<compile_context>
chip_gen: v6e
topology: v6e:2x2x1
jax: 0.10.0
libtpu: 0.0.40
codegen_flags: <defaults>
</compile_context>

<pallas_src>
import functools

import jax
import jax.numpy as jnp
from jax.experimental import pallas as pl
from jax.experimental.pallas import tpu as pltpu

_LANE = 128
_SUBLANE = 8
_NEG_INF = -1e30


def _softmax_last(logits):
    m = jnp.max(logits, axis=-1, keepdims=True)
    e = jnp.exp(logits - m)
    s = jnp.sum(e, axis=-1, keepdims=True)
    # EUP reciprocal; approx=True is the faster option when tolerance permits.
    return e * pl.reciprocal(s, approx=False)


def _elman_feedback_kernel(x_ref, h0_ref, w_in_ref, b_in_ref, w_h_ref, b_h_ref,
                           w3_ref, b3_ref, out_ref, ht_ref, p_s):
    S, TB, Din = x_ref.shape
    H = w_h_ref.shape[0]
    O = w3_ref.shape[1]
    Sm1 = S - 1

    w_in = w_in_ref[...]            # (Din, H)
    w_h = w_h_ref[...]              # (H, H)
    w3 = w3_ref[...]                # (H, O)
    b_in = b_in_ref[...]            # (1, H)
    b_h = b_h_ref[...]              # (1, H)
    b3 = b3_ref[...]                # (1, O)

    # ---- Hoisted input projection: one tall 2-D matmul over the S-1 consumed
    # timesteps, stored time-major so the loop reads contiguous leading slices.
    x2 = x_ref[pl.ds(0, Sm1)].reshape(Sm1 * TB, Din)
    p2 = jnp.dot(x2, w_in, preferred_element_type=jnp.float32) + (b_in + b_h)
    p_s[...] = p2.reshape(Sm1, TB, H)

    # ---- Sequential recurrence: only ht @ W_h + tanh on the critical path.
    # p_s[t] is consumed before being overwritten with the new hidden state,
    # so the same scratch doubles as per-step hidden-state storage.
    def body(t, ht):
        ht_new = jnp.tanh(
            p_s[t] + jnp.dot(ht, w_h, preferred_element_type=jnp.float32))
        p_s[t] = ht_new
        return ht_new

    unroll = Sm1 if Sm1 <= 8 else 8   # bounded unroll: LLO visibility w/o spills
    ht_final = jax.lax.fori_loop(0, Sm1, body, h0_ref[...], unroll=unroll)
    ht_ref[...] = ht_final.astype(ht_ref.dtype)

    # ---- Deferred feedback path: batched 2-D matmuls over all hidden states.
    h2 = p_s[...].reshape(Sm1 * TB, H)
    g2 = jnp.dot(h2, w_h, preferred_element_type=jnp.float32) + b_h
    y2 = _softmax_last(jnp.dot(h2, w3, preferred_element_type=jnp.float32) + b3)
    z2 = jnp.tanh(jnp.dot(y2, w_in, preferred_element_type=jnp.float32)
                  + b_in + g2)

    # ---- Output projection + softmax, written straight into out_ref.
    out_ref[0] = jnp.broadcast_to(_softmax_last(b3), (TB, O)).astype(out_ref.dtype)
    logits2 = jnp.dot(z2, w3, preferred_element_type=jnp.float32) + b3
    out_ref[pl.ds(1, Sm1)] = (
        _softmax_last(logits2).reshape(Sm1, TB, O).astype(out_ref.dtype))


def _round_up(n, m):
    return (n + m - 1) // m * m


def _pad_to(a, axis, size, value=0.0):
    pad = size - a.shape[axis]
    if pad == 0:
        return a
    widths = [(0, 0)] * a.ndim
    widths[axis] = (0, pad)
    return jnp.pad(a, widths, constant_values=value)


def _vmem_bytes_estimate(S, tb, dp, hp, op):
    """Rough per-tile f32 VMEM footprint (double-buffered I/O + scratch + temps)."""
    x_t, out_t, h0_t = S * tb * dp, S * tb * op, tb * hp
    weights = dp * hp + hp * hp + hp * op + 3 * max(hp, op)
    p_s = (S - 1) * tb * hp
    temps = (S - 1) * tb * (2 * hp + 2 * op)
    return 4 * (2 * (x_t + out_t + h0_t + weights) + p_s + temps)


@functools.partial(jax.jit, static_argnames=("tb",))
def elman_rnn_pred_feedback(x, h0, w_in, b_in, w_h, b_h, w3, b3, *, tb=8):
    B, S, Din = x.shape
    H = w_h.shape[0]
    O = w3.shape[1]
    if S < 2:
        raise ValueError("sequence length must be >= 2")
    if O != Din:
        raise ValueError("prediction feedback requires output_dim == input_dim")

    # Lane-dense feature dims (128 multiples) and a sublane-aligned batch tile.
    Dp = _round_up(Din, _LANE)
    Hp = _round_up(H, _LANE)
    Op = _round_up(O, _LANE)
    tb_eff = max(_SUBLANE, _round_up(min(tb, max(B, 1)), _SUBLANE))
    # Keep the per-tile footprint comfortable on every generation
    # (v7x physical VMEM is 64 MiB; default scoped limit 32 MiB).
    while (tb_eff > _SUBLANE and
           _vmem_bytes_estimate(S, tb_eff, Dp, Hp, Op) > 24 * 1024 * 1024):
        tb_eff = max(_SUBLANE, (tb_eff // 2) // _SUBLANE * _SUBLANE)
    Bp = _round_up(B, tb_eff)
    n_tiles = Bp // tb_eff

    # Time-major x for zero-cost leading-axis per-timestep views in the kernel.
    x_tm = _pad_to(_pad_to(jnp.transpose(x, (1, 0, 2)).astype(jnp.float32),
                           1, Bp), 2, Dp)                       # (S, Bp, Dp)
    h0_p = _pad_to(_pad_to(h0.astype(jnp.float32), 0, Bp), 1, Hp)
    w_in_p = _pad_to(_pad_to(w_in.astype(jnp.float32), 0, Dp), 1, Hp)
    b_in_p = _pad_to(b_in.astype(jnp.float32), 1, Hp)
    w_h_p = _pad_to(_pad_to(w_h.astype(jnp.float32), 0, Hp), 1, Hp)
    b_h_p = _pad_to(b_h.astype(jnp.float32), 1, Hp)
    w3_p = _pad_to(_pad_to(w3.astype(jnp.float32), 0, Hp), 1, Op)
    # Padded logit columns get a very negative bias so both softmaxes stay
    # exact on the real columns (their exp underflows to 0).
    b3_p = _pad_to(b3.astype(jnp.float32), 1, Op, value=_NEG_INF)

    out_tm, ht_p = pl.pallas_call(
        _elman_feedback_kernel,
        out_shape=(jax.ShapeDtypeStruct((S, Bp, Op), jnp.float32),
                   jax.ShapeDtypeStruct((Bp, Hp), jnp.float32)),
        grid=(n_tiles,),
        in_specs=[
            pl.BlockSpec((S, tb_eff, Dp), lambda i: (0, i, 0)),
            pl.BlockSpec((tb_eff, Hp), lambda i: (i, 0)),
            pl.BlockSpec((Dp, Hp), lambda i: (0, 0)),
            pl.BlockSpec((1, Hp), lambda i: (0, 0)),
            pl.BlockSpec((Hp, Hp), lambda i: (0, 0)),
            pl.BlockSpec((1, Hp), lambda i: (0, 0)),
            pl.BlockSpec((Hp, Op), lambda i: (0, 0)),
            pl.BlockSpec((1, Op), lambda i: (0, 0)),
        ],
        out_specs=(pl.BlockSpec((S, tb_eff, Op), lambda i: (0, i, 0)),
                   pl.BlockSpec((tb_eff, Hp), lambda i: (i, 0))),
        scratch_shapes=[
            pltpu.VMEM((S - 1, tb_eff, Hp), jnp.float32),  # p_s (reused as h_s)
        ],
        compiler_params=pltpu.CompilerParams(
            dimension_semantics=("parallel",)),
    )(x_tm, h0_p, w_in_p, b_in_p, w_h_p, b_h_p, w3_p, b3_p)

    out = jnp.transpose(out_tm, (1, 0, 2))[:B, :, :O]
    ht = ht_p[:B, :H]
    return out, ht


def _reference(x, h0, w_in, b_in, w_h, b_h, w3, b3):
    """Pure-JAX reference mirroring the PyTorch forward()."""
    B, S, _ = x.shape
    H = w_h.shape[0]
    ht = h0
    z = jnp.zeros((B, S, H), jnp.float32)
    for t in range(S - 1):
        ht = jnp.tanh(x[:, t, :] @ w_in + b_in[0] + ht @ w_h + b_h[0])
        yt = jax.nn.softmax(ht @ w3 + b3[0], axis=-1)
        htp1 = jnp.tanh(yt @ w_in + b_in[0] + ht @ w_h + b_h[0])
        z = z.at[:, t + 1, :].set(htp1)
    out = jax.nn.softmax(jnp.einsum('bsh,ho->bso', z, w3) + b3[0], axis=-1)
    return out, ht


if __name__ == "__main__":
    # Full-precision f32 matmuls in the XLA reference so tolerances stay tight.
    jax.config.update("jax_default_matmul_precision", "highest")

    input_dim, hidden_dim, output_dim = 16, 32, 16   # feedback needs O == Din
    S = 8

    key = jax.random.PRNGKey(0)
    ks = jax.random.split(key, 8)

    # Deterministic parameter init (uniform, torch-Linear-like bounds),
    # stored as (in_features, out_features) == torch weight transposed.
    def _init(k, shape, fan_in):
        bound = 1.0 / jnp.sqrt(fan_in)
        return jax.random.uniform(k, shape, jnp.float32, -bound, bound)

    w_in = _init(ks[2], (input_dim, hidden_dim), input_dim)
    b_in = _init(ks[3], (1, hidden_dim), input_dim)
    w_h = _init(ks[4], (hidden_dim, hidden_dim), hidden_dim)
    b_h = _init(ks[5], (1, hidden_dim), hidden_dim)
    w3 = _init(ks[6], (hidden_dim, output_dim), hidden_dim)
    b3 = _init(ks[7], (1, output_dim), hidden_dim)

    # B=2 exercises the batch-padding path (single tile); B=16 exercises a
    # two-tile parallel grid.
    for B in (2, 16):
        kx, kh = jax.random.split(jax.random.fold_in(key, B))
        x = jax.random.normal(kx, (B, S, input_dim), jnp.float32)
        h0 = jax.random.normal(kh, (B, hidden_dim), jnp.float32)

        out, ht = elman_rnn_pred_feedback(x, h0, w_in, b_in, w_h, b_h, w3, b3)
        jax.block_until_ready((out, ht))

        out_ref, ht_ref = _reference(x, h0, w_in, b_in, w_h, b_h, w3, b3)
        assert out.shape == (B, S, output_dim) and ht.shape == (B, hidden_dim)
        assert jnp.allclose(out, out_ref, atol=2e-5, rtol=2e-5), (
            f"out mismatch (B={B}): {jnp.max(jnp.abs(out - out_ref))}")
        assert jnp.allclose(ht, ht_ref, atol=2e-5, rtol=2e-5), (
            f"ht mismatch (B={B}): {jnp.max(jnp.abs(ht - ht_ref))}")

    print("KERNEL_OK")
</pallas_src>

<mosaic_0001>
module attributes {stable_mosaic.version = 11 : i64} {
  func.func @_elman_feedback_kernel(%arg0: i32, %arg1: memref<8x8x128xf32, #tpu.memory_space<vmem>>, %arg2: memref<8x128xf32, #tpu.memory_space<vmem>>, %arg3: memref<128x128xf32, #tpu.memory_space<vmem>>, %arg4: memref<1x128xf32, #tpu.memory_space<vmem>>, %arg5: memref<128x128xf32, #tpu.memory_space<vmem>>, %arg6: memref<1x128xf32, #tpu.memory_space<vmem>>, %arg7: memref<128x128xf32, #tpu.memory_space<vmem>>, %arg8: memref<1x128xf32, #tpu.memory_space<vmem>>, %arg9: memref<8x8x128xf32, #tpu.memory_space<vmem>>, %arg10: memref<8x128xf32, #tpu.memory_space<vmem>>, %arg11: memref<7x8x128xf32, #tpu.memory_space<vmem>>) attributes {dimension_semantics = [#tpu.dimension_semantics<parallel>], iteration_bounds = array<i64: 1>, scalar_prefetch = 0 : i64, scratch_operands = 1 : i64, tpu.core_type = #tpu.core_type<tc>, window_params = [{transform_indices = @transform_0, window_bounds = array<i64: 8, 8, 128>}, {transform_indices = @transform_1, window_bounds = array<i64: 8, 128>}, {pipeline_mode = #tpu.pipeline_mode<synchronous>, transform_indices = @transform_2, window_bounds = array<i64: 128, 128>}, {pipeline_mode = #tpu.pipeline_mode<synchronous>, transform_indices = @transform_3, window_bounds = array<i64: 1, 128>}, {pipeline_mode = #tpu.pipeline_mode<synchronous>, transform_indices = @transform_4, window_bounds = array<i64: 128, 128>}, {pipeline_mode = #tpu.pipeline_mode<synchronous>, transform_indices = @transform_5, window_bounds = array<i64: 1, 128>}, {pipeline_mode = #tpu.pipeline_mode<synchronous>, transform_indices = @transform_6, window_bounds = array<i64: 128, 128>}, {pipeline_mode = #tpu.pipeline_mode<synchronous>, transform_indices = @transform_7, window_bounds = array<i64: 1, 128>}, {transform_indices = @transform_8, window_bounds = array<i64: 8, 8, 128>}, {transform_indices = @transform_9, window_bounds = array<i64: 8, 128>}]} {
    %c0 = arith.constant 0 : index
    %c0_0 = arith.constant 0 : index
    %0 = vector.load %arg3[%c0, %c0_0] : memref<128x128xf32, #tpu.memory_space<vmem>>, vector<128x128xf32>
    %c0_1 = arith.constant 0 : index
    %c0_2 = arith.constant 0 : index
    %1 = vector.load %arg5[%c0_1, %c0_2] : memref<128x128xf32, #tpu.memory_space<vmem>>, vector<128x128xf32>
    %c0_3 = arith.constant 0 : index
    %c0_4 = arith.constant 0 : index
    %2 = vector.load %arg7[%c0_3, %c0_4] : memref<128x128xf32, #tpu.memory_space<vmem>>, vector<128x128xf32>
    %c0_5 = arith.constant 0 : index
    %c0_6 = arith.constant 0 : index
    %3 = vector.load %arg4[%c0_5, %c0_6] : memref<1x128xf32, #tpu.memory_space<vmem>>, vector<1x128xf32>
    %c0_7 = arith.constant 0 : index
    %c0_8 = arith.constant 0 : index
    %4 = vector.load %arg6[%c0_7, %c0_8] : memref<1x128xf32, #tpu.memory_space<vmem>>, vector<1x128xf32>
    %c0_9 = arith.constant 0 : index
    %c0_10 = arith.constant 0 : index
    %5 = vector.load %arg8[%c0_9, %c0_10] : memref<1x128xf32, #tpu.memory_space<vmem>>, vector<1x128xf32>
    %c0_11 = arith.constant 0 : index
    %c0_12 = arith.constant 0 : index
    %c0_13 = arith.constant 0 : index
    %6 = vector.load %arg1[%c0_11, %c0_12, %c0_13] : memref<8x8x128xf32, #tpu.memory_space<vmem>>, vector<7x8x128xf32>
    %7 = vector.shape_cast %6 : vector<7x8x128xf32> to vector<56x128xf32>
    %cst = arith.constant dense<0.000000e+00> : vector<56x128xf32>
    %8 = tpu.matmul %7, %0, %cst {dimension_numbers = #tpu.dot_dimension_numbers<[1], [0], [0], [1], [0, 0, 1, 1], [], []>, precision = #tpu.contract_precision<fp32>} : vector<56x128xf32>, vector<128x128xf32>, vector<56x128xf32> -> vector<56x128xf32>
    %9 = arith.addf %3, %4 : vector<1x128xf32>
    %10 = vector.broadcast %9 : vector<1x128xf32> to vector<56x128xf32>
    %11 = arith.addf %8, %10 : vector<56x128xf32>
    %12 = vector.shape_cast %11 : vector<56x128xf32> to vector<7x8x128xf32>
    %c0_14 = arith.constant 0 : index
    %c0_15 = arith.constant 0 : index
    %c0_16 = arith.constant 0 : index
    %13 = vector.load %arg11[%c0_14, %c0_15, %c0_16] : memref<7x8x128xf32, #tpu.memory_space<vmem>>, vector<7x8x128xf32>
    tpu.vector_store %arg11[%c0_14, %c0_15, %c0_16], %12 {strides = array<i32>} : memref<7x8x128xf32, #tpu.memory_space<vmem>>, vector<7x8x128xf32>,
    %c0_17 = arith.constant 0 : index
    %c0_18 = arith.constant 0 : index
    %14 = vector.load %arg2[%c0_17, %c0_18] : memref<8x128xf32, #tpu.memory_space<vmem>>, vector<8x128xf32>
    %c0_i32 = arith.constant 0 : i32
    %15 = arith.index_cast %c0_i32 : i32 to index
    %c0_19 = arith.constant 0 : index
    %c0_20 = arith.constant 0 : index
    %16 = vector.load %arg11[%15, %c0_19, %c0_20] : memref<7x8x128xf32, #tpu.memory_space<vmem>>, vector<1x8x128xf32>
    %17 = vector.shape_cast %16 : vector<1x8x128xf32> to vector<8x128xf32>
    %cst_21 = arith.constant dense<0.000000e+00> : vector<8x128xf32>
    %18 = tpu.matmul %14, %1, %cst_21 {dimension_numbers = #tpu.dot_dimension_numbers<[1], [0], [0], [1], [0, 0, 1, 1], [], []>, precision = #tpu.contract_precision<fp32>} : vector<8x128xf32>, vector<128x128xf32>, vector<8x128xf32> -> vector<8x128xf32>
    %19 = arith.addf %17, %18 : vector<8x128xf32>
    %20 = math.tanh %19 : vector<8x128xf32>
    %21 = arith.index_cast %c0_i32 : i32 to index
    %c0_22 = arith.constant 0 : index
    %c0_23 = arith.constant 0 : index
    %22 = vector.load %arg11[%21, %c0_22, %c0_23] : memref<7x8x128xf32, #tpu.memory_space<vmem>>, vector<1x8x128xf32>
    %23 = vector.shape_cast %22 : vector<1x8x128xf32> to vector<8x128xf32>
    %24 = vector.shape_cast %20 : vector<8x128xf32> to vector<1x8x128xf32>
    tpu.vector_store %arg11[%21, %c0_22, %c0_23], %24 {strides = array<i32>} : memref<7x8x128xf32, #tpu.memory_space<vmem>>, vector<1x8x128xf32>,
    %c1_i32 = arith.constant 1 : i32
    %25 = arith.index_cast %c1_i32 : i32 to index
    %c0_24 = arith.constant 0 : index
    %c0_25 = arith.constant 0 : index
    %26 = vector.load %arg11[%25, %c0_24, %c0_25] : memref<7x8x128xf32, #tpu.memory_space<vmem>>, vector<1x8x128xf32>
    %27 = vector.shape_cast %26 : vector<1x8x128xf32> to vector<8x128xf32>
    %cst_26 = arith.constant dense<0.000000e+00> : vector<8x128xf32>
    %28 = tpu.matmul %20, %1, %cst_26 {dimension_numbers = #tpu.dot_dimension_numbers<[1], [0], [0], [1], [0, 0, 1, 1], [], []>, precision = #tpu.contract_precision<fp32>} : vector<8x128xf32>, vector<128x128xf32>, vector<8x128xf32> -> vector<8x128xf32>
    %29 = arith.addf %27, %28 : vector<8x128xf32>
    %30 = math.tanh %29 : vector<8x128xf32>
    %31 = arith.index_cast %c1_i32 : i32 to index
    %c0_27 = arith.constant 0 : index
    %c0_28 = arith.constant 0 : index
    %32 = vector.load %arg11[%31, %c0_27, %c0_28] : memref<7x8x128xf32, #tpu.memory_space<vmem>>, vector<1x8x128xf32>
    %33 = vector.shape_cast %32 : vector<1x8x128xf32> to vector<8x128xf32>
    %34 = vector.shape_cast %30 : vector<8x128xf32> to vector<1x8x128xf32>
    tpu.vector_store %arg11[%31, %c0_27, %c0_28], %34 {strides = array<i32>} : memref<7x8x128xf32, #tpu.memory_space<vmem>>, vector<1x8x128xf32>,
    %c2_i32 = arith.constant 2 : i32
    %35 = arith.index_cast %c2_i32 : i32 to index
    %c0_29 = arith.constant 0 : index
    %c0_30 = arith.constant 0 : index
    %36 = vector.load %arg11[%35, %c0_29, %c0_30] : memref<7x8x128xf32, #tpu.memory_space<vmem>>, vector<1x8x128xf32>
    %37 = vector.shape_cast %36 : vector<1x8x128xf32> to vector<8x128xf32>
    %cst_31 = arith.constant dense<0.000000e+00> : vector<8x128xf32>
    %38 = tpu.matmul %30, %1, %cst_31 {dimension_numbers = #tpu.dot_dimension_numbers<[1], [0], [0], [1], [0, 0, 1, 1], [], []>, precision = #tpu.contract_precision<fp32>} : vector<8x128xf32>, vector<128x128xf32>, vector<8x128xf32> -> vector<8x128xf32>
    %39 = arith.addf %37, %38 : vector<8x128xf32>
    %40 = math.tanh %39 : vector<8x128xf32>
    %41 = arith.index_cast %c2_i32 : i32 to index
    %c0_32 = arith.constant 0 : index
    %c0_33 = arith.constant 0 : index
    %42 = vector.load %arg11[%41, %c0_32, %c0_33] : memref<7x8x128xf32, #tpu.memory_space<vmem>>, vector<1x8x128xf32>
    %43 = vector.shape_cast %42 : vector<1x8x128xf32> to vector<8x128xf32>
    %44 = vector.shape_cast %40 : vector<8x128xf32> to vector<1x8x128xf32>
    tpu.vector_store %arg11[%41, %c0_32, %c0_33], %44 {strides = array<i32>} : memref<7x8x128xf32, #tpu.memory_space<vmem>>, vector<1x8x128xf32>,
    %c3_i32 = arith.constant 3 : i32
    %45 = arith.index_cast %c3_i32 : i32 to index
    %c0_34 = arith.constant 0 : index
    %c0_35 = arith.constant 0 : index
    %46 = vector.load %arg11[%45, %c0_34, %c0_35] : memref<7x8x128xf32, #tpu.memory_space<vmem>>, vector<1x8x128xf32>
    %47 = vector.shape_cast %46 : vector<1x8x128xf32> to vector<8x128xf32>
    %cst_36 = arith.constant dense<0.000000e+00> : vector<8x128xf32>
    %48 = tpu.matmul %40, %1, %cst_36 {dimension_numbers = #tpu.dot_dimension_numbers<[1], [0], [0], [1], [0, 0, 1, 1], [], []>, precision = #tpu.contract_precision<fp32>} : vector<8x128xf32>, vector<128x128xf32>, vector<8x128xf32> -> vector<8x128xf32>
    %49 = arith.addf %47, %48 : vector<8x128xf32>
    %50 = math.tanh %49 : vector<8x128xf32>
    %51 = arith.index_cast %c3_i32 : i32 to index
    %c0_37 = arith.constant 0 : index
    %c0_38 = arith.constant 0 : index
    %52 = vector.load %arg11[%51, %c0_37, %c0_38] : memref<7x8x128xf32, #tpu.memory_space<vmem>>, vector<1x8x128xf32>
    %53 = vector.shape_cast %52 : vector<1x8x128xf32> to vector<8x128xf32>
    %54 = vector.shape_cast %50 : vector<8x128xf32> to vector<1x8x128xf32>
    tpu.vector_store %arg11[%51, %c0_37, %c0_38], %54 {strides = array<i32>} : memref<7x8x128xf32, #tpu.memory_space<vmem>>, vector<1x8x128xf32>,
    %c4_i32 = arith.constant 4 : i32
    %55 = arith.index_cast %c4_i32 : i32 to index
    %c0_39 = arith.constant 0 : index
    %c0_40 = arith.constant 0 : index
    %56 = vector.load %arg11[%55, %c0_39, %c0_40] : memref<7x8x128xf32, #tpu.memory_space<vmem>>, vector<1x8x128xf32>
    %57 = vector.shape_cast %56 : vector<1x8x128xf32> to vector<8x128xf32>
    %cst_41 = arith.constant dense<0.000000e+00> : vector<8x128xf32>
    %58 = tpu.matmul %50, %1, %cst_41 {dimension_numbers = #tpu.dot_dimension_numbers<[1], [0], [0], [1], [0, 0, 1, 1], [], []>, precision = #tpu.contract_precision<fp32>} : vector<8x128xf32>, vector<128x128xf32>, vector<8x128xf32> -> vector<8x128xf32>
    %59 = arith.addf %57, %58 : vector<8x128xf32>
    %60 = math.tanh %59 : vector<8x128xf32>
    %61 = arith.index_cast %c4_i32 : i32 to index
    %c0_42 = arith.constant 0 : index
    %c0_43 = arith.constant 0 : index
    %62 = vector.load %arg11[%61, %c0_42, %c0_43] : memref<7x8x128xf32, #tpu.memory_space<vmem>>, vector<1x8x128xf32>
    %63 = vector.shape_cast %62 : vector<1x8x128xf32> to vector<8x128xf32>
    %64 = vector.shape_cast %60 : vector<8x128xf32> to vector<1x8x128xf32>
    tpu.vector_store %arg11[%61, %c0_42, %c0_43], %64 {strides = array<i32>} : memref<7x8x128xf32, #tpu.memory_space<vmem>>, vector<1x8x128xf32>,
    %c5_i32 = arith.constant 5 : i32
    %65 = arith.index_cast %c5_i32 : i32 to index
    %c0_44 = arith.constant 0 : index
    %c0_45 = arith.constant 0 : index
    %66 = vector.load %arg11[%65, %c0_44, %c0_45] : memref<7x8x128xf32, #tpu.memory_space<vmem>>, vector<1x8x128xf32>
    %67 = vector.shape_cast %66 : vector<1x8x128xf32> to vector<8x128xf32>
    %cst_46 = arith.constant dense<0.000000e+00> : vector<8x128xf32>
    %68 = tpu.matmul %60, %1, %cst_46 {dimension_numbers = #tpu.dot_dimension_numbers<[1], [0], [0], [1], [0, 0, 1, 1], [], []>, precision = #tpu.contract_precision<fp32>} : vector<8x128xf32>, vector<128x128xf32>, vector<8x128xf32> -> vector<8x128xf32>
    %69 = arith.addf %67, %68 : vector<8x128xf32>
    %70 = math.tanh %69 : vector<8x128xf32>
    %71 = arith.index_cast %c5_i32 : i32 to index
    %c0_47 = arith.constant 0 : index
    %c0_48 = arith.constant 0 : index
    %72 = vector.load %arg11[%71, %c0_47, %c0_48] : memref<7x8x128xf32, #tpu.memory_space<vmem>>, vector<1x8x128xf32>
    %73 = vector.shape_cast %72 : vector<1x8x128xf32> to vector<8x128xf32>
    %74 = vector.shape_cast %70 : vector<8x128xf32> to vector<1x8x128xf32>
    tpu.vector_store %arg11[%71, %c0_47, %c0_48], %74 {strides = array<i32>} : memref<7x8x128xf32, #tpu.memory_space<vmem>>, vector<1x8x128xf32>,
    %c6_i32 = arith.constant 6 : i32
    %75 = arith.index_cast %c6_i32 : i32 to index
    %c0_49 = arith.constant 0 : index
    %c0_50 = arith.constant 0 : index
    %76 = vector.load %arg11[%75, %c0_49, %c0_50] : memref<7x8x128xf32, #tpu.memory_space<vmem>>, vector<1x8x128xf32>
    %77 = vector.shape_cast %76 : vector<1x8x128xf32> to vector<8x128xf32>
    %cst_51 = arith.constant dense<0.000000e+00> : vector<8x128xf32>
    %78 = tpu.matmul %70, %1, %cst_51 {dimension_numbers = #tpu.dot_dimension_numbers<[1], [0], [0], [1], [0, 0, 1, 1], [], []>, precision = #tpu.contract_precision<fp32>} : vector<8x128xf32>, vector<128x128xf32>, vector<8x128xf32> -> vector<8x128xf32>
    %79 = arith.addf %77, %78 : vector<8x128xf32>
    %80 = math.tanh %79 : vector<8x128xf32>
    %81 = arith.index_cast %c6_i32 : i32 to index
    %c0_52 = arith.constant 0 : index
    %c0_53 = arith.constant 0 : index
    %82 = vector.load %arg11[%81, %c0_52, %c0_53] : memref<7x8x128xf32, #tpu.memory_space<vmem>>, vector<1x8x128xf32>
    %83 = vector.shape_cast %82 : vector<1x8x128xf32> to vector<8x128xf32>
    %84 = vector.shape_cast %80 : vector<8x128xf32> to vector<1x8x128xf32>
    tpu.vector_store %arg11[%81, %c0_52, %c0_53], %84 {strides = array<i32>} : memref<7x8x128xf32, #tpu.memory_space<vmem>>, vector<1x8x128xf32>,
    %c7_i32 = arith.constant 7 : i32
    %c0_54 = arith.constant 0 : index
    %c0_55 = arith.constant 0 : index
    %85 = vector.load %arg10[%c0_54, %c0_55] : memref<8x128xf32, #tpu.memory_space<vmem>>, vector<8x128xf32>
    tpu.vector_store %arg10[%c0_54, %c0_55], %80 {strides = array<i32>} : memref<8x128xf32, #tpu.memory_space<vmem>>, vector<8x128xf32>,
    %c0_56 = arith.constant 0 : index
    %c0_57 = arith.constant 0 : index
    %c0_58 = arith.constant 0 : index
    %86 = vector.load %arg11[%c0_56, %c0_57, %c0_58] : memref<7x8x128xf32, #tpu.memory_space<vmem>>, vector<7x8x128xf32>
    %87 = vector.shape_cast %86 : vector<7x8x128xf32> to vector<56x128xf32>
    %cst_59 = arith.constant dense<0.000000e+00> : vector<56x128xf32>
    %88 = tpu.matmul %87, %1, %cst_59 {dimension_numbers = #tpu.dot_dimension_numbers<[1], [0], [0], [1], [0, 0, 1, 1], [], []>, precision = #tpu.contract_precision<fp32>} : vector<56x128xf32>, vector<128x128xf32>, vector<56x128xf32> -> vector<56x128xf32>
    %89 = vector.broadcast %4 : vector<1x128xf32> to vector<56x128xf32>
    %90 = arith.addf %88, %89 : vector<56x128xf32>
    %cst_60 = arith.constant dense<0.000000e+00> : vector<56x128xf32>
    %91 = tpu.matmul %87, %2, %cst_60 {dimension_numbers = #tpu.dot_dimension_numbers<[1], [0], [0], [1], [0, 0, 1, 1], [], []>, precision = #tpu.contract_precision<fp32>} : vector<56x128xf32>, vector<128x128xf32>, vector<56x128xf32> -> vector<56x128xf32>
    %92 = vector.broadcast %5 : vector<1x128xf32> to vector<56x128xf32>
    %93 = arith.addf %91, %92 : vector<56x128xf32>
    %cst_61 = arith.constant dense<0xFF800000> : vector<56xf32>
    %94 = vector.multi_reduction <maximumf>, %93, %cst_61 [1] : vector<56x128xf32> to vector<56xf32>
    %95 = vector.shape_cast %94 : vector<56xf32> to vector<56x1xf32>
    %96 = vector.broadcast %95 : vector<56x1xf32> to vector<56x128xf32>
    %97 = arith.subf %93, %96 : vector<56x128xf32>
    %98 = math.exp %97 : vector<56x128xf32>
    %cst_62 = arith.constant dense<0.000000e+00> : vector<56xf32>
    %99 = vector.multi_reduction <add>, %98, %cst_62 [1] : vector<56x128xf32> to vector<56xf32>
    %100 = vector.shape_cast %99 : vector<56xf32> to vector<56x1xf32>
    %101 = tpu.reciprocal %100 : vector<56x1xf32> -> vector<56x1xf32>
    %102 = vector.broadcast %101 : vector<56x1xf32> to vector<56x128xf32>
    %103 = arith.mulf %98, %102 : vector<56x128xf32>
    %cst_63 = arith.constant dense<0.000000e+00> : vector<56x128xf32>
    %104 = tpu.matmul %103, %0, %cst_63 {dimension_numbers = #tpu.dot_dimension_numbers<[1], [0], [0], [1], [0, 0, 1, 1], [], []>, precision = #tpu.contract_precision<fp32>} : vector<56x128xf32>, vector<128x128xf32>, vector<56x128xf32> -> vector<56x128xf32>
    %105 = vector.broadcast %3 : vector<1x128xf32> to vector<56x128xf32>
    %106 = arith.addf %104, %105 : vector<56x128xf32>
    %107 = arith.addf %106, %90 : vector<56x128xf32>
    %108 = math.tanh %107 : vector<56x128xf32>
    %cst_64 = arith.constant dense<0xFF800000> : vector<1xf32>
    %109 = vector.multi_reduction <maximumf>, %5, %cst_64 [1] : vector<1x128xf32> to vector<1xf32>
    %110 = vector.shape_cast %109 : vector<1xf32> to vector<1x1xf32>
    %111 = vector.broadcast %110 : vector<1x1xf32> to vector<1x128xf32>
    %112 = arith.subf %5, %111 : vector<1x128xf32>
    %113 = math.exp %112 : vector<1x128xf32>
    %cst_65 = arith.constant dense<0.000000e+00> : vector<1xf32>
    %114 = vector.multi_reduction <add>, %113, %cst_65 [1] : vector<1x128xf32> to vector<1xf32>
    %115 = vector.shape_cast %114 : vector<1xf32> to vector<1x1xf32>
    %116 = tpu.reciprocal %115 : vector<1x1xf32> -> vector<1x1xf32>
    %117 = vector.broadcast %116 : vector<1x1xf32> to vector<1x128xf32>
    %118 = arith.mulf %113, %117 : vector<1x128xf32>
    %119 = vector.shape_cast %118 : vector<1x128xf32> to vector<1x128xf32>
    %120 = vector.broadcast %119 : vector<1x128xf32> to vector<8x128xf32>
    %c0_66 = arith.constant 0 : index
    %c0_67 = arith.constant 0 : index
    %c0_68 = arith.constant 0 : index
    %121 = vector.load %arg9[%c0_66, %c0_67, %c0_68] : memref<8x8x128xf32, #tpu.memory_space<vmem>>, vector<1x8x128xf32>
    %122 = vector.shape_cast %121 : vector<1x8x128xf32> to vector<8x128xf32>
    %123 = vector.shape_cast %120 : vector<8x128xf32> to vector<1x8x128xf32>
    tpu.vector_store %arg9[%c0_66, %c0_67, %c0_68], %123 {strides = array<i32>} : memref<8x8x128xf32, #tpu.memory_space<vmem>>, vector<1x8x128xf32>,
    %cst_69 = arith.constant dense<0.000000e+00> : vector<56x128xf32>
    %124 = tpu.matmul %108, %2, %cst_69 {dimension_numbers = #tpu.dot_dimension_numbers<[1], [0], [0], [1], [0, 0, 1, 1], [], []>, precision = #tpu.contract_precision<fp32>} : vector<56x128xf32>, vector<128x128xf32>, vector<56x128xf32> -> vector<56x128xf32>
    %125 = vector.broadcast %5 : vector<1x128xf32> to vector<56x128xf32>
    %126 = arith.addf %124, %125 : vector<56x128xf32>
    %cst_70 = arith.constant dense<0xFF800000> : vector<56xf32>
    %127 = vector.multi_reduction <maximumf>, %126, %cst_70 [1] : vector<56x128xf32> to vector<56xf32>
    %128 = vector.shape_cast %127 : vector<56xf32> to vector<56x1xf32>
    %129 = vector.broadcast %128 : vector<56x1xf32> to vector<56x128xf32>
    %130 = arith.subf %126, %129 : vector<56x128xf32>
    %131 = math.exp %130 : vector<56x128xf32>
    %cst_71 = arith.constant dense<0.000000e+00> : vector<56xf32>
    %132 = vector.multi_reduction <add>, %131, %cst_71 [1] : vector<56x128xf32> to vector<56xf32>
    %133 = vector.shape_cast %132 : vector<56xf32> to vector<56x1xf32>
    %134 = tpu.reciprocal %133 : vector<56x1xf32> -> vector<56x1xf32>
    %135 = vector.broadcast %134 : vector<56x1xf32> to vector<56x128xf32>
    %136 = arith.mulf %131, %135 : vector<56x128xf32>
    %137 = vector.shape_cast %136 : vector<56x128xf32> to vector<7x8x128xf32>
    %c1 = arith.constant 1 : index
    %c0_72 = arith.constant 0 : index
    %c0_73 = arith.constant 0 : index
    %138 = vector.load %arg9[%c1, %c0_72, %c0_73] : memref<8x8x128xf32, #tpu.memory_space<vmem>>, vector<7x8x128xf32>
    tpu.vector_store %arg9[%c1, %c0_72, %c0_73], %137 {strides = array<i32>} : memref<8x8x128xf32, #tpu.memory_space<vmem>>, vector<7x8x128xf32>,
    return
  }
  func.func @transform_0(%arg0: i32) -> (i32, i32, i32) {
    %c0_i32 = arith.constant 0 : i32
    %c0_i32_0 = arith.constant 0 : i32
    %c0_i32_1 = arith.constant 0 : i32
    return %c0_i32, %arg0, %c0_i32_0 : i32, i32, i32
  }
  func.func @transform_1(%arg0: i32) -> (i32, i32) {
    %c0_i32 = arith.constant 0 : i32
    %c0_i32_0 = arith.constant 0 : i32
    return %arg0, %c0_i32 : i32, i32
  }
  func.func @transform_2(%arg0: i32) -> (i32, i32) {
    %c0_i32 = arith.constant 0 : i32
    %c0_i32_0 = arith.constant 0 : i32
    %c0_i32_1 = arith.constant 0 : i32
    return %c0_i32, %c0_i32_0 : i32, i32
  }
  func.func @transform_3(%arg0: i32) -> (i32, i32) {
    %c0_i32 = arith.constant 0 : i32
    %c0_i32_0 = arith.constant 0 : i32
    %c0_i32_1 = arith.constant 0 : i32
    return %c0_i32, %c0_i32_0 : i32, i32
  }
  func.func @transform_4(%arg0: i32) -> (i32, i32) {
    %c0_i32 = arith.constant 0 : i32
    %c0_i32_0 = arith.constant 0 : i32
    %c0_i32_1 = arith.constant 0 : i32
    return %c0_i32, %c0_i32_0 : i32, i32
  }
  func.func @transform_5(%arg0: i32) -> (i32, i32) {
    %c0_i32 = arith.constant 0 : i32
    %c0_i32_0 = arith.constant 0 : i32
    %c0_i32_1 = arith.constant 0 : i32
    return %c0_i32, %c0_i32_0 : i32, i32
  }
  func.func @transform_6(%arg0: i32) -> (i32, i32) {
    %c0_i32 = arith.constant 0 : i32
    %c0_i32_0 = arith.constant 0 : i32
    %c0_i32_1 = arith.constant 0 : i32
    return %c0_i32, %c0_i32_0 : i32, i32
  }
  func.func @transform_7(%arg0: i32) -> (i32, i32) {
    %c0_i32 = arith.constant 0 : i32
    %c0_i32_0 = arith.constant 0 : i32
    %c0_i32_1 = arith.constant 0 : i32
    return %c0_i32, %c0_i32_0 : i32, i32
  }
  func.func @transform_8(%arg0: i32) -> (i32, i32, i32) {
    %c0_i32 = arith.constant 0 : i32
    %c0_i32_0 = arith.constant 0 : i32
    %c0_i32_1 = arith.constant 0 : i32
    return %c0_i32, %arg0, %c0_i32_0 : i32, i32, i32
  }
  func.func @transform_9(%arg0: i32) -> (i32, i32) {
    %c0_i32 = arith.constant 0 : i32
    %c0_i32_0 = arith.constant 0 : i32
    return %arg0, %c0_i32 : i32, i32
  }
}

</mosaic_0001>

<llo_original>
// kernel: elman_rnn_pred_feedback.1
$region0: #{elman_rnn_pred_feedback.1}
  #allocation0 [shape = 'u32[]', space=smem, size = 0x4, offset = 0x4, fixed_abs, tag = 'smem constant byte address 0x4 - core index']
  #allocation1 [shape = 'u32[144,128]{1,0:T(1,128)}', space=vmem, size = 0x12000, scoped, tag = 'internal scratch']
  #allocation2 [shape = 'f32[7,8,128]{2,1,0:T(8,128)}', space=vmem, size = 0x7000, scoped, tag = 'scratch operand']
  %s0 = inlined_call_operand.vmem [shape: f32[8,8,128], index: 0, kind: input, shape index: {}]
  %s1 = inlined_call_operand.vmem [shape: f32[8,128], index: 1, kind: input, shape index: {}]
  %s2 = inlined_call_operand.vmem [shape: f32[128,128], index: 2, kind: input, shape index: {}]
  %s3 = inlined_call_operand.vmem [shape: f32[1,128], index: 3, kind: input, shape index: {}]
  %s4 = inlined_call_operand.vmem [shape: f32[128,128], index: 4, kind: input, shape index: {}]
  %s5 = inlined_call_operand.vmem [shape: f32[1,128], index: 5, kind: input, shape index: {}]
  %s6 = inlined_call_operand.vmem [shape: f32[128,128], index: 6, kind: input, shape index: {}]
  %s7 = inlined_call_operand.vmem [shape: f32[1,128], index: 7, kind: input, shape index: {}]
  %s8 = inlined_call_operand.vmem [shape: f32[8,8,128], index: 8, kind: output, shape index: {0}]
  %s9 = inlined_call_operand.vmem [shape: f32[8,128], index: 9, kind: output, shape index: {1}]
  %10 = xla_tuple %s8, %s9
  %s11 = sld [smem:[#allocation0]]
  $region50: #{elman_rnn_pred_feedback.1} parent=0
    _
  %s13 = ssub.s32 1, %s11
  %s14 = scalar_select 0, %s13, %s11
  // Predicated region
  $region2: #{elman_rnn_pred_feedback.1} parent=0 // pred_check
    _
  $region3: #{elman_rnn_pred_feedback.1} parent=0 // pred_check_branch
    %16 = sbr.rel (0) target = $region5
  $region4: #{elman_rnn_pred_feedback.1} parent=0 // pred_region
    _
  $region5: #{elman_rnn_pred_feedback.1} parent=0 // pred_fallthru
    _
  // Predicated region
  $region6: #{elman_rnn_pred_feedback.1} parent=0 // pred_check
    _
  $region7: #{elman_rnn_pred_feedback.1} parent=0 // pred_check_branch
    %18 = sbr.rel (0) target = $region9
  $region8: #{elman_rnn_pred_feedback.1} parent=0 // pred_region
    _
  $region9: #{elman_rnn_pred_feedback.1} parent=0 // pred_fallthru
    _
  // Predicated region
  $region10: #{elman_rnn_pred_feedback.1} parent=0 // pred_check
    _
  $region11: #{elman_rnn_pred_feedback.1} parent=0 // pred_check_branch
    %20 = sbr.rel (0) target = $region13
  $region12: #{elman_rnn_pred_feedback.1} parent=0 // pred_region
    _
  $region13: #{elman_rnn_pred_feedback.1} parent=0 // pred_fallthru
    _
  // Predicated region
  $region14: #{elman_rnn_pred_feedback.1} parent=0 // pred_check
    _
  $region15: #{elman_rnn_pred_feedback.1} parent=0 // pred_check_branch
    %22 = sbr.rel (0) target = $region17
  $region16: #{elman_rnn_pred_feedback.1} parent=0 // pred_region
    _
  $region17: #{elman_rnn_pred_feedback.1} parent=0 // pred_fallthru
    _
  // Predicated region
  $region18: #{elman_rnn_pred_feedback.1} parent=0 // pred_check
    _
  $region19: #{elman_rnn_pred_feedback.1} parent=0 // pred_check_branch
    %24 = sbr.rel (0) target = $region21
  $region20: #{elman_rnn_pred_feedback.1} parent=0 // pred_region
    _
  $region21: #{elman_rnn_pred_feedback.1} parent=0 // pred_fallthru
    _
  // Predicated region
  $region22: #{elman_rnn_pred_feedback.1} parent=0 // pred_check
    _
  $region23: #{elman_rnn_pred_feedback.1} parent=0 // pred_check_branch
    %26 = sbr.rel (0) target = $region25
  $region24: #{elman_rnn_pred_feedback.1} parent=0 // pred_region
    _
  $region25: #{elman_rnn_pred_feedback.1} parent=0 // pred_fallthru
    _
  // Predicated region
  $region26: #{elman_rnn_pred_feedback.1} parent=0 // pred_check
    _
  $region27: #{elman_rnn_pred_feedback.1} parent=0 // pred_check_branch
    %28 = sbr.rel (0) target = $region29
  $region28: #{elman_rnn_pred_feedback.1} parent=0 // pred_region
    _
  $region29: #{elman_rnn_pred_feedback.1} parent=0 // pred_fallthru
    _
  // Predicated region
  $region30: #{elman_rnn_pred_feedback.1} parent=0 // pred_check
    _
  $region31: #{elman_rnn_pred_feedback.1} parent=0 // pred_check_branch
    %30 = sbr.rel (0) target = $region33
  $region32: #{elman_rnn_pred_feedback.1} parent=0 // pred_region
    _
  $region33: #{elman_rnn_pred_feedback.1} parent=0 // pred_fallthru
    _
  %v31 = vld [vmem:[%s2] sm:$0xff]
  %v32 = vld [vmem:[%s2 + $0x8] sm:$0xff]
  %v33 = vld [vmem:[%s2 + $0x10] sm:$0xff]
  %v34 = vld [vmem:[%s2 + $0x18] sm:$0xff]
  %v35 = vld [vmem:[%s2 + $0x20] sm:$0xff]
  %v36 = vld [vmem:[%s2 + $0x28] sm:$0xff]
  %v37 = vld [vmem:[%s2 + $0x30] sm:$0xff]
  %v38 = vld [vmem:[%s2 + $0x38] sm:$0xff]
  %v39 = vld [vmem:[%s2 + $0x40] sm:$0xff]
  %v40 = vld [vmem:[%s2 + $0x48] sm:$0xff]
  %v41 = vld [vmem:[%s2 + $0x50] sm:$0xff]
  %v42 = vld [vmem:[%s2 + $0x58] sm:$0xff]
  %v43 = vld [vmem:[%s2 + $0x60] sm:$0xff]
  %v44 = vld [vmem:[%s2 + $0x68] sm:$0xff]
  %v45 = vld [vmem:[%s2 + $0x70] sm:$0xff]
  %v46 = vld [vmem:[%s2 + $0x78] sm:$0xff]
  %v47 = vld [vmem:[%s4] sm:$0xff]
  %v48 = vld [vmem:[%s4 + $0x8] sm:$0xff]
  %v49 = vld [vmem:[%s4 + $0x10] sm:$0xff]
  %v50 = vld [vmem:[%s4 + $0x18] sm:$0xff]
  %v51 = vld [vmem:[%s4 + $0x20] sm:$0xff]
  %v52 = vld [vmem:[%s4 + $0x28] sm:$0xff]
  %v53 = vld [vmem:[%s4 + $0x30] sm:$0xff]
  %v54 = vld [vmem:[%s4 + $0x38] sm:$0xff]
  %v55 = vld [vmem:[%s4 + $0x40] sm:$0xff]
  %v56 = vld [vmem:[%s4 + $0x48] sm:$0xff]
  %v57 = vld [vmem:[%s4 + $0x50] sm:$0xff]
  %v58 = vld [vmem:[%s4 + $0x58] sm:$0xff]
  %v59 = vld [vmem:[%s4 + $0x60] sm:$0xff]
  %v60 = vld [vmem:[%s4 + $0x68] sm:$0xff]
  %v61 = vld [vmem:[%s4 + $0x70] sm:$0xff]
  %v62 = vld [vmem:[%s4 + $0x78] sm:$0xff]
  %v63 = vld [vmem:[%s6] sm:$0xff]
  %v64 = vld [vmem:[%s6 + $0x8] sm:$0xff]
  %v65 = vld [vmem:[%s6 + $0x10] sm:$0xff]
  %v66 = vld [vmem:[%s6 + $0x18] sm:$0xff]
  %v67 = vld [vmem:[%s6 + $0x20] sm:$0xff]
  %v68 = vld [vmem:[%s6 + $0x28] sm:$0xff]
  %v69 = vld [vmem:[%s6 + $0x30] sm:$0xff]
  %v70 = vld [vmem:[%s6 + $0x38] sm:$0xff]
  %v71 = vld [vmem:[%s6 + $0x40] sm:$0xff]
  %v72 = vld [vmem:[%s6 + $0x48] sm:$0xff]
  %v73 = vld [vmem:[%s6 + $0x50] sm:$0xff]
  %v74 = vld [vmem:[%s6 + $0x58] sm:$0xff]
  %v75 = vld [vmem:[%s6 + $0x60] sm:$0xff]
  %v76 = vld [vmem:[%s6 + $0x68] sm:$0xff]
  %v77 = vld [vmem:[%s6 + $0x70] sm:$0xff]
  %v78 = vld [vmem:[%s6 + $0x78] sm:$0xff]
  %v79 = vld [vmem:[%s3] sm:$0x1]
  %v80 = vld [vmem:[%s5] sm:$0x1]
  %v81 = vld [vmem:[%s7] sm:$0x1]
  %v82 = vld [vmem:[%s0] sm:$0xff]
  %v83 = vld [vmem:[%s0 + $0x8] sm:$0xff]
  %v84 = vld [vmem:[%s0 + $0x10] sm:$0xff]
  %v85 = vld [vmem:[%s0 + $0x18] sm:$0xff]
  %v86 = vld [vmem:[%s0 + $0x20] sm:$0xff]
  %v87 = vld [vmem:[%s0 + $0x28] sm:$0xff]
  %v88 = vld [vmem:[%s0 + $0x30] sm:$0xff]
  %v89 = vadd.f32 %v79, %v80
  %v91 = vlaneseq
  %v92 = vshrl.u32 %v91, 7
  %v93 = vsub.s32 0, %v92
  %v94 = vrot.slane %v89, %v93
  %96 = vmatprep.subr.mxu0 0.0
  %v97 = vand.u32 %v46, 4294901760
  %98 = vmatpush1.msra.mxu0 %v97
  %99 = vmatprep.subr.mxu0 0.0
  %v100 = vand.u32 %v45, 4294901760
  %101 = vmatpush1.msra.mxu0 %v100
  %102 = vmatprep.subr.mxu0 0.0
  %v103 = vand.u32 %v44, 4294901760
  %104 = vmatpush1.msra.mxu0 %v103
  %105 = vmatprep.subr.mxu0 0.0
  %v106 = vand.u32 %v43, 4294901760
  %107 = vmatpush1.msra.mxu0 %v106
  %108 = vmatprep.subr.mxu0 0.0
  %v109 = vand.u32 %v42, 4294901760
  %110 = vmatpush1.msra.mxu0 %v109
  %111 = vmatprep.subr.mxu0 0.0
  %v112 = vand.u32 %v41, 4294901760
  %113 = vmatpush1.msra.mxu0 %v112
  %114 = vmatprep.subr.mxu0 0.0
  %v115 = vand.u32 %v40, 4294901760
  %116 = vmatpush1.msra.mxu0 %v115
  %117 = vmatprep.subr.mxu0 0.0
  %v118 = vand.u32 %v39, 4294901760
  %119 = vmatpush1.msra.mxu0 %v118
  %120 = vmatprep.subr.mxu0 0.0
  %v121 = vand.u32 %v38, 4294901760
  %122 = vmatpush1.msra.mxu0 %v121
  %123 = vmatprep.subr.mxu0 0.0
  %v124 = vand.u32 %v37, 4294901760
  %125 = vmatpush1.msra.mxu0 %v124
  %126 = vmatprep.subr.mxu0 0.0
  %v127 = vand.u32 %v36, 4294901760
  %128 = vmatpush1.msra.mxu0 %v127
  %129 = vmatprep.subr.mxu0 0.0
  %v130 = vand.u32 %v35, 4294901760
  %131 = vmatpush1.msra.mxu0 %v130
  %132 = vmatprep.subr.mxu0 0.0
  %v133 = vand.u32 %v34, 4294901760
  %134 = vmatpush1.msra.mxu0 %v133
  %135 = vmatprep.subr.mxu0 0.0
  %v136 = vand.u32 %v33, 4294901760
  %137 = vmatpush1.msra.mxu0 %v136
  %138 = vmatprep.subr.mxu0 0.0
  %v139 = vand.u32 %v32, 4294901760
  %140 = vmatpush1.msra.mxu0 %v139
  %141 = vmatprep.subr.mxu0 0.0
  %v142 = vand.u32 %v31, 4294901760
  %143 = vmatpush1.msra.mxu0 %v142
  %144 = vmatprep.subr.mxu0 0.0
  %145 = vmatpush2.msra.mxu0 0.0
  %146 = vmatprep.subr.mxu0 0.0
  %147 = vmatpush2.msra.mxu0 0.0
  %148 = vmatprep.subr.mxu0 0.0
  %149 = vmatpush2.msra.mxu0 0.0
  %150 = vmatprep.subr.mxu0 0.0
  %151 = vmatpush2.msra.mxu0 0.0
  %152 = vmatprep.subr.mxu0 0.0
  %153 = vmatpush2.msra.mxu0 0.0
  %154 = vmatprep.subr.mxu0 0.0
  %155 = vmatpush2.msra.mxu0 0.0
  %156 = vmatprep.subr.mxu0 0.0
  %157 = vmatpush2.msra.mxu0 0.0
  %158 = vmatprep.subr.mxu0 0.0
  %159 = vmatpush2.msra.mxu0 0.0
  %160 = vmatprep.subr.mxu0 0.0
  %161 = vmatpush2.msra.mxu0 0.0
  %162 = vmatprep.subr.mxu0 0.0
  %163 = vmatpush2.msra.mxu0 0.0
  %164 = vmatprep.subr.mxu0 0.0
  %165 = vmatpush2.msra.mxu0 0.0
  %166 = vmatprep.subr.mxu0 0.0
  %167 = vmatpush2.msra.mxu0 0.0
  %168 = vmatprep.subr.mxu0 0.0
  %169 = vmatpush2.msra.mxu0 0.0
  %170 = vmatprep.subr.mxu0 0.0
  %171 = vmatpush2.msra.mxu0 0.0
  %172 = vmatprep.subr.mxu0 0.0
  %173 = vmatpush2.msra.mxu0 0.0
  %174 = vmatprep.subr.mxu0 0.0
  %175 = vmatpush2.msra.mxu0 0.0
  %176 = vmatprep.mubr.f32.mxu0 0.0
  %v177 = vand.u32 %v82, 4294901760
  %v178 = vsub.f32 %v82, %v177
  %v179 = vand.u32 %v178, 4294901760
  %v180 = vsub.f32 %v178, %v179
  %v181 = vand.u32 %v180, 4294901760
  %182 = vmatmul.mubr.f32.gmra.mxu0 %v181
  %v183 = vpop.f32.mrf.mxu0
  %v184 = vadd.f32 %v94, %v183
  %v185 = vpop.f32.mrf.mxu0
  %186 = vmatprep.mubr.f32.mxu0 0.0
  %v187 = vand.u32 %v83, 4294901760
  %v188 = vsub.f32 %v83, %v187
  %v189 = vand.u32 %v188, 4294901760
  %v190 = vsub.f32 %v188, %v189
  %v191 = vand.u32 %v190, 4294901760
  %192 = vmatmul.mubr.f32.gmra.mxu0 %v191
  %v193 = vpop.f32.mrf.mxu0
  %v194 = vadd.f32 %v94, %v193
  %v195 = vpop.f32.mrf.mxu0
  %196 = vmatprep.mubr.f32.mxu0 0.0
  %v197 = vand.u32 %v84, 4294901760
  %v198 = vsub.f32 %v84, %v197
  %v199 = vand.u32 %v198, 4294901760
  %v200 = vsub.f32 %v198, %v199
  %v201 = vand.u32 %v200, 4294901760
  %202 = vmatmul.mubr.f32.gmra.mxu0 %v201
  %v203 = vpop.f32.mrf.mxu0
  %v204 = vadd.f32 %v94, %v203
  %v205 = vpop.f32.mrf.mxu0
  %206 = vmatprep.mubr.f32.mxu0 0.0
  %v207 = vand.u32 %v85, 4294901760
  %v208 = vsub.f32 %v85, %v207
  %v209 = vand.u32 %v208, 4294901760
  %v210 = vsub.f32 %v208, %v209
  %v211 = vand.u32 %v210, 4294901760
  %212 = vmatmul.mubr.f32.gmra.mxu0 %v211
  %v213 = vpop.f32.mrf.mxu0
  %v214 = vadd.f32 %v94, %v213
  %v215 = vpop.f32.mrf.mxu0
  %216 = vmatprep.mubr.f32.mxu0 0.0
  %v217 = vand.u32 %v86, 4294901760
  %v218 = vsub.f32 %v86, %v217
  %v219 = vand.u32 %v218, 4294901760
  %v220 = vsub.f32 %v218, %v219
  %v221 = vand.u32 %v220, 4294901760
  %222 = vmatmul.mubr.f32.gmra.mxu0 %v221
  %v223 = vpop.f32.mrf.mxu0
  %v224 = vadd.f32 %v94, %v223
  %v225 = vpop.f32.mrf.mxu0
  %226 = vmatprep.mubr.f32.mxu0 0.0
  %v227 = vand.u32 %v87, 4294901760
  %v228 = vsub.f32 %v87, %v227
  %v229 = vand.u32 %v228, 4294901760
  %v230 = vsub.f32 %v228, %v229
  %v231 = vand.u32 %v230, 4294901760
  %232 = vmatmul.mubr.f32.gmra.mxu0 %v231
  %v233 = vpop.f32.mrf.mxu0
  %v234 = vadd.f32 %v94, %v233
  %v235 = vpop.f32.mrf.mxu0
  %236 = vmatprep.mubr.f32.mxu0 0.0
  %v237 = vand.u32 %v88, 4294901760
  %v238 = vsub.f32 %v88, %v237
  %v239 = vand.u32 %v238, 4294901760
  %v240 = vsub.f32 %v238, %v239
  %v241 = vand.u32 %v240, 4294901760
  %242 = vmatmul.mubr.f32.gmra.mxu0 %v241
  %v243 = vpop.f32.mrf.mxu0
  %v244 = vadd.f32 %v94, %v243
  %v245 = vpop.f32.mrf.mxu0
  %246 = vdwg.mxu0
  %247 = vmatprep.subr.mxu0 0.0
  %v248 = vand.u32 %v46, 4294901760
  %v249 = vsub.f32 %v46, %v248
  %v250 = vand.u32 %v249, 4294901760
  %v251 = vsub.f32 %v249, %v250
  %v252 = vand.u32 %v251, 4294901760
  %253 = vmatpush1.msra.mxu0 %v252
  %254 = vmatprep.subr.mxu0 0.0
  %v255 = vand.u32 %v45, 4294901760
  %v256 = vsub.f32 %v45, %v255
  %v257 = vand.u32 %v256, 4294901760
  %v258 = vsub.f32 %v256, %v257
  %v259 = vand.u32 %v258, 4294901760
  %260 = vmatpush1.msra.mxu0 %v259
  %261 = vmatprep.subr.mxu0 0.0
  %v262 = vand.u32 %v44, 4294901760
  %v263 = vsub.f32 %v44, %v262
  %v264 = vand.u32 %v263, 4294901760
  %v265 = vsub.f32 %v263, %v264
  %v266 = vand.u32 %v265, 4294901760
  %267 = vmatpush1.msra.mxu0 %v266
  %268 = vmatprep.subr.mxu0 0.0
  %v269 = vand.u32 %v43, 4294901760
  %v270 = vsub.f32 %v43, %v269
  %v271 = vand.u32 %v270, 4294901760
  %v272 = vsub.f32 %v270, %v271
  %v273 = vand.u32 %v272, 4294901760
  %274 = vmatpush1.msra.mxu0 %v273
  %275 = vmatprep.subr.mxu0 0.0
  %v276 = vand.u32 %v42, 4294901760
  %v277 = vsub.f32 %v42, %v276
  %v278 = vand.u32 %v277, 4294901760
  %v279 = vsub.f32 %v277, %v278
  %v280 = vand.u32 %v279, 4294901760
  %281 = vmatpush1.msra.mxu0 %v280
  %282 = vmatprep.subr.mxu0 0.0
  %v283 = vand.u32 %v41, 4294901760
  %v284 = vsub.f32 %v41, %v283
  %v285 = vand.u32 %v284, 4294901760
  %v286 = vsub.f32 %v284, %v285
  %v287 = vand.u32 %v286, 4294901760
  %288 = vmatpush1.msra.mxu0 %v287
  %289 = vmatprep.subr.mxu0 0.0
  %v290 = vand.u32 %v40, 4294901760
  %v291 = vsub.f32 %v40, %v290
  %v292 = vand.u32 %v291, 4294901760
  %v293 = vsub.f32 %v291, %v292
  %v294 = vand.u32 %v293, 4294901760
  %295 = vmatpush1.msra.mxu0 %v294
  %296 = vmatprep.subr.mxu0 0.0
  %v297 = vand.u32 %v39, 4294901760
  %v298 = vsub.f32 %v39, %v297
  %v299 = vand.u32 %v298, 4294901760
  %v300 = vsub.f32 %v298, %v299
  %v301 = vand.u32 %v300, 4294901760
  %302 = vmatpush1.msra.mxu0 %v301
  %303 = vmatprep.subr.mxu0 0.0
  %v304 = vand.u32 %v38, 4294901760
  %v305 = vsub.f32 %v38, %v304
  %v306 = vand.u32 %v305, 4294901760
  %v307 = vsub.f32 %v305, %v306
  %v308 = vand.u32 %v307, 4294901760
  %309 = vmatpush1.msra.mxu0 %v308
  %310 = vmatprep.subr.mxu0 0.0
  %v311 = vand.u32 %v37, 4294901760
  %v312 = vsub.f32 %v37, %v311
  %v313 = vand.u32 %v312, 4294901760
  %v314 = vsub.f32 %v312, %v313
  %v315 = vand.u32 %v314, 4294901760
  %316 = vmatpush1.msra.mxu0 %v315
  %317 = vmatprep.subr.mxu0 0.0
  %v318 = vand.u32 %v36, 4294901760
  %v319 = vsub.f32 %v36, %v318
  %v320 = vand.u32 %v319, 4294901760
  %v321 = vsub.f32 %v319, %v320
  %v322 = vand.u32 %v321, 4294901760
  %323 = vmatpush1.msra.mxu0 %v322
  %324 = vmatprep.subr.mxu0 0.0
  %v325 = vand.u32 %v35, 4294901760
  %v326 = vsub.f32 %v35, %v325
  %v327 = vand.u32 %v326, 4294901760
  %v328 = vsub.f32 %v326, %v327
  %v329 = vand.u32 %v328, 4294901760
  %330 = vmatpush1.msra.mxu0 %v329
  %331 = vmatprep.subr.mxu0 0.0
  %v332 = vand.u32 %v34, 4294901760
  %v333 = vsub.f32 %v34, %v332
  %v334 = vand.u32 %v333, 4294901760
  %v335 = vsub.f32 %v333, %v334
  %v336 = vand.u32 %v335, 4294901760
  %337 = vmatpush1.msra.mxu0 %v336
  %338 = vmatprep.subr.mxu0 0.0
  %v339 = vand.u32 %v33, 4294901760
  %v340 = vsub.f32 %v33, %v339
  %v341 = vand.u32 %v340, 4294901760
  %v342 = vsub.f32 %v340, %v341
  %v343 = vand.u32 %v342, 4294901760
  %344 = vmatpush1.msra.mxu0 %v343
  %345 = vmatprep.subr.mxu0 0.0
  %v346 = vand.u32 %v32, 4294901760
  %v347 = vsub.f32 %v32, %v346
  %v348 = vand.u32 %v347, 4294901760
  %v349 = vsub.f32 %v347, %v348
  %v350 = vand.u32 %v349, 4294901760
  %351 = vmatpush1.msra.mxu0 %v350
  %352 = vmatprep.subr.mxu0 0.0
  %v353 = vand.u32 %v31, 4294901760
  %v354 = vsub.f32 %v31, %v353
  %v355 = vand.u32 %v354, 4294901760
  %v356 = vsub.f32 %v354, %v355
  %v357 = vand.u32 %v356, 4294901760
  %358 = vmatpush1.msra.mxu0 %v357
  %359 = vmatprep.subr.mxu0 0.0
  %360 = vmatpush2.msra.mxu0 0.0
  %361 = vmatprep.subr.mxu0 0.0
  %362 = vmatpush2.msra.mxu0 0.0
  %363 = vmatprep.subr.mxu0 0.0
  %364 = vmatpush2.msra.mxu0 0.0
  %365 = vmatprep.subr.mxu0 0.0
  %366 = vmatpush2.msra.mxu0 0.0
  %367 = vmatprep.subr.mxu0 0.0
  %368 = vmatpush2.msra.mxu0 0.0
  %369 = vmatprep.subr.mxu0 0.0
  %370 = vmatpush2.msra.mxu0 0.0
  %371 = vmatprep.subr.mxu0 0.0
  %372 = vmatpush2.msra.mxu0 0.0
  %373 = vmatprep.subr.mxu0 0.0
  %374 = vmatpush2.msra.mxu0 0.0
  %375 = vmatprep.subr.mxu0 0.0
  %376 = vmatpush2.msra.mxu0 0.0
  %377 = vmatprep.subr.mxu0 0.0
  %378 = vmatpush2.msra.mxu0 0.0
  %379 = vmatprep.subr.mxu0 0.0
  %380 = vmatpush2.msra.mxu0 0.0
  %381 = vmatprep.subr.mxu0 0.0
  %382 = vmatpush2.msra.mxu0 0.0
  %383 = vmatprep.subr.mxu0 0.0
  %384 = vmatpush2.msra.mxu0 0.0
  %385 = vmatprep.subr.mxu0 0.0
  %386 = vmatpush2.msra.mxu0 0.0
  %387 = vmatprep.subr.mxu0 0.0
  %388 = vmatpush2.msra.mxu0 0.0
  %389 = vmatprep.subr.mxu0 0.0
  %390 = vmatpush2.msra.mxu0 0.0
  %391 = vmatprep.mubr.f32.mxu0 0.0
  %v392 = vand.u32 %v82, 4294901760
  %393 = vmatmul.mubr.f32.gmra.mxu0 %v392
  %v394 = vpop.f32.mrf.mxu0
  %v395 = vadd.f32 %v184, %v394
  %v396 = vpop.f32.mrf.mxu0
  %397 = vmatprep.mubr.f32.mxu0 0.0
  %v398 = vand.u32 %v83, 4294901760
  %399 = vmatmul.mubr.f32.gmra.mxu0 %v398
  %v400 = vpop.f32.mrf.mxu0
  %v401 = vadd.f32 %v194, %v400
  %v402 = vpop.f32.mrf.mxu0
  %403 = vmatprep.mubr.f32.mxu0 0.0
  %v404 = vand.u32 %v84, 4294901760
  %405 = vmatmul.mubr.f32.gmra.mxu0 %v404
  %v406 = vpop.f32.mrf.mxu0
  %v407 = vadd.f32 %v204, %v406
  %v408 = vpop.f32.mrf.mxu0
  %409 = vmatprep.mubr.f32.mxu0 0.0
  %v410 = vand.u32 %v85, 4294901760
  %411 = vmatmul.mubr.f32.gmra.mxu0 %v410
  %v412 = vpop.f32.mrf.mxu0
  %v413 = vadd.f32 %v214, %v412
  %v414 = vpop.f32.mrf.mxu0
  %415 = vmatprep.mubr.f32.mxu0 0.0
  %v416 = vand.u32 %v86, 4294901760
  %417 = vmatmul.mubr.f32.gmra.mxu0 %v416
  %v418 = vpop.f32.mrf.mxu0
  %v419 = vadd.f32 %v224, %v418
  %v420 = vpop.f32.mrf.mxu0
  %421 = vmatprep.mubr.f32.mxu0 0.0
  %v422 = vand.u32 %v87, 4294901760
  %423 = vmatmul.mubr.f32.gmra.mxu0 %v422
  %v424 = vpop.f32.mrf.mxu0
  %v425 = vadd.f32 %v234, %v424
  %v426 = vpop.f32.mrf.mxu0
  %427 = vmatprep.mubr.f32.mxu0 0.0
  %v428 = vand.u32 %v88, 4294901760
  %429 = vmatmul.mubr.f32.gmra.mxu0 %v428
  %v430 = vpop.f32.mrf.mxu0
  %v431 = vadd.f32 %v244, %v430
  %v432 = vpop.f32.mrf.mxu0
  %433 = vdwg.mxu0
  %434 = vmatprep.subr.mxu0 0.0
  %v435 = vand.u32 %v46, 4294901760
  %v436 = vsub.f32 %v46, %v435
  %437 = vmatpush1.msra.mxu0 %v436
  %438 = vmatprep.subr.mxu0 0.0
  %v439 = vand.u32 %v45, 4294901760
  %v440 = vsub.f32 %v45, %v439
  %441 = vmatpush1.msra.mxu0 %v440
  %442 = vmatprep.subr.mxu0 0.0
  %v443 = vand.u32 %v44, 4294901760
  %v444 = vsub.f32 %v44, %v443
  %445 = vmatpush1.msra.mxu0 %v444
  %446 = vmatprep.subr.mxu0 0.0
  %v447 = vand.u32 %v43, 4294901760
  %v448 = vsub.f32 %v43, %v447
  %449 = vmatpush1.msra.mxu0 %v448
  %450 = vmatprep.subr.mxu0 0.0
  %v451 = vand.u32 %v42, 4294901760
  %v452 = vsub.f32 %v42, %v451
  %453 = vmatpush1.msra.mxu0 %v452
  %454 = vmatprep.subr.mxu0 0.0
  %v455 = vand.u32 %v41, 4294901760
  %v456 = vsub.f32 %v41, %v455
  %457 = vmatpush1.msra.mxu0 %v456
  %458 = vmatprep.subr.mxu0 0.0
  %v459 = vand.u32 %v40, 4294901760
  %v460 = vsub.f32 %v40, %v459
  %461 = vmatpush1.msra.mxu0 %v460
  %462 = vmatprep.subr.mxu0 0.0
  %v463 = vand.u32 %v39, 4294901760
  %v464 = vsub.f32 %v39, %v463
  %465 = vmatpush1.msra.mxu0 %v464
  %466 = vmatprep.subr.mxu0 0.0
  %v467 = vand.u32 %v38, 4294901760
  %v468 = vsub.f32 %v38, %v467
  %469 = vmatpush1.msra.mxu0 %v468
  %470 = vmatprep.subr.mxu0 0.0
  %v471 = vand.u32 %v37, 4294901760
  %v472 = vsub.f32 %v37, %v471
  %473 = vmatpush1.msra.mxu0 %v472
  %474 = vmatprep.subr.mxu0 0.0
  %v475 = vand.u32 %v36, 4294901760
  %v476 = vsub.f32 %v36, %v475
  %477 = vmatpush1.msra.mxu0 %v476
  %478 = vmatprep.subr.mxu0 0.0
  %v479 = vand.u32 %v35, 4294901760
  %v480 = vsub.f32 %v35, %v479
  %481 = vmatpush1.msra.mxu0 %v480
  %482 = vmatprep.subr.mxu0 0.0
  %v483 = vand.u32 %v34, 4294901760
  %v484 = vsub.f32 %v34, %v483
  %485 = vmatpush1.msra.mxu0 %v484
  %486 = vmatprep.subr.mxu0 0.0
  %v487 = vand.u32 %v33, 4294901760
  %v488 = vsub.f32 %v33, %v487
  %489 = vmatpush1.msra.mxu0 %v488
  %490 = vmatprep.subr.mxu0 0.0
  %v491 = vand.u32 %v32, 4294901760
  %v492 = vsub.f32 %v32, %v491
  %493 = vmatpush1.msra.mxu0 %v492
  %494 = vmatprep.subr.mxu0 0.0
  %v495 = vand.u32 %v31, 4294901760
  %v496 = vsub.f32 %v31, %v495
  %497 = vmatpush1.msra.mxu0 %v496
  %498 = vmatprep.subr.mxu0 0.0
  %499 = vmatpush2.msra.mxu0 0.0
  %500 = vmatprep.subr.mxu0 0.0
  %501 = vmatpush2.msra.mxu0 0.0
  %502 = vmatprep.subr.mxu0 0.0
  %503 = vmatpush2.msra.mxu0 0.0
  %504 = vmatprep.subr.mxu0 0.0
  %505 = vmatpush2.msra.mxu0 0.0
  %506 = vmatprep.subr.mxu0 0.0
  %507 = vmatpush2.msra.mxu0 0.0
  %508 = vmatprep.subr.mxu0 0.0
  %509 = vmatpush2.msra.mxu0 0.0
  %510 = vmatprep.subr.mxu0 0.0
  %511 = vmatpush2.msra.mxu0 0.0
  %512 = vmatprep.subr.mxu0 0.0
  %513 = vmatpush2.msra.mxu0 0.0
  %514 = vmatprep.subr.mxu0 0.0
  %515 = vmatpush2.msra.mxu0 0.0
  %516 = vmatprep.subr.mxu0 0.0
  %517 = vmatpush2.msra.mxu0 0.0
  %518 = vmatprep.subr.mxu0 0.0
  %519 = vmatpush2.msra.mxu0 0.0
  %520 = vmatprep.subr.mxu0 0.0
  %521 = vmatpush2.msra.mxu0 0.0
  %522 = vmatprep.subr.mxu0 0.0
  %523 = vmatpush2.msra.mxu0 0.0
  %524 = vmatprep.subr.mxu0 0.0
  %525 = vmatpush2.msra.mxu0 0.0
  %526 = vmatprep.subr.mxu0 0.0
  %527 = vmatpush2.msra.mxu0 0.0
  %528 = vmatprep.subr.mxu0 0.0
  %529 = vmatpush2.msra.mxu0 0.0
  %530 = vmatprep.mubr.f32.mxu0 0.0
  %v531 = vand.u32 %v82, 4294901760
  %v532 = vsub.f32 %v82, %v531
  %533 = vmatmul.mubr.f32.gmra.mxu0 %v532
  %v534 = vpop.f32.mrf.mxu0
  %v535 = vadd.f32 %v395, %v534
  %v536 = vpop.f32.mrf.mxu0
  %537 = vmatprep.mubr.f32.mxu0 0.0
  %v538 = vand.u32 %v83, 4294901760
  %v539 = vsub.f32 %v83, %v538
  %540 = vmatmul.mubr.f32.gmra.mxu0 %v539
  %v541 = vpop.f32.mrf.mxu0
  %v542 = vadd.f32 %v401, %v541
  %v543 = vpop.f32.mrf.mxu0
  %544 = vmatprep.mubr.f32.mxu0 0.0
  %v545 = vand.u32 %v84, 4294901760
  %v546 = vsub.f32 %v84, %v545
  %547 = vmatmul.mubr.f32.gmra.mxu0 %v546
  %v548 = vpop.f32.mrf.mxu0
  %v549 = vadd.f32 %v407, %v548
  %v550 = vpop.f32.mrf.mxu0
  %551 = vmatprep.mubr.f32.mxu0 0.0
  %v552 = vand.u32 %v85, 4294901760
  %v553 = vsub.f32 %v85, %v552
  %554 = vmatmul.mubr.f32.gmra.mxu0 %v553
  %v555 = vpop.f32.mrf.mxu0
  %v556 = vadd.f32 %v413, %v555
  %v557 = vpop.f32.mrf.mxu0
  %558 = vmatprep.mubr.f32.mxu0 0.0
  %v559 = vand.u32 %v86, 4294901760
  %v560 = vsub.f32 %v86, %v559
  %561 = vmatmul.mubr.f32.gmra.mxu0 %v560
  %v562 = vpop.f32.mrf.mxu0
  %v563 = vadd.f32 %v419, %v562
  %v564 = vpop.f32.mrf.mxu0
  %565 = vmatprep.mubr.f32.mxu0 0.0
  %v566 = vand.u32 %v87, 4294901760
  %v567 = vsub.f32 %v87, %v566
  %568 = vmatmul.mubr.f32.gmra.mxu0 %v567
  %v569 = vpop.f32.mrf.mxu0
  %v570 = vadd.f32 %v425, %v569
  %v571 = vpop.f32.mrf.mxu0
  %572 = vmatprep.mubr.f32.mxu0 0.0
  %v573 = vand.u32 %v88, 4294901760
  %v574 = vsub.f32 %v88, %v573
  %575 = vmatmul.mubr.f32.gmra.mxu0 %v574
  %v576 = vpop.f32.mrf.mxu0
  %v577 = vadd.f32 %v431, %v576
  %v578 = vpop.f32.mrf.mxu0
  %579 = vdwg.mxu0
  %580 = vmatprep.subr.mxu0 0.0
  %v581 = vand.u32 %v46, 4294901760
  %582 = vmatpush1.msra.mxu0 %v581
  %583 = vmatprep.subr.mxu0 0.0
  %v584 = vand.u32 %v45, 4294901760
  %585 = vmatpush1.msra.mxu0 %v584
  %586 = vmatprep.subr.mxu0 0.0
  %v587 = vand.u32 %v44, 4294901760
  %588 = vmatpush1.msra.mxu0 %v587
  %589 = vmatprep.subr.mxu0 0.0
  %v590 = vand.u32 %v43, 4294901760
  %591 = vmatpush1.msra.mxu0 %v590
  %592 = vmatprep.subr.mxu0 0.0
  %v593 = vand.u32 %v42, 4294901760
  %594 = vmatpush1.msra.mxu0 %v593
  %595 = vmatprep.subr.mxu0 0.0
  %v596 = vand.u32 %v41, 4294901760
  %597 = vmatpush1.msra.mxu0 %v596
  %598 = vmatprep.subr.mxu0 0.0
  %v599 = vand.u32 %v40, 4294901760
  %600 = vmatpush1.msra.mxu0 %v599
  %601 = vmatprep.subr.mxu0 0.0
  %v602 = vand.u32 %v39, 4294901760
  %603 = vmatpush1.msra.mxu0 %v602
  %604 = vmatprep.subr.mxu0 0.0
  %v605 = vand.u32 %v38, 4294901760
  %606 = vmatpush1.msra.mxu0 %v605
  %607 = vmatprep.subr.mxu0 0.0
  %v608 = vand.u32 %v37, 4294901760
  %609 = vmatpush1.msra.mxu0 %v608
  %610 = vmatprep.subr.mxu0 0.0
  %v611 = vand.u32 %v36, 4294901760
  %612 = vmatpush1.msra.mxu0 %v611
  %613 = vmatprep.subr.mxu0 0.0
  %v614 = vand.u32 %v35, 4294901760
  %615 = vmatpush1.msra.mxu0 %v614
  %616 = vmatprep.subr.mxu0 0.0
  %v617 = vand.u32 %v34, 4294901760
  %618 = vmatpush1.msra.mxu0 %v617
  %619 = vmatprep.subr.mxu0 0.0
  %v620 = vand.u32 %v33, 4294901760
  %621 = vmatpush1.msra.mxu0 %v620
  %622 = vmatprep.subr.mxu0 0.0
  %v623 = vand.u32 %v32, 4294901760
  %624 = vmatpush1.msra.mxu0 %v623
  %625 = vmatprep.subr.mxu0 0.0
  %v626 = vand.u32 %v31, 4294901760
  %627 = vmatpush1.msra.mxu0 %v626
  %628 = vmatprep.subr.mxu0 0.0
  %629 = vmatpush2.msra.mxu0 0.0
  %630 = vmatprep.subr.mxu0 0.0
  %631 = vmatpush2.msra.mxu0 0.0
  %632 = vmatprep.subr.mxu0 0.0
  %633 = vmatpush2.msra.mxu0 0.0
  %634 = vmatprep.subr.mxu0 0.0
  %635 = vmatpush2.msra.mxu0 0.0
  %636 = vmatprep.subr.mxu0 0.0
  %637 = vmatpush2.msra.mxu0 0.0
  %638 = vmatprep.subr.mxu0 0.0
  %639 = vmatpush2.msra.mxu0 0.0
  %640 = vmatprep.subr.mxu0 0.0
  %641 = vmatpush2.msra.mxu0 0.0
  %642 = vmatprep.subr.mxu0 0.0
  %643 = vmatpush2.msra.mxu0 0.0
  %644 = vmatprep.subr.mxu0 0.0
  %645 = vmatpush2.msra.mxu0 0.0
  %646 = vmatprep.subr.mxu0 0.0
  %647 = vmatpush2.msra.mxu0 0.0
  %648 = vmatprep.subr.mxu0 0.0
  %649 = vmatpush2.msra.mxu0 0.0
  %650 = vmatprep.subr.mxu0 0.0
  %651 = vmatpush2.msra.mxu0 0.0
  %652 = vmatprep.subr.mxu0 0.0
  %653 = vmatpush2.msra.mxu0 0.0
  %654 = vmatprep.subr.mxu0 0.0
  %655 = vmatpush2.msra.mxu0 0.0
  %656 = vmatprep.subr.mxu0 0.0
  %657 = vmatpush2.msra.mxu0 0.0
  %658 = vmatprep.subr.mxu0 0.0
  %659 = vmatpush2.msra.mxu0 0.0
  %660 = vmatprep.mubr.f32.mxu0 0.0
  %v661 = vand.u32 %v82, 4294901760
  %v662 = vsub.f32 %v82, %v661
  %v663 = vand.u32 %v662, 4294901760
  %664 = vmatmul.mubr.f32.gmra.mxu0 %v663
  %v665 = vpop.f32.mrf.mxu0
  %v666 = vadd.f32 %v535, %v665
  %v667 = vpop.f32.mrf.mxu0
  %668 = vmatprep.mubr.f32.mxu0 0.0
  %v669 = vand.u32 %v83, 4294901760
  %v670 = vsub.f32 %v83, %v669
  %v671 = vand.u32 %v670, 4294901760
  %672 = vmatmul.mubr.f32.gmra.mxu0 %v671
  %v673 = vpop.f32.mrf.mxu0
  %v674 = vadd.f32 %v542, %v673
  %v675 = vpop.f32.mrf.mxu0
  %676 = vmatprep.mubr.f32.mxu0 0.0
  %v677 = vand.u32 %v84, 4294901760
  %v678 = vsub.f32 %v84, %v677
  %v679 = vand.u32 %v678, 4294901760
  %680 = vmatmul.mubr.f32.gmra.mxu0 %v679
  %v681 = vpop.f32.mrf.mxu0
  %v682 = vadd.f32 %v549, %v681
  %v683 = vpop.f32.mrf.mxu0
  %684 = vmatprep.mubr.f32.mxu0 0.0
  %v685 = vand.u32 %v85, 4294901760
  %v686 = vsub.f32 %v85, %v685
  %v687 = vand.u32 %v686, 4294901760
  %688 = vmatmul.mubr.f32.gmra.mxu0 %v687
  %v689 = vpop.f32.mrf.mxu0
  %v690 = vadd.f32 %v556, %v689
  %v691 = vpop.f32.mrf.mxu0
  %692 = vmatprep.mubr.f32.mxu0 0.0
  %v693 = vand.u32 %v86, 4294901760
  %v694 = vsub.f32 %v86, %v693
  %v695 = vand.u32 %v694, 4294901760
  %696 = vmatmul.mubr.f32.gmra.mxu0 %v695
  %v697 = vpop.f32.mrf.mxu0
  %v698 = vadd.f32 %v563, %v697
  %v699 = vpop.f32.mrf.mxu0
  %700 = vmatprep.mubr.f32.mxu0 0.0
  %v701 = vand.u32 %v87, 4294901760
  %v702 = vsub.f32 %v87, %v701
  %v703 = vand.u32 %v702, 4294901760
  %704 = vmatmul.mubr.f32.gmra.mxu0 %v703
  %v705 = vpop.f32.mrf.mxu0
  %v706 = vadd.f32 %v570, %v705
  %v707 = vpop.f32.mrf.mxu0
  %708 = vmatprep.mubr.f32.mxu0 0.0
  %v709 = vand.u32 %v88, 4294901760
  %v710 = vsub.f32 %v88, %v709
  %v711 = vand.u32 %v710, 4294901760
  %712 = vmatmul.mubr.f32.gmra.mxu0 %v711
  %v713 = vpop.f32.mrf.mxu0
  %v714 = vadd.f32 %v577, %v713
  %v715 = vpop.f32.mrf.mxu0
  %716 = vdwg.mxu0
  %717 = vmatprep.subr.mxu0 0.0
  %v718 = vand.u32 %v46, 4294901760
  %v719 = vsub.f32 %v46, %v718
  %v720 = vand.u32 %v719, 4294901760
  %721 = vmatpush1.msra.mxu0 %v720
  %722 = vmatprep.subr.mxu0 0.0
  %v723 = vand.u32 %v45, 4294901760
  %v724 = vsub.f32 %v45, %v723
  %v725 = vand.u32 %v724, 4294901760
  %726 = vmatpush1.msra.mxu0 %v725
  %727 = vmatprep.subr.mxu0 0.0
  %v728 = vand.u32 %v44, 4294901760
  %v729 = vsub.f32 %v44, %v728
  %v730 = vand.u32 %v729, 4294901760
  %731 = vmatpush1.msra.mxu0 %v730
  %732 = vmatprep.subr.mxu0 0.0
  %v733 = vand.u32 %v43, 4294901760
  %v734 = vsub.f32 %v43, %v733
  %v735 = vand.u32 %v734, 4294901760
  %736 = vmatpush1.msra.mxu0 %v735
  %737 = vmatprep.subr.mxu0 0.0
  %v738 = vand.u32 %v42, 4294901760
  %v739 = vsub.f32 %v42, %v738
  %v740 = vand.u32 %v739, 4294901760
  %741 = vmatpush1.msra.mxu0 %v740
  %742 = vmatprep.subr.mxu0 0.0
  %v743 = vand.u32 %v41, 4294901760
  %v744 = vsub.f32 %v41, %v743
  %v745 = vand.u32 %v744, 4294901760
  %746 = vmatpush1.msra.mxu0 %v745
  %747 = vmatprep.subr.mxu0 0.0
  %v748 = vand.u32 %v40, 4294901760
  %v749 = vsub.f32 %v40, %v748
  %v750 = vand.u32 %v749, 4294901760
  %751 = vmatpush1.msra.mxu0 %v750
  %752 = vmatprep.subr.mxu0 0.0
  %v753 = vand.u32 %v39, 4294901760
  %v754 = vsub.f32 %v39, %v753
  %v755 = vand.u32 %v754, 4294901760
  %756 = vmatpush1.msra.mxu0 %v755
  %757 = vmatprep.subr.mxu0 0.0
  %v758 = vand.u32 %v38, 4294901760
  %v759 = vsub.f32 %v38, %v758
  %v760 = vand.u32 %v759, 4294901760
  %761 = vmatpush1.msra.mxu0 %v760
  %762 = vmatprep.subr.mxu0 0.0
  %v763 = vand.u32 %v37, 4294901760
  %v764 = vsub.f32 %v37, %v763
  %v765 = vand.u32 %v764, 4294901760
  %766 = vmatpush1.msra.mxu0 %v765
  %767 = vmatprep.subr.mxu0 0.0
  %v768 = vand.u32 %v36, 4294901760
  %v769 = vsub.f32 %v36, %v768
  %v770 = vand.u32 %v769, 4294901760
  %771 = vmatpush1.msra.mxu0 %v770
  %772 = vmatprep.subr.mxu0 0.0
  %v773 = vand.u32 %v35, 4294901760
  %v774 = vsub.f32 %v35, %v773
  %v775 = vand.u32 %v774, 4294901760
  %776 = vmatpush1.msra.mxu0 %v775
  %777 = vmatprep.subr.mxu0 0.0
  %v778 = vand.u32 %v34, 4294901760
  %v779 = vsub.f32 %v34, %v778
  %v780 = vand.u32 %v779, 4294901760
  %781 = vmatpush1.msra.mxu0 %v780
  %782 = vmatprep.subr.mxu0 0.0
  %v783 = vand.u32 %v33, 4294901760
  %v784 = vsub.f32 %v33, %v783
  %v785 = vand.u32 %v784, 4294901760
  %786 = vmatpush1.msra.mxu0 %v785
  %787 = vmatprep.subr.mxu0 0.0
  %v788 = vand.u32 %v32, 4294901760
  %v789 = vsub.f32 %v32, %v788
  %v790 = vand.u32 %v789, 4294901760
  %791 = vmatpush1.msra.mxu0 %v790
  %792 = vmatprep.subr.mxu0 0.0
  %v793 = vand.u32 %v31, 4294901760
  %v794 = vsub.f32 %v31, %v793
  %v795 = vand.u32 %v794, 4294901760
  %796 = vmatpush1.msra.mxu0 %v795
  %797 = vmatprep.subr.mxu0 0.0
  %798 = vmatpush2.msra.mxu0 0.0
  %799 = vmatprep.subr.mxu0 0.0
  %800 = vmatpush2.msra.mxu0 0.0
  %801 = vmatprep.subr.mxu0 0.0
  %802 = vmatpush2.msra.mxu0 0.0
  %803 = vmatprep.subr.mxu0 0.0
  %804 = vmatpush2.msra.mxu0 0.0
  %805 = vmatprep.subr.mxu0 0.0
  %806 = vmatpush2.msra.mxu0 0.0
  %807 = vmatprep.subr.mxu0 0.0
  %808 = vmatpush2.msra.mxu0 0.0
  %809 = vmatprep.subr.mxu0 0.0
  %810 = vmatpush2.msra.mxu0 0.0
  %811 = vmatprep.subr.mxu0 0.0
  %812 = vmatpush2.msra.mxu0 0.0
  %813 = vmatprep.subr.mxu0 0.0
  %814 = vmatpush2.msra.mxu0 0.0
  %815 = vmatprep.subr.mxu0 0.0
  %816 = vmatpush2.msra.mxu0 0.0
  %817 = vmatprep.subr.mxu0 0.0
  %818 = vmatpush2.msra.mxu0 0.0
  %819 = vmatprep.subr.mxu0 0.0
  %820 = vmatpush2.msra.mxu0 0.0
  %821 = vmatprep.subr.mxu0 0.0
  %822 = vmatpush2.msra.mxu0 0.0
  %823 = vmatprep.subr.mxu0 0.0
  %824 = vmatpush2.msra.mxu0 0.0
  %825 = vmatprep.subr.mxu0 0.0
  %826 = vmatpush2.msra.mxu0 0.0
  %827 = vmatprep.subr.mxu0 0.0
  %828 = vmatpush2.msra.mxu0 0.0
  %829 = vmatprep.mubr.f32.mxu0 0.0
  %v830 = vand.u32 %v82, 4294901760
  %831 = vmatmul.mubr.f32.gmra.mxu0 %v830
  %v832 = vpop.f32.mrf.mxu0
  %v833 = vadd.f32 %v666, %v832
  %v834 = vpop.f32.mrf.mxu0
  %835 = vmatprep.mubr.f32.mxu0 0.0
  %v836 = vand.u32 %v83, 4294901760
  %837 = vmatmul.mubr.f32.gmra.mxu0 %v836
  %v838 = vpop.f32.mrf.mxu0
  %v839 = vadd.f32 %v674, %v838
  %v840 = vpop.f32.mrf.mxu0
  %841 = vmatprep.mubr.f32.mxu0 0.0
  %v842 = vand.u32 %v84, 4294901760
  %843 = vmatmul.mubr.f32.gmra.mxu0 %v842
  %v844 = vpop.f32.mrf.mxu0
  %v845 = vadd.f32 %v682, %v844
  %v846 = vpop.f32.mrf.mxu0
  %847 = vmatprep.mubr.f32.mxu0 0.0
  %v848 = vand.u32 %v85, 4294901760
  %849 = vmatmul.mubr.f32.gmra.mxu0 %v848
  %v850 = vpop.f32.mrf.mxu0
  %v851 = vadd.f32 %v690, %v850
  %v852 = vpop.f32.mrf.mxu0
  %853 = vmatprep.mubr.f32.mxu0 0.0
  %v854 = vand.u32 %v86, 4294901760
  %855 = vmatmul.mubr.f32.gmra.mxu0 %v854
  %v856 = vpop.f32.mrf.mxu0
  %v857 = vadd.f32 %v698, %v856
  %v858 = vpop.f32.mrf.mxu0
  %859 = vmatprep.mubr.f32.mxu0 0.0
  %v860 = vand.u32 %v87, 4294901760
  %861 = vmatmul.mubr.f32.gmra.mxu0 %v860
  %v862 = vpop.f32.mrf.mxu0
  %v863 = vadd.f32 %v706, %v862
  %v864 = vpop.f32.mrf.mxu0
  %865 = vmatprep.mubr.f32.mxu0 0.0
  %v866 = vand.u32 %v88, 4294901760
  %867 = vmatmul.mubr.f32.gmra.mxu0 %v866
  %v868 = vpop.f32.mrf.mxu0
  %v869 = vadd.f32 %v714, %v868
  %v870 = vpop.f32.mrf.mxu0
  %871 = vdwg.mxu0
  %872 = vmatprep.subr.mxu0 0.0
  %v873 = vand.u32 %v46, 4294901760
  %874 = vmatpush1.msra.mxu0 %v873
  %875 = vmatprep.subr.mxu0 0.0
  %v876 = vand.u32 %v45, 4294901760
  %877 = vmatpush1.msra.mxu0 %v876
  %878 = vmatprep.subr.mxu0 0.0
  %v879 = vand.u32 %v44, 4294901760
  %880 = vmatpush1.msra.mxu0 %v879
  %881 = vmatprep.subr.mxu0 0.0
  %v882 = vand.u32 %v43, 4294901760
  %883 = vmatpush1.msra.mxu0 %v882
  %884 = vmatprep.subr.mxu0 0.0
  %v885 = vand.u32 %v42, 4294901760
  %886 = vmatpush1.msra.mxu0 %v885
  %887 = vmatprep.subr.mxu0 0.0
  %v888 = vand.u32 %v41, 4294901760
  %889 = vmatpush1.msra.mxu0 %v888
  %890 = vmatprep.subr.mxu0 0.0
  %v891 = vand.u32 %v40, 4294901760
  %892 = vmatpush1.msra.mxu0 %v891
  %893 = vmatprep.subr.mxu0 0.0
  %v894 = vand.u32 %v39, 4294901760
  %895 = vmatpush1.msra.mxu0 %v894
  %896 = vmatprep.subr.mxu0 0.0
  %v897 = vand.u32 %v38, 4294901760
  %898 = vmatpush1.msra.mxu0 %v897
  %899 = vmatprep.subr.mxu0 0.0
  %v900 = vand.u32 %v37, 4294901760
  %901 = vmatpush1.msra.mxu0 %v900
  %902 = vmatprep.subr.mxu0 0.0
  %v903 = vand.u32 %v36, 4294901760
  %904 = vmatpush1.msra.mxu0 %v903
  %905 = vmatprep.subr.mxu0 0.0
  %v906 = vand.u32 %v35, 4294901760
  %907 = vmatpush1.msra.mxu0 %v906
  %908 = vmatprep.subr.mxu0 0.0
  %v909 = vand.u32 %v34, 4294901760
  %910 = vmatpush1.msra.mxu0 %v909
  %911 = vmatprep.subr.mxu0 0.0
  %v912 = vand.u32 %v33, 4294901760
  %913 = vmatpush1.msra.mxu0 %v912
  %914 = vmatprep.subr.mxu0 0.0
  %v915 = vand.u32 %v32, 4294901760
  %916 = vmatpush1.msra.mxu0 %v915
  %917 = vmatprep.subr.mxu0 0.0
  %v918 = vand.u32 %v31, 4294901760
  %919 = vmatpush1.msra.mxu0 %v918
  %920 = vmatprep.subr.mxu0 0.0
  %921 = vmatpush2.msra.mxu0 0.0
  %922 = vmatprep.subr.mxu0 0.0
  %923 = vmatpush2.msra.mxu0 0.0
  %924 = vmatprep.subr.mxu0 0.0
  %925 = vmatpush2.msra.mxu0 0.0
  %926 = vmatprep.subr.mxu0 0.0
  %927 = vmatpush2.msra.mxu0 0.0
  %928 = vmatprep.subr.mxu0 0.0
  %929 = vmatpush2.msra.mxu0 0.0
  %930 = vmatprep.subr.mxu0 0.0
  %931 = vmatpush2.msra.mxu0 0.0
  %932 = vmatprep.subr.mxu0 0.0
  %933 = vmatpush2.msra.mxu0 0.0
  %934 = vmatprep.subr.mxu0 0.0
  %935 = vmatpush2.msra.mxu0 0.0
  %936 = vmatprep.subr.mxu0 0.0
  %937 = vmatpush2.msra.mxu0 0.0
  %938 = vmatprep.subr.mxu0 0.0
  %939 = vmatpush2.msra.mxu0 0.0
  %940 = vmatprep.subr.mxu0 0.0
  %941 = vmatpush2.msra.mxu0 0.0
  %942 = vmatprep.subr.mxu0 0.0
  %943 = vmatpush2.msra.mxu0 0.0
  %944 = vmatprep.subr.mxu0 0.0
  %945 = vmatpush2.msra.mxu0 0.0
  %946 = vmatprep.subr.mxu0 0.0
  %947 = vmatpush2.msra.mxu0 0.0
  %948 = vmatprep.subr.mxu0 0.0
  %949 = vmatpush2.msra.mxu0 0.0
  %950 = vmatprep.subr.mxu0 0.0
  %951 = vmatpush2.msra.mxu0 0.0
  %952 = vmatprep.mubr.f32.mxu0 0.0
  %v953 = vand.u32 %v82, 4294901760
  %954 = vmatmul.mubr.f32.gmra.mxu0 %v953
  %v955 = vpop.f32.mrf.mxu0
  %v956 = vadd.f32 %v833, %v955
  %v957 = vpop.f32.mrf.mxu0
  %958 = vmatprep.mubr.f32.mxu0 0.0
  %v959 = vand.u32 %v83, 4294901760
  %960 = vmatmul.mubr.f32.gmra.mxu0 %v959
  %v961 = vpop.f32.mrf.mxu0
  %v962 = vadd.f32 %v839, %v961
  %v963 = vpop.f32.mrf.mxu0
  %964 = vmatprep.mubr.f32.mxu0 0.0
  %v965 = vand.u32 %v84, 4294901760
  %966 = vmatmul.mubr.f32.gmra.mxu0 %v965
  %v967 = vpop.f32.mrf.mxu0
  %v968 = vadd.f32 %v845, %v967
  %v969 = vpop.f32.mrf.mxu0
  %970 = vmatprep.mubr.f32.mxu0 0.0
  %v971 = vand.u32 %v85, 4294901760
  %972 = vmatmul.mubr.f32.gmra.mxu0 %v971
  %v973 = vpop.f32.mrf.mxu0
  %v974 = vadd.f32 %v851, %v973
  %v975 = vpop.f32.mrf.mxu0
  %976 = vmatprep.mubr.f32.mxu0 0.0
  %v977 = vand.u32 %v86, 4294901760
  %978 = vmatmul.mubr.f32.gmra.mxu0 %v977
  %v979 = vpop.f32.mrf.mxu0
  %v980 = vadd.f32 %v857, %v979
  %v981 = vpop.f32.mrf.mxu0
  %982 = vmatprep.mubr.f32.mxu0 0.0
  %v983 = vand.u32 %v87, 4294901760
  %984 = vmatmul.mubr.f32.gmra.mxu0 %v983
  %v985 = vpop.f32.mrf.mxu0
  %v986 = vadd.f32 %v863, %v985
  %v987 = vpop.f32.mrf.mxu0
  %988 = vmatprep.mubr.f32.mxu0 0.0
  %v989 = vand.u32 %v88, 4294901760
  %990 = vmatmul.mubr.f32.gmra.mxu0 %v989
  %v991 = vpop.f32.mrf.mxu0
  %v992 = vadd.f32 %v869, %v991
  %v993 = vpop.f32.mrf.mxu0
  %994 = vdwg.mxu0
  %995 = vst [vmem:[#allocation2] sm:$0xff] %v956
  %996 = vst [vmem:[#allocation2 + $0x8] sm:$0xff] %v962
  %997 = vst [vmem:[#allocation2 + $0x10] sm:$0xff] %v968
  %998 = vst [vmem:[#allocation2 + $0x18] sm:$0xff] %v974
  %999 = vst [vmem:[#allocation2 + $0x20] sm:$0xff] %v980
  %1000 = vst [vmem:[#allocation2 + $0x28] sm:$0xff] %v986
  %1001 = vst [vmem:[#allocation2 + $0x30] sm:$0xff] %v992
  %v1002 = vld [vmem:[%s1] sm:$0xff]
  %v1003 = vld [vmem:[#allocation2] sm:$0xff]
  %1004 = vmatprep.subr.mxu0 0.0
  %v1005 = vand.u32 %v62, 4294901760
  %1006 = vmatpush1.msra.mxu0 %v1005
  %1007 = vmatprep.subr.mxu0 0.0
  %v1008 = vand.u32 %v61, 4294901760
  %1009 = vmatpush1.msra.mxu0 %v1008
  %1010 = vmatprep.subr.mxu0 0.0
  %v1011 = vand.u32 %v60, 4294901760
  %1012 = vmatpush1.msra.mxu0 %v1011
  %1013 = vmatprep.subr.mxu0 0.0
  %v1014 = vand.u32 %v59, 4294901760
  %1015 = vmatpush1.msra.mxu0 %v1014
  %1016 = vmatprep.subr.mxu0 0.0
  %v1017 = vand.u32 %v58, 4294901760
  %1018 = vmatpush1.msra.mxu0 %v1017
  %1019 = vmatprep.subr.mxu0 0.0
  %v1020 = vand.u32 %v57, 4294901760
  %1021 = vmatpush1.msra.mxu0 %v1020
  %1022 = vmatprep.subr.mxu0 0.0
  %v1023 = vand.u32 %v56, 4294901760
  %1024 = vmatpush1.msra.mxu0 %v1023
  %1025 = vmatprep.subr.mxu0 0.0
  %v1026 = vand.u32 %v55, 4294901760
  %1027 = vmatpush1.msra.mxu0 %v1026
  %1028 = vmatprep.subr.mxu0 0.0
  %v1029 = vand.u32 %v54, 4294901760
  %1030 = vmatpush1.msra.mxu0 %v1029
  %1031 = vmatprep.subr.mxu0 0.0
  %v1032 = vand.u32 %v53, 4294901760
  %1033 = vmatpush1.msra.mxu0 %v1032
  %1034 = vmatprep.subr.mxu0 0.0
  %v1035 = vand.u32 %v52, 4294901760
  %1036 = vmatpush1.msra.mxu0 %v1035
  %1037 = vmatprep.subr.mxu0 0.0
  %v1038 = vand.u32 %v51, 4294901760
  %1039 = vmatpush1.msra.mxu0 %v1038
  %1040 = vmatprep.subr.mxu0 0.0
  %v1041 = vand.u32 %v50, 4294901760
  %1042 = vmatpush1.msra.mxu0 %v1041
  %1043 = vmatprep.subr.mxu0 0.0
  %v1044 = vand.u32 %v49, 4294901760
  %1045 = vmatpush1.msra.mxu0 %v1044
  %1046 = vmatprep.subr.mxu0 0.0
  %v1047 = vand.u32 %v48, 4294901760
  %1048 = vmatpush1.msra.mxu0 %v1047
  %1049 = vmatprep.subr.mxu0 0.0
  %v1050 = vand.u32 %v47, 4294901760
  %1051 = vmatpush1.msra.mxu0 %v1050
  %1052 = vmatprep.subr.mxu0 0.0
  %1053 = vmatpush2.msra.mxu0 0.0
  %1054 = vmatprep.subr.mxu0 0.0
  %1055 = vmatpush2.msra.mxu0 0.0
  %1056 = vmatprep.subr.mxu0 0.0
  %1057 = vmatpush2.msra.mxu0 0.0
  %1058 = vmatprep.subr.mxu0 0.0
  %1059 = vmatpush2.msra.mxu0 0.0
  %1060 = vmatprep.subr.mxu0 0.0
  %1061 = vmatpush2.msra.mxu0 0.0
  %1062 = vmatprep.subr.mxu0 0.0
  %1063 = vmatpush2.msra.mxu0 0.0
  %1064 = vmatprep.subr.mxu0 0.0
  %1065 = vmatpush2.msra.mxu0 0.0
  %1066 = vmatprep.subr.mxu0 0.0
  %1067 = vmatpush2.msra.mxu0 0.0
  %1068 = vmatprep.subr.mxu0 0.0
  %1069 = vmatpush2.msra.mxu0 0.0
  %1070 = vmatprep.subr.mxu0 0.0
  %1071 = vmatpush2.msra.mxu0 0.0
  %1072 = vmatprep.subr.mxu0 0.0
  %1073 = vmatpush2.msra.mxu0 0.0
  %1074 = vmatprep.subr.mxu0 0.0
  %1075 = vmatpush2.msra.mxu0 0.0
  %1076 = vmatprep.subr.mxu0 0.0
  %1077 = vmatpush2.msra.mxu0 0.0
  %1078 = vmatprep.subr.mxu0 0.0
  %1079 = vmatpush2.msra.mxu0 0.0
  %1080 = vmatprep.subr.mxu0 0.0
  %1081 = vmatpush2.msra.mxu0 0.0
  %1082 = vmatprep.subr.mxu0 0.0
  %1083 = vmatpush2.msra.mxu0 0.0
  %1084 = vmatprep.mubr.f32.mxu0 0.0
  %v1085 = vand.u32 %v1002, 4294901760
  %v1086 = vsub.f32 %v1002, %v1085
  %v1087 = vand.u32 %v1086, 4294901760
  %v1088 = vsub.f32 %v1086, %v1087
  %v1089 = vand.u32 %v1088, 4294901760
  %1090 = vmatmul.mubr.f32.gmra.mxu0 %v1089
  %v1091 = vpop.f32.mrf.mxu0
  %v1092 = vadd.f32 0.0, %v1091
  %v1093 = vpop.f32.mrf.mxu0
  %1094 = vdwg.mxu0
  %1095 = vmatprep.subr.mxu0 0.0
  %v1096 = vand.u32 %v62, 4294901760
  %v1097 = vsub.f32 %v62, %v1096
  %v1098 = vand.u32 %v1097, 4294901760
  %v1099 = vsub.f32 %v1097, %v1098
  %v1100 = vand.u32 %v1099, 4294901760
  %1101 = vmatpush1.msra.mxu0 %v1100
  %1102 = vmatprep.subr.mxu0 0.0
  %v1103 = vand.u32 %v61, 4294901760
  %v1104 = vsub.f32 %v61, %v1103
  %v1105 = vand.u32 %v1104, 4294901760
  %v1106 = vsub.f32 %v1104, %v1105
  %v1107 = vand.u32 %v1106, 4294901760
  %1108 = vmatpush1.msra.mxu0 %v1107
  %1109 = vmatprep.subr.mxu0 0.0
  %v1110 = vand.u32 %v60, 4294901760
  %v1111 = vsub.f32 %v60, %v1110
  %v1112 = vand.u32 %v1111, 4294901760
  %v1113 = vsub.f32 %v1111, %v1112
  %v1114 = vand.u32 %v1113, 4294901760
  %1115 = vmatpush1.msra.mxu0 %v1114
  %1116 = vmatprep.subr.mxu0 0.0
  %v1117 = vand.u32 %v59, 4294901760
  %v1118 = vsub.f32 %v59, %v1117
  %v1119 = vand.u32 %v1118, 4294901760
  %v1120 = vsub.f32 %v1118, %v1119
  %v1121 = vand.u32 %v1120, 4294901760
  %1122 = vmatpush1.msra.mxu0 %v1121
  %1123 = vmatprep.subr.mxu0 0.0
  %v1124 = vand.u32 %v58, 4294901760
  %v1125 = vsub.f32 %v58, %v1124
  %v1126 = vand.u32 %v1125, 4294901760
  %v1127 = vsub.f32 %v1125, %v1126
  %v1128 = vand.u32 %v1127, 4294901760
  %1129 = vmatpush1.msra.mxu0 %v1128
  %1130 = vmatprep.subr.mxu0 0.0
  %v1131 = vand.u32 %v57, 4294901760
  %v1132 = vsub.f32 %v57, %v1131
  %v1133 = vand.u32 %v1132, 4294901760
  %v1134 = vsub.f32 %v1132, %v1133
  %v1135 = vand.u32 %v1134, 4294901760
  %1136 = vmatpush1.msra.mxu0 %v1135
  %1137 = vmatprep.subr.mxu0 0.0
  %v1138 = vand.u32 %v56, 4294901760
  %v1139 = vsub.f32 %v56, %v1138
  %v1140 = vand.u32 %v1139, 4294901760
  %v1141 = vsub.f32 %v1139, %v1140
  %v1142 = vand.u32 %v1141, 4294901760
  %1143 = vmatpush1.msra.mxu0 %v1142
  %1144 = vmatprep.subr.mxu0 0.0
  %v1145 = vand.u32 %v55, 4294901760
  %v1146 = vsub.f32 %v55, %v1145
  %v1147 = vand.u32 %v1146, 4294901760
  %v1148 = vsub.f32 %v1146, %v1147
  %v1149 = vand.u32 %v1148, 4294901760
  %1150 = vmatpush1.msra.mxu0 %v1149
  %1151 = vmatprep.subr.mxu0 0.0
  %v1152 = vand.u32 %v54, 4294901760
  %v1153 = vsub.f32 %v54, %v1152
  %v1154 = vand.u32 %v1153, 4294901760
  %v1155 = vsub.f32 %v1153, %v1154
  %v1156 = vand.u32 %v1155, 4294901760
  %1157 = vmatpush1.msra.mxu0 %v1156
  %1158 = vmatprep.subr.mxu0 0.0
  %v1159 = vand.u32 %v53, 4294901760
  %v1160 = vsub.f32 %v53, %v1159
  %v1161 = vand.u32 %v1160, 4294901760
  %v1162 = vsub.f32 %v1160, %v1161
  %v1163 = vand.u32 %v1162, 4294901760
  %1164 = vmatpush1.msra.mxu0 %v1163
  %1165 = vmatprep.subr.mxu0 0.0
  %v1166 = vand.u32 %v52, 4294901760
  %v1167 = vsub.f32 %v52, %v1166
  %v1168 = vand.u32 %v1167, 4294901760
  %v1169 = vsub.f32 %v1167, %v1168
  %v1170 = vand.u32 %v1169, 4294901760
  %1171 = vmatpush1.msra.mxu0 %v1170
  %1172 = vmatprep.subr.mxu0 0.0
  %v1173 = vand.u32 %v51, 4294901760
  %v1174 = vsub.f32 %v51, %v1173
  %v1175 = vand.u32 %v1174, 4294901760
  %v1176 = vsub.f32 %v1174, %v1175
  %v1177 = vand.u32 %v1176, 4294901760
  %1178 = vmatpush1.msra.mxu0 %v1177
  %1179 = vmatprep.subr.mxu0 0.0
  %v1180 = vand.u32 %v50, 4294901760
  %v1181 = vsub.f32 %v50, %v1180
  %v1182 = vand.u32 %v1181, 4294901760
  %v1183 = vsub.f32 %v1181, %v1182
  %v1184 = vand.u32 %v1183, 4294901760
  %1185 = vmatpush1.msra.mxu0 %v1184
  %1186 = vmatprep.subr.mxu0 0.0
  %v1187 = vand.u32 %v49, 4294901760
  %v1188 = vsub.f32 %v49, %v1187
  %v1189 = vand.u32 %v1188, 4294901760
  %v1190 = vsub.f32 %v1188, %v1189
  %v1191 = vand.u32 %v1190, 4294901760
  %1192 = vmatpush1.msra.mxu0 %v1191
  %1193 = vmatprep.subr.mxu0 0.0
  %v1194 = vand.u32 %v48, 4294901760
  %v1195 = vsub.f32 %v48, %v1194
  %v1196 = vand.u32 %v1195, 4294901760
  %v1197 = vsub.f32 %v1195, %v1196
  %v1198 = vand.u32 %v1197, 4294901760
  %1199 = vmatpush1.msra.mxu0 %v1198
  %1200 = vmatprep.subr.mxu0 0.0
  %v1201 = vand.u32 %v47, 4294901760
  %v1202 = vsub.f32 %v47, %v1201
  %v1203 = vand.u32 %v1202, 4294901760
  %v1204 = vsub.f32 %v1202, %v1203
  %v1205 = vand.u32 %v1204, 4294901760
  %1206 = vmatpush1.msra.mxu0 %v1205
  %1207 = vmatprep.subr.mxu0 0.0
  %1208 = vmatpush2.msra.mxu0 0.0
  %1209 = vmatprep.subr.mxu0 0.0
  %1210 = vmatpush2.msra.mxu0 0.0
  %1211 = vmatprep.subr.mxu0 0.0
  %1212 = vmatpush2.msra.mxu0 0.0
  %1213 = vmatprep.subr.mxu0 0.0
  %1214 = vmatpush2.msra.mxu0 0.0
  %1215 = vmatprep.subr.mxu0 0.0
  %1216 = vmatpush2.msra.mxu0 0.0
  %1217 = vmatprep.subr.mxu0 0.0
  %1218 = vmatpush2.msra.mxu0 0.0
  %1219 = vmatprep.subr.mxu0 0.0
  %1220 = vmatpush2.msra.mxu0 0.0
  %1221 = vmatprep.subr.mxu0 0.0
  %1222 = vmatpush2.msra.mxu0 0.0
  %1223 = vmatprep.subr.mxu0 0.0
  %1224 = vmatpush2.msra.mxu0 0.0
  %1225 = vmatprep.subr.mxu0 0.0
  %1226 = vmatpush2.msra.mxu0 0.0
  %1227 = vmatprep.subr.mxu0 0.0
  %1228 = vmatpush2.msra.mxu0 0.0
  %1229 = vmatprep.subr.mxu0 0.0
  %1230 = vmatpush2.msra.mxu0 0.0
  %1231 = vmatprep.subr.mxu0 0.0
  %1232 = vmatpush2.msra.mxu0 0.0
  %1233 = vmatprep.subr.mxu0 0.0
  %1234 = vmatpush2.msra.mxu0 0.0
  %1235 = vmatprep.subr.mxu0 0.0
  %1236 = vmatpush2.msra.mxu0 0.0
  %1237 = vmatprep.subr.mxu0 0.0
  %1238 = vmatpush2.msra.mxu0 0.0
  %1239 = vmatprep.mubr.f32.mxu0 0.0
  %v1240 = vand.u32 %v1002, 4294901760
  %1241 = vmatmul.mubr.f32.gmra.mxu0 %v1240
  %v1242 = vpop.f32.mrf.mxu0
  %v1243 = vadd.f32 %v1092, %v1242
  %v1244 = vpop.f32.mrf.mxu0
  %1245 = vdwg.mxu0
  %1246 = vmatprep.subr.mxu0 0.0
  %v1247 = vand.u32 %v62, 4294901760
  %v1248 = vsub.f32 %v62, %v1247
  %1249 = vmatpush1.msra.mxu0 %v1248
  %1250 = vmatprep.subr.mxu0 0.0
  %v1251 = vand.u32 %v61, 4294901760
  %v1252 = vsub.f32 %v61, %v1251
  %1253 = vmatpush1.msra.mxu0 %v1252
  %1254 = vmatprep.subr.mxu0 0.0
  %v1255 = vand.u32 %v60, 4294901760
  %v1256 = vsub.f32 %v60, %v1255
  %1257 = vmatpush1.msra.mxu0 %v1256
  %1258 = vmatprep.subr.mxu0 0.0
  %v1259 = vand.u32 %v59, 4294901760
  %v1260 = vsub.f32 %v59, %v1259
  %1261 = vmatpush1.msra.mxu0 %v1260
  %1262 = vmatprep.subr.mxu0 0.0
  %v1263 = vand.u32 %v58, 4294901760
  %v1264 = vsub.f32 %v58, %v1263
  %1265 = vmatpush1.msra.mxu0 %v1264
  %1266 = vmatprep.subr.mxu0 0.0
  %v1267 = vand.u32 %v57, 4294901760
  %v1268 = vsub.f32 %v57, %v1267
  %1269 = vmatpush1.msra.mxu0 %v1268
  %1270 = vmatprep.subr.mxu0 0.0
  %v1271 = vand.u32 %v56, 4294901760
  %v1272 = vsub.f32 %v56, %v1271
  %1273 = vmatpush1.msra.mxu0 %v1272
  %1274 = vmatprep.subr.mxu0 0.0
  %v1275 = vand.u32 %v55, 4294901760
  %v1276 = vsub.f32 %v55, %v1275
  %1277 = vmatpush1.msra.mxu0 %v1276
  %1278 = vmatprep.subr.mxu0 0.0
  %v1279 = vand.u32 %v54, 4294901760
  %v1280 = vsub.f32 %v54, %v1279
  %1281 = vmatpush1.msra.mxu0 %v1280
  %1282 = vmatprep.subr.mxu0 0.0
  %v1283 = vand.u32 %v53, 4294901760
  %v1284 = vsub.f32 %v53, %v1283
  %1285 = vmatpush1.msra.mxu0 %v1284
  %1286 = vmatprep.subr.mxu0 0.0
  %v1287 = vand.u32 %v52, 4294901760
  %v1288 = vsub.f32 %v52, %v1287
  %1289 = vmatpush1.msra.mxu0 %v1288
  %1290 = vmatprep.subr.mxu0 0.0
  %v1291 = vand.u32 %v51, 4294901760
  %v1292 = vsub.f32 %v51, %v1291
  %1293 = vmatpush1.msra.mxu0 %v1292
  %1294 = vmatprep.subr.mxu0 0.0
  %v1295 = vand.u32 %v50, 4294901760
  %v1296 = vsub.f32 %v50, %v1295
  %1297 = vmatpush1.msra.mxu0 %v1296
  %1298 = vmatprep.subr.mxu0 0.0
  %v1299 = vand.u32 %v49, 4294901760
  %v1300 = vsub.f32 %v49, %v1299
  %1301 = vmatpush1.msra.mxu0 %v1300
  %1302 = vmatprep.subr.mxu0 0.0
  %v1303 = vand.u32 %v48, 4294901760
  %v1304 = vsub.f32 %v48, %v1303
  %1305 = vmatpush1.msra.mxu0 %v1304
  %1306 = vmatprep.subr.mxu0 0.0
  %v1307 = vand.u32 %v47, 4294901760
  %v1308 = vsub.f32 %v47, %v1307
  %1309 = vmatpush1.msra.mxu0 %v1308
  %1310 = vmatprep.subr.mxu0 0.0
  %1311 = vmatpush2.msra.mxu0 0.0
  %1312 = vmatprep.subr.mxu0 0.0
  %1313 = vmatpush2.msra.mxu0 0.0
  %1314 = vmatprep.subr.mxu0 0.0
  %1315 = vmatpush2.msra.mxu0 0.0
  %1316 = vmatprep.subr.mxu0 0.0
  %1317 = vmatpush2.msra.mxu0 0.0
  %1318 = vmatprep.subr.mxu0 0.0
  %1319 = vmatpush2.msra.mxu0 0.0
  %1320 = vmatprep.subr.mxu0 0.0
  %1321 = vmatpush2.msra.mxu0 0.0
  %1322 = vmatprep.subr.mxu0 0.0
  %1323 = vmatpush2.msra.mxu0 0.0
  %1324 = vmatprep.subr.mxu0 0.0
  %1325 = vmatpush2.msra.mxu0 0.0
  %1326 = vmatprep.subr.mxu0 0.0
  %1327 = vmatpush2.msra.mxu0 0.0
  %1328 = vmatprep.subr.mxu0 0.0
  %1329 = vmatpush2.msra.mxu0 0.0
  %1330 = vmatprep.subr.mxu0 0.0
  %1331 = vmatpush2.msra.mxu0 0.0
  %1332 = vmatprep.subr.mxu0 0.0
  %1333 = vmatpush2.msra.mxu0 0.0
  %1334 = vmatprep.subr.mxu0 0.0
  %1335 = vmatpush2.msra.mxu0 0.0
  %1336 = vmatprep.subr.mxu0 0.0
  %1337 = vmatpush2.msra.mxu0 0.0
  %1338 = vmatprep.subr.mxu0 0.0
  %1339 = vmatpush2.msra.mxu0 0.0
  %1340 = vmatprep.subr.mxu0 0.0
  %1341 = vmatpush2.msra.mxu0 0.0
  %1342 = vmatprep.mubr.f32.mxu0 0.0
  %v1343 = vand.u32 %v1002, 4294901760
  %v1344 = vsub.f32 %v1002, %v1343
  %1345 = vmatmul.mubr.f32.gmra.mxu0 %v1344
  %v1346 = vpop.f32.mrf.mxu0
  %v1347 = vadd.f32 %v1243, %v1346
  %v1348 = vpop.f32.mrf.mxu0
  %1349 = vdwg.mxu0
  %1350 = vmatprep.subr.mxu0 0.0
  %v1351 = vand.u32 %v62, 4294901760
  %1352 = vmatpush1.msra.mxu0 %v1351
  %1353 = vmatprep.subr.mxu0 0.0
  %v1354 = vand.u32 %v61, 4294901760
  %1355 = vmatpush1.msra.mxu0 %v1354
  %1356 = vmatprep.subr.mxu0 0.0
  %v1357 = vand.u32 %v60, 4294901760
  %1358 = vmatpush1.msra.mxu0 %v1357
  %1359 = vmatprep.subr.mxu0 0.0
  %v1360 = vand.u32 %v59, 4294901760
  %1361 = vmatpush1.msra.mxu0 %v1360
  %1362 = vmatprep.subr.mxu0 0.0
  %v1363 = vand.u32 %v58, 4294901760
  %1364 = vmatpush1.msra.mxu0 %v1363
  %1365 = vmatprep.subr.mxu0 0.0
  %v1366 = vand.u32 %v57, 4294901760
  %1367 = vmatpush1.msra.mxu0 %v1366
  %1368 = vmatprep.subr.mxu0 0.0
  %v1369 = vand.u32 %v56, 4294901760
  %1370 = vmatpush1.msra.mxu0 %v1369
  %1371 = vmatprep.subr.mxu0 0.0
  %v1372 = vand.u32 %v55, 4294901760
  %1373 = vmatpush1.msra.mxu0 %v1372
  %1374 = vmatprep.subr.mxu0 0.0
  %v1375 = vand.u32 %v54, 4294901760
  %1376 = vmatpush1.msra.mxu0 %v1375
  %1377 = vmatprep.subr.mxu0 0.0
  %v1378 = vand.u32 %v53, 4294901760
  %1379 = vmatpush1.msra.mxu0 %v1378
  %1380 = vmatprep.subr.mxu0 0.0
  %v1381 = vand.u32 %v52, 4294901760
  %1382 = vmatpush1.msra.mxu0 %v1381
  %1383 = vmatprep.subr.mxu0 0.0
  %v1384 = vand.u32 %v51, 4294901760
  %1385 = vmatpush1.msra.mxu0 %v1384
  %1386 = vmatprep.subr.mxu0 0.0
  %v1387 = vand.u32 %v50, 4294901760
  %1388 = vmatpush1.msra.mxu0 %v1387
  %1389 = vmatprep.subr.mxu0 0.0
  %v1390 = vand.u32 %v49, 4294901760
  %1391 = vmatpush1.msra.mxu0 %v1390
  %1392 = vmatprep.subr.mxu0 0.0
  %v1393 = vand.u32 %v48, 4294901760
  %1394 = vmatpush1.msra.mxu0 %v1393
  %1395 = vmatprep.subr.mxu0 0.0
  %v1396 = vand.u32 %v47, 4294901760
  %1397 = vmatpush1.msra.mxu0 %v1396
  %1398 = vmatprep.subr.mxu0 0.0
  %1399 = vmatpush2.msra.mxu0 0.0
  %1400 = vmatprep.subr.mxu0 0.0
  %1401 = vmatpush2.msra.mxu0 0.0
  %1402 = vmatprep.subr.mxu0 0.0
  %1403 = vmatpush2.msra.mxu0 0.0
  %1404 = vmatprep.subr.mxu0 0.0
  %1405 = vmatpush2.msra.mxu0 0.0
  %1406 = vmatprep.subr.mxu0 0.0
  %1407 = vmatpush2.msra.mxu0 0.0
  %1408 = vmatprep.subr.mxu0 0.0
  %1409 = vmatpush2.msra.mxu0 0.0
  %1410 = vmatprep.subr.mxu0 0.0
  %1411 = vmatpush2.msra.mxu0 0.0
  %1412 = vmatprep.subr.mxu0 0.0
  %1413 = vmatpush2.msra.mxu0 0.0
  %1414 = vmatprep.subr.mxu0 0.0
  %1415 = vmatpush2.msra.mxu0 0.0
  %1416 = vmatprep.subr.mxu0 0.0
  %1417 = vmatpush2.msra.mxu0 0.0
  %1418 = vmatprep.subr.mxu0 0.0
  %1419 = vmatpush2.msra.mxu0 0.0
  %1420 = vmatprep.subr.mxu0 0.0
  %1421 = vmatpush2.msra.mxu0 0.0
  %1422 = vmatprep.subr.mxu0 0.0
  %1423 = vmatpush2.msra.mxu0 0.0
  %1424 = vmatprep.subr.mxu0 0.0
  %1425 = vmatpush2.msra.mxu0 0.0
  %1426 = vmatprep.subr.mxu0 0.0
  %1427 = vmatpush2.msra.mxu0 0.0
  %1428 = vmatprep.subr.mxu0 0.0
  %1429 = vmatpush2.msra.mxu0 0.0
  %1430 = vmatprep.mubr.f32.mxu0 0.0
  %v1431 = vand.u32 %v1002, 4294901760
  %v1432 = vsub.f32 %v1002, %v1431
  %v1433 = vand.u32 %v1432, 4294901760
  %1434 = vmatmul.mubr.f32.gmra.mxu0 %v1433
  %v1435 = vpop.f32.mrf.mxu0
  %v1436 = vadd.f32 %v1347, %v1435
  %v1437 = vpop.f32.mrf.mxu0
  %1438 = vdwg.mxu0
  %1439 = vmatprep.subr.mxu0 0.0
  %v1440 = vand.u32 %v62, 4294901760
  %v1441 = vsub.f32 %v62, %v1440
  %v1442 = vand.u32 %v1441, 4294901760
  %1443 = vmatpush1.msra.mxu0 %v1442
  %1444 = vmatprep.subr.mxu0 0.0
  %v1445 = vand.u32 %v61, 4294901760
  %v1446 = vsub.f32 %v61, %v1445
  %v1447 = vand.u32 %v1446, 4294901760
  %1448 = vmatpush1.msra.mxu0 %v1447
  %1449 = vmatprep.subr.mxu0 0.0
  %v1450 = vand.u32 %v60, 4294901760
  %v1451 = vsub.f32 %v60, %v1450
  %v1452 = vand.u32 %v1451, 4294901760
  %1453 = vmatpush1.msra.mxu0 %v1452
  %1454 = vmatprep.subr.mxu0 0.0
  %v1455 = vand.u32 %v59, 4294901760
  %v1456 = vsub.f32 %v59, %v1455
  %v1457 = vand.u32 %v1456, 4294901760
  %1458 = vmatpush1.msra.mxu0 %v1457
  %1459 = vmatprep.subr.mxu0 0.0
  %v1460 = vand.u32 %v58, 4294901760
  %v1461 = vsub.f32 %v58, %v1460
  %v1462 = vand.u32 %v1461, 4294901760
  %1463 = vmatpush1.msra.mxu0 %v1462
  %1464 = vmatprep.subr.mxu0 0.0
  %v1465 = vand.u32 %v57, 4294901760
  %v1466 = vsub.f32 %v57, %v1465
  %v1467 = vand.u32 %v1466, 4294901760
  %1468 = vmatpush1.msra.mxu0 %v1467
  %1469 = vmatprep.subr.mxu0 0.0
  %v1470 = vand.u32 %v56, 4294901760
  %v1471 = vsub.f32 %v56, %v1470
  %v1472 = vand.u32 %v1471, 4294901760
  %1473 = vmatpush1.msra.mxu0 %v1472
  %1474 = vmatprep.subr.mxu0 0.0
  %v1475 = vand.u32 %v55, 4294901760
  %v1476 = vsub.f32 %v55, %v1475
  %v1477 = vand.u32 %v1476, 4294901760
  %1478 = vmatpush1.msra.mxu0 %v1477
  %1479 = vmatprep.subr.mxu0 0.0
  %v1480 = vand.u32 %v54, 4294901760
  %v1481 = vsub.f32 %v54, %v1480
  %v1482 = vand.u32 %v1481, 4294901760
  %1483 = vmatpush1.msra.mxu0 %v1482
  %1484 = vmatprep.subr.mxu0 0.0
  %v1485 = vand.u32 %v53, 4294901760
  %v1486 = vsub.f32 %v53, %v1485
  %v1487 = vand.u32 %v1486, 4294901760
  %1488 = vmatpush1.msra.mxu0 %v1487
  %1489 = vmatprep.subr.mxu0 0.0
  %v1490 = vand.u32 %v52, 4294901760
  %v1491 = vsub.f32 %v52, %v1490
  %v1492 = vand.u32 %v1491, 4294901760
  %1493 = vmatpush1.msra.mxu0 %v1492
  %1494 = vmatprep.subr.mxu0 0.0
  %v1495 = vand.u32 %v51, 4294901760
  %v1496 = vsub.f32 %v51, %v1495
  %v1497 = vand.u32 %v1496, 4294901760
  %1498 = vmatpush1.msra.mxu0 %v1497
  %1499 = vmatprep.subr.mxu0 0.0
  %v1500 = vand.u32 %v50, 4294901760
  %v1501 = vsub.f32 %v50, %v1500
  %v1502 = vand.u32 %v1501, 4294901760
  %1503 = vmatpush1.msra.mxu0 %v1502
  %1504 = vmatprep.subr.mxu0 0.0
  %v1505 = vand.u32 %v49, 4294901760
  %v1506 = vsub.f32 %v49, %v1505
  %v1507 = vand.u32 %v1506, 4294901760
  %1508 = vmatpush1.msra.mxu0 %v1507
  %1509 = vmatprep.subr.mxu0 0.0
  %v1510 = vand.u32 %v48, 4294901760
  %v1511 = vsub.f32 %v48, %v1510
  %v1512 = vand.u32 %v1511, 4294901760
  %1513 = vmatpush1.msra.mxu0 %v1512
  %1514 = vmatprep.subr.mxu0 0.0
  %v1515 = vand.u32 %v47, 4294901760
  %v1516 = vsub.f32 %v47, %v1515
  %v1517 = vand.u32 %v1516, 4294901760
  %1518 = vmatpush1.msra.mxu0 %v1517
  %1519 = vmatprep.subr.mxu0 0.0
  %1520 = vmatpush2.msra.mxu0 0.0
  %1521 = vmatprep.subr.mxu0 0.0
  %1522 = vmatpush2.msra.mxu0 0.0
  %1523 = vmatprep.subr.mxu0 0.0
  %1524 = vmatpush2.msra.mxu0 0.0
  %1525 = vmatprep.subr.mxu0 0.0
  %1526 = vmatpush2.msra.mxu0 0.0
  %1527 = vmatprep.subr.mxu0 0.0
  %1528 = vmatpush2.msra.mxu0 0.0
  %1529 = vmatprep.subr.mxu0 0.0
  %1530 = vmatpush2.msra.mxu0 0.0
  %1531 = vmatprep.subr.mxu0 0.0
  %1532 = vmatpush2.msra.mxu0 0.0
  %1533 = vmatprep.subr.mxu0 0.0
  %1534 = vmatpush2.msra.mxu0 0.0
  %1535 = vmatprep.subr.mxu0 0.0
  %1536 = vmatpush2.msra.mxu0 0.0
  %1537 = vmatprep.subr.mxu0 0.0
  %1538 = vmatpush2.msra.mxu0 0.0
  %1539 = vmatprep.subr.mxu0 0.0
  %1540 = vmatpush2.msra.mxu0 0.0
  %1541 = vmatprep.subr.mxu0 0.0
  %1542 = vmatpush2.msra.mxu0 0.0
  %1543 = vmatprep.subr.mxu0 0.0
  %1544 = vmatpush2.msra.mxu0 0.0
  %1545 = vmatprep.subr.mxu0 0.0
  %1546 = vmatpush2.msra.mxu0 0.0
  %1547 = vmatprep.subr.mxu0 0.0
  %1548 = vmatpush2.msra.mxu0 0.0
  %1549 = vmatprep.subr.mxu0 0.0
  %1550 = vmatpush2.msra.mxu0 0.0
  %1551 = vmatprep.mubr.f32.mxu0 0.0
  %v1552 = vand.u32 %v1002, 4294901760
  %1553 = vmatmul.mubr.f32.gmra.mxu0 %v1552
  %v1554 = vpop.f32.mrf.mxu0
  %v1555 = vadd.f32 %v1436, %v1554
  %v1556 = vpop.f32.mrf.mxu0
  %1557 = vdwg.mxu0
  %1558 = vmatprep.subr.mxu0 0.0
  %v1559 = vand.u32 %v62, 4294901760
  %1560 = vmatpush1.msra.mxu0 %v1559
  %1561 = vmatprep.subr.mxu0 0.0
  %v1562 = vand.u32 %v61, 4294901760
  %1563 = vmatpush1.msra.mxu0 %v1562
  %1564 = vmatprep.subr.mxu0 0.0
  %v1565 = vand.u32 %v60, 4294901760
  %1566 = vmatpush1.msra.mxu0 %v1565
  %1567 = vmatprep.subr.mxu0 0.0
  %v1568 = vand.u32 %v59, 4294901760
  %1569 = vmatpush1.msra.mxu0 %v1568
  %1570 = vmatprep.subr.mxu0 0.0
  %v1571 = vand.u32 %v58, 4294901760
  %1572 = vmatpush1.msra.mxu0 %v1571
  %1573 = vmatprep.subr.mxu0 0.0
  %v1574 = vand.u32 %v57, 4294901760
  %1575 = vmatpush1.msra.mxu0 %v1574
  %1576 = vmatprep.subr.mxu0 0.0
  %v1577 = vand.u32 %v56, 4294901760
  %1578 = vmatpush1.msra.mxu0 %v1577
  %1579 = vmatprep.subr.mxu0 0.0
  %v1580 = vand.u32 %v55, 4294901760
  %1581 = vmatpush1.msra.mxu0 %v1580
  %1582 = vmatprep.subr.mxu0 0.0
  %v1583 = vand.u32 %v54, 4294901760
  %1584 = vmatpush1.msra.mxu0 %v1583
  %1585 = vmatprep.subr.mxu0 0.0
  %v1586 = vand.u32 %v53, 4294901760
  %1587 = vmatpush1.msra.mxu0 %v1586
  %1588 = vmatprep.subr.mxu0 0.0
  %v1589 = vand.u32 %v52, 4294901760
  %1590 = vmatpush1.msra.mxu0 %v1589
  %1591 = vmatprep.subr.mxu0 0.0
  %v1592 = vand.u32 %v51, 4294901760
  %1593 = vmatpush1.msra.mxu0 %v1592
  %1594 = vmatprep.subr.mxu0 0.0
  %v1595 = vand.u32 %v50, 4294901760
  %1596 = vmatpush1.msra.mxu0 %v1595
  %1597 = vmatprep.subr.mxu0 0.0
  %v1598 = vand.u32 %v49, 4294901760
  %1599 = vmatpush1.msra.mxu0 %v1598
  %1600 = vmatprep.subr.mxu0 0.0
  %v1601 = vand.u32 %v48, 4294901760
  %1602 = vmatpush1.msra.mxu0 %v1601
  %1603 = vmatprep.subr.mxu0 0.0
  %v1604 = vand.u32 %v47, 4294901760
  %1605 = vmatpush1.msra.mxu0 %v1604
  %1606 = vmatprep.subr.mxu0 0.0
  %1607 = vmatpush2.msra.mxu0 0.0
  %1608 = vmatprep.subr.mxu0 0.0
  %1609 = vmatpush2.msra.mxu0 0.0
  %1610 = vmatprep.subr.mxu0 0.0
  %1611 = vmatpush2.msra.mxu0 0.0
  %1612 = vmatprep.subr.mxu0 0.0
  %1613 = vmatpush2.msra.mxu0 0.0
  %1614 = vmatprep.subr.mxu0 0.0
  %1615 = vmatpush2.msra.mxu0 0.0
  %1616 = vmatprep.subr.mxu0 0.0
  %1617 = vmatpush2.msra.mxu0 0.0
  %1618 = vmatprep.subr.mxu0 0.0
  %1619 = vmatpush2.msra.mxu0 0.0
  %1620 = vmatprep.subr.mxu0 0.0
  %1621 = vmatpush2.msra.mxu0 0.0
  %1622 = vmatprep.subr.mxu0 0.0
  %1623 = vmatpush2.msra.mxu0 0.0
  %1624 = vmatprep.subr.mxu0 0.0
  %1625 = vmatpush2.msra.mxu0 0.0
  %1626 = vmatprep.subr.mxu0 0.0
  %1627 = vmatpush2.msra.mxu0 0.0
  %1628 = vmatprep.subr.mxu0 0.0
  %1629 = vmatpush2.msra.mxu0 0.0
  %1630 = vmatprep.subr.mxu0 0.0
  %1631 = vmatpush2.msra.mxu0 0.0
  %1632 = vmatprep.subr.mxu0 0.0
  %1633 = vmatpush2.msra.mxu0 0.0
  %1634 = vmatprep.subr.mxu0 0.0
  %1635 = vmatpush2.msra.mxu0 0.0
  %1636 = vmatprep.subr.mxu0 0.0
  %1637 = vmatpush2.msra.mxu0 0.0
  %1638 = vmatprep.mubr.f32.mxu0 0.0
  %v1639 = vand.u32 %v1002, 4294901760
  %1640 = vmatmul.mubr.f32.gmra.mxu0 %v1639
  %v1641 = vpop.f32.mrf.mxu0
  %v1642 = vadd.f32 %v1555, %v1641
  %v1643 = vpop.f32.mrf.mxu0
  %1644 = vdwg.mxu0
  %v1645 = vadd.f32 %v1003, %v1642
  %v1646 = vtanh.pop %v1645
  %1647 = vst [vmem:[#allocation2] sm:$0xff] %v1646
  %s1648 = scalar_lea.vmem [#allocation2], 8
  %v1649 = vld [vmem:[%s1648] sm:$0xff]
  %1650 = vmatprep.subr.mxu0 0.0
  %v1651 = vand.u32 %v62, 4294901760
  %1652 = vmatpush1.msra.mxu0 %v1651
  %1653 = vmatprep.subr.mxu0 0.0
  %v1654 = vand.u32 %v61, 4294901760
  %1655 = vmatpush1.msra.mxu0 %v1654
  %1656 = vmatprep.subr.mxu0 0.0
  %v1657 = vand.u32 %v60, 4294901760
  %1658 = vmatpush1.msra.mxu0 %v1657
  %1659 = vmatprep.subr.mxu0 0.0
  %v1660 = vand.u32 %v59, 4294901760
  %1661 = vmatpush1.msra.mxu0 %v1660
  %1662 = vmatprep.subr.mxu0 0.0
  %v1663 = vand.u32 %v58, 4294901760
  %1664 = vmatpush1.msra.mxu0 %v1663
  %1665 = vmatprep.subr.mxu0 0.0
  %v1666 = vand.u32 %v57, 4294901760
  %1667 = vmatpush1.msra.mxu0 %v1666
  %1668 = vmatprep.subr.mxu0 0.0
  %v1669 = vand.u32 %v56, 4294901760
  %1670 = vmatpush1.msra.mxu0 %v1669
  %1671 = vmatprep.subr.mxu0 0.0
  %v1672 = vand.u32 %v55, 4294901760
  %1673 = vmatpush1.msra.mxu0 %v1672
  %1674 = vmatprep.subr.mxu0 0.0
  %v1675 = vand.u32 %v54, 4294901760
  %1676 = vmatpush1.msra.mxu0 %v1675
  %1677 = vmatprep.subr.mxu0 0.0
  %v1678 = vand.u32 %v53, 4294901760
  %1679 = vmatpush1.msra.mxu0 %v1678
  %1680 = vmatprep.subr.mxu0 0.0
  %v1681 = vand.u32 %v52, 4294901760
  %1682 = vmatpush1.msra.mxu0 %v1681
  %1683 = vmatprep.subr.mxu0 0.0
  %v1684 = vand.u32 %v51, 4294901760
  %1685 = vmatpush1.msra.mxu0 %v1684
  %1686 = vmatprep.subr.mxu0 0.0
  %v1687 = vand.u32 %v50, 4294901760
  %1688 = vmatpush1.msra.mxu0 %v1687
  %1689 = vmatprep.subr.mxu0 0.0
  %v1690 = vand.u32 %v49, 4294901760
  %1691 = vmatpush1.msra.mxu0 %v1690
  %1692 = vmatprep.subr.mxu0 0.0
  %v1693 = vand.u32 %v48, 4294901760
  %1694 = vmatpush1.msra.mxu0 %v1693
  %1695 = vmatprep.subr.mxu0 0.0
  %v1696 = vand.u32 %v47, 4294901760
  %1697 = vmatpush1.msra.mxu0 %v1696
  %1698 = vmatprep.subr.mxu0 0.0
  %1699 = vmatpush2.msra.mxu0 0.0
  %1700 = vmatprep.subr.mxu0 0.0
  %1701 = vmatpush2.msra.mxu0 0.0
  %1702 = vmatprep.subr.mxu0 0.0
  %1703 = vmatpush2.msra.mxu0 0.0
  %1704 = vmatprep.subr.mxu0 0.0
  %1705 = vmatpush2.msra.mxu0 0.0
  %1706 = vmatprep.subr.mxu0 0.0
  %1707 = vmatpush2.msra.mxu0 0.0
  %1708 = vmatprep.subr.mxu0 0.0
  %1709 = vmatpush2.msra.mxu0 0.0
  %1710 = vmatprep.subr.mxu0 0.0
  %1711 = vmatpush2.msra.mxu0 0.0
  %1712 = vmatprep.subr.mxu0 0.0
  %1713 = vmatpush2.msra.mxu0 0.0
  %1714 = vmatprep.subr.mxu0 0.0
  %1715 = vmatpush2.msra.mxu0 0.0
  %1716 = vmatprep.subr.mxu0 0.0
  %1717 = vmatpush2.msra.mxu0 0.0
  %1718 = vmatprep.subr.mxu0 0.0
  %1719 = vmatpush2.msra.mxu0 0.0
  %1720 = vmatprep.subr.mxu0 0.0
  %1721 = vmatpush2.msra.mxu0 0.0
  %1722 = vmatprep.subr.mxu0 0.0
  %1723 = vmatpush2.msra.mxu0 0.0
  %1724 = vmatprep.subr.mxu0 0.0
  %1725 = vmatpush2.msra.mxu0 0.0
  %1726 = vmatprep.subr.mxu0 0.0
  %1727 = vmatpush2.msra.mxu0 0.0
  %1728 = vmatprep.subr.mxu0 0.0
  %1729 = vmatpush2.msra.mxu0 0.0
  %1730 = vmatprep.mubr.f32.mxu0 0.0
  %v1731 = vand.u32 %v1646, 4294901760
  %v1732 = vsub.f32 %v1646, %v1731
  %v1733 = vand.u32 %v1732, 4294901760
  %v1734 = vsub.f32 %v1732, %v1733
  %v1735 = vand.u32 %v1734, 4294901760
  %1736 = vmatmul.mubr.f32.gmra.mxu0 %v1735
  %v1737 = vpop.f32.mrf.mxu0
  %v1738 = vadd.f32 0.0, %v1737
  %v1739 = vpop.f32.mrf.mxu0
  %1740 = vdwg.mxu0
  %1741 = vmatprep.subr.mxu0 0.0
  %v1742 = vand.u32 %v62, 4294901760
  %v1743 = vsub.f32 %v62, %v1742
  %v1744 = vand.u32 %v1743, 4294901760
  %v1745 = vsub.f32 %v1743, %v1744
  %v1746 = vand.u32 %v1745, 4294901760
  %1747 = vmatpush1.msra.mxu0 %v1746
  %1748 = vmatprep.subr.mxu0 0.0
  %v1749 = vand.u32 %v61, 4294901760
  %v1750 = vsub.f32 %v61, %v1749
  %v1751 = vand.u32 %v1750, 4294901760
  %v1752 = vsub.f32 %v1750, %v1751
  %v1753 = vand.u32 %v1752, 4294901760
  %1754 = vmatpush1.msra.mxu0 %v1753
  %1755 = vmatprep.subr.mxu0 0.0
  %v1756 = vand.u32 %v60, 4294901760
  %v1757 = vsub.f32 %v60, %v1756
  %v1758 = vand.u32 %v1757, 4294901760
  %v1759 = vsub.f32 %v1757, %v1758
  %v1760 = vand.u32 %v1759, 4294901760
  %1761 = vmatpush1.msra.mxu0 %v1760
  %1762 = vmatprep.subr.mxu0 0.0
  %v1763 = vand.u32 %v59, 4294901760
  %v1764 = vsub.f32 %v59, %v1763
  %v1765 = vand.u32 %v1764, 4294901760
  %v1766 = vsub.f32 %v1764, %v1765
  %v1767 = vand.u32 %v1766, 4294901760
  %1768 = vmatpush1.msra.mxu0 %v1767
  %1769 = vmatprep.subr.mxu0 0.0
  %v1770 = vand.u32 %v58, 4294901760
  %v1771 = vsub.f32 %v58, %v1770
  %v1772 = vand.u32 %v1771, 4294901760
  %v1773 = vsub.f32 %v1771, %v1772
  %v1774 = vand.u32 %v1773, 4294901760
  %1775 = vmatpush1.msra.mxu0 %v1774
  %1776 = vmatprep.subr.mxu0 0.0
  %v1777 = vand.u32 %v57, 4294901760
  %v1778 = vsub.f32 %v57, %v1777
  %v1779 = vand.u32 %v1778, 4294901760
  %v1780 = vsub.f32 %v1778, %v1779
  %v1781 = vand.u32 %v1780, 4294901760
  %1782 = vmatpush1.msra.mxu0 %v1781
  %1783 = vmatprep.subr.mxu0 0.0
  %v1784 = vand.u32 %v56, 4294901760
  %v1785 = vsub.f32 %v56, %v1784
  %v1786 = vand.u32 %v1785, 4294901760
  %v1787 = vsub.f32 %v1785, %v1786
  %v1788 = vand.u32 %v1787, 4294901760
  %1789 = vmatpush1.msra.mxu0 %v1788
  %1790 = vmatprep.subr.mxu0 0.0
  %v1791 = vand.u32 %v55, 4294901760
  %v1792 = vsub.f32 %v55, %v1791
  %v1793 = vand.u32 %v1792, 4294901760
  %v1794 = vsub.f32 %v1792, %v1793
  %v1795 = vand.u32 %v1794, 4294901760
  %1796 = vmatpush1.msra.mxu0 %v1795
  %1797 = vmatprep.subr.mxu0 0.0
  %v1798 = vand.u32 %v54, 4294901760
  %v1799 = vsub.f32 %v54, %v1798
  %v1800 = vand.u32 %v1799, 4294901760
  %v1801 = vsub.f32 %v1799, %v1800
  %v1802 = vand.u32 %v1801, 4294901760
  %1803 = vmatpush1.msra.mxu0 %v1802
  %1804 = vmatprep.subr.mxu0 0.0
  %v1805 = vand.u32 %v53, 4294901760
  %v1806 = vsub.f32 %v53, %v1805
  %v1807 = vand.u32 %v1806, 4294901760
  %v1808 = vsub.f32 %v1806, %v1807
  %v1809 = vand.u32 %v1808, 4294901760
  %1810 = vmatpush1.msra.mxu0 %v1809
  %1811 = vmatprep.subr.mxu0 0.0
  %v1812 = vand.u32 %v52, 4294901760
  %v1813 = vsub.f32 %v52, %v1812
  %v1814 = vand.u32 %v1813, 4294901760
  %v1815 = vsub.f32 %v1813, %v1814
  %v1816 = vand.u32 %v1815, 4294901760
  %1817 = vmatpush1.msra.mxu0 %v1816
  %1818 = vmatprep.subr.mxu0 0.0
  %v1819 = vand.u32 %v51, 4294901760
  %v1820 = vsub.f32 %v51, %v1819
  %v1821 = vand.u32 %v1820, 4294901760
  %v1822 = vsub.f32 %v1820, %v1821
  %v1823 = vand.u32 %v1822, 4294901760
  %1824 = vmatpush1.msra.mxu0 %v1823
  %1825 = vmatprep.subr.mxu0 0.0
  %v1826 = vand.u32 %v50, 4294901760
  %v1827 = vsub.f32 %v50, %v1826
  %v1828 = vand.u32 %v1827, 4294901760
  %v1829 = vsub.f32 %v1827, %v1828
  %v1830 = vand.u32 %v1829, 4294901760
  %1831 = vmatpush1.msra.mxu0 %v1830
  %1832 = vmatprep.subr.mxu0 0.0
  %v1833 = vand.u32 %v49, 4294901760
  %v1834 = vsub.f32 %v49, %v1833
  %v1835 = vand.u32 %v1834, 4294901760
  %v1836 = vsub.f32 %v1834, %v1835
  %v1837 = vand.u32 %v1836, 4294901760
  %1838 = vmatpush1.msra.mxu0 %v1837
  %1839 = vmatprep.subr.mxu0 0.0
  %v1840 = vand.u32 %v48, 4294901760
  %v1841 = vsub.f32 %v48, %v1840
  %v1842 = vand.u32 %v1841, 4294901760
  %v1843 = vsub.f32 %v1841, %v1842
  %v1844 = vand.u32 %v1843, 4294901760
  %1845 = vmatpush1.msra.mxu0 %v1844
  %1846 = vmatprep.subr.mxu0 0.0
  %v1847 = vand.u32 %v47, 4294901760
  %v1848 = vsub.f32 %v47, %v1847
  %v1849 = vand.u32 %v1848, 4294901760
  %v1850 = vsub.f32 %v1848, %v1849
  %v1851 = vand.u32 %v1850, 4294901760
  %1852 = vmatpush1.msra.mxu0 %v1851
  %1853 = vmatprep.subr.mxu0 0.0
  %1854 = vmatpush2.msra.mxu0 0.0
  %1855 = vmatprep.subr.mxu0 0.0
  %1856 = vmatpush2.msra.mxu0 0.0
  %1857 = vmatprep.subr.mxu0 0.0
  %1858 = vmatpush2.msra.mxu0 0.0
  %1859 = vmatprep.subr.mxu0 0.0
  %1860 = vmatpush2.msra.mxu0 0.0
  %1861 = vmatprep.subr.mxu0 0.0
  %1862 = vmatpush2.msra.mxu0 0.0
  %1863 = vmatprep.subr.mxu0 0.0
  %1864 = vmatpush2.msra.mxu0 0.0
  %1865 = vmatprep.subr.mxu0 0.0
  %1866 = vmatpush2.msra.mxu0 0.0
  %1867 = vmatprep.subr.mxu0 0.0
  %1868 = vmatpush2.msra.mxu0 0.0
  %1869 = vmatprep.subr.mxu0 0.0
  %1870 = vmatpush2.msra.mxu0 0.0
  %1871 = vmatprep.subr.mxu0 0.0
  %1872 = vmatpush2.msra.mxu0 0.0
  %1873 = vmatprep.subr.mxu0 0.0
  %1874 = vmatpush2.msra.mxu0 0.0
  %1875 = vmatprep.subr.mxu0 0.0
  %1876 = vmatpush2.msra.mxu0 0.0
  %1877 = vmatprep.subr.mxu0 0.0
  %1878 = vmatpush2.msra.mxu0 0.0
  %1879 = vmatprep.subr.mxu0 0.0
  %1880 = vmatpush2.msra.mxu0 0.0
  %1881 = vmatprep.subr.mxu0 0.0
  %1882 = vmatpush2.msra.mxu0 0.0
  %1883 = vmatprep.subr.mxu0 0.0
  %1884 = vmatpush2.msra.mxu0 0.0
  %1885 = vmatprep.mubr.f32.mxu0 0.0
  %v1886 = vand.u32 %v1646, 4294901760
  %1887 = vmatmul.mubr.f32.gmra.mxu0 %v1886
  %v1888 = vpop.f32.mrf.mxu0
  %v1889 = vadd.f32 %v1738, %v1888
  %v1890 = vpop.f32.mrf.mxu0
  %1891 = vdwg.mxu0
  %1892 = vmatprep.subr.mxu0 0.0
  %v1893 = vand.u32 %v62, 4294901760
  %v1894 = vsub.f32 %v62, %v1893
  %1895 = vmatpush1.msra.mxu0 %v1894
  %1896 = vmatprep.subr.mxu0 0.0
  %v1897 = vand.u32 %v61, 4294901760
  %v1898 = vsub.f32 %v61, %v1897
  %1899 = vmatpush1.msra.mxu0 %v1898
  %1900 = vmatprep.subr.mxu0 0.0
  %v1901 = vand.u32 %v60, 4294901760
  %v1902 = vsub.f32 %v60, %v1901
  %1903 = vmatpush1.msra.mxu0 %v1902
  %1904 = vmatprep.subr.mxu0 0.0
  %v1905 = vand.u32 %v59, 4294901760
  %v1906 = vsub.f32 %v59, %v1905
  %1907 = vmatpush1.msra.mxu0 %v1906
  %1908 = vmatprep.subr.mxu0 0.0
  %v1909 = vand.u32 %v58, 4294901760
  %v1910 = vsub.f32 %v58, %v1909
  %1911 = vmatpush1.msra.mxu0 %v1910
  %1912 = vmatprep.subr.mxu0 0.0
  %v1913 = vand.u32 %v57, 4294901760
  %v1914 = vsub.f32 %v57, %v1913
  %1915 = vmatpush1.msra.mxu0 %v1914
  %1916 = vmatprep.subr.mxu0 0.0
  %v1917 = vand.u32 %v56, 4294901760
  %v1918 = vsub.f32 %v56, %v1917
  %1919 = vmatpush1.msra.mxu0 %v1918
  %1920 = vmatprep.subr.mxu0 0.0
  %v1921 = vand.u32 %v55, 4294901760
  %v1922 = vsub.f32 %v55, %v1921
  %1923 = vmatpush1.msra.mxu0 %v1922
  %1924 = vmatprep.subr.mxu0 0.0
  %v1925 = vand.u32 %v54, 4294901760
  %v1926 = vsub.f32 %v54, %v1925
  %1927 = vmatpush1.msra.mxu0 %v1926
  %1928 = vmatprep.subr.mxu0 0.0
  %v1929 = vand.u32 %v53, 4294901760
  %v1930 = vsub.f32 %v53, %v1929
  %1931 = vmatpush1.msra.mxu0 %v1930
  %1932 = vmatprep.subr.mxu0 0.0
  %v1933 = vand.u32 %v52, 4294901760
  %v1934 = vsub.f32 %v52, %v1933
  %1935 = vmatpush1.msra.mxu0 %v1934
  %1936 = vmatprep.subr.mxu0 0.0
  %v1937 = vand.u32 %v51, 4294901760
  %v1938 = vsub.f32 %v51, %v1937
  %1939 = vmatpush1.msra.mxu0 %v1938
  %1940 = vmatprep.subr.mxu0 0.0
  %v1941 = vand.u32 %v50, 4294901760
  %v1942 = vsub.f32 %v50, %v1941
  %1943 = vmatpush1.msra.mxu0 %v1942
  %1944 = vmatprep.subr.mxu0 0.0
  %v1945 = vand.u32 %v49, 4294901760
  %v1946 = vsub.f32 %v49, %v1945
  %1947 = vmatpush1.msra.mxu0 %v1946
  %1948 = vmatprep.subr.mxu0 0.0
  %v1949 = vand.u32 %v48, 4294901760
  %v1950 = vsub.f32 %v48, %v1949
  %1951 = vmatpush1.msra.mxu0 %v1950
  %1952 = vmatprep.subr.mxu0 0.0
  %v1953 = vand.u32 %v47, 4294901760
  %v1954 = vsub.f32 %v47, %v1953
  %1955 = vmatpush1.msra.mxu0 %v1954
  %1956 = vmatprep.subr.mxu0 0.0
  %1957 = vmatpush2.msra.mxu0 0.0
  %1958 = vmatprep.subr.mxu0 0.0
  %1959 = vmatpush2.msra.mxu0 0.0
  %1960 = vmatprep.subr.mxu0 0.0
  %1961 = vmatpush2.msra.mxu0 0.0
  %1962 = vmatprep.subr.mxu0 0.0
  %1963 = vmatpush2.msra.mxu0 0.0
  %1964 = vmatprep.subr.mxu0 0.0
  %1965 = vmatpush2.msra.mxu0 0.0
  %1966 = vmatprep.subr.mxu0 0.0
  %1967 = vmatpush2.msra.mxu0 0.0
  %1968 = vmatprep.subr.mxu0 0.0
  %1969 = vmatpush2.msra.mxu0 0.0
  %1970 = vmatprep.subr.mxu0 0.0
  %1971 = vmatpush2.msra.mxu0 0.0
  %1972 = vmatprep.subr.mxu0 0.0
  %1973 = vmatpush2.msra.mxu0 0.0
  %1974 = vmatprep.subr.mxu0 0.0
  %1975 = vmatpush2.msra.mxu0 0.0
  %1976 = vmatprep.subr.mxu0 0.0
  %1977 = vmatpush2.msra.mxu0 0.0
  %1978 = vmatprep.subr.mxu0 0.0
  %1979 = vmatpush2.msra.mxu0 0.0
  %1980 = vmatprep.subr.mxu0 0.0
  %1981 = vmatpush2.msra.mxu0 0.0
  %1982 = vmatprep.subr.mxu0 0.0
  %1983 = vmatpush2.msra.mxu0 0.0
  %1984 = vmatprep.subr.mxu0 0.0
  %1985 = vmatpush2.msra.mxu0 0.0
  %1986 = vmatprep.subr.mxu0 0.0
  %1987 = vmatpush2.msra.mxu0 0.0
  %1988 = vmatprep.mubr.f32.mxu0 0.0
  %v1989 = vand.u32 %v1646, 4294901760
  %v1990 = vsub.f32 %v1646, %v1989
  %1991 = vmatmul.mubr.f32.gmra.mxu0 %v1990
  %v1992 = vpop.f32.mrf.mxu0
  %v1993 = vadd.f32 %v1889, %v1992
  %v1994 = vpop.f32.mrf.mxu0
  %1995 = vdwg.mxu0
  %1996 = vmatprep.subr.mxu0 0.0
  %v1997 = vand.u32 %v62, 4294901760
  %1998 = vmatpush1.msra.mxu0 %v1997
  %1999 = vmatprep.subr.mxu0 0.0
  %v2000 = vand.u32 %v61, 4294901760
  %2001 = vmatpush1.msra.mxu0 %v2000
  %2002 = vmatprep.subr.mxu0 0.0
  %v2003 = vand.u32 %v60, 4294901760
  %2004 = vmatpush1.msra.mxu0 %v2003
  %2005 = vmatprep.subr.mxu0 0.0
  %v2006 = vand.u32 %v59, 4294901760
  %2007 = vmatpush1.msra.mxu0 %v2006
  %2008 = vmatprep.subr.mxu0 0.0
  %v2009 = vand.u32 %v58, 4294901760
  %2010 = vmatpush1.msra.mxu0 %v2009
  %2011 = vmatprep.subr.mxu0 0.0
  %v2012 = vand.u32 %v57, 4294901760
  %2013 = vmatpush1.msra.mxu0 %v2012
  %2014 = vmatprep.subr.mxu0 0.0
  %v2015 = vand.u32 %v56, 4294901760
  %2016 = vmatpush1.msra.mxu0 %v2015
  %2017 = vmatprep.subr.mxu0 0.0
  %v2018 = vand.u32 %v55, 4294901760
  %2019 = vmatpush1.msra.mxu0 %v2018
  %2020 = vmatprep.subr.mxu0 0.0
  %v2021 = vand.u32 %v54, 4294901760
  %2022 = vmatpush1.msra.mxu0 %v2021
  %2023 = vmatprep.subr.mxu0 0.0
  %v2024 = vand.u32 %v53, 4294901760
  %2025 = vmatpush1.msra.mxu0 %v2024
  %2026 = vmatprep.subr.mxu0 0.0
  %v2027 = vand.u32 %v52, 4294901760
  %2028 = vmatpush1.msra.mxu0 %v2027
  %2029 = vmatprep.subr.mxu0 0.0
  %v2030 = vand.u32 %v51, 4294901760
  %2031 = vmatpush1.msra.mxu0 %v2030
  %2032 = vmatprep.subr.mxu0 0.0
  %v2033 = vand.u32 %v50, 4294901760
  %2034 = vmatpush1.msra.mxu0 %v2033
  %2035 = vmatprep.subr.mxu0 0.0
  %v2036 = vand.u32 %v49, 4294901760
  %2037 = vmatpush1.msra.mxu0 %v2036
  %2038 = vmatprep.subr.mxu0 0.0
  %v2039 = vand.u32 %v48, 4294901760
  %2040 = vmatpush1.msra.mxu0 %v2039
  %2041 = vmatprep.subr.mxu0 0.0
  %v2042 = vand.u32 %v47, 4294901760
  %2043 = vmatpush1.msra.mxu0 %v2042
  %2044 = vmatprep.subr.mxu0 0.0
  %2045 = vmatpush2.msra.mxu0 0.0
  %2046 = vmatprep.subr.mxu0 0.0
  %2047 = vmatpush2.msra.mxu0 0.0
  %2048 = vmatprep.subr.mxu0 0.0
  %2049 = vmatpush2.msra.mxu0 0.0
  %2050 = vmatprep.subr.mxu0 0.0
  %2051 = vmatpush2.msra.mxu0 0.0
  %2052 = vmatprep.subr.mxu0 0.0
  %2053 = vmatpush2.msra.mxu0 0.0
  %2054 = vmatprep.subr.mxu0 0.0
  %2055 = vmatpush2.msra.mxu0 0.0
  %2056 = vmatprep.subr.mxu0 0.0
  %2057 = vmatpush2.msra.mxu0 0.0
  %2058 = vmatprep.subr.mxu0 0.0
  %2059 = vmatpush2.msra.mxu0 0.0
  %2060 = vmatprep.subr.mxu0 0.0
  %2061 = vmatpush2.msra.mxu0 0.0
  %2062 = vmatprep.subr.mxu0 0.0
  %2063 = vmatpush2.msra.mxu0 0.0
  %2064 = vmatprep.subr.mxu0 0.0
  %2065 = vmatpush2.msra.mxu0 0.0
  %2066 = vmatprep.subr.mxu0 0.0
  %2067 = vmatpush2.msra.mxu0 0.0
  %2068 = vmatprep.subr.mxu0 0.0
  %2069 = vmatpush2.msra.mxu0 0.0
  %2070 = vmatprep.subr.mxu0 0.0
  %2071 = vmatpush2.msra.mxu0 0.0
  %2072 = vmatprep.subr.mxu0 0.0
  %2073 = vmatpush2.msra.mxu0 0.0
  %2074 = vmatprep.subr.mxu0 0.0
  %2075 = vmatpush2.msra.mxu0 0.0
  %2076 = vmatprep.mubr.f32.mxu0 0.0
  %v2077 = vand.u32 %v1646, 4294901760
  %v2078 = vsub.f32 %v1646, %v2077
  %v2079 = vand.u32 %v2078, 4294901760
  %2080 = vmatmul.mubr.f32.gmra.mxu0 %v2079
  %v2081 = vpop.f32.mrf.mxu0
  %v2082 = vadd.f32 %v1993, %v2081
  %v2083 = vpop.f32.mrf.mxu0
  %2084 = vdwg.mxu0
  %2085 = vmatprep.subr.mxu0 0.0
  %v2086 = vand.u32 %v62, 4294901760
  %v2087 = vsub.f32 %v62, %v2086
  %v2088 = vand.u32 %v2087, 4294901760
  %2089 = vmatpush1.msra.mxu0 %v2088
  %2090 = vmatprep.subr.mxu0 0.0
  %v2091 = vand.u32 %v61, 4294901760
  %v2092 = vsub.f32 %v61, %v2091
  %v2093 = vand.u32 %v2092, 4294901760
  %2094 = vmatpush1.msra.mxu0 %v2093
  %2095 = vmatprep.subr.mxu0 0.0
  %v2096 = vand.u32 %v60, 4294901760
  %v2097 = vsub.f32 %v60, %v2096
  %v2098 = vand.u32 %v2097, 4294901760
  %2099 = vmatpush1.msra.mxu0 %v2098
  %2100 = vmatprep.subr.mxu0 0.0
  %v2101 = vand.u32 %v59, 4294901760
  %v2102 = vsub.f32 %v59, %v2101
  %v2103 = vand.u32 %v2102, 4294901760
  %2104 = vmatpush1.msra.mxu0 %v2103
  %2105 = vmatprep.subr.mxu0 0.0
  %v2106 = vand.u32 %v58, 4294901760
  %v2107 = vsub.f32 %v58, %v2106
  %v2108 = vand.u32 %v2107, 4294901760
  %2109 = vmatpush1.msra.mxu0 %v2108
  %2110 = vmatprep.subr.mxu0 0.0
  %v2111 = vand.u32 %v57, 4294901760
  %v2112 = vsub.f32 %v57, %v2111
  %v2113 = vand.u32 %v2112, 4294901760
  %2114 = vmatpush1.msra.mxu0 %v2113
  %2115 = vmatprep.subr.mxu0 0.0
  %v2116 = vand.u32 %v56, 4294901760
  %v2117 = vsub.f32 %v56, %v2116
  %v2118 = vand.u32 %v2117, 4294901760
  %2119 = vmatpush1.msra.mxu0 %v2118
  %2120 = vmatprep.subr.mxu0 0.0
  %v2121 = vand.u32 %v55, 4294901760
  %v2122 = vsub.f32 %v55, %v2121
  %v2123 = vand.u32 %v2122, 4294901760
  %2124 = vmatpush1.msra.mxu0 %v2123
  %2125 = vmatprep.subr.mxu0 0.0
  %v2126 = vand.u32 %v54, 4294901760
  %v2127 = vsub.f32 %v54, %v2126
  %v2128 = vand.u32 %v2127, 4294901760
  %2129 = vmatpush1.msra.mxu0 %v2128
  %2130 = vmatprep.subr.mxu0 0.0
  %v2131 = vand.u32 %v53, 4294901760
  %v2132 = vsub.f32 %v53, %v2131
  %v2133 = vand.u32 %v2132, 4294901760
  %2134 = vmatpush1.msra.mxu0 %v2133
  %2135 = vmatprep.subr.mxu0 0.0
  %v2136 = vand.u32 %v52, 4294901760
  %v2137 = vsub.f32 %v52, %v2136
  %v2138 = vand.u32 %v2137, 4294901760
  %2139 = vmatpush1.msra.mxu0 %v2138
  %2140 = vmatprep.subr.mxu0 0.0
  %v2141 = vand.u32 %v51, 4294901760
  %v2142 = vsub.f32 %v51, %v2141
  %v2143 = vand.u32 %v2142, 4294901760
  %2144 = vmatpush1.msra.mxu0 %v2143
  %2145 = vmatprep.subr.mxu0 0.0
  %v2146 = vand.u32 %v50, 4294901760
  %v2147 = vsub.f32 %v50, %v2146
  %v2148 = vand.u32 %v2147, 4294901760
  %2149 = vmatpush1.msra.mxu0 %v2148
  %2150 = vmatprep.subr.mxu0 0.0
  %v2151 = vand.u32 %v49, 4294901760
  %v2152 = vsub.f32 %v49, %v2151
  %v2153 = vand.u32 %v2152, 4294901760
  %2154 = vmatpush1.msra.mxu0 %v2153
  %2155 = vmatprep.subr.mxu0 0.0
  %v2156 = vand.u32 %v48, 4294901760
  %v2157 = vsub.f32 %v48, %v2156
  %v2158 = vand.u32 %v2157, 4294901760
  %2159 = vmatpush1.msra.mxu0 %v2158
  %2160 = vmatprep.subr.mxu0 0.0
  %v2161 = vand.u32 %v47, 4294901760
  %v2162 = vsub.f32 %v47, %v2161
  %v2163 = vand.u32 %v2162, 4294901760
  %2164 = vmatpush1.msra.mxu0 %v2163
  %2165 = vmatprep.subr.mxu0 0.0
  %2166 = vmatpush2.msra.mxu0 0.0
  %2167 = vmatprep.subr.mxu0 0.0
  %2168 = vmatpush2.msra.mxu0 0.0
  %2169 = vmatprep.subr.mxu0 0.0
  %2170 = vmatpush2.msra.mxu0 0.0
  %2171 = vmatprep.subr.mxu0 0.0
  %2172 = vmatpush2.msra.mxu0 0.0
  %2173 = vmatprep.subr.mxu0 0.0
  %2174 = vmatpush2.msra.mxu0 0.0
  %2175 = vmatprep.subr.mxu0 0.0
  %2176 = vmatpush2.msra.mxu0 0.0
  %2177 = vmatprep.subr.mxu0 0.0
  %2178 = vmatpush2.msra.mxu0 0.0
  %2179 = vmatprep.subr.mxu0 0.0
  %2180 = vmatpush2.msra.mxu0 0.0
  %2181 = vmatprep.subr.mxu0 0.0
  %2182 = vmatpush2.msra.mxu0 0.0
  %2183 = vmatprep.subr.mxu0 0.0
  %2184 = vmatpush2.msra.mxu0 0.0
  %2185 = vmatprep.subr.mxu0 0.0
  %2186 = vmatpush2.msra.mxu0 0.0
  %2187 = vmatprep.subr.mxu0 0.0
  %2188 = vmatpush2.msra.mxu0 0.0
  %2189 = vmatprep.subr.mxu0 0.0
  %2190 = vmatpush2.msra.mxu0 0.0
  %2191 = vmatprep.subr.mxu0 0.0
  %2192 = vmatpush2.msra.mxu0 0.0
  %2193 = vmatprep.subr.mxu0 0.0
  %2194 = vmatpush2.msra.mxu0 0.0
  %2195 = vmatprep.subr.mxu0 0.0
  %2196 = vmatpush2.msra.mxu0 0.0
  %2197 = vmatprep.mubr.f32.mxu0 0.0
  %v2198 = vand.u32 %v1646, 4294901760
  %2199 = vmatmul.mubr.f32.gmra.mxu0 %v2198
  %v2200 = vpop.f32.mrf.mxu0
  %v2201 = vadd.f32 %v2082, %v2200
  %v2202 = vpop.f32.mrf.mxu0
  %2203 = vdwg.mxu0
  %2204 = vmatprep.subr.mxu0 0.0
  %v2205 = vand.u32 %v62, 4294901760
  %2206 = vmatpush1.msra.mxu0 %v2205
  %2207 = vmatprep.subr.mxu0 0.0
  %v2208 = vand.u32 %v61, 4294901760
  %2209 = vmatpush1.msra.mxu0 %v2208
  %2210 = vmatprep.subr.mxu0 0.0
  %v2211 = vand.u32 %v60, 4294901760
  %2212 = vmatpush1.msra.mxu0 %v2211
  %2213 = vmatprep.subr.mxu0 0.0
  %v2214 = vand.u32 %v59, 4294901760
  %2215 = vmatpush1.msra.mxu0 %v2214
  %2216 = vmatprep.subr.mxu0 0.0
  %v2217 = vand.u32 %v58, 4294901760
  %2218 = vmatpush1.msra.mxu0 %v2217
  %2219 = vmatprep.subr.mxu0 0.0
  %v2220 = vand.u32 %v57, 4294901760
  %2221 = vmatpush1.msra.mxu0 %v2220
  %2222 = vmatprep.subr.mxu0 0.0
  %v2223 = vand.u32 %v56, 4294901760
  %2224 = vmatpush1.msra.mxu0 %v2223
  %2225 = vmatprep.subr.mxu0 0.0
  %v2226 = vand.u32 %v55, 4294901760
  %2227 = vmatpush1.msra.mxu0 %v2226
  %2228 = vmatprep.subr.mxu0 0.0
  %v2229 = vand.u32 %v54, 4294901760
  %2230 = vmatpush1.msra.mxu0 %v2229
  %2231 = vmatprep.subr.mxu0 0.0
  %v2232 = vand.u32 %v53, 4294901760
  %2233 = vmatpush1.msra.mxu0 %v2232
  %2234 = vmatprep.subr.mxu0 0.0
  %v2235 = vand.u32 %v52, 4294901760
  %2236 = vmatpush1.msra.mxu0 %v2235
  %2237 = vmatprep.subr.mxu0 0.0
  %v2238 = vand.u32 %v51, 4294901760
  %2239 = vmatpush1.msra.mxu0 %v2238
  %2240 = vmatprep.subr.mxu0 0.0
  %v2241 = vand.u32 %v50, 4294901760
  %2242 = vmatpush1.msra.mxu0 %v2241
  %2243 = vmatprep.subr.mxu0 0.0
  %v2244 = vand.u32 %v49, 4294901760
  %2245 = vmatpush1.msra.mxu0 %v2244
  %2246 = vmatprep.subr.mxu0 0.0
  %v2247 = vand.u32 %v48, 4294901760
  %2248 = vmatpush1.msra.mxu0 %v2247
  %2249 = vmatprep.subr.mxu0 0.0
  %v2250 = vand.u32 %v47, 4294901760
  %2251 = vmatpush1.msra.mxu0 %v2250
  %2252 = vmatprep.subr.mxu0 0.0
  %2253 = vmatpush2.msra.mxu0 0.0
  %2254 = vmatprep.subr.mxu0 0.0
  %2255 = vmatpush2.msra.mxu0 0.0
  %2256 = vmatprep.subr.mxu0 0.0
  %2257 = vmatpush2.msra.mxu0 0.0
  %2258 = vmatprep.subr.mxu0 0.0
  %2259 = vmatpush2.msra.mxu0 0.0
  %2260 = vmatprep.subr.mxu0 0.0
  %2261 = vmatpush2.msra.mxu0 0.0
  %2262 = vmatprep.subr.mxu0 0.0
  %2263 = vmatpush2.msra.mxu0 0.0
  %2264 = vmatprep.subr.mxu0 0.0
  %2265 = vmatpush2.msra.mxu0 0.0
  %2266 = vmatprep.subr.mxu0 0.0
  %2267 = vmatpush2.msra.mxu0 0.0
  %2268 = vmatprep.subr.mxu0 0.0
  %2269 = vmatpush2.msra.mxu0 0.0
  %2270 = vmatprep.subr.mxu0 0.0
  %2271 = vmatpush2.msra.mxu0 0.0
  %2272 = vmatprep.subr.mxu0 0.0
  %2273 = vmatpush2.msra.mxu0 0.0
  %2274 = vmatprep.subr.mxu0 0.0
  %2275 = vmatpush2.msra.mxu0 0.0
  %2276 = vmatprep.subr.mxu0 0.0
  %2277 = vmatpush2.msra.mxu0 0.0
  %2278 = vmatprep.subr.mxu0 0.0
  %2279 = vmatpush2.msra.mxu0 0.0
  %2280 = vmatprep.subr.mxu0 0.0
  %2281 = vmatpush2.msra.mxu0 0.0
  %2282 = vmatprep.subr.mxu0 0.0
  %2283 = vmatpush2.msra.mxu0 0.0
  %2284 = vmatprep.mubr.f32.mxu0 0.0
  %v2285 = vand.u32 %v1646, 4294901760
  %2286 = vmatmul.mubr.f32.gmra.mxu0 %v2285
  %v2287 = vpop.f32.mrf.mxu0
  %v2288 = vadd.f32 %v2201, %v2287
  %v2289 = vpop.f32.mrf.mxu0
  %2290 = vdwg.mxu0
  %v2291 = vadd.f32 %v1649, %v2288
  %v2292 = vtanh.pop %v2291
  %2293 = vst [vmem:[%s1648] sm:$0xff] %v2292
  %s2294 = scalar_lea.vmem [#allocation2], 16
  %v2295 = vld [vmem:[%s2294] sm:$0xff]
  %2296 = vmatprep.subr.mxu0 0.0
  %v2297 = vand.u32 %v62, 4294901760
  %2298 = vmatpush1.msra.mxu0 %v2297
  %2299 = vmatprep.subr.mxu0 0.0
  %v2300 = vand.u32 %v61, 4294901760
  %2301 = vmatpush1.msra.mxu0 %v2300
  %2302 = vmatprep.subr.mxu0 0.0
  %v2303 = vand.u32 %v60, 4294901760
  %2304 = vmatpush1.msra.mxu0 %v2303
  %2305 = vmatprep.subr.mxu0 0.0
  %v2306 = vand.u32 %v59, 4294901760
  %2307 = vmatpush1.msra.mxu0 %v2306
  %2308 = vmatprep.subr.mxu0 0.0
  %v2309 = vand.u32 %v58, 4294901760
  %2310 = vmatpush1.msra.mxu0 %v2309
  %2311 = vmatprep.subr.mxu0 0.0
  %v2312 = vand.u32 %v57, 4294901760
  %2313 = vmatpush1.msra.mxu0 %v2312
  %2314 = vmatprep.subr.mxu0 0.0
  %v2315 = vand.u32 %v56, 4294901760
  %2316 = vmatpush1.msra.mxu0 %v2315
  %2317 = vmatprep.subr.mxu0 0.0
  %v2318 = vand.u32 %v55, 4294901760
  %2319 = vmatpush1.msra.mxu0 %v2318
  %2320 = vmatprep.subr.mxu0 0.0
  %v2321 = vand.u32 %v54, 4294901760
  %2322 = vmatpush1.msra.mxu0 %v2321
  %2323 = vmatprep.subr.mxu0 0.0
  %v2324 = vand.u32 %v53, 4294901760
  %2325 = vmatpush1.msra.mxu0 %v2324
  %2326 = vmatprep.subr.mxu0 0.0
  %v2327 = vand.u32 %v52, 4294901760
  %2328 = vmatpush1.msra.mxu0 %v2327
  %2329 = vmatprep.subr.mxu0 0.0
  %v2330 = vand.u32 %v51, 4294901760
  %2331 = vmatpush1.msra.mxu0 %v2330
  %2332 = vmatprep.subr.mxu0 0.0
  %v2333 = vand.u32 %v50, 4294901760
  %2334 = vmatpush1.msra.mxu0 %v2333
  %2335 = vmatprep.subr.mxu0 0.0
  %v2336 = vand.u32 %v49, 4294901760
  %2337 = vmatpush1.msra.mxu0 %v2336
  %2338 = vmatprep.subr.mxu0 0.0
  %v2339 = vand.u32 %v48, 4294901760
  %2340 = vmatpush1.msra.mxu0 %v2339
  %2341 = vmatprep.subr.mxu0 0.0
  %v2342 = vand.u32 %v47, 4294901760
  %2343 = vmatpush1.msra.mxu0 %v2342
  %2344 = vmatprep.subr.mxu0 0.0
  %2345 = vmatpush2.msra.mxu0 0.0
  %2346 = vmatprep.subr.mxu0 0.0
  %2347 = vmatpush2.msra.mxu0 0.0
  %2348 = vmatprep.subr.mxu0 0.0
  %2349 = vmatpush2.msra.mxu0 0.0
  %2350 = vmatprep.subr.mxu0 0.0
  %2351 = vmatpush2.msra.mxu0 0.0
  %2352 = vmatprep.subr.mxu0 0.0
  %2353 = vmatpush2.msra.mxu0 0.0
  %2354 = vmatprep.subr.mxu0 0.0
  %2355 = vmatpush2.msra.mxu0 0.0
  %2356 = vmatprep.subr.mxu0 0.0
  %2357 = vmatpush2.msra.mxu0 0.0
  %2358 = vmatprep.subr.mxu0 0.0
  %2359 = vmatpush2.msra.mxu0 0.0
  %2360 = vmatprep.subr.mxu0 0.0
  %2361 = vmatpush2.msra.mxu0 0.0
  %2362 = vmatprep.subr.mxu0 0.0
  %2363 = vmatpush2.msra.mxu0 0.0
  %2364 = vmatprep.subr.mxu0 0.0
  %2365 = vmatpush2.msra.mxu0 0.0
  %2366 = vmatprep.subr.mxu0 0.0
  %2367 = vmatpush2.msra.mxu0 0.0
  %2368 = vmatprep.subr.mxu0 0.0
  %2369 = vmatpush2.msra.mxu0 0.0
  %2370 = vmatprep.subr.mxu0 0.0
  %2371 = vmatpush2.msra.mxu0 0.0
  %2372 = vmatprep.subr.mxu0 0.0
  %2373 = vmatpush2.msra.mxu0 0.0
  %2374 = vmatprep.subr.mxu0 0.0
  %2375 = vmatpush2.msra.mxu0 0.0
  %2376 = vmatprep.mubr.f32.mxu0 0.0
  %v2377 = vand.u32 %v2292, 4294901760
  %v2378 = vsub.f32 %v2292, %v2377
  %v2379 = vand.u32 %v2378, 4294901760
  %v2380 = vsub.f32 %v2378, %v2379
  %v2381 = vand.u32 %v2380, 4294901760
  %2382 = vmatmul.mubr.f32.gmra.mxu0 %v2381
  %v2383 = vpop.f32.mrf.mxu0
  %v2384 = vadd.f32 0.0, %v2383
  %v2385 = vpop.f32.mrf.mxu0
  %2386 = vdwg.mxu0
  %2387 = vmatprep.subr.mxu0 0.0
  %v2388 = vand.u32 %v62, 4294901760
  %v2389 = vsub.f32 %v62, %v2388
  %v2390 = vand.u32 %v2389, 4294901760
  %v2391 = vsub.f32 %v2389, %v2390
  %v2392 = vand.u32 %v2391, 4294901760
  %2393 = vmatpush1.msra.mxu0 %v2392
  %2394 = vmatprep.subr.mxu0 0.0
  %v2395 = vand.u32 %v61, 4294901760
  %v2396 = vsub.f32 %v61, %v2395
  %v2397 = vand.u32 %v2396, 4294901760
  %v2398 = vsub.f32 %v2396, %v2397
  %v2399 = vand.u32 %v2398, 4294901760
  %2400 = vmatpush1.msra.mxu0 %v2399
  %2401 = vmatprep.subr.mxu0 0.0
  %v2402 = vand.u32 %v60, 4294901760
  %v2403 = vsub.f32 %v60, %v2402
  %v2404 = vand.u32 %v2403, 4294901760
  %v2405 = vsub.f32 %v2403, %v2404
  %v2406 = vand.u32 %v2405, 4294901760
  %2407 = vmatpush1.msra.mxu0 %v2406
  %2408 = vmatprep.subr.mxu0 0.0
  %v2409 = vand.u32 %v59, 4294901760
  %v2410 = vsub.f32 %v59, %v2409
  %v2411 = vand.u32 %v2410, 4294901760
  %v2412 = vsub.f32 %v2410, %v2411
  %v2413 = vand.u32 %v2412, 4294901760
  %2414 = vmatpush1.msra.mxu0 %v2413
  %2415 = vmatprep.subr.mxu0 0.0
  %v2416 = vand.u32 %v58, 4294901760
  %v2417 = vsub.f32 %v58, %v2416
  %v2418 = vand.u32 %v2417, 4294901760
  %v2419 = vsub.f32 %v2417, %v2418
  %v2420 = vand.u32 %v2419, 4294901760
  %2421 = vmatpush1.msra.mxu0 %v2420
  %2422 = vmatprep.subr.mxu0 0.0
  %v2423 = vand.u32 %v57, 4294901760
  %v2424 = vsub.f32 %v57, %v2423
  %v2425 = vand.u32 %v2424, 4294901760
  %v2426 = vsub.f32 %v2424, %v2425
  %v2427 = vand.u32 %v2426, 4294901760
  %2428 = vmatpush1.msra.mxu0 %v2427
  %2429 = vmatprep.subr.mxu0 0.0
  %v2430 = vand.u32 %v56, 4294901760
  %v2431 = vsub.f32 %v56, %v2430
  %v2432 = vand.u32 %v2431, 4294901760
  %v2433 = vsub.f32 %v2431, %v2432
  %v2434 = vand.u32 %v2433, 4294901760
  %2435 = vmatpush1.msra.mxu0 %v2434
  %2436 = vmatprep.subr.mxu0 0.0
  %v2437 = vand.u32 %v55, 4294901760
  %v2438 = vsub.f32 %v55, %v2437
  %v2439 = vand.u32 %v2438, 4294901760
  %v2440 = vsub.f32 %v2438, %v2439
  %v2441 = vand.u32 %v2440, 4294901760
  %2442 = vmatpush1.msra.mxu0 %v2441
  %2443 = vmatprep.subr.mxu0 0.0
  %v2444 = vand.u32 %v54, 4294901760
  %v2445 = vsub.f32 %v54, %v2444
  %v2446 = vand.u32 %v2445, 4294901760
  %v2447 = vsub.f32 %v2445, %v2446
  %v2448 = vand.u32 %v2447, 4294901760
  %2449 = vmatpush1.msra.mxu0 %v2448
  %2450 = vmatprep.subr.mxu0 0.0
  %v2451 = vand.u32 %v53, 4294901760
  %v2452 = vsub.f32 %v53, %v2451
  %v2453 = vand.u32 %v2452, 4294901760
  %v2454 = vsub.f32 %v2452, %v2453
  %v2455 = vand.u32 %v2454, 4294901760
  %2456 = vmatpush1.msra.mxu0 %v2455
  %2457 = vmatprep.subr.mxu0 0.0
  %v2458 = vand.u32 %v52, 4294901760
  %v2459 = vsub.f32 %v52, %v2458
  %v2460 = vand.u32 %v2459, 4294901760
  %v2461 = vsub.f32 %v2459, %v2460
  %v2462 = vand.u32 %v2461, 4294901760
  %2463 = vmatpush1.msra.mxu0 %v2462
  %2464 = vmatprep.subr.mxu0 0.0
  %v2465 = vand.u32 %v51, 4294901760
  %v2466 = vsub.f32 %v51, %v2465
  %v2467 = vand.u32 %v2466, 4294901760
  %v2468 = vsub.f32 %v2466, %v2467
  %v2469 = vand.u32 %v2468, 4294901760
  %2470 = vmatpush1.msra.mxu0 %v2469
  %2471 = vmatprep.subr.mxu0 0.0
  %v2472 = vand.u32 %v50, 4294901760
  %v2473 = vsub.f32 %v50, %v2472
  %v2474 = vand.u32 %v2473, 4294901760
  %v2475 = vsub.f32 %v2473, %v2474
  %v2476 = vand.u32 %v2475, 4294901760
  %2477 = vmatpush1.msra.mxu0 %v2476
  %2478 = vmatprep.subr.mxu0 0.0
  %v2479 = vand.u32 %v49, 4294901760
  %v2480 = vsub.f32 %v49, %v2479
  %v2481 = vand.u32 %v2480, 4294901760
  %v2482 = vsub.f32 %v2480, %v2481
  %v2483 = vand.u32 %v2482, 4294901760
  %2484 = vmatpush1.msra.mxu0 %v2483
  %2485 = vmatprep.subr.mxu0 0.0
  %v2486 = vand.u32 %v48, 4294901760
  %v2487 = vsub.f32 %v48, %v2486
  %v2488 = vand.u32 %v2487, 4294901760
  %v2489 = vsub.f32 %v2487, %v2488
  %v2490 = vand.u32 %v2489, 4294901760
  %2491 = vmatpush1.msra.mxu0 %v2490
  %2492 = vmatprep.subr.mxu0 0.0
  %v2493 = vand.u32 %v47, 4294901760
  %v2494 = vsub.f32 %v47, %v2493
  %v2495 = vand.u32 %v2494, 4294901760
  %v2496 = vsub.f32 %v2494, %v2495
  %v2497 = vand.u32 %v2496, 4294901760
  %2498 = vmatpush1.msra.mxu0 %v2497
  %2499 = vmatprep.subr.mxu0 0.0
  %2500 = vmatpush2.msra.mxu0 0.0
  %2501 = vmatprep.subr.mxu0 0.0
  %2502 = vmatpush2.msra.mxu0 0.0
  %2503 = vmatprep.subr.mxu0 0.0
  %2504 = vmatpush2.msra.mxu0 0.0
  %2505 = vmatprep.subr.mxu0 0.0
  %2506 = vmatpush2.msra.mxu0 0.0
  %2507 = vmatprep.subr.mxu0 0.0
  %2508 = vmatpush2.msra.mxu0 0.0
  %2509 = vmatprep.subr.mxu0 0.0
  %2510 = vmatpush2.msra.mxu0 0.0
  %2511 = vmatprep.subr.mxu0 0.0
  %2512 = vmatpush2.msra.mxu0 0.0
  %2513 = vmatprep.subr.mxu0 0.0
  %2514 = vmatpush2.msra.mxu0 0.0
  %2515 = vmatprep.subr.mxu0 0.0
  %2516 = vmatpush2.msra.mxu0 0.0
  %2517 = vmatprep.subr.mxu0 0.0
  %2518 = vmatpush2.msra.mxu0 0.0
  %2519 = vmatprep.subr.mxu0 0.0
  %2520 = vmatpush2.msra.mxu0 0.0
  %2521 = vmatprep.subr.mxu0 0.0
  %2522 = vmatpush2.msra.mxu0 0.0
  %2523 = vmatprep.subr.mxu0 0.0
  %2524 = vmatpush2.msra.mxu0 0.0
  %2525 = vmatprep.subr.mxu0 0.0
  %2526 = vmatpush2.msra.mxu0 0.0
  %2527 = vmatprep.subr.mxu0 0.0
  %2528 = vmatpush2.msra.mxu0 0.0
  %2529 = vmatprep.subr.mxu0 0.0
  %2530 = vmatpush2.msra.mxu0 0.0
  %2531 = vmatprep.mubr.f32.mxu0 0.0
  %v2532 = vand.u32 %v2292, 4294901760
  %2533 = vmatmul.mubr.f32.gmra.mxu0 %v2532
  %v2534 = vpop.f32.mrf.mxu0
  %v2535 = vadd.f32 %v2384, %v2534
  %v2536 = vpop.f32.mrf.mxu0
  %2537 = vdwg.mxu0
  %2538 = vmatprep.subr.mxu0 0.0
  %v2539 = vand.u32 %v62, 4294901760
  %v2540 = vsub.f32 %v62, %v2539
  %2541 = vmatpush1.msra.mxu0 %v2540
  %2542 = vmatprep.subr.mxu0 0.0
  %v2543 = vand.u32 %v61, 4294901760
  %v2544 = vsub.f32 %v61, %v2543
  %2545 = vmatpush1.msra.mxu0 %v2544
  %2546 = vmatprep.subr.mxu0 0.0
  %v2547 = vand.u32 %v60, 4294901760
  %v2548 = vsub.f32 %v60, %v2547
  %2549 = vmatpush1.msra.mxu0 %v2548
  %2550 = vmatprep.subr.mxu0 0.0
  %v2551 = vand.u32 %v59, 4294901760
  %v2552 = vsub.f32 %v59, %v2551
  %2553 = vmatpush1.msra.mxu0 %v2552
  %2554 = vmatprep.subr.mxu0 0.0
  %v2555 = vand.u32 %v58, 4294901760
  %v2556 = vsub.f32 %v58, %v2555
  %2557 = vmatpush1.msra.mxu0 %v2556
  %2558 = vmatprep.subr.mxu0 0.0
  %v2559 = vand.u32 %v57, 4294901760
  %v2560 = vsub.f32 %v57, %v2559
  %2561 = vmatpush1.msra.mxu0 %v2560
  %2562 = vmatprep.subr.mxu0 0.0
  %v2563 = vand.u32 %v56, 4294901760
  %v2564 = vsub.f32 %v56, %v2563
  %2565 = vmatpush1.msra.mxu0 %v2564
  %2566 = vmatprep.subr.mxu0 0.0
  %v2567 = vand.u32 %v55, 4294901760
  %v2568 = vsub.f32 %v55, %v2567
  %2569 = vmatpush1.msra.mxu0 %v2568
  %2570 = vmatprep.subr.mxu0 0.0
  %v2571 = vand.u32 %v54, 4294901760
  %v2572 = vsub.f32 %v54, %v2571
  %2573 = vmatpush1.msra.mxu0 %v2572
  %2574 = vmatprep.subr.mxu0 0.0
  %v2575 = vand.u32 %v53, 4294901760
  %v2576 = vsub.f32 %v53, %v2575
  %2577 = vmatpush1.msra.mxu0 %v2576
  %2578 = vmatprep.subr.mxu0 0.0
  %v2579 = vand.u32 %v52, 4294901760
  %v2580 = vsub.f32 %v52, %v2579
  %2581 = vmatpush1.msra.mxu0 %v2580
  %2582 = vmatprep.subr.mxu0 0.0
  %v2583 = vand.u32 %v51, 4294901760
  %v2584 = vsub.f32 %v51, %v2583
  %2585 = vmatpush1.msra.mxu0 %v2584
  %2586 = vmatprep.subr.mxu0 0.0
  %v2587 = vand.u32 %v50, 4294901760
  %v2588 = vsub.f32 %v50, %v2587
  %2589 = vmatpush1.msra.mxu0 %v2588
  %2590 = vmatprep.subr.mxu0 0.0
  %v2591 = vand.u32 %v49, 4294901760
  %v2592 = vsub.f32 %v49, %v2591
  %2593 = vmatpush1.msra.mxu0 %v2592
  %2594 = vmatprep.subr.mxu0 0.0
  %v2595 = vand.u32 %v48, 4294901760
  %v2596 = vsub.f32 %v48, %v2595
  %2597 = vmatpush1.msra.mxu0 %v2596
  %2598 = vmatprep.subr.mxu0 0.0
  %v2599 = vand.u32 %v47, 4294901760
  %v2600 = vsub.f32 %v47, %v2599
  %2601 = vmatpush1.msra.mxu0 %v2600
  %2602 = vmatprep.subr.mxu0 0.0
  %2603 = vmatpush2.msra.mxu0 0.0
  %2604 = vmatprep.subr.mxu0 0.0
  %2605 = vmatpush2.msra.mxu0 0.0
  %2606 = vmatprep.subr.mxu0 0.0
  %2607 = vmatpush2.msra.mxu0 0.0
  %2608 = vmatprep.subr.mxu0 0.0
  %2609 = vmatpush2.msra.mxu0 0.0
  %2610 = vmatprep.subr.mxu0 0.0
  %2611 = vmatpush2.msra.mxu0 0.0
  %2612 = vmatprep.subr.mxu0 0.0
  %2613 = vmatpush2.msra.mxu0 0.0
  %2614 = vmatprep.subr.mxu0 0.0
  %2615 = vmatpush2.msra.mxu0 0.0
  %2616 = vmatprep.subr.mxu0 0.0
  %2617 = vmatpush2.msra.mxu0 0.0
  %2618 = vmatprep.subr.mxu0 0.0
  %2619 = vmatpush2.msra.mxu0 0.0
  %2620 = vmatprep.subr.mxu0 0.0
  %2621 = vmatpush2.msra.mxu0 0.0
  %2622 = vmatprep.subr.mxu0 0.0
  %2623 = vmatpush2.msra.mxu0 0.0
  %2624 = vmatprep.subr.mxu0 0.0
  %2625 = vmatpush2.msra.mxu0 0.0
  %2626 = vmatprep.subr.mxu0 0.0
  %2627 = vmatpush2.msra.mxu0 0.0
  %2628 = vmatprep.subr.mxu0 0.0
  %2629 = vmatpush2.msra.mxu0 0.0
  %2630 = vmatprep.subr.mxu0 0.0
  %2631 = vmatpush2.msra.mxu0 0.0
  %2632 = vmatprep.subr.mxu0 0.0
  %2633 = vmatpush2.msra.mxu0 0.0
  %2634 = vmatprep.mubr.f32.mxu0 0.0
  %v2635 = vand.u32 %v2292, 4294901760
  %v2636 = vsub.f32 %v2292, %v2635
  %2637 = vmatmul.mubr.f32.gmra.mxu0 %v2636
  %v2638 = vpop.f32.mrf.mxu0
  %v2639 = vadd.f32 %v2535, %v2638
  %v2640 = vpop.f32.mrf.mxu0
  %2641 = vdwg.mxu0
  %2642 = vmatprep.subr.mxu0 0.0
  %v2643 = vand.u32 %v62, 4294901760
  %2644 = vmatpush1.msra.mxu0 %v2643
  %2645 = vmatprep.subr.mxu0 0.0
  %v2646 = vand.u32 %v61, 4294901760
  %2647 = vmatpush1.msra.mxu0 %v2646
  %2648 = vmatprep.subr.mxu0 0.0
  %v2649 = vand.u32 %v60, 4294901760
  %2650 = vmatpush1.msra.mxu0 %v2649
  %2651 = vmatprep.subr.mxu0 0.0
  %v2652 = vand.u32 %v59, 4294901760
  %2653 = vmatpush1.msra.mxu0 %v2652
  %2654 = vmatprep.subr.mxu0 0.0
  %v2655 = vand.u32 %v58, 4294901760
  %2656 = vmatpush1.msra.mxu0 %v2655
  %2657 = vmatprep.subr.mxu0 0.0
  %v2658 = vand.u32 %v57, 4294901760
  %2659 = vmatpush1.msra.mxu0 %v2658
  %2660 = vmatprep.subr.mxu0 0.0
  %v2661 = vand.u32 %v56, 4294901760
  %2662 = vmatpush1.msra.mxu0 %v2661
  %2663 = vmatprep.subr.mxu0 0.0
  %v2664 = vand.u32 %v55, 4294901760
  %2665 = vmatpush1.msra.mxu0 %v2664
  %2666 = vmatprep.subr.mxu0 0.0
  %v2667 = vand.u32 %v54, 4294901760
  %2668 = vmatpush1.msra.mxu0 %v2667
  %2669 = vmatprep.subr.mxu0 0.0
  %v2670 = vand.u32 %v53, 4294901760
  %2671 = vmatpush1.msra.mxu0 %v2670
  %2672 = vmatprep.subr.mxu0 0.0
  %v2673 = vand.u32 %v52, 4294901760
  %2674 = vmatpush1.msra.mxu0 %v2673
  %2675 = vmatprep.subr.mxu0 0.0
  %v2676 = vand.u32 %v51, 4294901760
  %2677 = vmatpush1.msra.mxu0 %v2676
  %2678 = vmatprep.subr.mxu0 0.0
  %v2679 = vand.u32 %v50, 4294901760
  %2680 = vmatpush1.msra.mxu0 %v2679
  %2681 = vmatprep.subr.mxu0 0.0
  %v2682 = vand.u32 %v49, 4294901760
  %2683 = vmatpush1.msra.mxu0 %v2682
  %2684 = vmatprep.subr.mxu0 0.0
  %v2685 = vand.u32 %v48, 4294901760
  %2686 = vmatpush1.msra.mxu0 %v2685
  %2687 = vmatprep.subr.mxu0 0.0
  %v2688 = vand.u32 %v47, 4294901760
  %2689 = vmatpush1.msra.mxu0 %v2688
  %2690 = vmatprep.subr.mxu0 0.0
  %2691 = vmatpush2.msra.mxu0 0.0
  %2692 = vmatprep.subr.mxu0 0.0
  %2693 = vmatpush2.msra.mxu0 0.0
  %2694 = vmatprep.subr.mxu0 0.0
  %2695 = vmatpush2.msra.mxu0 0.0
  %2696 = vmatprep.subr.mxu0 0.0
  %2697 = vmatpush2.msra.mxu0 0.0
  %2698 = vmatprep.subr.mxu0 0.0
  %2699 = vmatpush2.msra.mxu0 0.0
  %2700 = vmatprep.subr.mxu0 0.0
  %2701 = vmatpush2.msra.mxu0 0.0
  %2702 = vmatprep.subr.mxu0 0.0
  %2703 = vmatpush2.msra.mxu0 0.0
  %2704 = vmatprep.subr.mxu0 0.0
  %2705 = vmatpush2.msra.mxu0 0.0
  %2706 = vmatprep.subr.mxu0 0.0
  %2707 = vmatpush2.msra.mxu0 0.0
  %2708 = vmatprep.subr.mxu0 0.0
  %2709 = vmatpush2.msra.mxu0 0.0
  %2710 = vmatprep.subr.mxu0 0.0
  %2711 = vmatpush2.msra.mxu0 0.0
  %2712 = vmatprep.subr.mxu0 0.0
  %2713 = vmatpush2.msra.mxu0 0.0
  %2714 = vmatprep.subr.mxu0 0.0
  %2715 = vmatpush2.msra.mxu0 0.0
  %2716 = vmatprep.subr.mxu0 0.0
  %2717 = vmatpush2.msra.mxu0 0.0
  %2718 = vmatprep.subr.mxu0 0.0
  %2719 = vmatpush2.msra.mxu0 0.0
  %2720 = vmatprep.subr.mxu0 0.0
  %2721 = vmatpush2.msra.mxu0 0.0
  %2722 = vmatprep.mubr.f32.mxu0 0.0
  %v2723 = vand.u32 %v2292, 4294901760
  %v2724 = vsub.f32 %v2292, %v2723
  %v2725 = vand.u32 %v2724, 4294901760
  %2726 = vmatmul.mubr.f32.gmra.mxu0 %v2725
  %v2727 = vpop.f32.mrf.mxu0
  %v2728 = vadd.f32 %v2639, %v2727
  %v2729 = vpop.f32.mrf.mxu0
  %2730 = vdwg.mxu0
  %2731 = vmatprep.subr.mxu0 0.0
  %v2732 = vand.u32 %v62, 4294901760
  %v2733 = vsub.f32 %v62, %v2732
  %v2734 = vand.u32 %v2733, 4294901760
  %2735 = vmatpush1.msra.mxu0 %v2734
  %2736 = vmatprep.subr.mxu0 0.0
  %v2737 = vand.u32 %v61, 4294901760
  %v2738 = vsub.f32 %v61, %v2737
  %v2739 = vand.u32 %v2738, 4294901760
  %2740 = vmatpush1.msra.mxu0 %v2739
  %2741 = vmatprep.subr.mxu0 0.0
  %v2742 = vand.u32 %v60, 4294901760
  %v2743 = vsub.f32 %v60, %v2742
  %v2744 = vand.u32 %v2743, 4294901760
  %2745 = vmatpush1.msra.mxu0 %v2744
  %2746 = vmatprep.subr.mxu0 0.0
  %v2747 = vand.u32 %v59, 4294901760
  %v2748 = vsub.f32 %v59, %v2747
  %v2749 = vand.u32 %v2748, 4294901760
  %2750 = vmatpush1.msra.mxu0 %v2749
  %2751 = vmatprep.subr.mxu0 0.0
  %v2752 = vand.u32 %v58, 4294901760
  %v2753 = vsub.f32 %v58, %v2752
  %v2754 = vand.u32 %v2753, 4294901760
  %2755 = vmatpush1.msra.mxu0 %v2754
  %2756 = vmatprep.subr.mxu0 0.0
  %v2757 = vand.u32 %v57, 4294901760
  %v2758 = vsub.f32 %v57, %v2757
  %v2759 = vand.u32 %v2758, 4294901760
  %2760 = vmatpush1.msra.mxu0 %v2759
  %2761 = vmatprep.subr.mxu0 0.0
  %v2762 = vand.u32 %v56, 4294901760
  %v2763 = vsub.f32 %v56, %v2762
  %v2764 = vand.u32 %v2763, 4294901760
  %2765 = vmatpush1.msra.mxu0 %v2764
  %2766 = vmatprep.subr.mxu0 0.0
  %v2767 = vand.u32 %v55, 4294901760
  %v2768 = vsub.f32 %v55, %v2767
  %v2769 = vand.u32 %v2768, 4294901760
  %2770 = vmatpush1.msra.mxu0 %v2769
  %2771 = vmatprep.subr.mxu0 0.0
  %v2772 = vand.u32 %v54, 4294901760
  %v2773 = vsub.f32 %v54, %v2772
  %v2774 = vand.u32 %v2773, 4294901760
  %2775 = vmatpush1.msra.mxu0 %v2774
  %2776 = vmatprep.subr.mxu0 0.0
  %v2777 = vand.u32 %v53, 4294901760
  %v2778 = vsub.f32 %v53, %v2777
  %v2779 = vand.u32 %v2778, 4294901760
  %2780 = vmatpush1.msra.mxu0 %v2779
  %2781 = vmatprep.subr.mxu0 0.0
  %v2782 = vand.u32 %v52, 4294901760
  %v2783 = vsub.f32 %v52, %v2782
  %v2784 = vand.u32 %v2783, 4294901760
  %2785 = vmatpush1.msra.mxu0 %v2784
  %2786 = vmatprep.subr.mxu0 0.0
  %v2787 = vand.u32 %v51, 4294901760
  %v2788 = vsub.f32 %v51, %v2787
  %v2789 = vand.u32 %v2788, 4294901760
  %2790 = vmatpush1.msra.mxu0 %v2789
  %2791 = vmatprep.subr.mxu0 0.0
  %v2792 = vand.u32 %v50, 4294901760
  %v2793 = vsub.f32 %v50, %v2792
  %v2794 = vand.u32 %v2793, 4294901760
  %2795 = vmatpush1.msra.mxu0 %v2794
  %2796 = vmatprep.subr.mxu0 0.0
  %v2797 = vand.u32 %v49, 4294901760
  %v2798 = vsub.f32 %v49, %v2797
  %v2799 = vand.u32 %v2798, 4294901760
  %2800 = vmatpush1.msra.mxu0 %v2799
  %2801 = vmatprep.subr.mxu0 0.0
  %v2802 = vand.u32 %v48, 4294901760
  %v2803 = vsub.f32 %v48, %v2802
  %v2804 = vand.u32 %v2803, 4294901760
  %2805 = vmatpush1.msra.mxu0 %v2804
  %2806 = vmatprep.subr.mxu0 0.0
  %v2807 = vand.u32 %v47, 4294901760
  %v2808 = vsub.f32 %v47, %v2807
  %v2809 = vand.u32 %v2808, 4294901760
  %2810 = vmatpush1.msra.mxu0 %v2809
  %2811 = vmatprep.subr.mxu0 0.0
  %2812 = vmatpush2.msra.mxu0 0.0
  %2813 = vmatprep.subr.mxu0 0.0
  %2814 = vmatpush2.msra.mxu0 0.0
  %2815 = vmatprep.subr.mxu0 0.0
  %2816 = vmatpush2.msra.mxu0 0.0
  %2817 = vmatprep.subr.mxu0 0.0
  %2818 = vmatpush2.msra.mxu0 0.0
  %2819 = vmatprep.subr.mxu0 0.0
  %2820 = vmatpush2.msra.mxu0 0.0
  %2821 = vmatprep.subr.mxu0 0.0
  %2822 = vmatpush2.msra.mxu0 0.0
  %2823 = vmatprep.subr.mxu0 0.0
  %2824 = vmatpush2.msra.mxu0 0.0
  %2825 = vmatprep.subr.mxu0 0.0
  %2826 = vmatpush2.msra.mxu0 0.0
  %2827 = vmatprep.subr.mxu0 0.0
  %2828 = vmatpush2.msra.mxu0 0.0
  %2829 = vmatprep.subr.mxu0 0.0
  %2830 = vmatpush2.msra.mxu0 0.0
  %2831 = vmatprep.subr.mxu0 0.0
  %2832 = vmatpush2.msra.mxu0 0.0
  %2833 = vmatprep.subr.mxu0 0.0
  %2834 = vmatpush2.msra.mxu0 0.0
  %2835 = vmatprep.subr.mxu0 0.0
  %2836 = vmatpush2.msra.mxu0 0.0
  %2837 = vmatprep.subr.mxu0 0.0
  %2838 = vmatpush2.msra.mxu0 0.0
  %2839 = vmatprep.subr.mxu0 0.0
  %2840 = vmatpush2.msra.mxu0 0.0
  %2841 = vmatprep.subr.mxu0 0.0
  %2842 = vmatpush2.msra.mxu0 0.0
  %2843 = vmatprep.mubr.f32.mxu0 0.0
  %v2844 = vand.u32 %v2292, 4294901760
  %2845 = vmatmul.mubr.f32.gmra.mxu0 %v2844
  %v2846 = vpop.f32.mrf.mxu0
  %v2847 = vadd.f32 %v2728, %v2846
  %v2848 = vpop.f32.mrf.mxu0
  %2849 = vdwg.mxu0
  %2850 = vmatprep.subr.mxu0 0.0
  %v2851 = vand.u32 %v62, 4294901760
  %2852 = vmatpush1.msra.mxu0 %v2851
  %2853 = vmatprep.subr.mxu0 0.0
  %v2854 = vand.u32 %v61, 4294901760
  %2855 = vmatpush1.msra.mxu0 %v2854
  %2856 = vmatprep.subr.mxu0 0.0
  %v2857 = vand.u32 %v60, 4294901760
  %2858 = vmatpush1.msra.mxu0 %v2857
  %2859 = vmatprep.subr.mxu0 0.0
  %v2860 = vand.u32 %v59, 4294901760
  %2861 = vmatpush1.msra.mxu0 %v2860
  %2862 = vmatprep.subr.mxu0 0.0
  %v2863 = vand.u32 %v58, 4294901760
  %2864 = vmatpush1.msra.mxu0 %v2863
  %2865 = vmatprep.subr.mxu0 0.0
  %v2866 = vand.u32 %v57, 4294901760
  %2867 = vmatpush1.msra.mxu0 %v2866
  %2868 = vmatprep.subr.mxu0 0.0
  %v2869 = vand.u32 %v56, 4294901760
  %2870 = vmatpush1.msra.mxu0 %v2869
  %2871 = vmatprep.subr.mxu0 0.0
  %v2872 = vand.u32 %v55, 4294901760
  %2873 = vmatpush1.msra.mxu0 %v2872
  %2874 = vmatprep.subr.mxu0 0.0
  %v2875 = vand.u32 %v54, 4294901760
  %2876 = vmatpush1.msra.mxu0 %v2875
  %2877 = vmatprep.subr.mxu0 0.0
  %v2878 = vand.u32 %v53, 4294901760
  %2879 = vmatpush1.msra.mxu0 %v2878
  %2880 = vmatprep.subr.mxu0 0.0
  %v2881 = vand.u32 %v52, 4294901760
  %2882 = vmatpush1.msra.mxu0 %v2881
  %2883 = vmatprep.subr.mxu0 0.0
  %v2884 = vand.u32 %v51, 4294901760
  %2885 = vmatpush1.msra.mxu0 %v2884
  %2886 = vmatprep.subr.mxu0 0.0
  %v2887 = vand.u32 %v50, 4294901760
  %2888 = vmatpush1.msra.mxu0 %v2887
  %2889 = vmatprep.subr.mxu0 0.0
  %v2890 = vand.u32 %v49, 4294901760
  %2891 = vmatpush1.msra.mxu0 %v2890
  %2892 = vmatprep.subr.mxu0 0.0
  %v2893 = vand.u32 %v48, 4294901760
  %2894 = vmatpush1.msra.mxu0 %v2893
  %2895 = vmatprep.subr.mxu0 0.0
  %v2896 = vand.u32 %v47, 4294901760
  %2897 = vmatpush1.msra.mxu0 %v2896
  %2898 = vmatprep.subr.mxu0 0.0
  %2899 = vmatpush2.msra.mxu0 0.0
  %2900 = vmatprep.subr.mxu0 0.0
  %2901 = vmatpush2.msra.mxu0 0.0
  %2902 = vmatprep.subr.mxu0 0.0
  %2903 = vmatpush2.msra.mxu0 0.0
  %2904 = vmatprep.subr.mxu0 0.0
  %2905 = vmatpush2.msra.mxu0 0.0
  %2906 = vmatprep.subr.mxu0 0.0
  %2907 = vmatpush2.msra.mxu0 0.0
  %2908 = vmatprep.subr.mxu0 0.0
  %2909 = vmatpush2.msra.mxu0 0.0
  %2910 = vmatprep.subr.mxu0 0.0
  %2911 = vmatpush2.msra.mxu0 0.0
  %2912 = vmatprep.subr.mxu0 0.0
  %2913 = vmatpush2.msra.mxu0 0.0
  %2914 = vmatprep.subr.mxu0 0.0
  %2915 = vmatpush2.msra.mxu0 0.0
  %2916 = vmatprep.subr.mxu0 0.0
  %2917 = vmatpush2.msra.mxu0 0.0
  %2918 = vmatprep.subr.mxu0 0.0
  %2919 = vmatpush2.msra.mxu0 0.0
  %2920 = vmatprep.subr.mxu0 0.0
  %2921 = vmatpush2.msra.mxu0 0.0
  %2922 = vmatprep.subr.mxu0 0.0
  %2923 = vmatpush2.msra.mxu0 0.0
  %2924 = vmatprep.subr.mxu0 0.0
  %2925 = vmatpush2.msra.mxu0 0.0
  %2926 = vmatprep.subr.mxu0 0.0
  %2927 = vmatpush2.msra.mxu0 0.0
  %2928 = vmatprep.subr.mxu0 0.0
  %2929 = vmatpush2.msra.mxu0 0.0
  %2930 = vmatprep.mubr.f32.mxu0 0.0
  %v2931 = vand.u32 %v2292, 4294901760
  %2932 = vmatmul.mubr.f32.gmra.mxu0 %v2931
  %v2933 = vpop.f32.mrf.mxu0
  %v2934 = vadd.f32 %v2847, %v2933
  %v2935 = vpop.f32.mrf.mxu0
  %2936 = vdwg.mxu0
  %v2937 = vadd.f32 %v2295, %v2934
  %v2938 = vtanh.pop %v2937
  %2939 = vst [vmem:[%s2294] sm:$0xff] %v2938
  %s2940 = scalar_lea.vmem [#allocation2], 24
  %v2941 = vld [vmem:[%s2940] sm:$0xff]
  %2942 = vmatprep.subr.mxu0 0.0
  %v2943 = vand.u32 %v62, 4294901760
  %2944 = vmatpush1.msra.mxu0 %v2943
  %2945 = vmatprep.subr.mxu0 0.0
  %v2946 = vand.u32 %v61, 4294901760
  %2947 = vmatpush1.msra.mxu0 %v2946
  %2948 = vmatprep.subr.mxu0 0.0
  %v2949 = vand.u32 %v60, 4294901760
  %2950 = vmatpush1.msra.mxu0 %v2949
  %2951 = vmatprep.subr.mxu0 0.0
  %v2952 = vand.u32 %v59, 4294901760
  %2953 = vmatpush1.msra.mxu0 %v2952
  %2954 = vmatprep.subr.mxu0 0.0
  %v2955 = vand.u32 %v58, 4294901760
  %2956 = vmatpush1.msra.mxu0 %v2955
  %2957 = vmatprep.subr.mxu0 0.0
  %v2958 = vand.u32 %v57, 4294901760
  %2959 = vmatpush1.msra.mxu0 %v2958
  %2960 = vmatprep.subr.mxu0 0.0
  %v2961 = vand.u32 %v56, 4294901760
  %2962 = vmatpush1.msra.mxu0 %v2961
  %2963 = vmatprep.subr.mxu0 0.0
  %v2964 = vand.u32 %v55, 4294901760
  %2965 = vmatpush1.msra.mxu0 %v2964
  %2966 = vmatprep.subr.mxu0 0.0
  %v2967 = vand.u32 %v54, 4294901760
  %2968 = vmatpush1.msra.mxu0 %v2967
  %2969 = vmatprep.subr.mxu0 0.0
  %v2970 = vand.u32 %v53, 4294901760
  %2971 = vmatpush1.msra.mxu0 %v2970
  %2972 = vmatprep.subr.mxu0 0.0
  %v2973 = vand.u32 %v52, 4294901760
  %2974 = vmatpush1.msra.mxu0 %v2973
  %2975 = vmatprep.subr.mxu0 0.0
  %v2976 = vand.u32 %v51, 4294901760
  %2977 = vmatpush1.msra.mxu0 %v2976
  %2978 = vmatprep.subr.mxu0 0.0
  %v2979 = vand.u32 %v50, 4294901760
  %2980 = vmatpush1.msra.mxu0 %v2979
  %2981 = vmatprep.subr.mxu0 0.0
  %v2982 = vand.u32 %v49, 4294901760
  %2983 = vmatpush1.msra.mxu0 %v2982
  %2984 = vmatprep.subr.mxu0 0.0
  %v2985 = vand.u32 %v48, 4294901760
  %2986 = vmatpush1.msra.mxu0 %v2985
  %2987 = vmatprep.subr.mxu0 0.0
  %v2988 = vand.u32 %v47, 4294901760
  %2989 = vmatpush1.msra.mxu0 %v2988
  %2990 = vmatprep.subr.mxu0 0.0
  %2991 = vmatpush2.msra.mxu0 0.0
  %2992 = vmatprep.subr.mxu0 0.0
  %2993 = vmatpush2.msra.mxu0 0.0
  %2994 = vmatprep.subr.mxu0 0.0
  %2995 = vmatpush2.msra.mxu0 0.0
  %2996 = vmatprep.subr.mxu0 0.0
  %2997 = vmatpush2.msra.mxu0 0.0
  %2998 = vmatprep.subr.mxu0 0.0
  %2999 = vmatpush2.msra.mxu0 0.0
  %3000 = vmatprep.subr.mxu0 0.0
  %3001 = vmatpush2.msra.mxu0 0.0
  %3002 = vmatprep.subr.mxu0 0.0
  %3003 = vmatpush2.msra.mxu0 0.0
  %3004 = vmatprep.subr.mxu0 0.0
  %3005 = vmatpush2.msra.mxu0 0.0
  %3006 = vmatprep.subr.mxu0 0.0
  %3007 = vmatpush2.msra.mxu0 0.0
  %3008 = vmatprep.subr.mxu0 0.0
  %3009 = vmatpush2.msra.mxu0 0.0
  %3010 = vmatprep.subr.mxu0 0.0
  %3011 = vmatpush2.msra.mxu0 0.0
  %3012 = vmatprep.subr.mxu0 0.0
  %3013 = vmatpush2.msra.mxu0 0.0
  %3014 = vmatprep.subr.mxu0 0.0
  %3015 = vmatpush2.msra.mxu0 0.0
  %3016 = vmatprep.subr.mxu0 0.0
  %3017 = vmatpush2.msra.mxu0 0.0
  %3018 = vmatprep.subr.mxu0 0.0
  %3019 = vmatpush2.msra.mxu0 0.0
  %3020 = vmatprep.subr.mxu0 0.0
  %3021 = vmatpush2.msra.mxu0 0.0
  %3022 = vmatprep.mubr.f32.mxu0 0.0
  %v3023 = vand.u32 %v2938, 4294901760
  %v3024 = vsub.f32 %v2938, %v3023
  %v3025 = vand.u32 %v3024, 4294901760
  %v3026 = vsub.f32 %v3024, %v3025
  %v3027 = vand.u32 %v3026, 4294901760
  %3028 = vmatmul.mubr.f32.gmra.mxu0 %v3027
  %v3029 = vpop.f32.mrf.mxu0
  %v3030 = vadd.f32 0.0, %v3029
  %v3031 = vpop.f32.mrf.mxu0
  %3032 = vdwg.mxu0
  %3033 = vmatprep.subr.mxu0 0.0
  %v3034 = vand.u32 %v62, 4294901760
  %v3035 = vsub.f32 %v62, %v3034
  %v3036 = vand.u32 %v3035, 4294901760
  %v3037 = vsub.f32 %v3035, %v3036
  %v3038 = vand.u32 %v3037, 4294901760
  %3039 = vmatpush1.msra.mxu0 %v3038
  %3040 = vmatprep.subr.mxu0 0.0
  %v3041 = vand.u32 %v61, 4294901760
  %v3042 = vsub.f32 %v61, %v3041
  %v3043 = vand.u32 %v3042, 4294901760
  %v3044 = vsub.f32 %v3042, %v3043
  %v3045 = vand.u32 %v3044, 4294901760
  %3046 = vmatpush1.msra.mxu0 %v3045
  %3047 = vmatprep.subr.mxu0 0.0
  %v3048 = vand.u32 %v60, 4294901760
  %v3049 = vsub.f32 %v60, %v3048
  %v3050 = vand.u32 %v3049, 4294901760
  %v3051 = vsub.f32 %v3049, %v3050
  %v3052 = vand.u32 %v3051, 4294901760
  %3053 = vmatpush1.msra.mxu0 %v3052
  %3054 = vmatprep.subr.mxu0 0.0
  %v3055 = vand.u32 %v59, 4294901760
  %v3056 = vsub.f32 %v59, %v3055
  %v3057 = vand.u32 %v3056, 4294901760
  %v3058 = vsub.f32 %v3056, %v3057
  %v3059 = vand.u32 %v3058, 4294901760
  %3060 = vmatpush1.msra.mxu0 %v3059
  %3061 = vmatprep.subr.mxu0 0.0
  %v3062 = vand.u32 %v58, 4294901760
  %v3063 = vsub.f32 %v58, %v3062
  %v3064 = vand.u32 %v3063, 4294901760
  %v3065 = vsub.f32 %v3063, %v3064
  %v3066 = vand.u32 %v3065, 4294901760
  %3067 = vmatpush1.msra.mxu0 %v3066
  %3068 = vmatprep.subr.mxu0 0.0
  %v3069 = vand.u32 %v57, 4294901760
  %v3070 = vsub.f32 %v57, %v3069
  %v3071 = vand.u32 %v3070, 4294901760
  %v3072 = vsub.f32 %v3070, %v3071
  %v3073 = vand.u32 %v3072, 4294901760
  %3074 = vmatpush1.msra.mxu0 %v3073
  %3075 = vmatprep.subr.mxu0 0.0
  %v3076 = vand.u32 %v56, 4294901760
  %v3077 = vsub.f32 %v56, %v3076
  %v3078 = vand.u32 %v3077, 4294901760
  %v3079 = vsub.f32 %v3077, %v3078
  %v3080 = vand.u32 %v3079, 4294901760
  %3081 = vmatpush1.msra.mxu0 %v3080
  %3082 = vmatprep.subr.mxu0 0.0
  %v3083 = vand.u32 %v55, 4294901760
  %v3084 = vsub.f32 %v55, %v3083
  %v3085 = vand.u32 %v3084, 4294901760
  %v3086 = vsub.f32 %v3084, %v3085
  %v3087 = vand.u32 %v3086, 4294901760
  %3088 = vmatpush1.msra.mxu0 %v3087
  %3089 = vmatprep.subr.mxu0 0.0
  %v3090 = vand.u32 %v54, 4294901760
  %v3091 = vsub.f32 %v54, %v3090
  %v3092 = vand.u32 %v3091, 4294901760
  %v3093 = vsub.f32 %v3091, %v3092
  %v3094 = vand.u32 %v3093, 4294901760
  %3095 = vmatpush1.msra.mxu0 %v3094
  %3096 = vmatprep.subr.mxu0 0.0
  %v3097 = vand.u32 %v53, 4294901760
  %v3098 = vsub.f32 %v53, %v3097
  %v3099 = vand.u32 %v3098, 4294901760
  %v3100 = vsub.f32 %v3098, %v3099
  %v3101 = vand.u32 %v3100, 4294901760
  %3102 = vmatpush1.msra.mxu0 %v3101
  %3103 = vmatprep.subr.mxu0 0.0
  %v3104 = vand.u32 %v52, 4294901760
  %v3105 = vsub.f32 %v52, %v3104
  %v3106 = vand.u32 %v3105, 4294901760
  %v3107 = vsub.f32 %v3105, %v3106
  %v3108 = vand.u32 %v3107, 4294901760
  %3109 = vmatpush1.msra.mxu0 %v3108
  %3110 = vmatprep.subr.mxu0 0.0
  %v3111 = vand.u32 %v51, 4294901760
  %v3112 = vsub.f32 %v51, %v3111
  %v3113 = vand.u32 %v3112, 4294901760
  %v3114 = vsub.f32 %v3112, %v3113
  %v3115 = vand.u32 %v3114, 4294901760
  %3116 = vmatpush1.msra.mxu0 %v3115
  %3117 = vmatprep.subr.mxu0 0.0
  %v3118 = vand.u32 %v50, 4294901760
  %v3119 = vsub.f32 %v50, %v3118
  %v3120 = vand.u32 %v3119, 4294901760
  %v3121 = vsub.f32 %v3119, %v3120
  %v3122 = vand.u32 %v3121, 4294901760
  %3123 = vmatpush1.msra.mxu0 %v3122
  %3124 = vmatprep.subr.mxu0 0.0
  %v3125 = vand.u32 %v49, 4294901760
  %v3126 = vsub.f32 %v49, %v3125
  %v3127 = vand.u32 %v3126, 4294901760
  %v3128 = vsub.f32 %v3126, %v3127
  %v3129 = vand.u32 %v3128, 4294901760
  %3130 = vmatpush1.msra.mxu0 %v3129
  %3131 = vmatprep.subr.mxu0 0.0
  %v3132 = vand.u32 %v48, 4294901760
  %v3133 = vsub.f32 %v48, %v3132
  %v3134 = vand.u32 %v3133, 4294901760
  %v3135 = vsub.f32 %v3133, %v3134
  %v3136 = vand.u32 %v3135, 4294901760
  %3137 = vmatpush1.msra.mxu0 %v3136
  %3138 = vmatprep.subr.mxu0 0.0
  %v3139 = vand.u32 %v47, 4294901760
  %v3140 = vsub.f32 %v47, %v3139
  %v3141 = vand.u32 %v3140, 4294901760
  %v3142 = vsub.f32 %v3140, %v3141
  %v3143 = vand.u32 %v3142, 4294901760
  %3144 = vmatpush1.msra.mxu0 %v3143
  %3145 = vmatprep.subr.mxu0 0.0
  %3146 = vmatpush2.msra.mxu0 0.0
  %3147 = vmatprep.subr.mxu0 0.0
  %3148 = vmatpush2.msra.mxu0 0.0
  %3149 = vmatprep.subr.mxu0 0.0
  %3150 = vmatpush2.msra.mxu0 0.0
  %3151 = vmatprep.subr.mxu0 0.0
  %3152 = vmatpush2.msra.mxu0 0.0
  %3153 = vmatprep.subr.mxu0 0.0
  %3154 = vmatpush2.msra.mxu0 0.0
  %3155 = vmatprep.subr.mxu0 0.0
  %3156 = vmatpush2.msra.mxu0 0.0
  %3157 = vmatprep.subr.mxu0 0.0
  %3158 = vmatpush2.msra.mxu0 0.0
  %3159 = vmatprep.subr.mxu0 0.0
  %3160 = vmatpush2.msra.mxu0 0.0
  %3161 = vmatprep.subr.mxu0 0.0
  %3162 = vmatpush2.msra.mxu0 0.0
  %3163 = vmatprep.subr.mxu0 0.0
  %3164 = vmatpush2.msra.mxu0 0.0
  %3165 = vmatprep.subr.mxu0 0.0
  %3166 = vmatpush2.msra.mxu0 0.0
  %3167 = vmatprep.subr.mxu0 0.0
  %3168 = vmatpush2.msra.mxu0 0.0
  %3169 = vmatprep.subr.mxu0 0.0
  %3170 = vmatpush2.msra.mxu0 0.0
  %3171 = vmatprep.subr.mxu0 0.0
  %3172 = vmatpush2.msra.mxu0 0.0
  %3173 = vmatprep.subr.mxu0 0.0
  %3174 = vmatpush2.msra.mxu0 0.0
  %3175 = vmatprep.subr.mxu0 0.0
  %3176 = vmatpush2.msra.mxu0 0.0
  %3177 = vmatprep.mubr.f32.mxu0 0.0
  %v3178 = vand.u32 %v2938, 4294901760
  %3179 = vmatmul.mubr.f32.gmra.mxu0 %v3178
  %v3180 = vpop.f32.mrf.mxu0
  %v3181 = vadd.f32 %v3030, %v3180
  %v3182 = vpop.f32.mrf.mxu0
  %3183 = vdwg.mxu0
  %3184 = vmatprep.subr.mxu0 0.0
  %v3185 = vand.u32 %v62, 4294901760
  %v3186 = vsub.f32 %v62, %v3185
  %3187 = vmatpush1.msra.mxu0 %v3186
  %3188 = vmatprep.subr.mxu0 0.0
  %v3189 = vand.u32 %v61, 4294901760
  %v3190 = vsub.f32 %v61, %v3189
  %3191 = vmatpush1.msra.mxu0 %v3190
  %3192 = vmatprep.subr.mxu0 0.0
  %v3193 = vand.u32 %v60, 4294901760
  %v3194 = vsub.f32 %v60, %v3193
  %3195 = vmatpush1.msra.mxu0 %v3194
  %3196 = vmatprep.subr.mxu0 0.0
  %v3197 = vand.u32 %v59, 4294901760
  %v3198 = vsub.f32 %v59, %v3197
  %3199 = vmatpush1.msra.mxu0 %v3198
  %3200 = vmatprep.subr.mxu0 0.0
  %v3201 = vand.u32 %v58, 4294901760
  %v3202 = vsub.f32 %v58, %v3201
  %3203 = vmatpush1.msra.mxu0 %v3202
  %3204 = vmatprep.subr.mxu0 0.0
  %v3205 = vand.u32 %v57, 4294901760
  %v3206 = vsub.f32 %v57, %v3205
  %3207 = vmatpush1.msra.mxu0 %v3206
  %3208 = vmatprep.subr.mxu0 0.0
  %v3209 = vand.u32 %v56, 4294901760
  %v3210 = vsub.f32 %v56, %v3209
  %3211 = vmatpush1.msra.mxu0 %v3210
  %3212 = vmatprep.subr.mxu0 0.0
  %v3213 = vand.u32 %v55, 4294901760
  %v3214 = vsub.f32 %v55, %v3213
  %3215 = vmatpush1.msra.mxu0 %v3214
  %3216 = vmatprep.subr.mxu0 0.0
  %v3217 = vand.u32 %v54, 4294901760
  %v3218 = vsub.f32 %v54, %v3217
  %3219 = vmatpush1.msra.mxu0 %v3218
  %3220 = vmatprep.subr.mxu0 0.0
  %v3221 = vand.u32 %v53, 4294901760
  %v3222 = vsub.f32 %v53, %v3221
  %3223 = vmatpush1.msra.mxu0 %v3222
  %3224 = vmatprep.subr.mxu0 0.0
  %v3225 = vand.u32 %v52, 4294901760
  %v3226 = vsub.f32 %v52, %v3225
  %3227 = vmatpush1.msra.mxu0 %v3226
  %3228 = vmatprep.subr.mxu0 0.0
  %v3229 = vand.u32 %v51, 4294901760
  %v3230 = vsub.f32 %v51, %v3229
  %3231 = vmatpush1.msra.mxu0 %v3230
  %3232 = vmatprep.subr.mxu0 0.0
  %v3233 = vand.u32 %v50, 4294901760
  %v3234 = vsub.f32 %v50, %v3233
  %3235 = vmatpush1.msra.mxu0 %v3234
  %3236 = vmatprep.subr.mxu0 0.0
  %v3237 = vand.u32 %v49, 4294901760
  %v3238 = vsub.f32 %v49, %v3237
  %3239 = vmatpush1.msra.mxu0 %v3238
  %3240 = vmatprep.subr.mxu0 0.0
  %v3241 = vand.u32 %v48, 4294901760
  %v3242 = vsub.f32 %v48, %v3241
  %3243 = vmatpush1.msra.mxu0 %v3242
  %3244 = vmatprep.subr.mxu0 0.0
  %v3245 = vand.u32 %v47, 4294901760
  %v3246 = vsub.f32 %v47, %v3245
  %3247 = vmatpush1.msra.mxu0 %v3246
  %3248 = vmatprep.subr.mxu0 0.0
  %3249 = vmatpush2.msra.mxu0 0.0
  %3250 = vmatprep.subr.mxu0 0.0
  %3251 = vmatpush2.msra.mxu0 0.0
  %3252 = vmatprep.subr.mxu0 0.0
  %3253 = vmatpush2.msra.mxu0 0.0
  %3254 = vmatprep.subr.mxu0 0.0
  %3255 = vmatpush2.msra.mxu0 0.0
  %3256 = vmatprep.subr.mxu0 0.0
  %3257 = vmatpush2.msra.mxu0 0.0
  %3258 = vmatprep.subr.mxu0 0.0
  %3259 = vmatpush2.msra.mxu0 0.0
  %3260 = vmatprep.subr.mxu0 0.0
  %3261 = vmatpush2.msra.mxu0 0.0
  %3262 = vmatprep.subr.mxu0 0.0
  %3263 = vmatpush2.msra.mxu0 0.0
  %3264 = vmatprep.subr.mxu0 0.0
  %3265 = vmatpush2.msra.mxu0 0.0
  %3266 = vmatprep.subr.mxu0 0.0
  %3267 = vmatpush2.msra.mxu0 0.0
  %3268 = vmatprep.subr.mxu0 0.0
  %3269 = vmatpush2.msra.mxu0 0.0
  %3270 = vmatprep.subr.mxu0 0.0
  %3271 = vmatpush2.msra.mxu0 0.0
  %3272 = vmatprep.subr.mxu0 0.0
  %3273 = vmatpush2.msra.mxu0 0.0
  %3274 = vmatprep.subr.mxu0 0.0
  %3275 = vmatpush2.msra.mxu0 0.0
  %3276 = vmatprep.subr.mxu0 0.0
  %3277 = vmatpush2.msra.mxu0 0.0
  %3278 = vmatprep.subr.mxu0 0.0
  %3279 = vmatpush2.msra.mxu0 0.0
  %3280 = vmatprep.mubr.f32.mxu0 0.0
  %v3281 = vand.u32 %v2938, 4294901760
  %v3282 = vsub.f32 %v2938, %v3281
  %3283 = vmatmul.mubr.f32.gmra.mxu0 %v3282
  %v3284 = vpop.f32.mrf.mxu0
  %v3285 = vadd.f32 %v3181, %v3284
  %v3286 = vpop.f32.mrf.mxu0
  %3287 = vdwg.mxu0
  %3288 = vmatprep.subr.mxu0 0.0
  %v3289 = vand.u32 %v62, 4294901760
  %3290 = vmatpush1.msra.mxu0 %v3289
  %3291 = vmatprep.subr.mxu0 0.0
  %v3292 = vand.u32 %v61, 4294901760
  %3293 = vmatpush1.msra.mxu0 %v3292
  %3294 = vmatprep.subr.mxu0 0.0
  %v3295 = vand.u32 %v60, 4294901760
  %3296 = vmatpush1.msra.mxu0 %v3295
  %3297 = vmatprep.subr.mxu0 0.0
  %v3298 = vand.u32 %v59, 4294901760
  %3299 = vmatpush1.msra.mxu0 %v3298
  %3300 = vmatprep.subr.mxu0 0.0
  %v3301 = vand.u32 %v58, 4294901760
  %3302 = vmatpush1.msra.mxu0 %v3301
  %3303 = vmatprep.subr.mxu0 0.0
  %v3304 = vand.u32 %v57, 4294901760
  %3305 = vmatpush1.msra.mxu0 %v3304
  %3306 = vmatprep.subr.mxu0 0.0
  %v3307 = vand.u32 %v56, 4294901760
  %3308 = vmatpush1.msra.mxu0 %v3307
  %3309 = vmatprep.subr.mxu0 0.0
  %v3310 = vand.u32 %v55, 4294901760
  %3311 = vmatpush1.msra.mxu0 %v3310
  %3312 = vmatprep.subr.mxu0 0.0
  %v3313 = vand.u32 %v54, 4294901760
  %3314 = vmatpush1.msra.mxu0 %v3313
  %3315 = vmatprep.subr.mxu0 0.0
  %v3316 = vand.u32 %v53, 4294901760
  %3317 = vmatpush1.msra.mxu0 %v3316
  %3318 = vmatprep.subr.mxu0 0.0
  %v3319 = vand.u32 %v52, 4294901760
  %3320 = vmatpush1.msra.mxu0 %v3319
  %3321 = vmatprep.subr.mxu0 0.0
  %v3322 = vand.u32 %v51, 4294901760
  %3323 = vmatpush1.msra.mxu0 %v3322
  %3324 = vmatprep.subr.mxu0 0.0
  %v3325 = vand.u32 %v50, 4294901760
  %3326 = vmatpush1.msra.mxu0 %v3325
  %3327 = vmatprep.subr.mxu0 0.0
  %v3328 = vand.u32 %v49, 4294901760
  %3329 = vmatpush1.msra.mxu0 %v3328
  %3330 = vmatprep.subr.mxu0 0.0
  %v3331 = vand.u32 %v48, 4294901760
  %3332 = vmatpush1.msra.mxu0 %v3331
  %3333 = vmatprep.subr.mxu0 0.0
  %v3334 = vand.u32 %v47, 4294901760
  %3335 = vmatpush1.msra.mxu0 %v3334
  %3336 = vmatprep.subr.mxu0 0.0
  %3337 = vmatpush2.msra.mxu0 0.0
  %3338 = vmatprep.subr.mxu0 0.0
  %3339 = vmatpush2.msra.mxu0 0.0
  %3340 = vmatprep.subr.mxu0 0.0
  %3341 = vmatpush2.msra.mxu0 0.0
  %3342 = vmatprep.subr.mxu0 0.0
  %3343 = vmatpush2.msra.mxu0 0.0
  %3344 = vmatprep.subr.mxu0 0.0
  %3345 = vmatpush2.msra.mxu0 0.0
  %3346 = vmatprep.subr.mxu0 0.0
  %3347 = vmatpush2.msra.mxu0 0.0
  %3348 = vmatprep.subr.mxu0 0.0
  %3349 = vmatpush2.msra.mxu0 0.0
  %3350 = vmatprep.subr.mxu0 0.0
  %3351 = vmatpush2.msra.mxu0 0.0
  %3352 = vmatprep.subr.mxu0 0.0
  %3353 = vmatpush2.msra.mxu0 0.0
  %3354 = vmatprep.subr.mxu0 0.0
  %3355 = vmatpush2.msra.mxu0 0.0
  %3356 = vmatprep.subr.mxu0 0.0
  %3357 = vmatpush2.msra.mxu0 0.0
  %3358 = vmatprep.subr.mxu0 0.0
  %3359 = vmatpush2.msra.mxu0 0.0
  %3360 = vmatprep.subr.mxu0 0.0
  %3361 = vmatpush2.msra.mxu0 0.0
  %3362 = vmatprep.subr.mxu0 0.0
  %3363 = vmatpush2.msra.mxu0 0.0
  %3364 = vmatprep.subr.mxu0 0.0
  %3365 = vmatpush2.msra.mxu0 0.0
  %3366 = vmatprep.subr.mxu0 0.0
  %3367 = vmatpush2.msra.mxu0 0.0
  %3368 = vmatprep.mubr.f32.mxu0 0.0
  %v3369 = vand.u32 %v2938, 4294901760
  %v3370 = vsub.f32 %v2938, %v3369
  %v3371 = vand.u32 %v3370, 4294901760
  %3372 = vmatmul.mubr.f32.gmra.mxu0 %v3371
  %v3373 = vpop.f32.mrf.mxu0
  %v3374 = vadd.f32 %v3285, %v3373
  %v3375 = vpop.f32.mrf.mxu0
  %3376 = vdwg.mxu0
  %3377 = vmatprep.subr.mxu0 0.0
  %v3378 = vand.u32 %v62, 4294901760
  %v3379 = vsub.f32 %v62, %v3378
  %v3380 = vand.u32 %v3379, 4294901760
  %3381 = vmatpush1.msra.mxu0 %v3380
  %3382 = vmatprep.subr.mxu0 0.0
  %v3383 = vand.u32 %v61, 4294901760
  %v3384 = vsub.f32 %v61, %v3383
  %v3385 = vand.u32 %v3384, 4294901760
  %3386 = vmatpush1.msra.mxu0 %v3385
  %3387 = vmatprep.subr.mxu0 0.0
  %v3388 = vand.u32 %v60, 4294901760
  %v3389 = vsub.f32 %v60, %v3388
  %v3390 = vand.u32 %v3389, 4294901760
  %3391 = vmatpush1.msra.mxu0 %v3390
  %3392 = vmatprep.subr.mxu0 0.0
  %v3393 = vand.u32 %v59, 4294901760
  %v3394 = vsub.f32 %v59, %v3393
  %v3395 = vand.u32 %v3394, 4294901760
  %3396 = vmatpush1.msra.mxu0 %v3395
  %3397 = vmatprep.subr.mxu0 0.0
  %v3398 = vand.u32 %v58, 4294901760
  %v3399 = vsub.f32 %v58, %v3398
  %v3400 = vand.u32 %v3399, 4294901760
  %3401 = vmatpush1.msra.mxu0 %v3400
  %3402 = vmatprep.subr.mxu0 0.0
  %v3403 = vand.u32 %v57, 4294901760
  %v3404 = vsub.f32 %v57, %v3403
  %v3405 = vand.u32 %v3404, 4294901760
  %3406 = vmatpush1.msra.mxu0 %v3405
  %3407 = vmatprep.subr.mxu0 0.0
  %v3408 = vand.u32 %v56, 4294901760
  %v3409 = vsub.f32 %v56, %v3408
  %v3410 = vand.u32 %v3409, 4294901760
  %3411 = vmatpush1.msra.mxu0 %v3410
  %3412 = vmatprep.subr.mxu0 0.0
  %v3413 = vand.u32 %v55, 4294901760
  %v3414 = vsub.f32 %v55, %v3413
  %v3415 = vand.u32 %v3414, 4294901760
  %3416 = vmatpush1.msra.mxu0 %v3415
  %3417 = vmatprep.subr.mxu0 0.0
  %v3418 = vand.u32 %v54, 4294901760
  %v3419 = vsub.f32 %v54, %v3418
  %v3420 = vand.u32 %v3419, 4294901760
  %3421 = vmatpush1.msra.mxu0 %v3420
  %3422 = vmatprep.subr.mxu0 0.0
  %v3423 = vand.u32 %v53, 4294901760
  %v3424 = vsub.f32 %v53, %v3423
  %v3425 = vand.u32 %v3424, 4294901760
  %3426 = vmatpush1.msra.mxu0 %v3425
  %3427 = vmatprep.subr.mxu0 0.0
  %v3428 = vand.u32 %v52, 4294901760
  %v3429 = vsub.f32 %v52, %v3428
  %v3430 = vand.u32 %v3429, 4294901760
  %3431 = vmatpush1.msra.mxu0 %v3430
  %3432 = vmatprep.subr.mxu0 0.0
  %v3433 = vand.u32 %v51, 4294901760
  %v3434 = vsub.f32 %v51, %v3433
  %v3435 = vand.u32 %v3434, 4294901760
  %3436 = vmatpush1.msra.mxu0 %v3435
  %3437 = vmatprep.subr.mxu0 0.0
  %v3438 = vand.u32 %v50, 4294901760
  %v3439 = vsub.f32 %v50, %v3438
  %v3440 = vand.u32 %v3439, 4294901760
  %3441 = vmatpush1.msra.mxu0 %v3440
  %3442 = vmatprep.subr.mxu0 0.0
  %v3443 = vand.u32 %v49, 4294901760
  %v3444 = vsub.f32 %v49, %v3443
  %v3445 = vand.u32 %v3444, 4294901760
  %3446 = vmatpush1.msra.mxu0 %v3445
  %3447 = vmatprep.subr.mxu0 0.0
  %v3448 = vand.u32 %v48, 4294901760
  %v3449 = vsub.f32 %v48, %v3448
  %v3450 = vand.u32 %v3449, 4294901760
  %3451 = vmatpush1.msra.mxu0 %v3450
  %3452 = vmatprep.subr.mxu0 0.0
  %v3453 = vand.u32 %v47, 4294901760
  %v3454 = vsub.f32 %v47, %v3453
  %v3455 = vand.u32 %v3454, 4294901760
  %3456 = vmatpush1.msra.mxu0 %v3455
  %3457 = vmatprep.subr.mxu0 0.0
  %3458 = vmatpush2.msra.mxu0 0.0
  %3459 = vmatprep.subr.mxu0 0.0
  %3460 = vmatpush2.msra.mxu0 0.0
  %3461 = vmatprep.subr.mxu0 0.0
  %3462 = vmatpush2.msra.mxu0 0.0
  %3463 = vmatprep.subr.mxu0 0.0
  %3464 = vmatpush2.msra.mxu0 0.0
  %3465 = vmatprep.subr.mxu0 0.0
  %3466 = vmatpush2.msra.mxu0 0.0
  %3467 = vmatprep.subr.mxu0 0.0
  %3468 = vmatpush2.msra.mxu0 0.0
  %3469 = vmatprep.subr.mxu0 0.0
  %3470 = vmatpush2.msra.mxu0 0.0
  %3471 = vmatprep.subr.mxu0 0.0
  %3472 = vmatpush2.msra.mxu0 0.0
  %3473 = vmatprep.subr.mxu0 0.0
  %3474 = vmatpush2.msra.mxu0 0.0
  %3475 = vmatprep.subr.mxu0 0.0
  %3476 = vmatpush2.msra.mxu0 0.0
  %3477 = vmatprep.subr.mxu0 0.0
  %3478 = vmatpush2.msra.mxu0 0.0
  %3479 = vmatprep.subr.mxu0 0.0
  %3480 = vmatpush2.msra.mxu0 0.0
  %3481 = vmatprep.subr.mxu0 0.0
  %3482 = vmatpush2.msra.mxu0 0.0
  %3483 = vmatprep.subr.mxu0 0.0
  %3484 = vmatpush2.msra.mxu0 0.0
  %3485 = vmatprep.subr.mxu0 0.0
  %3486 = vmatpush2.msra.mxu0 0.0
  %3487 = vmatprep.subr.mxu0 0.0
  %3488 = vmatpush2.msra.mxu0 0.0
  %3489 = vmatprep.mubr.f32.mxu0 0.0
  %v3490 = vand.u32 %v2938, 4294901760
  %3491 = vmatmul.mubr.f32.gmra.mxu0 %v3490
  %v3492 = vpop.f32.mrf.mxu0
  %v3493 = vadd.f32 %v3374, %v3492
  %v3494 = vpop.f32.mrf.mxu0
  %3495 = vdwg.mxu0
  %3496 = vmatprep.subr.mxu0 0.0
  %v3497 = vand.u32 %v62, 4294901760
  %3498 = vmatpush1.msra.mxu0 %v3497
  %3499 = vmatprep.subr.mxu0 0.0
  %v3500 = vand.u32 %v61, 4294901760
  %3501 = vmatpush1.msra.mxu0 %v3500
  %3502 = vmatprep.subr.mxu0 0.0
  %v3503 = vand.u32 %v60, 4294901760
  %3504 = vmatpush1.msra.mxu0 %v3503
  %3505 = vmatprep.subr.mxu0 0.0
  %v3506 = vand.u32 %v59, 4294901760
  %3507 = vmatpush1.msra.mxu0 %v3506
  %3508 = vmatprep.subr.mxu0 0.0
  %v3509 = vand.u32 %v58, 4294901760
  %3510 = vmatpush1.msra.mxu0 %v3509
  %3511 = vmatprep.subr.mxu0 0.0
  %v3512 = vand.u32 %v57, 4294901760
  %3513 = vmatpush1.msra.mxu0 %v3512
  %3514 = vmatprep.subr.mxu0 0.0
  %v3515 = vand.u32 %v56, 4294901760
  %3516 = vmatpush1.msra.mxu0 %v3515
  %3517 = vmatprep.subr.mxu0 0.0
  %v3518 = vand.u32 %v55, 4294901760
  %3519 = vmatpush1.msra.mxu0 %v3518
  %3520 = vmatprep.subr.mxu0 0.0
  %v3521 = vand.u32 %v54, 4294901760
  %3522 = vmatpush1.msra.mxu0 %v3521
  %3523 = vmatprep.subr.mxu0 0.0
  %v3524 = vand.u32 %v53, 4294901760
  %3525 = vmatpush1.msra.mxu0 %v3524
  %3526 = vmatprep.subr.mxu0 0.0
  %v3527 = vand.u32 %v52, 4294901760
  %3528 = vmatpush1.msra.mxu0 %v3527
  %3529 = vmatprep.subr.mxu0 0.0
  %v3530 = vand.u32 %v51, 4294901760
  %3531 = vmatpush1.msra.mxu0 %v3530
  %3532 = vmatprep.subr.mxu0 0.0
  %v3533 = vand.u32 %v50, 4294901760
  %3534 = vmatpush1.msra.mxu0 %v3533
  %3535 = vmatprep.subr.mxu0 0.0
  %v3536 = vand.u32 %v49, 4294901760
  %3537 = vmatpush1.msra.mxu0 %v3536
  %3538 = vmatprep.subr.mxu0 0.0
  %v3539 = vand.u32 %v48, 4294901760
  %3540 = vmatpush1.msra.mxu0 %v3539
  %3541 = vmatprep.subr.mxu0 0.0
  %v3542 = vand.u32 %v47, 4294901760
  %3543 = vmatpush1.msra.mxu0 %v3542
  %3544 = vmatprep.subr.mxu0 0.0
  %3545 = vmatpush2.msra.mxu0 0.0
  %3546 = vmatprep.subr.mxu0 0.0
  %3547 = vmatpush2.msra.mxu0 0.0
  %3548 = vmatprep.subr.mxu0 0.0
  %3549 = vmatpush2.msra.mxu0 0.0
  %3550 = vmatprep.subr.mxu0 0.0
  %3551 = vmatpush2.msra.mxu0 0.0
  %3552 = vmatprep.subr.mxu0 0.0
  %3553 = vmatpush2.msra.mxu0 0.0
  %3554 = vmatprep.subr.mxu0 0.0
  %3555 = vmatpush2.msra.mxu0 0.0
  %3556 = vmatprep.subr.mxu0 0.0
  %3557 = vmatpush2.msra.mxu0 0.0
  %3558 = vmatprep.subr.mxu0 0.0
  %3559 = vmatpush2.msra.mxu0 0.0
  %3560 = vmatprep.subr.mxu0 0.0
  %3561 = vmatpush2.msra.mxu0 0.0
  %3562 = vmatprep.subr.mxu0 0.0
  %3563 = vmatpush2.msra.mxu0 0.0
  %3564 = vmatprep.subr.mxu0 0.0
  %3565 = vmatpush2.msra.mxu0 0.0
  %3566 = vmatprep.subr.mxu0 0.0
  %3567 = vmatpush2.msra.mxu0 0.0
  %3568 = vmatprep.subr.mxu0 0.0
  %3569 = vmatpush2.msra.mxu0 0.0
  %3570 = vmatprep.subr.mxu0 0.0
  %3571 = vmatpush2.msra.mxu0 0.0
  %3572 = vmatprep.subr.mxu0 0.0
  %3573 = vmatpush2.msra.mxu0 0.0
  %3574 = vmatprep.subr.mxu0 0.0
  %3575 = vmatpush2.msra.mxu0 0.0
  %3576 = vmatprep.mubr.f32.mxu0 0.0
  %v3577 = vand.u32 %v2938, 4294901760
  %3578 = vmatmul.mubr.f32.gmra.mxu0 %v3577
  %v3579 = vpop.f32.mrf.mxu0
  %v3580 = vadd.f32 %v3493, %v3579
  %v3581 = vpop.f32.mrf.mxu0
  %3582 = vdwg.mxu0
  %v3583 = vadd.f32 %v2941, %v3580
  %v3584 = vtanh.pop %v3583
  %3585 = vst [vmem:[%s2940] sm:$0xff] %v3584
  %s3586 = scalar_lea.vmem [#allocation2], 32
  %v3587 = vld [vmem:[%s3586] sm:$0xff]
  %3588 = vmatprep.subr.mxu0 0.0
  %v3589 = vand.u32 %v62, 4294901760
  %3590 = vmatpush1.msra.mxu0 %v3589
  %3591 = vmatprep.subr.mxu0 0.0
  %v3592 = vand.u32 %v61, 4294901760
  %3593 = vmatpush1.msra.mxu0 %v3592
  %3594 = vmatprep.subr.mxu0 0.0
  %v3595 = vand.u32 %v60, 4294901760
  %3596 = vmatpush1.msra.mxu0 %v3595
  %3597 = vmatprep.subr.mxu0 0.0
  %v3598 = vand.u32 %v59, 4294901760
  %3599 = vmatpush1.msra.mxu0 %v3598
  %3600 = vmatprep.subr.mxu0 0.0
  %v3601 = vand.u32 %v58, 4294901760
  %3602 = vmatpush1.msra.mxu0 %v3601
  %3603 = vmatprep.subr.mxu0 0.0
  %v3604 = vand.u32 %v57, 4294901760
  %3605 = vmatpush1.msra.mxu0 %v3604
  %3606 = vmatprep.subr.mxu0 0.0
  %v3607 = vand.u32 %v56, 4294901760
  %3608 = vmatpush1.msra.mxu0 %v3607
  %3609 = vmatprep.subr.mxu0 0.0
  %v3610 = vand.u32 %v55, 4294901760
  %3611 = vmatpush1.msra.mxu0 %v3610
  %3612 = vmatprep.subr.mxu0 0.0
  %v3613 = vand.u32 %v54, 4294901760
  %3614 = vmatpush1.msra.mxu0 %v3613
  %3615 = vmatprep.subr.mxu0 0.0
  %v3616 = vand.u32 %v53, 4294901760
  %3617 = vmatpush1.msra.mxu0 %v3616
  %3618 = vmatprep.subr.mxu0 0.0
  %v3619 = vand.u32 %v52, 4294901760
  %3620 = vmatpush1.msra.mxu0 %v3619
  %3621 = vmatprep.subr.mxu0 0.0
  %v3622 = vand.u32 %v51, 4294901760
  %3623 = vmatpush1.msra.mxu0 %v3622
  %3624 = vmatprep.subr.mxu0 0.0
  %v3625 = vand.u32 %v50, 4294901760
  %3626 = vmatpush1.msra.mxu0 %v3625
  %3627 = vmatprep.subr.mxu0 0.0
  %v3628 = vand.u32 %v49, 4294901760
  %3629 = vmatpush1.msra.mxu0 %v3628
  %3630 = vmatprep.subr.mxu0 0.0
  %v3631 = vand.u32 %v48, 4294901760
  %3632 = vmatpush1.msra.mxu0 %v3631
  %3633 = vmatprep.subr.mxu0 0.0
  %v3634 = vand.u32 %v47, 4294901760
  %3635 = vmatpush1.msra.mxu0 %v3634
  %3636 = vmatprep.subr.mxu0 0.0
  %3637 = vmatpush2.msra.mxu0 0.0
  %3638 = vmatprep.subr.mxu0 0.0
  %3639 = vmatpush2.msra.mxu0 0.0
  %3640 = vmatprep.subr.mxu0 0.0
  %3641 = vmatpush2.msra.mxu0 0.0
  %3642 = vmatprep.subr.mxu0 0.0
  %3643 = vmatpush2.msra.mxu0 0.0
  %3644 = vmatprep.subr.mxu0 0.0
  %3645 = vmatpush2.msra.mxu0 0.0
  %3646 = vmatprep.subr.mxu0 0.0
  %3647 = vmatpush2.msra.mxu0 0.0
  %3648 = vmatprep.subr.mxu0 0.0
  %3649 = vmatpush2.msra.mxu0 0.0
  %3650 = vmatprep.subr.mxu0 0.0
  %3651 = vmatpush2.msra.mxu0 0.0
  %3652 = vmatprep.subr.mxu0 0.0
  %3653 = vmatpush2.msra.mxu0 0.0
  %3654 = vmatprep.subr.mxu0 0.0
  %3655 = vmatpush2.msra.mxu0 0.0
  %3656 = vmatprep.subr.mxu0 0.0
  %3657 = vmatpush2.msra.mxu0 0.0
  %3658 = vmatprep.subr.mxu0 0.0
  %3659 = vmatpush2.msra.mxu0 0.0
  %3660 = vmatprep.subr.mxu0 0.0
  %3661 = vmatpush2.msra.mxu0 0.0
  %3662 = vmatprep.subr.mxu0 0.0
  %3663 = vmatpush2.msra.mxu0 0.0
  %3664 = vmatprep.subr.mxu0 0.0
  %3665 = vmatpush2.msra.mxu0 0.0
  %3666 = vmatprep.subr.mxu0 0.0
  %3667 = vmatpush2.msra.mxu0 0.0
  %3668 = vmatprep.mubr.f32.mxu0 0.0
  %v3669 = vand.u32 %v3584, 4294901760
  %v3670 = vsub.f32 %v3584, %v3669
  %v3671 = vand.u32 %v3670, 4294901760
  %v3672 = vsub.f32 %v3670, %v3671
  %v3673 = vand.u32 %v3672, 4294901760
  %3674 = vmatmul.mubr.f32.gmra.mxu0 %v3673
  %v3675 = vpop.f32.mrf.mxu0
  %v3676 = vadd.f32 0.0, %v3675
  %v3677 = vpop.f32.mrf.mxu0
  %3678 = vdwg.mxu0
  %3679 = vmatprep.subr.mxu0 0.0
  %v3680 = vand.u32 %v62, 4294901760
  %v3681 = vsub.f32 %v62, %v3680
  %v3682 = vand.u32 %v3681, 4294901760
  %v3683 = vsub.f32 %v3681, %v3682
  %v3684 = vand.u32 %v3683, 4294901760
  %3685 = vmatpush1.msra.mxu0 %v3684
  %3686 = vmatprep.subr.mxu0 0.0
  %v3687 = vand.u32 %v61, 4294901760
  %v3688 = vsub.f32 %v61, %v3687
  %v3689 = vand.u32 %v3688, 4294901760
  %v3690 = vsub.f32 %v3688, %v3689
  %v3691 = vand.u32 %v3690, 4294901760
  %3692 = vmatpush1.msra.mxu0 %v3691
  %3693 = vmatprep.subr.mxu0 0.0
  %v3694 = vand.u32 %v60, 4294901760
  %v3695 = vsub.f32 %v60, %v3694
  %v3696 = vand.u32 %v3695, 4294901760
  %v3697 = vsub.f32 %v3695, %v3696
  %v3698 = vand.u32 %v3697, 4294901760
  %3699 = vmatpush1.msra.mxu0 %v3698
  %3700 = vmatprep.subr.mxu0 0.0
  %v3701 = vand.u32 %v59, 4294901760
  %v3702 = vsub.f32 %v59, %v3701
  %v3703 = vand.u32 %v3702, 4294901760
  %v3704 = vsub.f32 %v3702, %v3703
  %v3705 = vand.u32 %v3704, 4294901760
  %3706 = vmatpush1.msra.mxu0 %v3705
  %3707 = vmatprep.subr.mxu0 0.0
  %v3708 = vand.u32 %v58, 4294901760
  %v3709 = vsub.f32 %v58, %v3708
  %v3710 = vand.u32 %v3709, 4294901760
  %v3711 = vsub.f32 %v3709, %v3710
  %v3712 = vand.u32 %v3711, 4294901760
  %3713 = vmatpush1.msra.mxu0 %v3712
  %3714 = vmatprep.subr.mxu0 0.0
  %v3715 = vand.u32 %v57, 4294901760
  %v3716 = vsub.f32 %v57, %v3715
  %v3717 = vand.u32 %v3716, 4294901760
  %v3718 = vsub.f32 %v3716, %v3717
  %v3719 = vand.u32 %v3718, 4294901760
  %3720 = vmatpush1.msra.mxu0 %v3719
  %3721 = vmatprep.subr.mxu0 0.0
  %v3722 = vand.u32 %v56, 4294901760
  %v3723 = vsub.f32 %v56, %v3722
  %v3724 = vand.u32 %v3723, 4294901760
  %v3725 = vsub.f32 %v3723, %v3724
  %v3726 = vand.u32 %v3725, 4294901760
  %3727 = vmatpush1.msra.mxu0 %v3726
  %3728 = vmatprep.subr.mxu0 0.0
  %v3729 = vand.u32 %v55, 4294901760
  %v3730 = vsub.f32 %v55, %v3729
  %v3731 = vand.u32 %v3730, 4294901760
  %v3732 = vsub.f32 %v3730, %v3731
  %v3733 = vand.u32 %v3732, 4294901760
  %3734 = vmatpush1.msra.mxu0 %v3733
  %3735 = vmatprep.subr.mxu0 0.0
  %v3736 = vand.u32 %v54, 4294901760
  %v3737 = vsub.f32 %v54, %v3736
  %v3738 = vand.u32 %v3737, 4294901760
  %v3739 = vsub.f32 %v3737, %v3738
  %v3740 = vand.u32 %v3739, 4294901760
  %3741 = vmatpush1.msra.mxu0 %v3740
  %3742 = vmatprep.subr.mxu0 0.0
  %v3743 = vand.u32 %v53, 4294901760
  %v3744 = vsub.f32 %v53, %v3743
  %v3745 = vand.u32 %v3744, 4294901760
  %v3746 = vsub.f32 %v3744, %v3745
  %v3747 = vand.u32 %v3746, 4294901760
  %3748 = vmatpush1.msra.mxu0 %v3747
  %3749 = vmatprep.subr.mxu0 0.0
  %v3750 = vand.u32 %v52, 4294901760
  %v3751 = vsub.f32 %v52, %v3750
  %v3752 = vand.u32 %v3751, 4294901760
  %v3753 = vsub.f32 %v3751, %v3752
  %v3754 = vand.u32 %v3753, 4294901760
  %3755 = vmatpush1.msra.mxu0 %v3754
  %3756 = vmatprep.subr.mxu0 0.0
  %v3757 = vand.u32 %v51, 4294901760
  %v3758 = vsub.f32 %v51, %v3757
  %v3759 = vand.u32 %v3758, 4294901760
  %v3760 = vsub.f32 %v3758, %v3759
  %v3761 = vand.u32 %v3760, 4294901760
  %3762 = vmatpush1.msra.mxu0 %v3761
  %3763 = vmatprep.subr.mxu0 0.0
  %v3764 = vand.u32 %v50, 4294901760
  %v3765 = vsub.f32 %v50, %v3764
  %v3766 = vand.u32 %v3765, 4294901760
  %v3767 = vsub.f32 %v3765, %v3766
  %v3768 = vand.u32 %v3767, 4294901760
  %3769 = vmatpush1.msra.mxu0 %v3768
  %3770 = vmatprep.subr.mxu0 0.0
  %v3771 = vand.u32 %v49, 4294901760
  %v3772 = vsub.f32 %v49, %v3771
  %v3773 = vand.u32 %v3772, 4294901760
  %v3774 = vsub.f32 %v3772, %v3773
  %v3775 = vand.u32 %v3774, 4294901760
  %3776 = vmatpush1.msra.mxu0 %v3775
  %3777 = vmatprep.subr.mxu0 0.0
  %v3778 = vand.u32 %v48, 4294901760
  %v3779 = vsub.f32 %v48, %v3778
  %v3780 = vand.u32 %v3779, 4294901760
  %v3781 = vsub.f32 %v3779, %v3780
  %v3782 = vand.u32 %v3781, 4294901760
  %3783 = vmatpush1.msra.mxu0 %v3782
  %3784 = vmatprep.subr.mxu0 0.0
  %v3785 = vand.u32 %v47, 4294901760
  %v3786 = vsub.f32 %v47, %v3785
  %v3787 = vand.u32 %v3786, 4294901760
  %v3788 = vsub.f32 %v3786, %v3787
  %v3789 = vand.u32 %v3788, 4294901760
  %3790 = vmatpush1.msra.mxu0 %v3789
  %3791 = vmatprep.subr.mxu0 0.0
  %3792 = vmatpush2.msra.mxu0 0.0
  %3793 = vmatprep.subr.mxu0 0.0
  %3794 = vmatpush2.msra.mxu0 0.0
  %3795 = vmatprep.subr.mxu0 0.0
  %3796 = vmatpush2.msra.mxu0 0.0
  %3797 = vmatprep.subr.mxu0 0.0
  %3798 = vmatpush2.msra.mxu0 0.0
  %3799 = vmatprep.subr.mxu0 0.0
  %3800 = vmatpush2.msra.mxu0 0.0
  %3801 = vmatprep.subr.mxu0 0.0
  %3802 = vmatpush2.msra.mxu0 0.0
  %3803 = vmatprep.subr.mxu0 0.0
  %3804 = vmatpush2.msra.mxu0 0.0
  %3805 = vmatprep.subr.mxu0 0.0
  %3806 = vmatpush2.msra.mxu0 0.0
  %3807 = vmatprep.subr.mxu0 0.0
  %3808 = vmatpush2.msra.mxu0 0.0
  %3809 = vmatprep.subr.mxu0 0.0
  %3810 = vmatpush2.msra.mxu0 0.0
  %3811 = vmatprep.subr.mxu0 0.0
  %3812 = vmatpush2.msra.mxu0 0.0
  %3813 = vmatprep.subr.mxu0 0.0
  %3814 = vmatpush2.msra.mxu0 0.0
  %3815 = vmatprep.subr.mxu0 0.0
  %3816 = vmatpush2.msra.mxu0 0.0
  %3817 = vmatprep.subr.mxu0 0.0
  %3818 = vmatpush2.msra.mxu0 0.0
  %3819 = vmatprep.subr.mxu0 0.0
  %3820 = vmatpush2.msra.mxu0 0.0
  %3821 = vmatprep.subr.mxu0 0.0
  %3822 = vmatpush2.msra.mxu0 0.0
  %3823 = vmatprep.mubr.f32.mxu0 0.0
  %v3824 = vand.u32 %v3584, 4294901760
  %3825 = vmatmul.mubr.f32.gmra.mxu0 %v3824
  %v3826 = vpop.f32.mrf.mxu0
  %v3827 = vadd.f32 %v3676, %v3826
  %v3828 = vpop.f32.mrf.mxu0
  %3829 = vdwg.mxu0
  %3830 = vmatprep.subr.mxu0 0.0
  %v3831 = vand.u32 %v62, 4294901760
  %v3832 = vsub.f32 %v62, %v3831
  %3833 = vmatpush1.msra.mxu0 %v3832
  %3834 = vmatprep.subr.mxu0 0.0
  %v3835 = vand.u32 %v61, 4294901760
  %v3836 = vsub.f32 %v61, %v3835
  %3837 = vmatpush1.msra.mxu0 %v3836
  %3838 = vmatprep.subr.mxu0 0.0
  %v3839 = vand.u32 %v60, 4294901760
  %v3840 = vsub.f32 %v60, %v3839
  %3841 = vmatpush1.msra.mxu0 %v3840
  %3842 = vmatprep.subr.mxu0 0.0
  %v3843 = vand.u32 %v59, 4294901760
  %v3844 = vsub.f32 %v59, %v3843
  %3845 = vmatpush1.msra.mxu0 %v3844
  %3846 = vmatprep.subr.mxu0 0.0
  %v3847 = vand.u32 %v58, 4294901760
  %v3848 = vsub.f32 %v58, %v3847
  %3849 = vmatpush1.msra.mxu0 %v3848
  %3850 = vmatprep.subr.mxu0 0.0
  %v3851 = vand.u32 %v57, 4294901760
  %v3852 = vsub.f32 %v57, %v3851
  %3853 = vmatpush1.msra.mxu0 %v3852
  %3854 = vmatprep.subr.mxu0 0.0
  %v3855 = vand.u32 %v56, 4294901760
  %v3856 = vsub.f32 %v56, %v3855
  %3857 = vmatpush1.msra.mxu0 %v3856
  %3858 = vmatprep.subr.mxu0 0.0
  %v3859 = vand.u32 %v55, 4294901760
  %v3860 = vsub.f32 %v55, %v3859
  %3861 = vmatpush1.msra.mxu0 %v3860
  %3862 = vmatprep.subr.mxu0 0.0
  %v3863 = vand.u32 %v54, 4294901760
  %v3864 = vsub.f32 %v54, %v3863
  %3865 = vmatpush1.msra.mxu0 %v3864
  %3866 = vmatprep.subr.mxu0 0.0
  %v3867 = vand.u32 %v53, 4294901760
  %v3868 = vsub.f32 %v53, %v3867
  %3869 = vmatpush1.msra.mxu0 %v3868
  %3870 = vmatprep.subr.mxu0 0.0
  %v3871 = vand.u32 %v52, 4294901760
  %v3872 = vsub.f32 %v52, %v3871
  %3873 = vmatpush1.msra.mxu0 %v3872
  %3874 = vmatprep.subr.mxu0 0.0
  %v3875 = vand.u32 %v51, 4294901760
  %v3876 = vsub.f32 %v51, %v3875
  %3877 = vmatpush1.msra.mxu0 %v3876
  %3878 = vmatprep.subr.mxu0 0.0
  %v3879 = vand.u32 %v50, 4294901760
  %v3880 = vsub.f32 %v50, %v3879
  %3881 = vmatpush1.msra.mxu0 %v3880
  %3882 = vmatprep.subr.mxu0 0.0
  %v3883 = vand.u32 %v49, 4294901760
  %v3884 = vsub.f32 %v49, %v3883
  %3885 = vmatpush1.msra.mxu0 %v3884
  %3886 = vmatprep.subr.mxu0 0.0
  %v3887 = vand.u32 %v48, 4294901760
  %v3888 = vsub.f32 %v48, %v3887
  %3889 = vmatpush1.msra.mxu0 %v3888
  %3890 = vmatprep.subr.mxu0 0.0
  %v3891 = vand.u32 %v47, 4294901760
  %v3892 = vsub.f32 %v47, %v3891
  %3893 = vmatpush1.msra.mxu0 %v3892
  %3894 = vmatprep.subr.mxu0 0.0
  %3895 = vmatpush2.msra.mxu0 0.0
  %3896 = vmatprep.subr.mxu0 0.0
  %3897 = vmatpush2.msra.mxu0 0.0
  %3898 = vmatprep.subr.mxu0 0.0
  %3899 = vmatpush2.msra.mxu0 0.0
  %3900 = vmatprep.subr.mxu0 0.0
  %3901 = vmatpush2.msra.mxu0 0.0
  %3902 = vmatprep.subr.mxu0 0.0
  %3903 = vmatpush2.msra.mxu0 0.0
  %3904 = vmatprep.subr.mxu0 0.0
  %3905 = vmatpush2.msra.mxu0 0.0
  %3906 = vmatprep.subr.mxu0 0.0
  %3907 = vmatpush2.msra.mxu0 0.0
  %3908 = vmatprep.subr.mxu0 0.0
  %3909 = vmatpush2.msra.mxu0 0.0
  %3910 = vmatprep.subr.mxu0 0.0
  %3911 = vmatpush2.msra.mxu0 0.0
  %3912 = vmatprep.subr.mxu0 0.0
  %3913 = vmatpush2.msra.mxu0 0.0
  %3914 = vmatprep.subr.mxu0 0.0
  %3915 = vmatpush2.msra.mxu0 0.0
  %3916 = vmatprep.subr.mxu0 0.0
  %3917 = vmatpush2.msra.mxu0 0.0
  %3918 = vmatprep.subr.mxu0 0.0
  %3919 = vmatpush2.msra.mxu0 0.0
  %3920 = vmatprep.subr.mxu0 0.0
  %3921 = vmatpush2.msra.mxu0 0.0
  %3922 = vmatprep.subr.mxu0 0.0
  %3923 = vmatpush2.msra.mxu0 0.0
  %3924 = vmatprep.subr.mxu0 0.0
  %3925 = vmatpush2.msra.mxu0 0.0
  %3926 = vmatprep.mubr.f32.mxu0 0.0
  %v3927 = vand.u32 %v3584, 4294901760
  %v3928 = vsub.f32 %v3584, %v3927
  %3929 = vmatmul.mubr.f32.gmra.mxu0 %v3928
  %v3930 = vpop.f32.mrf.mxu0
  %v3931 = vadd.f32 %v3827, %v3930
  %v3932 = vpop.f32.mrf.mxu0
  %3933 = vdwg.mxu0
  %3934 = vmatprep.subr.mxu0 0.0
  %v3935 = vand.u32 %v62, 4294901760
  %3936 = vmatpush1.msra.mxu0 %v3935
  %3937 = vmatprep.subr.mxu0 0.0
  %v3938 = vand.u32 %v61, 4294901760
  %3939 = vmatpush1.msra.mxu0 %v3938
  %3940 = vmatprep.subr.mxu0 0.0
  %v3941 = vand.u32 %v60, 4294901760
  %3942 = vmatpush1.msra.mxu0 %v3941
  %3943 = vmatprep.subr.mxu0 0.0
  %v3944 = vand.u32 %v59, 4294901760
  %3945 = vmatpush1.msra.mxu0 %v3944
  %3946 = vmatprep.subr.mxu0 0.0
  %v3947 = vand.u32 %v58, 4294901760
  %3948 = vmatpush1.msra.mxu0 %v3947
  %3949 = vmatprep.subr.mxu0 0.0
  %v3950 = vand.u32 %v57, 4294901760
  %3951 = vmatpush1.msra.mxu0 %v3950
  %3952 = vmatprep.subr.mxu0 0.0
  %v3953 = vand.u32 %v56, 4294901760
  %3954 = vmatpush1.msra.mxu0 %v3953
  %3955 = vmatprep.subr.mxu0 0.0
  %v3956 = vand.u32 %v55, 4294901760
  %3957 = vmatpush1.msra.mxu0 %v3956
  %3958 = vmatprep.subr.mxu0 0.0
  %v3959 = vand.u32 %v54, 4294901760
  %3960 = vmatpush1.msra.mxu0 %v3959
  %3961 = vmatprep.subr.mxu0 0.0
  %v3962 = vand.u32 %v53, 4294901760
  %3963 = vmatpush1.msra.mxu0 %v3962
  %3964 = vmatprep.subr.mxu0 0.0
  %v3965 = vand.u32 %v52, 4294901760
  %3966 = vmatpush1.msra.mxu0 %v3965
  %3967 = vmatprep.subr.mxu0 0.0
  %v3968 = vand.u32 %v51, 4294901760
  %3969 = vmatpush1.msra.mxu0 %v3968
  %3970 = vmatprep.subr.mxu0 0.0
  %v3971 = vand.u32 %v50, 4294901760
  %3972 = vmatpush1.msra.mxu0 %v3971
  %3973 = vmatprep.subr.mxu0 0.0
  %v3974 = vand.u32 %v49, 4294901760
  %3975 = vmatpush1.msra.mxu0 %v3974
  %3976 = vmatprep.subr.mxu0 0.0
  %v3977 = vand.u32 %v48, 4294901760
  %3978 = vmatpush1.msra.mxu0 %v3977
  %3979 = vmatprep.subr.mxu0 0.0
  %v3980 = vand.u32 %v47, 4294901760
  %3981 = vmatpush1.msra.mxu0 %v3980
  %3982 = vmatprep.subr.mxu0 0.0
  %3983 = vmatpush2.msra.mxu0 0.0
  %3984 = vmatprep.subr.mxu0 0.0
  %3985 = vmatpush2.msra.mxu0 0.0
  %3986 = vmatprep.subr.mxu0 0.0
  %3987 = vmatpush2.msra.mxu0 0.0
  %3988 = vmatprep.subr.mxu0 0.0
  %3989 = vmatpush2.msra.mxu0 0.0
  %3990 = vmatprep.subr.mxu0 0.0
  %3991 = vmatpush2.msra.mxu0 0.0
  %3992 = vmatprep.subr.mxu0 0.0
  %3993 = vmatpush2.msra.mxu0 0.0
  %3994 = vmatprep.subr.mxu0 0.0
  %3995 = vmatpush2.msra.mxu0 0.0
  %3996 = vmatprep.subr.mxu0 0.0
  %3997 = vmatpush2.msra.mxu0 0.0
  %3998 = vmatprep.subr.mxu0 0.0
  %3999 = vmatpush2.msra.mxu0 0.0
  %4000 = vmatprep.subr.mxu0 0.0
  %4001 = vmatpush2.msra.mxu0 0.0
  %4002 = vmatprep.subr.mxu0 0.0
  %4003 = vmatpush2.msra.mxu0 0.0
  %4004 = vmatprep.subr.mxu0 0.0
  %4005 = vmatpush2.msra.mxu0 0.0
  %4006 = vmatprep.subr.mxu0 0.0
  %4007 = vmatpush2.msra.mxu0 0.0
  %4008 = vmatprep.subr.mxu0 0.0
  %4009 = vmatpush2.msra.mxu0 0.0
  %4010 = vmatprep.subr.mxu0 0.0
  %4011 = vmatpush2.msra.mxu0 0.0
  %4012 = vmatprep.subr.mxu0 0.0
  %4013 = vmatpush2.msra.mxu0 0.0
  %4014 = vmatprep.mubr.f32.mxu0 0.0
  %v4015 = vand.u32 %v3584, 4294901760
  %v4016 = vsub.f32 %v3584, %v4015
  %v4017 = vand.u32 %v4016, 4294901760
  %4018 = vmatmul.mubr.f32.gmra.mxu0 %v4017
  %v4019 = vpop.f32.mrf.mxu0
  %v4020 = vadd.f32 %v3931, %v4019
  %v4021 = vpop.f32.mrf.mxu0
  %4022 = vdwg.mxu0
  %4023 = vmatprep.subr.mxu0 0.0
  %v4024 = vand.u32 %v62, 4294901760
  %v4025 = vsub.f32 %v62, %v4024
  %v4026 = vand.u32 %v4025, 4294901760
  %4027 = vmatpush1.msra.mxu0 %v4026
  %4028 = vmatprep.subr.mxu0 0.0
  %v4029 = vand.u32 %v61, 4294901760
  %v4030 = vsub.f32 %v61, %v4029
  %v4031 = vand.u32 %v4030, 4294901760
  %4032 = vmatpush1.msra.mxu0 %v4031
  %4033 = vmatprep.subr.mxu0 0.0
  %v4034 = vand.u32 %v60, 4294901760
  %v4035 = vsub.f32 %v60, %v4034
  %v4036 = vand.u32 %v4035, 4294901760
  %4037 = vmatpush1.msra.mxu0 %v4036
  %4038 = vmatprep.subr.mxu0 0.0
  %v4039 = vand.u32 %v59, 4294901760
  %v4040 = vsub.f32 %v59, %v4039
  %v4041 = vand.u32 %v4040, 4294901760
  %4042 = vmatpush1.msra.mxu0 %v4041
  %4043 = vmatprep.subr.mxu0 0.0
  %v4044 = vand.u32 %v58, 4294901760
  %v4045 = vsub.f32 %v58, %v4044
  %v4046 = vand.u32 %v4045, 4294901760
  %4047 = vmatpush1.msra.mxu0 %v4046
  %4048 = vmatprep.subr.mxu0 0.0
  %v4049 = vand.u32 %v57, 4294901760
  %v4050 = vsub.f32 %v57, %v4049
  %v4051 = vand.u32 %v4050, 4294901760
  %4052 = vmatpush1.msra.mxu0 %v4051
  %4053 = vmatprep.subr.mxu0 0.0
  %v4054 = vand.u32 %v56, 4294901760
  %v4055 = vsub.f32 %v56, %v4054
  %v4056 = vand.u32 %v4055, 4294901760
  %4057 = vmatpush1.msra.mxu0 %v4056
  %4058 = vmatprep.subr.mxu0 0.0
  %v4059 = vand.u32 %v55, 4294901760
  %v4060 = vsub.f32 %v55, %v4059
  %v4061 = vand.u32 %v4060, 4294901760
  %4062 = vmatpush1.msra.mxu0 %v4061
  %4063 = vmatprep.subr.mxu0 0.0
  %v4064 = vand.u32 %v54, 4294901760
  %v4065 = vsub.f32 %v54, %v4064
  %v4066 = vand.u32 %v4065, 4294901760
  %4067 = vmatpush1.msra.mxu0 %v4066
  %4068 = vmatprep.subr.mxu0 0.0
  %v4069 = vand.u32 %v53, 4294901760
  %v4070 = vsub.f32 %v53, %v4069
  %v4071 = vand.u32 %v4070, 4294901760
  %4072 = vmatpush1.msra.mxu0 %v4071
  %4073 = vmatprep.subr.mxu0 0.0
  %v4074 = vand.u32 %v52, 4294901760
  %v4075 = vsub.f32 %v52, %v4074
  %v4076 = vand.u32 %v4075, 4294901760
  %4077 = vmatpush1.msra.mxu0 %v4076
  %4078 = vmatprep.subr.mxu0 0.0
  %v4079 = vand.u32 %v51, 4294901760
  %v4080 = vsub.f32 %v51, %v4079
  %v4081 = vand.u32 %v4080, 4294901760
  %4082 = vmatpush1.msra.mxu0 %v4081
  %4083 = vmatprep.subr.mxu0 0.0
  %v4084 = vand.u32 %v50, 4294901760
  %v4085 = vsub.f32 %v50, %v4084
  %v4086 = vand.u32 %v4085, 4294901760
  %4087 = vmatpush1.msra.mxu0 %v4086
  %4088 = vmatprep.subr.mxu0 0.0
  %v4089 = vand.u32 %v49, 4294901760
  %v4090 = vsub.f32 %v49, %v4089
  %v4091 = vand.u32 %v4090, 4294901760
  %4092 = vmatpush1.msra.mxu0 %v4091
  %4093 = vmatprep.subr.mxu0 0.0
  %v4094 = vand.u32 %v48, 4294901760
  %v4095 = vsub.f32 %v48, %v4094
  %v4096 = vand.u32 %v4095, 4294901760
  %4097 = vmatpush1.msra.mxu0 %v4096
  %4098 = vmatprep.subr.mxu0 0.0
  %v4099 = vand.u32 %v47, 4294901760
  %v4100 = vsub.f32 %v47, %v4099
  %v4101 = vand.u32 %v4100, 4294901760
  %4102 = vmatpush1.msra.mxu0 %v4101
  %4103 = vmatprep.subr.mxu0 0.0
  %4104 = vmatpush2.msra.mxu0 0.0
  %4105 = vmatprep.subr.mxu0 0.0
  %4106 = vmatpush2.msra.mxu0 0.0
  %4107 = vmatprep.subr.mxu0 0.0
  %4108 = vmatpush2.msra.mxu0 0.0
  %4109 = vmatprep.subr.mxu0 0.0
  %4110 = vmatpush2.msra.mxu0 0.0
  %4111 = vmatprep.subr.mxu0 0.0
  %4112 = vmatpush2.msra.mxu0 0.0
  %4113 = vmatprep.subr.mxu0 0.0
  %4114 = vmatpush2.msra.mxu0 0.0
  %4115 = vmatprep.subr.mxu0 0.0
  %4116 = vmatpush2.msra.mxu0 0.0
  %4117 = vmatprep.subr.mxu0 0.0
  %4118 = vmatpush2.msra.mxu0 0.0
  %4119 = vmatprep.subr.mxu0 0.0
  %4120 = vmatpush2.msra.mxu0 0.0
  %4121 = vmatprep.subr.mxu0 0.0
  %4122 = vmatpush2.msra.mxu0 0.0
  %4123 = vmatprep.subr.mxu0 0.0
  %4124 = vmatpush2.msra.mxu0 0.0
  %4125 = vmatprep.subr.mxu0 0.0
  %4126 = vmatpush2.msra.mxu0 0.0
  %4127 = vmatprep.subr.mxu0 0.0
  %4128 = vmatpush2.msra.mxu0 0.0
  %4129 = vmatprep.subr.mxu0 0.0
  %4130 = vmatpush2.msra.mxu0 0.0
  %4131 = vmatprep.subr.mxu0 0.0
  %4132 = vmatpush2.msra.mxu0 0.0
  %4133 = vmatprep.subr.mxu0 0.0
  %4134 = vmatpush2.msra.mxu0 0.0
  %4135 = vmatprep.mubr.f32.mxu0 0.0
  %v4136 = vand.u32 %v3584, 4294901760
  %4137 = vmatmul.mubr.f32.gmra.mxu0 %v4136
  %v4138 = vpop.f32.mrf.mxu0
  %v4139 = vadd.f32 %v4020, %v4138
  %v4140 = vpop.f32.mrf.mxu0
  %4141 = vdwg.mxu0
  %4142 = vmatprep.subr.mxu0 0.0
  %v4143 = vand.u32 %v62, 4294901760
  %4144 = vmatpush1.msra.mxu0 %v4143
  %4145 = vmatprep.subr.mxu0 0.0
  %v4146 = vand.u32 %v61, 4294901760
  %4147 = vmatpush1.msra.mxu0 %v4146
  %4148 = vmatprep.subr.mxu0 0.0
  %v4149 = vand.u32 %v60, 4294901760
  %4150 = vmatpush1.msra.mxu0 %v4149
  %4151 = vmatprep.subr.mxu0 0.0
  %v4152 = vand.u32 %v59, 4294901760
  %4153 = vmatpush1.msra.mxu0 %v4152
  %4154 = vmatprep.subr.mxu0 0.0
  %v4155 = vand.u32 %v58, 4294901760
  %4156 = vmatpush1.msra.mxu0 %v4155
  %4157 = vmatprep.subr.mxu0 0.0
  %v4158 = vand.u32 %v57, 4294901760
  %4159 = vmatpush1.msra.mxu0 %v4158
  %4160 = vmatprep.subr.mxu0 0.0
  %v4161 = vand.u32 %v56, 4294901760
  %4162 = vmatpush1.msra.mxu0 %v4161
  %4163 = vmatprep.subr.mxu0 0.0
  %v4164 = vand.u32 %v55, 4294901760
  %4165 = vmatpush1.msra.mxu0 %v4164
  %4166 = vmatprep.subr.mxu0 0.0
  %v4167 = vand.u32 %v54, 4294901760
  %4168 = vmatpush1.msra.mxu0 %v4167
  %4169 = vmatprep.subr.mxu0 0.0
  %v4170 = vand.u32 %v53, 4294901760
  %4171 = vmatpush1.msra.mxu0 %v4170
  %4172 = vmatprep.subr.mxu0 0.0
  %v4173 = vand.u32 %v52, 4294901760
  %4174 = vmatpush1.msra.mxu0 %v4173
  %4175 = vmatprep.subr.mxu0 0.0
  %v4176 = vand.u32 %v51, 4294901760
  %4177 = vmatpush1.msra.mxu0 %v4176
  %4178 = vmatprep.subr.mxu0 0.0
  %v4179 = vand.u32 %v50, 4294901760
  %4180 = vmatpush1.msra.mxu0 %v4179
  %4181 = vmatprep.subr.mxu0 0.0
  %v4182 = vand.u32 %v49, 4294901760
  %4183 = vmatpush1.msra.mxu0 %v4182
  %4184 = vmatprep.subr.mxu0 0.0
  %v4185 = vand.u32 %v48, 4294901760
  %4186 = vmatpush1.msra.mxu0 %v4185
  %4187 = vmatprep.subr.mxu0 0.0
  %v4188 = vand.u32 %v47, 4294901760
  %4189 = vmatpush1.msra.mxu0 %v4188
  %4190 = vmatprep.subr.mxu0 0.0
  %4191 = vmatpush2.msra.mxu0 0.0
  %4192 = vmatprep.subr.mxu0 0.0
  %4193 = vmatpush2.msra.mxu0 0.0
  %4194 = vmatprep.subr.mxu0 0.0
  %4195 = vmatpush2.msra.mxu0 0.0
  %4196 = vmatprep.subr.mxu0 0.0
  %4197 = vmatpush2.msra.mxu0 0.0
  %4198 = vmatprep.subr.mxu0 0.0
  %4199 = vmatpush2.msra.mxu0 0.0
  %4200 = vmatprep.subr.mxu0 0.0
  %4201 = vmatpush2.msra.mxu0 0.0
  %4202 = vmatprep.subr.mxu0 0.0
  %4203 = vmatpush2.msra.mxu0 0.0
  %4204 = vmatprep.subr.mxu0 0.0
  %4205 = vmatpush2.msra.mxu0 0.0
  %4206 = vmatprep.subr.mxu0 0.0
  %4207 = vmatpush2.msra.mxu0 0.0
  %4208 = vmatprep.subr.mxu0 0.0
  %4209 = vmatpush2.msra.mxu0 0.0
  %4210 = vmatprep.subr.mxu0 0.0
  %4211 = vmatpush2.msra.mxu0 0.0
  %4212 = vmatprep.subr.mxu0 0.0
  %4213 = vmatpush2.msra.mxu0 0.0
  %4214 = vmatprep.subr.mxu0 0.0
  %4215 = vmatpush2.msra.mxu0 0.0
  %4216 = vmatprep.subr.mxu0 0.0
  %4217 = vmatpush2.msra.mxu0 0.0
  %4218 = vmatprep.subr.mxu0 0.0
  %4219 = vmatpush2.msra.mxu0 0.0
  %4220 = vmatprep.subr.mxu0 0.0
  %4221 = vmatpush2.msra.mxu0 0.0
  %4222 = vmatprep.mubr.f32.mxu0 0.0
  %v4223 = vand.u32 %v3584, 4294901760
  %4224 = vmatmul.mubr.f32.gmra.mxu0 %v4223
  %v4225 = vpop.f32.mrf.mxu0
  %v4226 = vadd.f32 %v4139, %v4225
  %v4227 = vpop.f32.mrf.mxu0
  %4228 = vdwg.mxu0
  %v4229 = vadd.f32 %v3587, %v4226
  %v4230 = vtanh.pop %v4229
  %4231 = vst [vmem:[%s3586] sm:$0xff] %v4230
  %s4232 = scalar_lea.vmem [#allocation2], 40
  %v4233 = vld [vmem:[%s4232] sm:$0xff]
  %4234 = vmatprep.subr.mxu0 0.0
  %v4235 = vand.u32 %v62, 4294901760
  %4236 = vmatpush1.msra.mxu0 %v4235
  %4237 = vmatprep.subr.mxu0 0.0
  %v4238 = vand.u32 %v61, 4294901760
  %4239 = vmatpush1.msra.mxu0 %v4238
  %4240 = vmatprep.subr.mxu0 0.0
  %v4241 = vand.u32 %v60, 4294901760
  %4242 = vmatpush1.msra.mxu0 %v4241
  %4243 = vmatprep.subr.mxu0 0.0
  %v4244 = vand.u32 %v59, 4294901760
  %4245 = vmatpush1.msra.mxu0 %v4244
  %4246 = vmatprep.subr.mxu0 0.0
  %v4247 = vand.u32 %v58, 4294901760
  %4248 = vmatpush1.msra.mxu0 %v4247
  %4249 = vmatprep.subr.mxu0 0.0
  %v4250 = vand.u32 %v57, 4294901760
  %4251 = vmatpush1.msra.mxu0 %v4250
  %4252 = vmatprep.subr.mxu0 0.0
  %v4253 = vand.u32 %v56, 4294901760
  %4254 = vmatpush1.msra.mxu0 %v4253
  %4255 = vmatprep.subr.mxu0 0.0
  %v4256 = vand.u32 %v55, 4294901760
  %4257 = vmatpush1.msra.mxu0 %v4256
  %4258 = vmatprep.subr.mxu0 0.0
  %v4259 = vand.u32 %v54, 4294901760
  %4260 = vmatpush1.msra.mxu0 %v4259
  %4261 = vmatprep.subr.mxu0 0.0
  %v4262 = vand.u32 %v53, 4294901760
  %4263 = vmatpush1.msra.mxu0 %v4262
  %4264 = vmatprep.subr.mxu0 0.0
  %v4265 = vand.u32 %v52, 4294901760
  %4266 = vmatpush1.msra.mxu0 %v4265
  %4267 = vmatprep.subr.mxu0 0.0
  %v4268 = vand.u32 %v51, 4294901760
  %4269 = vmatpush1.msra.mxu0 %v4268
  %4270 = vmatprep.subr.mxu0 0.0
  %v4271 = vand.u32 %v50, 4294901760
  %4272 = vmatpush1.msra.mxu0 %v4271
  %4273 = vmatprep.subr.mxu0 0.0
  %v4274 = vand.u32 %v49, 4294901760
  %4275 = vmatpush1.msra.mxu0 %v4274
  %4276 = vmatprep.subr.mxu0 0.0
  %v4277 = vand.u32 %v48, 4294901760
  %4278 = vmatpush1.msra.mxu0 %v4277
  %4279 = vmatprep.subr.mxu0 0.0
  %v4280 = vand.u32 %v47, 4294901760
  %4281 = vmatpush1.msra.mxu0 %v4280
  %4282 = vmatprep.subr.mxu0 0.0
  %4283 = vmatpush2.msra.mxu0 0.0
  %4284 = vmatprep.subr.mxu0 0.0
  %4285 = vmatpush2.msra.mxu0 0.0
  %4286 = vmatprep.subr.mxu0 0.0
  %4287 = vmatpush2.msra.mxu0 0.0
  %4288 = vmatprep.subr.mxu0 0.0
  %4289 = vmatpush2.msra.mxu0 0.0
  %4290 = vmatprep.subr.mxu0 0.0
  %4291 = vmatpush2.msra.mxu0 0.0
  %4292 = vmatprep.subr.mxu0 0.0
  %4293 = vmatpush2.msra.mxu0 0.0
  %4294 = vmatprep.subr.mxu0 0.0
  %4295 = vmatpush2.msra.mxu0 0.0
  %4296 = vmatprep.subr.mxu0 0.0
  %4297 = vmatpush2.msra.mxu0 0.0
  %4298 = vmatprep.subr.mxu0 0.0
  %4299 = vmatpush2.msra.mxu0 0.0
  %4300 = vmatprep.subr.mxu0 0.0
  %4301 = vmatpush2.msra.mxu0 0.0
  %4302 = vmatprep.subr.mxu0 0.0
  %4303 = vmatpush2.msra.mxu0 0.0
  %4304 = vmatprep.subr.mxu0 0.0
  %4305 = vmatpush2.msra.mxu0 0.0
  %4306 = vmatprep.subr.mxu0 0.0
  %4307 = vmatpush2.msra.mxu0 0.0
  %4308 = vmatprep.subr.mxu0 0.0
  %4309 = vmatpush2.msra.mxu0 0.0
  %4310 = vmatprep.subr.mxu0 0.0
  %4311 = vmatpush2.msra.mxu0 0.0
  %4312 = vmatprep.subr.mxu0 0.0
  %4313 = vmatpush2.msra.mxu0 0.0
  %4314 = vmatprep.mubr.f32.mxu0 0.0
  %v4315 = vand.u32 %v4230, 4294901760
  %v4316 = vsub.f32 %v4230, %v4315
  %v4317 = vand.u32 %v4316, 4294901760
  %v4318 = vsub.f32 %v4316, %v4317
  %v4319 = vand.u32 %v4318, 4294901760
  %4320 = vmatmul.mubr.f32.gmra.mxu0 %v4319
  %v4321 = vpop.f32.mrf.mxu0
  %v4322 = vadd.f32 0.0, %v4321
  %v4323 = vpop.f32.mrf.mxu0
  %4324 = vdwg.mxu0
  %4325 = vmatprep.subr.mxu0 0.0
  %v4326 = vand.u32 %v62, 4294901760
  %v4327 = vsub.f32 %v62, %v4326
  %v4328 = vand.u32 %v4327, 4294901760
  %v4329 = vsub.f32 %v4327, %v4328
  %v4330 = vand.u32 %v4329, 4294901760
  %4331 = vmatpush1.msra.mxu0 %v4330
  %4332 = vmatprep.subr.mxu0 0.0
  %v4333 = vand.u32 %v61, 4294901760
  %v4334 = vsub.f32 %v61, %v4333
  %v4335 = vand.u32 %v4334, 4294901760
  %v4336 = vsub.f32 %v4334, %v4335
  %v4337 = vand.u32 %v4336, 4294901760
  %4338 = vmatpush1.msra.mxu0 %v4337
  %4339 = vmatprep.subr.mxu0 0.0
  %v4340 = vand.u32 %v60, 4294901760
  %v4341 = vsub.f32 %v60, %v4340
  %v4342 = vand.u32 %v4341, 4294901760
  %v4343 = vsub.f32 %v4341, %v4342
  %v4344 = vand.u32 %v4343, 4294901760
  %4345 = vmatpush1.msra.mxu0 %v4344
  %4346 = vmatprep.subr.mxu0 0.0
  %v4347 = vand.u32 %v59, 4294901760
  %v4348 = vsub.f32 %v59, %v4347
  %v4349 = vand.u32 %v4348, 4294901760
  %v4350 = vsub.f32 %v4348, %v4349
  %v4351 = vand.u32 %v4350, 4294901760
  %4352 = vmatpush1.msra.mxu0 %v4351
  %4353 = vmatprep.subr.mxu0 0.0
  %v4354 = vand.u32 %v58, 4294901760
  %v4355 = vsub.f32 %v58, %v4354
  %v4356 = vand.u32 %v4355, 4294901760
  %v4357 = vsub.f32 %v4355, %v4356
  %v4358 = vand.u32 %v4357, 4294901760
  %4359 = vmatpush1.msra.mxu0 %v4358
  %4360 = vmatprep.subr.mxu0 0.0
  %v4361 = vand.u32 %v57, 4294901760
  %v4362 = vsub.f32 %v57, %v4361
  %v4363 = vand.u32 %v4362, 4294901760
  %v4364 = vsub.f32 %v4362, %v4363
  %v4365 = vand.u32 %v4364, 4294901760
  %4366 = vmatpush1.msra.mxu0 %v4365
  %4367 = vmatprep.subr.mxu0 0.0
  %v4368 = vand.u32 %v56, 4294901760
  %v4369 = vsub.f32 %v56, %v4368
  %v4370 = vand.u32 %v4369, 4294901760
  %v4371 = vsub.f32 %v4369, %v4370
  %v4372 = vand.u32 %v4371, 4294901760
  %4373 = vmatpush1.msra.mxu0 %v4372
  %4374 = vmatprep.subr.mxu0 0.0
  %v4375 = vand.u32 %v55, 4294901760
  %v4376 = vsub.f32 %v55, %v4375
  %v4377 = vand.u32 %v4376, 4294901760
  %v4378 = vsub.f32 %v4376, %v4377
  %v4379 = vand.u32 %v4378, 4294901760
  %4380 = vmatpush1.msra.mxu0 %v4379
  %4381 = vmatprep.subr.mxu0 0.0
  %v4382 = vand.u32 %v54, 4294901760
  %v4383 = vsub.f32 %v54, %v4382
  %v4384 = vand.u32 %v4383, 4294901760
  %v4385 = vsub.f32 %v4383, %v4384
  %v4386 = vand.u32 %v4385, 4294901760
  %4387 = vmatpush1.msra.mxu0 %v4386
  %4388 = vmatprep.subr.mxu0 0.0
  %v4389 = vand.u32 %v53, 4294901760
  %v4390 = vsub.f32 %v53, %v4389
  %v4391 = vand.u32 %v4390, 4294901760
  %v4392 = vsub.f32 %v4390, %v4391
  %v4393 = vand.u32 %v4392, 4294901760
  %4394 = vmatpush1.msra.mxu0 %v4393
  %4395 = vmatprep.subr.mxu0 0.0
  %v4396 = vand.u32 %v52, 4294901760
  %v4397 = vsub.f32 %v52, %v4396
  %v4398 = vand.u32 %v4397, 4294901760
  %v4399 = vsub.f32 %v4397, %v4398
  %v4400 = vand.u32 %v4399, 4294901760
  %4401 = vmatpush1.msra.mxu0 %v4400
  %4402 = vmatprep.subr.mxu0 0.0
  %v4403 = vand.u32 %v51, 4294901760
  %v4404 = vsub.f32 %v51, %v4403
  %v4405 = vand.u32 %v4404, 4294901760
  %v4406 = vsub.f32 %v4404, %v4405
  %v4407 = vand.u32 %v4406, 4294901760
  %4408 = vmatpush1.msra.mxu0 %v4407
  %4409 = vmatprep.subr.mxu0 0.0
  %v4410 = vand.u32 %v50, 4294901760
  %v4411 = vsub.f32 %v50, %v4410
  %v4412 = vand.u32 %v4411, 4294901760
  %v4413 = vsub.f32 %v4411, %v4412
  %v4414 = vand.u32 %v4413, 4294901760
  %4415 = vmatpush1.msra.mxu0 %v4414
  %4416 = vmatprep.subr.mxu0 0.0
  %v4417 = vand.u32 %v49, 4294901760
  %v4418 = vsub.f32 %v49, %v4417
  %v4419 = vand.u32 %v4418, 4294901760
  %v4420 = vsub.f32 %v4418, %v4419
  %v4421 = vand.u32 %v4420, 4294901760
  %4422 = vmatpush1.msra.mxu0 %v4421
  %4423 = vmatprep.subr.mxu0 0.0
  %v4424 = vand.u32 %v48, 4294901760
  %v4425 = vsub.f32 %v48, %v4424
  %v4426 = vand.u32 %v4425, 4294901760
  %v4427 = vsub.f32 %v4425, %v4426
  %v4428 = vand.u32 %v4427, 4294901760
  %4429 = vmatpush1.msra.mxu0 %v4428
  %4430 = vmatprep.subr.mxu0 0.0
  %v4431 = vand.u32 %v47, 4294901760
  %v4432 = vsub.f32 %v47, %v4431
  %v4433 = vand.u32 %v4432, 4294901760
  %v4434 = vsub.f32 %v4432, %v4433
  %v4435 = vand.u32 %v4434, 4294901760
  %4436 = vmatpush1.msra.mxu0 %v4435
  %4437 = vmatprep.subr.mxu0 0.0
  %4438 = vmatpush2.msra.mxu0 0.0
  %4439 = vmatprep.subr.mxu0 0.0
  %4440 = vmatpush2.msra.mxu0 0.0
  %4441 = vmatprep.subr.mxu0 0.0
  %4442 = vmatpush2.msra.mxu0 0.0
  %4443 = vmatprep.subr.mxu0 0.0
  %4444 = vmatpush2.msra.mxu0 0.0
  %4445 = vmatprep.subr.mxu0 0.0
  %4446 = vmatpush2.msra.mxu0 0.0
  %4447 = vmatprep.subr.mxu0 0.0
  %4448 = vmatpush2.msra.mxu0 0.0
  %4449 = vmatprep.subr.mxu0 0.0
  %4450 = vmatpush2.msra.mxu0 0.0
  %4451 = vmatprep.subr.mxu0 0.0
  %4452 = vmatpush2.msra.mxu0 0.0
  %4453 = vmatprep.subr.mxu0 0.0
  %4454 = vmatpush2.msra.mxu0 0.0
  %4455 = vmatprep.subr.mxu0 0.0
  %4456 = vmatpush2.msra.mxu0 0.0
  %4457 = vmatprep.subr.mxu0 0.0
  %4458 = vmatpush2.msra.mxu0 0.0
  %4459 = vmatprep.subr.mxu0 0.0
  %4460 = vmatpush2.msra.mxu0 0.0
  %4461 = vmatprep.subr.mxu0 0.0
  %4462 = vmatpush2.msra.mxu0 0.0
  %4463 = vmatprep.subr.mxu0 0.0
  %4464 = vmatpush2.msra.mxu0 0.0
  %4465 = vmatprep.subr.mxu0 0.0
  %4466 = vmatpush2.msra.mxu0 0.0
  %4467 = vmatprep.subr.mxu0 0.0
  %4468 = vmatpush2.msra.mxu0 0.0
  %4469 = vmatprep.mubr.f32.mxu0 0.0
  %v4470 = vand.u32 %v4230, 4294901760
  %4471 = vmatmul.mubr.f32.gmra.mxu0 %v4470
  %v4472 = vpop.f32.mrf.mxu0
  %v4473 = vadd.f32 %v4322, %v4472
  %v4474 = vpop.f32.mrf.mxu0
  %4475 = vdwg.mxu0
  %4476 = vmatprep.subr.mxu0 0.0
  %v4477 = vand.u32 %v62, 4294901760
  %v4478 = vsub.f32 %v62, %v4477
  %4479 = vmatpush1.msra.mxu0 %v4478
  %4480 = vmatprep.subr.mxu0 0.0
  %v4481 = vand.u32 %v61, 4294901760
  %v4482 = vsub.f32 %v61, %v4481
  %4483 = vmatpush1.msra.mxu0 %v4482
  %4484 = vmatprep.subr.mxu0 0.0
  %v4485 = vand.u32 %v60, 4294901760
  %v4486 = vsub.f32 %v60, %v4485
  %4487 = vmatpush1.msra.mxu0 %v4486
  %4488 = vmatprep.subr.mxu0 0.0
  %v4489 = vand.u32 %v59, 4294901760
  %v4490 = vsub.f32 %v59, %v4489
  %4491 = vmatpush1.msra.mxu0 %v4490
  %4492 = vmatprep.subr.mxu0 0.0
  %v4493 = vand.u32 %v58, 4294901760
  %v4494 = vsub.f32 %v58, %v4493
  %4495 = vmatpush1.msra.mxu0 %v4494
  %4496 = vmatprep.subr.mxu0 0.0
  %v4497 = vand.u32 %v57, 4294901760
  %v4498 = vsub.f32 %v57, %v4497
  %4499 = vmatpush1.msra.mxu0 %v4498
  %4500 = vmatprep.subr.mxu0 0.0
  %v4501 = vand.u32 %v56, 4294901760
  %v4502 = vsub.f32 %v56, %v4501
  %4503 = vmatpush1.msra.mxu0 %v4502
  %4504 = vmatprep.subr.mxu0 0.0
  %v4505 = vand.u32 %v55, 4294901760
  %v4506 = vsub.f32 %v55, %v4505
  %4507 = vmatpush1.msra.mxu0 %v4506
  %4508 = vmatprep.subr.mxu0 0.0
  %v4509 = vand.u32 %v54, 4294901760
  %v4510 = vsub.f32 %v54, %v4509
  %4511 = vmatpush1.msra.mxu0 %v4510
  %4512 = vmatprep.subr.mxu0 0.0
  %v4513 = vand.u32 %v53, 4294901760
  %v4514 = vsub.f32 %v53, %v4513
  %4515 = vmatpush1.msra.mxu0 %v4514
  %4516 = vmatprep.subr.mxu0 0.0
  %v4517 = vand.u32 %v52, 4294901760
  %v4518 = vsub.f32 %v52, %v4517
  %4519 = vmatpush1.msra.mxu0 %v4518
  %4520 = vmatprep.subr.mxu0 0.0
  %v4521 = vand.u32 %v51, 4294901760
  %v4522 = vsub.f32 %v51, %v4521
  %4523 = vmatpush1.msra.mxu0 %v4522
  %4524 = vmatprep.subr.mxu0 0.0
  %v4525 = vand.u32 %v50, 4294901760
  %v4526 = vsub.f32 %v50, %v4525
  %4527 = vmatpush1.msra.mxu0 %v4526
  %4528 = vmatprep.subr.mxu0 0.0
  %v4529 = vand.u32 %v49, 4294901760
  %v4530 = vsub.f32 %v49, %v4529
  %4531 = vmatpush1.msra.mxu0 %v4530
  %4532 = vmatprep.subr.mxu0 0.0
  %v4533 = vand.u32 %v48, 4294901760
  %v4534 = vsub.f32 %v48, %v4533
  %4535 = vmatpush1.msra.mxu0 %v4534
  %4536 = vmatprep.subr.mxu0 0.0
  %v4537 = vand.u32 %v47, 4294901760
  %v4538 = vsub.f32 %v47, %v4537
  %4539 = vmatpush1.msra.mxu0 %v4538
  %4540 = vmatprep.subr.mxu0 0.0
  %4541 = vmatpush2.msra.mxu0 0.0
  %4542 = vmatprep.subr.mxu0 0.0
  %4543 = vmatpush2.msra.mxu0 0.0
  %4544 = vmatprep.subr.mxu0 0.0
  %4545 = vmatpush2.msra.mxu0 0.0
  %4546 = vmatprep.subr.mxu0 0.0
  %4547 = vmatpush2.msra.mxu0 0.0
  %4548 = vmatprep.subr.mxu0 0.0
  %4549 = vmatpush2.msra.mxu0 0.0
  %4550 = vmatprep.subr.mxu0 0.0
  %4551 = vmatpush2.msra.mxu0 0.0
  %4552 = vmatprep.subr.mxu0 0.0
  %4553 = vmatpush2.msra.mxu0 0.0
  %4554 = vmatprep.subr.mxu0 0.0
  %4555 = vmatpush2.msra.mxu0 0.0
  %4556 = vmatprep.subr.mxu0 0.0
  %4557 = vmatpush2.msra.mxu0 0.0
  %4558 = vmatprep.subr.mxu0 0.0
  %4559 = vmatpush2.msra.mxu0 0.0
  %4560 = vmatprep.subr.mxu0 0.0
  %4561 = vmatpush2.msra.mxu0 0.0
  %4562 = vmatprep.subr.mxu0 0.0
  %4563 = vmatpush2.msra.mxu0 0.0
  %4564 = vmatprep.subr.mxu0 0.0
  %4565 = vmatpush2.msra.mxu0 0.0
  %4566 = vmatprep.subr.mxu0 0.0
  %4567 = vmatpush2.msra.mxu0 0.0
  %4568 = vmatprep.subr.mxu0 0.0
  %4569 = vmatpush2.msra.mxu0 0.0
  %4570 = vmatprep.subr.mxu0 0.0
  %4571 = vmatpush2.msra.mxu0 0.0
  %4572 = vmatprep.mubr.f32.mxu0 0.0
  %v4573 = vand.u32 %v4230, 4294901760
  %v4574 = vsub.f32 %v4230, %v4573
  %4575 = vmatmul.mubr.f32.gmra.mxu0 %v4574
  %v4576 = vpop.f32.mrf.mxu0
  %v4577 = vadd.f32 %v4473, %v4576
  %v4578 = vpop.f32.mrf.mxu0
  %4579 = vdwg.mxu0
  %4580 = vmatprep.subr.mxu0 0.0
  %v4581 = vand.u32 %v62, 4294901760
  %4582 = vmatpush1.msra.mxu0 %v4581
  %4583 = vmatprep.subr.mxu0 0.0
  %v4584 = vand.u32 %v61, 4294901760
  %4585 = vmatpush1.msra.mxu0 %v4584
  %4586 = vmatprep.subr.mxu0 0.0
  %v4587 = vand.u32 %v60, 4294901760
  %4588 = vmatpush1.msra.mxu0 %v4587
  %4589 = vmatprep.subr.mxu0 0.0
  %v4590 = vand.u32 %v59, 4294901760
  %4591 = vmatpush1.msra.mxu0 %v4590
  %4592 = vmatprep.subr.mxu0 0.0
  %v4593 = vand.u32 %v58, 4294901760
  %4594 = vmatpush1.msra.mxu0 %v4593
  %4595 = vmatprep.subr.mxu0 0.0
  %v4596 = vand.u32 %v57, 4294901760
  %4597 = vmatpush1.msra.mxu0 %v4596
  %4598 = vmatprep.subr.mxu0 0.0
  %v4599 = vand.u32 %v56, 4294901760
  %4600 = vmatpush1.msra.mxu0 %v4599
  %4601 = vmatprep.subr.mxu0 0.0
  %v4602 = vand.u32 %v55, 4294901760
  %4603 = vmatpush1.msra.mxu0 %v4602
  %4604 = vmatprep.subr.mxu0 0.0
  %v4605 = vand.u32 %v54, 4294901760
  %4606 = vmatpush1.msra.mxu0 %v4605
  %4607 = vmatprep.subr.mxu0 0.0
  %v4608 = vand.u32 %v53, 4294901760
  %4609 = vmatpush1.msra.mxu0 %v4608
  %4610 = vmatprep.subr.mxu0 0.0
  %v4611 = vand.u32 %v52, 4294901760
  %4612 = vmatpush1.msra.mxu0 %v4611
  %4613 = vmatprep.subr.mxu0 0.0
  %v4614 = vand.u32 %v51, 4294901760
  %4615 = vmatpush1.msra.mxu0 %v4614
  %4616 = vmatprep.subr.mxu0 0.0
  %v4617 = vand.u32 %v50, 4294901760
  %4618 = vmatpush1.msra.mxu0 %v4617
  %4619 = vmatprep.subr.mxu0 0.0
  %v4620 = vand.u32 %v49, 4294901760
  %4621 = vmatpush1.msra.mxu0 %v4620
  %4622 = vmatprep.subr.mxu0 0.0
  %v4623 = vand.u32 %v48, 4294901760
  %4624 = vmatpush1.msra.mxu0 %v4623
  %4625 = vmatprep.subr.mxu0 0.0
  %v4626 = vand.u32 %v47, 4294901760
  %4627 = vmatpush1.msra.mxu0 %v4626
  %4628 = vmatprep.subr.mxu0 0.0
  %4629 = vmatpush2.msra.mxu0 0.0
  %4630 = vmatprep.subr.mxu0 0.0
  %4631 = vmatpush2.msra.mxu0 0.0
  %4632 = vmatprep.subr.mxu0 0.0
  %4633 = vmatpush2.msra.mxu0 0.0
  %4634 = vmatprep.subr.mxu0 0.0
  %4635 = vmatpush2.msra.mxu0 0.0
  %4636 = vmatprep.subr.mxu0 0.0
  %4637 = vmatpush2.msra.mxu0 0.0
  %4638 = vmatprep.subr.mxu0 0.0
  %4639 = vmatpush2.msra.mxu0 0.0
  %4640 = vmatprep.subr.mxu0 0.0
  %4641 = vmatpush2.msra.mxu0 0.0
  %4642 = vmatprep.subr.mxu0 0.0
  %4643 = vmatpush2.msra.mxu0 0.0
  %4644 = vmatprep.subr.mxu0 0.0
  %4645 = vmatpush2.msra.mxu0 0.0
  %4646 = vmatprep.subr.mxu0 0.0
  %4647 = vmatpush2.msra.mxu0 0.0
  %4648 = vmatprep.subr.mxu0 0.0
  %4649 = vmatpush2.msra.mxu0 0.0
  %4650 = vmatprep.subr.mxu0 0.0
  %4651 = vmatpush2.msra.mxu0 0.0
  %4652 = vmatprep.subr.mxu0 0.0
  %4653 = vmatpush2.msra.mxu0 0.0
  %4654 = vmatprep.subr.mxu0 0.0
  %4655 = vmatpush2.msra.mxu0 0.0
  %4656 = vmatprep.subr.mxu0 0.0
  %4657 = vmatpush2.msra.mxu0 0.0
  %4658 = vmatprep.subr.mxu0 0.0
  %4659 = vmatpush2.msra.mxu0 0.0
  %4660 = vmatprep.mubr.f32.mxu0 0.0
  %v4661 = vand.u32 %v4230, 4294901760
  %v4662 = vsub.f32 %v4230, %v4661
  %v4663 = vand.u32 %v4662, 4294901760
  %4664 = vmatmul.mubr.f32.gmra.mxu0 %v4663
  %v4665 = vpop.f32.mrf.mxu0
  %v4666 = vadd.f32 %v4577, %v4665
  %v4667 = vpop.f32.mrf.mxu0
  %4668 = vdwg.mxu0
  %4669 = vmatprep.subr.mxu0 0.0
  %v4670 = vand.u32 %v62, 4294901760
  %v4671 = vsub.f32 %v62, %v4670
  %v4672 = vand.u32 %v4671, 4294901760
  %4673 = vmatpush1.msra.mxu0 %v4672
  %4674 = vmatprep.subr.mxu0 0.0
  %v4675 = vand.u32 %v61, 4294901760
  %v4676 = vsub.f32 %v61, %v4675
  %v4677 = vand.u32 %v4676, 4294901760
  %4678 = vmatpush1.msra.mxu0 %v4677
  %4679 = vmatprep.subr.mxu0 0.0
  %v4680 = vand.u32 %v60, 4294901760
  %v4681 = vsub.f32 %v60, %v4680
  %v4682 = vand.u32 %v4681, 4294901760
  %4683 = vmatpush1.msra.mxu0 %v4682
  %4684 = vmatprep.subr.mxu0 0.0
  %v4685 = vand.u32 %v59, 4294901760
  %v4686 = vsub.f32 %v59, %v4685
  %v4687 = vand.u32 %v4686, 4294901760
  %4688 = vmatpush1.msra.mxu0 %v4687
  %4689 = vmatprep.subr.mxu0 0.0
  %v4690 = vand.u32 %v58, 4294901760
  %v4691 = vsub.f32 %v58, %v4690
  %v4692 = vand.u32 %v4691, 4294901760
  %4693 = vmatpush1.msra.mxu0 %v4692
  %4694 = vmatprep.subr.mxu0 0.0
  %v4695 = vand.u32 %v57, 4294901760
  %v4696 = vsub.f32 %v57, %v4695
  %v4697 = vand.u32 %v4696, 4294901760
  %4698 = vmatpush1.msra.mxu0 %v4697
  %4699 = vmatprep.subr.mxu0 0.0
  %v4700 = vand.u32 %v56, 4294901760
  %v4701 = vsub.f32 %v56, %v4700
  %v4702 = vand.u32 %v4701, 4294901760
  %4703 = vmatpush1.msra.mxu0 %v4702
  %4704 = vmatprep.subr.mxu0 0.0
  %v4705 = vand.u32 %v55, 4294901760
  %v4706 = vsub.f32 %v55, %v4705
  %v4707 = vand.u32 %v4706, 4294901760
  %4708 = vmatpush1.msra.mxu0 %v4707
  %4709 = vmatprep.subr.mxu0 0.0
  %v4710 = vand.u32 %v54, 4294901760
  %v4711 = vsub.f32 %v54, %v4710
  %v4712 = vand.u32 %v4711, 4294901760
  %4713 = vmatpush1.msra.mxu0 %v4712
  %4714 = vmatprep.subr.mxu0 0.0
  %v4715 = vand.u32 %v53, 4294901760
  %v4716 = vsub.f32 %v53, %v4715
  %v4717 = vand.u32 %v4716, 4294901760
  %4718 = vmatpush1.msra.mxu0 %v4717
  %4719 = vmatprep.subr.mxu0 0.0
  %v4720 = vand.u32 %v52, 4294901760
  %v4721 = vsub.f32 %v52, %v4720
  %v4722 = vand.u32 %v4721, 4294901760
  %4723 = vmatpush1.msra.mxu0 %v4722
  %4724 = vmatprep.subr.mxu0 0.0
  %v4725 = vand.u32 %v51, 4294901760
  %v4726 = vsub.f32 %v51, %v4725
  %v4727 = vand.u32 %v4726, 4294901760
  %4728 = vmatpush1.msra.mxu0 %v4727
  %4729 = vmatprep.subr.mxu0 0.0
  %v4730 = vand.u32 %v50, 4294901760
  %v4731 = vsub.f32 %v50, %v4730
  %v4732 = vand.u32 %v4731, 4294901760
  %4733 = vmatpush1.msra.mxu0 %v4732
  %4734 = vmatprep.subr.mxu0 0.0
  %v4735 = vand.u32 %v49, 4294901760
  %v4736 = vsub.f32 %v49, %v4735
  %v4737 = vand.u32 %v4736, 4294901760
  %4738 = vmatpush1.msra.mxu0 %v4737
  %4739 = vmatprep.subr.mxu0 0.0
  %v4740 = vand.u32 %v48, 4294901760
  %v4741 = vsub.f32 %v48, %v4740
  %v4742 = vand.u32 %v4741, 4294901760
  %4743 = vmatpush1.msra.mxu0 %v4742
  %4744 = vmatprep.subr.mxu0 0.0
  %v4745 = vand.u32 %v47, 4294901760
  %v4746 = vsub.f32 %v47, %v4745
  %v4747 = vand.u32 %v4746, 4294901760
  %4748 = vmatpush1.msra.mxu0 %v4747
  %4749 = vmatprep.subr.mxu0 0.0
  %4750 = vmatpush2.msra.mxu0 0.0
  %4751 = vmatprep.subr.mxu0 0.0
  %4752 = vmatpush2.msra.mxu0 0.0
  %4753 = vmatprep.subr.mxu0 0.0
  %4754 = vmatpush2.msra.mxu0 0.0
  %4755 = vmatprep.subr.mxu0 0.0
  %4756 = vmatpush2.msra.mxu0 0.0
  %4757 = vmatprep.subr.mxu0 0.0
  %4758 = vmatpush2.msra.mxu0 0.0
  %4759 = vmatprep.subr.mxu0 0.0
  %4760 = vmatpush2.msra.mxu0 0.0
  %4761 = vmatprep.subr.mxu0 0.0
  %4762 = vmatpush2.msra.mxu0 0.0
  %4763 = vmatprep.subr.mxu0 0.0
  %4764 = vmatpush2.msra.mxu0 0.0
  %4765 = vmatprep.subr.mxu0 0.0
  %4766 = vmatpush2.msra.mxu0 0.0
  %4767 = vmatprep.subr.mxu0 0.0
  %4768 = vmatpush2.msra.mxu0 0.0
  %4769 = vmatprep.subr.mxu0 0.0
  %4770 = vmatpush2.msra.mxu0 0.0
  %4771 = vmatprep.subr.mxu0 0.0
  %4772 = vmatpush2.msra.mxu0 0.0
  %4773 = vmatprep.subr.mxu0 0.0
  %4774 = vmatpush2.msra.mxu0 0.0
  %4775 = vmatprep.subr.mxu0 0.0
  %4776 = vmatpush2.msra.mxu0 0.0
  %4777 = vmatprep.subr.mxu0 0.0
  %4778 = vmatpush2.msra.mxu0 0.0
  %4779 = vmatprep.subr.mxu0 0.0
  %4780 = vmatpush2.msra.mxu0 0.0
  %4781 = vmatprep.mubr.f32.mxu0 0.0
  %v4782 = vand.u32 %v4230, 4294901760
  %4783 = vmatmul.mubr.f32.gmra.mxu0 %v4782
  %v4784 = vpop.f32.mrf.mxu0
  %v4785 = vadd.f32 %v4666, %v4784
  %v4786 = vpop.f32.mrf.mxu0
  %4787 = vdwg.mxu0
  %4788 = vmatprep.subr.mxu0 0.0
  %v4789 = vand.u32 %v62, 4294901760
  %4790 = vmatpush1.msra.mxu0 %v4789
  %4791 = vmatprep.subr.mxu0 0.0
  %v4792 = vand.u32 %v61, 4294901760
  %4793 = vmatpush1.msra.mxu0 %v4792
  %4794 = vmatprep.subr.mxu0 0.0
  %v4795 = vand.u32 %v60, 4294901760
  %4796 = vmatpush1.msra.mxu0 %v4795
  %4797 = vmatprep.subr.mxu0 0.0
  %v4798 = vand.u32 %v59, 4294901760
  %4799 = vmatpush1.msra.mxu0 %v4798
  %4800 = vmatprep.subr.mxu0 0.0
  %v4801 = vand.u32 %v58, 4294901760
  %4802 = vmatpush1.msra.mxu0 %v4801
  %4803 = vmatprep.subr.mxu0 0.0
  %v4804 = vand.u32 %v57, 4294901760
  %4805 = vmatpush1.msra.mxu0 %v4804
  %4806 = vmatprep.subr.mxu0 0.0
  %v4807 = vand.u32 %v56, 4294901760
  %4808 = vmatpush1.msra.mxu0 %v4807
  %4809 = vmatprep.subr.mxu0 0.0
  %v4810 = vand.u32 %v55, 4294901760
  %4811 = vmatpush1.msra.mxu0 %v4810
  %4812 = vmatprep.subr.mxu0 0.0
  %v4813 = vand.u32 %v54, 4294901760
  %4814 = vmatpush1.msra.mxu0 %v4813
  %4815 = vmatprep.subr.mxu0 0.0
  %v4816 = vand.u32 %v53, 4294901760
  %4817 = vmatpush1.msra.mxu0 %v4816
  %4818 = vmatprep.subr.mxu0 0.0
  %v4819 = vand.u32 %v52, 4294901760
  %4820 = vmatpush1.msra.mxu0 %v4819
  %4821 = vmatprep.subr.mxu0 0.0
  %v4822 = vand.u32 %v51, 4294901760
  %4823 = vmatpush1.msra.mxu0 %v4822
  %4824 = vmatprep.subr.mxu0 0.0
  %v4825 = vand.u32 %v50, 4294901760
  %4826 = vmatpush1.msra.mxu0 %v4825
  %4827 = vmatprep.subr.mxu0 0.0
  %v4828 = vand.u32 %v49, 4294901760
  %4829 = vmatpush1.msra.mxu0 %v4828
  %4830 = vmatprep.subr.mxu0 0.0
  %v4831 = vand.u32 %v48, 4294901760
  %4832 = vmatpush1.msra.mxu0 %v4831
  %4833 = vmatprep.subr.mxu0 0.0
  %v4834 = vand.u32 %v47, 4294901760
  %4835 = vmatpush1.msra.mxu0 %v4834
  %4836 = vmatprep.subr.mxu0 0.0
  %4837 = vmatpush2.msra.mxu0 0.0
  %4838 = vmatprep.subr.mxu0 0.0
  %4839 = vmatpush2.msra.mxu0 0.0
  %4840 = vmatprep.subr.mxu0 0.0
  %4841 = vmatpush2.msra.mxu0 0.0
  %4842 = vmatprep.subr.mxu0 0.0
  %4843 = vmatpush2.msra.mxu0 0.0
  %4844 = vmatprep.subr.mxu0 0.0
  %4845 = vmatpush2.msra.mxu0 0.0
  %4846 = vmatprep.subr.mxu0 0.0
  %4847 = vmatpush2.msra.mxu0 0.0
  %4848 = vmatprep.subr.mxu0 0.0
  %4849 = vmatpush2.msra.mxu0 0.0
  %4850 = vmatprep.subr.mxu0 0.0
  %4851 = vmatpush2.msra.mxu0 0.0
  %4852 = vmatprep.subr.mxu0 0.0
  %4853 = vmatpush2.msra.mxu0 0.0
  %4854 = vmatprep.subr.mxu0 0.0
  %4855 = vmatpush2.msra.mxu0 0.0
  %4856 = vmatprep.subr.mxu0 0.0
  %4857 = vmatpush2.msra.mxu0 0.0
  %4858 = vmatprep.subr.mxu0 0.0
  %4859 = vmatpush2.msra.mxu0 0.0
  %4860 = vmatprep.subr.mxu0 0.0
  %4861 = vmatpush2.msra.mxu0 0.0
  %4862 = vmatprep.subr.mxu0 0.0
  %4863 = vmatpush2.msra.mxu0 0.0
  %4864 = vmatprep.subr.mxu0 0.0
  %4865 = vmatpush2.msra.mxu0 0.0
  %4866 = vmatprep.subr.mxu0 0.0
  %4867 = vmatpush2.msra.mxu0 0.0
  %4868 = vmatprep.mubr.f32.mxu0 0.0
  %v4869 = vand.u32 %v4230, 4294901760
  %4870 = vmatmul.mubr.f32.gmra.mxu0 %v4869
  %v4871 = vpop.f32.mrf.mxu0
  %v4872 = vadd.f32 %v4785, %v4871
  %v4873 = vpop.f32.mrf.mxu0
  %4874 = vdwg.mxu0
  %v4875 = vadd.f32 %v4233, %v4872
  %v4876 = vtanh.pop %v4875
  %4877 = vst [vmem:[%s4232] sm:$0xff] %v4876
  %s4878 = scalar_lea.vmem [#allocation2], 48
  %v4879 = vld [vmem:[%s4878] sm:$0xff]
  %4880 = vmatprep.subr.mxu0 0.0
  %v4881 = vand.u32 %v62, 4294901760
  %4882 = vmatpush1.msra.mxu0 %v4881
  %4883 = vmatprep.subr.mxu0 0.0
  %v4884 = vand.u32 %v61, 4294901760
  %4885 = vmatpush1.msra.mxu0 %v4884
  %4886 = vmatprep.subr.mxu0 0.0
  %v4887 = vand.u32 %v60, 4294901760
  %4888 = vmatpush1.msra.mxu0 %v4887
  %4889 = vmatprep.subr.mxu0 0.0
  %v4890 = vand.u32 %v59, 4294901760
  %4891 = vmatpush1.msra.mxu0 %v4890
  %4892 = vmatprep.subr.mxu0 0.0
  %v4893 = vand.u32 %v58, 4294901760
  %4894 = vmatpush1.msra.mxu0 %v4893
  %4895 = vmatprep.subr.mxu0 0.0
  %v4896 = vand.u32 %v57, 4294901760
  %4897 = vmatpush1.msra.mxu0 %v4896
  %4898 = vmatprep.subr.mxu0 0.0
  %v4899 = vand.u32 %v56, 4294901760
  %4900 = vmatpush1.msra.mxu0 %v4899
  %4901 = vmatprep.subr.mxu0 0.0
  %v4902 = vand.u32 %v55, 4294901760
  %4903 = vmatpush1.msra.mxu0 %v4902
  %4904 = vmatprep.subr.mxu0 0.0
  %v4905 = vand.u32 %v54, 4294901760
  %4906 = vmatpush1.msra.mxu0 %v4905
  %4907 = vmatprep.subr.mxu0 0.0
  %v4908 = vand.u32 %v53, 4294901760
  %4909 = vmatpush1.msra.mxu0 %v4908
  %4910 = vmatprep.subr.mxu0 0.0
  %v4911 = vand.u32 %v52, 4294901760
  %4912 = vmatpush1.msra.mxu0 %v4911
  %4913 = vmatprep.subr.mxu0 0.0
  %v4914 = vand.u32 %v51, 4294901760
  %4915 = vmatpush1.msra.mxu0 %v4914
  %4916 = vmatprep.subr.mxu0 0.0
  %v4917 = vand.u32 %v50, 4294901760
  %4918 = vmatpush1.msra.mxu0 %v4917
  %4919 = vmatprep.subr.mxu0 0.0
  %v4920 = vand.u32 %v49, 4294901760
  %4921 = vmatpush1.msra.mxu0 %v4920
  %4922 = vmatprep.subr.mxu0 0.0
  %v4923 = vand.u32 %v48, 4294901760
  %4924 = vmatpush1.msra.mxu0 %v4923
  %4925 = vmatprep.subr.mxu0 0.0
  %v4926 = vand.u32 %v47, 4294901760
  %4927 = vmatpush1.msra.mxu0 %v4926
  %4928 = vmatprep.subr.mxu0 0.0
  %4929 = vmatpush2.msra.mxu0 0.0
  %4930 = vmatprep.subr.mxu0 0.0
  %4931 = vmatpush2.msra.mxu0 0.0
  %4932 = vmatprep.subr.mxu0 0.0
  %4933 = vmatpush2.msra.mxu0 0.0
  %4934 = vmatprep.subr.mxu0 0.0
  %4935 = vmatpush2.msra.mxu0 0.0
  %4936 = vmatprep.subr.mxu0 0.0
  %4937 = vmatpush2.msra.mxu0 0.0
  %4938 = vmatprep.subr.mxu0 0.0
  %4939 = vmatpush2.msra.mxu0 0.0
  %4940 = vmatprep.subr.mxu0 0.0
  %4941 = vmatpush2.msra.mxu0 0.0
  %4942 = vmatprep.subr.mxu0 0.0
  %4943 = vmatpush2.msra.mxu0 0.0
  %4944 = vmatprep.subr.mxu0 0.0
  %4945 = vmatpush2.msra.mxu0 0.0
  %4946 = vmatprep.subr.mxu0 0.0
  %4947 = vmatpush2.msra.mxu0 0.0
  %4948 = vmatprep.subr.mxu0 0.0
  %4949 = vmatpush2.msra.mxu0 0.0
  %4950 = vmatprep.subr.mxu0 0.0
  %4951 = vmatpush2.msra.mxu0 0.0
  %4952 = vmatprep.subr.mxu0 0.0
  %4953 = vmatpush2.msra.mxu0 0.0
  %4954 = vmatprep.subr.mxu0 0.0
  %4955 = vmatpush2.msra.mxu0 0.0
  %4956 = vmatprep.subr.mxu0 0.0
  %4957 = vmatpush2.msra.mxu0 0.0
  %4958 = vmatprep.subr.mxu0 0.0
  %4959 = vmatpush2.msra.mxu0 0.0
  %4960 = vmatprep.mubr.f32.mxu0 0.0
  %v4961 = vand.u32 %v4876, 4294901760
  %v4962 = vsub.f32 %v4876, %v4961
  %v4963 = vand.u32 %v4962, 4294901760
  %v4964 = vsub.f32 %v4962, %v4963
  %v4965 = vand.u32 %v4964, 4294901760
  %4966 = vmatmul.mubr.f32.gmra.mxu0 %v4965
  %v4967 = vpop.f32.mrf.mxu0
  %v4968 = vadd.f32 0.0, %v4967
  %v4969 = vpop.f32.mrf.mxu0
  %4970 = vdwg.mxu0
  %4971 = vmatprep.subr.mxu0 0.0
  %v4972 = vand.u32 %v62, 4294901760
  %v4973 = vsub.f32 %v62, %v4972
  %v4974 = vand.u32 %v4973, 4294901760
  %v4975 = vsub.f32 %v4973, %v4974
  %v4976 = vand.u32 %v4975, 4294901760
  %4977 = vmatpush1.msra.mxu0 %v4976
  %4978 = vmatprep.subr.mxu0 0.0
  %v4979 = vand.u32 %v61, 4294901760
  %v4980 = vsub.f32 %v61, %v4979
  %v4981 = vand.u32 %v4980, 4294901760
  %v4982 = vsub.f32 %v4980, %v4981
  %v4983 = vand.u32 %v4982, 4294901760
  %4984 = vmatpush1.msra.mxu0 %v4983
  %4985 = vmatprep.subr.mxu0 0.0
  %v4986 = vand.u32 %v60, 4294901760
  %v4987 = vsub.f32 %v60, %v4986
  %v4988 = vand.u32 %v4987, 4294901760
  %v4989 = vsub.f32 %v4987, %v4988
  %v4990 = vand.u32 %v4989, 4294901760
  %4991 = vmatpush1.msra.mxu0 %v4990
  %4992 = vmatprep.subr.mxu0 0.0
  %v4993 = vand.u32 %v59, 4294901760
  %v4994 = vsub.f32 %v59, %v4993
  %v4995 = vand.u32 %v4994, 4294901760
  %v4996 = vsub.f32 %v4994, %v4995
  %v4997 = vand.u32 %v4996, 4294901760
  %4998 = vmatpush1.msra.mxu0 %v4997
  %4999 = vmatprep.subr.mxu0 0.0
  %v5000 = vand.u32 %v58, 4294901760
  %v5001 = vsub.f32 %v58, %v5000
  %v5002 = vand.u32 %v5001, 4294901760
  %v5003 = vsub.f32 %v5001, %v5002
  %v5004 = vand.u32 %v5003, 4294901760
  %5005 = vmatpush1.msra.mxu0 %v5004
  %5006 = vmatprep.subr.mxu0 0.0
  %v5007 = vand.u32 %v57, 4294901760
  %v5008 = vsub.f32 %v57, %v5007
  %v5009 = vand.u32 %v5008, 4294901760
  %v5010 = vsub.f32 %v5008, %v5009
  %v5011 = vand.u32 %v5010, 4294901760
  %5012 = vmatpush1.msra.mxu0 %v5011
  %5013 = vmatprep.subr.mxu0 0.0
  %v5014 = vand.u32 %v56, 4294901760
  %v5015 = vsub.f32 %v56, %v5014
  %v5016 = vand.u32 %v5015, 4294901760
  %v5017 = vsub.f32 %v5015, %v5016
  %v5018 = vand.u32 %v5017, 4294901760
  %5019 = vmatpush1.msra.mxu0 %v5018
  %5020 = vmatprep.subr.mxu0 0.0
  %v5021 = vand.u32 %v55, 4294901760
  %v5022 = vsub.f32 %v55, %v5021
  %v5023 = vand.u32 %v5022, 4294901760
  %v5024 = vsub.f32 %v5022, %v5023
  %v5025 = vand.u32 %v5024, 4294901760
  %5026 = vmatpush1.msra.mxu0 %v5025
  %5027 = vmatprep.subr.mxu0 0.0
  %v5028 = vand.u32 %v54, 4294901760
  %v5029 = vsub.f32 %v54, %v5028
  %v5030 = vand.u32 %v5029, 4294901760
  %v5031 = vsub.f32 %v5029, %v5030
  %v5032 = vand.u32 %v5031, 4294901760
  %5033 = vmatpush1.msra.mxu0 %v5032
  %5034 = vmatprep.subr.mxu0 0.0
  %v5035 = vand.u32 %v53, 4294901760
  %v5036 = vsub.f32 %v53, %v5035
  %v5037 = vand.u32 %v5036, 4294901760
  %v5038 = vsub.f32 %v5036, %v5037
  %v5039 = vand.u32 %v5038, 4294901760
  %5040 = vmatpush1.msra.mxu0 %v5039
  %5041 = vmatprep.subr.mxu0 0.0
  %v5042 = vand.u32 %v52, 4294901760
  %v5043 = vsub.f32 %v52, %v5042
  %v5044 = vand.u32 %v5043, 4294901760
  %v5045 = vsub.f32 %v5043, %v5044
  %v5046 = vand.u32 %v5045, 4294901760
  %5047 = vmatpush1.msra.mxu0 %v5046
  %5048 = vmatprep.subr.mxu0 0.0
  %v5049 = vand.u32 %v51, 4294901760
  %v5050 = vsub.f32 %v51, %v5049
  %v5051 = vand.u32 %v5050, 4294901760
  %v5052 = vsub.f32 %v5050, %v5051
  %v5053 = vand.u32 %v5052, 4294901760
  %5054 = vmatpush1.msra.mxu0 %v5053
  %5055 = vmatprep.subr.mxu0 0.0
  %v5056 = vand.u32 %v50, 4294901760
  %v5057 = vsub.f32 %v50, %v5056
  %v5058 = vand.u32 %v5057, 4294901760
  %v5059 = vsub.f32 %v5057, %v5058
  %v5060 = vand.u32 %v5059, 4294901760
  %5061 = vmatpush1.msra.mxu0 %v5060
  %5062 = vmatprep.subr.mxu0 0.0
  %v5063 = vand.u32 %v49, 4294901760
  %v5064 = vsub.f32 %v49, %v5063
  %v5065 = vand.u32 %v5064, 4294901760
  %v5066 = vsub.f32 %v5064, %v5065
  %v5067 = vand.u32 %v5066, 4294901760
  %5068 = vmatpush1.msra.mxu0 %v5067
  %5069 = vmatprep.subr.mxu0 0.0
  %v5070 = vand.u32 %v48, 4294901760
  %v5071 = vsub.f32 %v48, %v5070
  %v5072 = vand.u32 %v5071, 4294901760
  %v5073 = vsub.f32 %v5071, %v5072
  %v5074 = vand.u32 %v5073, 4294901760
  %5075 = vmatpush1.msra.mxu0 %v5074
  %5076 = vmatprep.subr.mxu0 0.0
  %v5077 = vand.u32 %v47, 4294901760
  %v5078 = vsub.f32 %v47, %v5077
  %v5079 = vand.u32 %v5078, 4294901760
  %v5080 = vsub.f32 %v5078, %v5079
  %v5081 = vand.u32 %v5080, 4294901760
  %5082 = vmatpush1.msra.mxu0 %v5081
  %5083 = vmatprep.subr.mxu0 0.0
  %5084 = vmatpush2.msra.mxu0 0.0
  %5085 = vmatprep.subr.mxu0 0.0
  %5086 = vmatpush2.msra.mxu0 0.0
  %5087 = vmatprep.subr.mxu0 0.0
  %5088 = vmatpush2.msra.mxu0 0.0
  %5089 = vmatprep.subr.mxu0 0.0
  %5090 = vmatpush2.msra.mxu0 0.0
  %5091 = vmatprep.subr.mxu0 0.0
  %5092 = vmatpush2.msra.mxu0 0.0
  %5093 = vmatprep.subr.mxu0 0.0
  %5094 = vmatpush2.msra.mxu0 0.0
  %5095 = vmatprep.subr.mxu0 0.0
  %5096 = vmatpush2.msra.mxu0 0.0
  %5097 = vmatprep.subr.mxu0 0.0
  %5098 = vmatpush2.msra.mxu0 0.0
  %5099 = vmatprep.subr.mxu0 0.0
  %5100 = vmatpush2.msra.mxu0 0.0
  %5101 = vmatprep.subr.mxu0 0.0
  %5102 = vmatpush2.msra.mxu0 0.0
  %5103 = vmatprep.subr.mxu0 0.0
  %5104 = vmatpush2.msra.mxu0 0.0
  %5105 = vmatprep.subr.mxu0 0.0
  %5106 = vmatpush2.msra.mxu0 0.0
  %5107 = vmatprep.subr.mxu0 0.0
  %5108 = vmatpush2.msra.mxu0 0.0
  %5109 = vmatprep.subr.mxu0 0.0
  %5110 = vmatpush2.msra.mxu0 0.0
  %5111 = vmatprep.subr.mxu0 0.0
  %5112 = vmatpush2.msra.mxu0 0.0
  %5113 = vmatprep.subr.mxu0 0.0
  %5114 = vmatpush2.msra.mxu0 0.0
  %5115 = vmatprep.mubr.f32.mxu0 0.0
  %v5116 = vand.u32 %v4876, 4294901760
  %5117 = vmatmul.mubr.f32.gmra.mxu0 %v5116
  %v5118 = vpop.f32.mrf.mxu0
  %v5119 = vadd.f32 %v4968, %v5118
  %v5120 = vpop.f32.mrf.mxu0
  %5121 = vdwg.mxu0
  %5122 = vmatprep.subr.mxu0 0.0
  %v5123 = vand.u32 %v62, 4294901760
  %v5124 = vsub.f32 %v62, %v5123
  %5125 = vmatpush1.msra.mxu0 %v5124
  %5126 = vmatprep.subr.mxu0 0.0
  %v5127 = vand.u32 %v61, 4294901760
  %v5128 = vsub.f32 %v61, %v5127
  %5129 = vmatpush1.msra.mxu0 %v5128
  %5130 = vmatprep.subr.mxu0 0.0
  %v5131 = vand.u32 %v60, 4294901760
  %v5132 = vsub.f32 %v60, %v5131
  %5133 = vmatpush1.msra.mxu0 %v5132
  %5134 = vmatprep.subr.mxu0 0.0
  %v5135 = vand.u32 %v59, 4294901760
  %v5136 = vsub.f32 %v59, %v5135
  %5137 = vmatpush1.msra.mxu0 %v5136
  %5138 = vmatprep.subr.mxu0 0.0
  %v5139 = vand.u32 %v58, 4294901760
  %v5140 = vsub.f32 %v58, %v5139
  %5141 = vmatpush1.msra.mxu0 %v5140
  %5142 = vmatprep.subr.mxu0 0.0
  %v5143 = vand.u32 %v57, 4294901760
  %v5144 = vsub.f32 %v57, %v5143
  %5145 = vmatpush1.msra.mxu0 %v5144
  %5146 = vmatprep.subr.mxu0 0.0
  %v5147 = vand.u32 %v56, 4294901760
  %v5148 = vsub.f32 %v56, %v5147
  %5149 = vmatpush1.msra.mxu0 %v5148
  %5150 = vmatprep.subr.mxu0 0.0
  %v5151 = vand.u32 %v55, 4294901760
  %v5152 = vsub.f32 %v55, %v5151
  %5153 = vmatpush1.msra.mxu0 %v5152
  %5154 = vmatprep.subr.mxu0 0.0
  %v5155 = vand.u32 %v54, 4294901760
  %v5156 = vsub.f32 %v54, %v5155
  %5157 = vmatpush1.msra.mxu0 %v5156
  %5158 = vmatprep.subr.mxu0 0.0
  %v5159 = vand.u32 %v53, 4294901760
  %v5160 = vsub.f32 %v53, %v5159
  %5161 = vmatpush1.msra.mxu0 %v5160
  %5162 = vmatprep.subr.mxu0 0.0
  %v5163 = vand.u32 %v52, 4294901760
  %v5164 = vsub.f32 %v52, %v5163
  %5165 = vmatpush1.msra.mxu0 %v5164
  %5166 = vmatprep.subr.mxu0 0.0
  %v5167 = vand.u32 %v51, 4294901760
  %v5168 = vsub.f32 %v51, %v5167
  %5169 = vmatpush1.msra.mxu0 %v5168
  %5170 = vmatprep.subr.mxu0 0.0
  %v5171 = vand.u32 %v50, 4294901760
  %v5172 = vsub.f32 %v50, %v5171
  %5173 = vmatpush1.msra.mxu0 %v5172
  %5174 = vmatprep.subr.mxu0 0.0
  %v5175 = vand.u32 %v49, 4294901760
  %v5176 = vsub.f32 %v49, %v5175
  %5177 = vmatpush1.msra.mxu0 %v5176
  %5178 = vmatprep.subr.mxu0 0.0
  %v5179 = vand.u32 %v48, 4294901760
  %v5180 = vsub.f32 %v48, %v5179
  %5181 = vmatpush1.msra.mxu0 %v5180
  %5182 = vmatprep.subr.mxu0 0.0
  %v5183 = vand.u32 %v47, 4294901760
  %v5184 = vsub.f32 %v47, %v5183
  %5185 = vmatpush1.msra.mxu0 %v5184
  %5186 = vmatprep.subr.mxu0 0.0
  %5187 = vmatpush2.msra.mxu0 0.0
  %5188 = vmatprep.subr.mxu0 0.0
  %5189 = vmatpush2.msra.mxu0 0.0
  %5190 = vmatprep.subr.mxu0 0.0
  %5191 = vmatpush2.msra.mxu0 0.0
  %5192 = vmatprep.subr.mxu0 0.0
  %5193 = vmatpush2.msra.mxu0 0.0
  %5194 = vmatprep.subr.mxu0 0.0
  %5195 = vmatpush2.msra.mxu0 0.0
  %5196 = vmatprep.subr.mxu0 0.0
  %5197 = vmatpush2.msra.mxu0 0.0
  %5198 = vmatprep.subr.mxu0 0.0
  %5199 = vmatpush2.msra.mxu0 0.0
  %5200 = vmatprep.subr.mxu0 0.0
  %5201 = vmatpush2.msra.mxu0 0.0
  %5202 = vmatprep.subr.mxu0 0.0
  %5203 = vmatpush2.msra.mxu0 0.0
  %5204 = vmatprep.subr.mxu0 0.0
  %5205 = vmatpush2.msra.mxu0 0.0
  %5206 = vmatprep.subr.mxu0 0.0
  %5207 = vmatpush2.msra.mxu0 0.0
  %5208 = vmatprep.subr.mxu0 0.0
  %5209 = vmatpush2.msra.mxu0 0.0
  %5210 = vmatprep.subr.mxu0 0.0
  %5211 = vmatpush2.msra.mxu0 0.0
  %5212 = vmatprep.subr.mxu0 0.0
  %5213 = vmatpush2.msra.mxu0 0.0
  %5214 = vmatprep.subr.mxu0 0.0
  %5215 = vmatpush2.msra.mxu0 0.0
  %5216 = vmatprep.subr.mxu0 0.0
  %5217 = vmatpush2.msra.mxu0 0.0
  %5218 = vmatprep.mubr.f32.mxu0 0.0
  %v5219 = vand.u32 %v4876, 4294901760
  %v5220 = vsub.f32 %v4876, %v5219
  %5221 = vmatmul.mubr.f32.gmra.mxu0 %v5220
  %v5222 = vpop.f32.mrf.mxu0
  %v5223 = vadd.f32 %v5119, %v5222
  %v5224 = vpop.f32.mrf.mxu0
  %5225 = vdwg.mxu0
  %5226 = vmatprep.subr.mxu0 0.0
  %v5227 = vand.u32 %v62, 4294901760
  %5228 = vmatpush1.msra.mxu0 %v5227
  %5229 = vmatprep.subr.mxu0 0.0
  %v5230 = vand.u32 %v61, 4294901760
  %5231 = vmatpush1.msra.mxu0 %v5230
  %5232 = vmatprep.subr.mxu0 0.0
  %v5233 = vand.u32 %v60, 4294901760
  %5234 = vmatpush1.msra.mxu0 %v5233
  %5235 = vmatprep.subr.mxu0 0.0
  %v5236 = vand.u32 %v59, 4294901760
  %5237 = vmatpush1.msra.mxu0 %v5236
  %5238 = vmatprep.subr.mxu0 0.0
  %v5239 = vand.u32 %v58, 4294901760
  %5240 = vmatpush1.msra.mxu0 %v5239
  %5241 = vmatprep.subr.mxu0 0.0
  %v5242 = vand.u32 %v57, 4294901760
  %5243 = vmatpush1.msra.mxu0 %v5242
  %5244 = vmatprep.subr.mxu0 0.0
  %v5245 = vand.u32 %v56, 4294901760
  %5246 = vmatpush1.msra.mxu0 %v5245
  %5247 = vmatprep.subr.mxu0 0.0
  %v5248 = vand.u32 %v55, 4294901760
  %5249 = vmatpush1.msra.mxu0 %v5248
  %5250 = vmatprep.subr.mxu0 0.0
  %v5251 = vand.u32 %v54, 4294901760
  %5252 = vmatpush1.msra.mxu0 %v5251
  %5253 = vmatprep.subr.mxu0 0.0
  %v5254 = vand.u32 %v53, 4294901760
  %5255 = vmatpush1.msra.mxu0 %v5254
  %5256 = vmatprep.subr.mxu0 0.0
  %v5257 = vand.u32 %v52, 4294901760
  %5258 = vmatpush1.msra.mxu0 %v5257
  %5259 = vmatprep.subr.mxu0 0.0
  %v5260 = vand.u32 %v51, 4294901760
  %5261 = vmatpush1.msra.mxu0 %v5260
  %5262 = vmatprep.subr.mxu0 0.0
  %v5263 = vand.u32 %v50, 4294901760
  %5264 = vmatpush1.msra.mxu0 %v5263
  %5265 = vmatprep.subr.mxu0 0.0
  %v5266 = vand.u32 %v49, 4294901760
  %5267 = vmatpush1.msra.mxu0 %v5266
  %5268 = vmatprep.subr.mxu0 0.0
  %v5269 = vand.u32 %v48, 4294901760
  %5270 = vmatpush1.msra.mxu0 %v5269
  %5271 = vmatprep.subr.mxu0 0.0
  %v5272 = vand.u32 %v47, 4294901760
  %5273 = vmatpush1.msra.mxu0 %v5272
  %5274 = vmatprep.subr.mxu0 0.0
  %5275 = vmatpush2.msra.mxu0 0.0
  %5276 = vmatprep.subr.mxu0 0.0
  %5277 = vmatpush2.msra.mxu0 0.0
  %5278 = vmatprep.subr.mxu0 0.0
  %5279 = vmatpush2.msra.mxu0 0.0
  %5280 = vmatprep.subr.mxu0 0.0
  %5281 = vmatpush2.msra.mxu0 0.0
  %5282 = vmatprep.subr.mxu0 0.0
  %5283 = vmatpush2.msra.mxu0 0.0
  %5284 = vmatprep.subr.mxu0 0.0
  %5285 = vmatpush2.msra.mxu0 0.0
  %5286 = vmatprep.subr.mxu0 0.0
  %5287 = vmatpush2.msra.mxu0 0.0
  %5288 = vmatprep.subr.mxu0 0.0
  %5289 = vmatpush2.msra.mxu0 0.0
  %5290 = vmatprep.subr.mxu0 0.0
  %5291 = vmatpush2.msra.mxu0 0.0
  %5292 = vmatprep.subr.mxu0 0.0
  %5293 = vmatpush2.msra.mxu0 0.0
  %5294 = vmatprep.subr.mxu0 0.0
  %5295 = vmatpush2.msra.mxu0 0.0
  %5296 = vmatprep.subr.mxu0 0.0
  %5297 = vmatpush2.msra.mxu0 0.0
  %5298 = vmatprep.subr.mxu0 0.0
  %5299 = vmatpush2.msra.mxu0 0.0
  %5300 = vmatprep.subr.mxu0 0.0
  %5301 = vmatpush2.msra.mxu0 0.0
  %5302 = vmatprep.subr.mxu0 0.0
  %5303 = vmatpush2.msra.mxu0 0.0
  %5304 = vmatprep.subr.mxu0 0.0
  %5305 = vmatpush2.msra.mxu0 0.0
  %5306 = vmatprep.mubr.f32.mxu0 0.0
  %v5307 = vand.u32 %v4876, 4294901760
  %v5308 = vsub.f32 %v4876, %v5307
  %v5309 = vand.u32 %v5308, 4294901760
  %5310 = vmatmul.mubr.f32.gmra.mxu0 %v5309
  %v5311 = vpop.f32.mrf.mxu0
  %v5312 = vadd.f32 %v5223, %v5311
  %v5313 = vpop.f32.mrf.mxu0
  %5314 = vdwg.mxu0
  %5315 = vmatprep.subr.mxu0 0.0
  %v5316 = vand.u32 %v62, 4294901760
  %v5317 = vsub.f32 %v62, %v5316
  %v5318 = vand.u32 %v5317, 4294901760
  %5319 = vmatpush1.msra.mxu0 %v5318
  %5320 = vmatprep.subr.mxu0 0.0
  %v5321 = vand.u32 %v61, 4294901760
  %v5322 = vsub.f32 %v61, %v5321
  %v5323 = vand.u32 %v5322, 4294901760
  %5324 = vmatpush1.msra.mxu0 %v5323
  %5325 = vmatprep.subr.mxu0 0.0
  %v5326 = vand.u32 %v60, 4294901760
  %v5327 = vsub.f32 %v60, %v5326
  %v5328 = vand.u32 %v5327, 4294901760
  %5329 = vmatpush1.msra.mxu0 %v5328
  %5330 = vmatprep.subr.mxu0 0.0
  %v5331 = vand.u32 %v59, 4294901760
  %v5332 = vsub.f32 %v59, %v5331
  %v5333 = vand.u32 %v5332, 4294901760
  %5334 = vmatpush1.msra.mxu0 %v5333
  %5335 = vmatprep.subr.mxu0 0.0
  %v5336 = vand.u32 %v58, 4294901760
  %v5337 = vsub.f32 %v58, %v5336
  %v5338 = vand.u32 %v5337, 4294901760
  %5339 = vmatpush1.msra.mxu0 %v5338
  %5340 = vmatprep.subr.mxu0 0.0
  %v5341 = vand.u32 %v57, 4294901760
  %v5342 = vsub.f32 %v57, %v5341
  %v5343 = vand.u32 %v5342, 4294901760
  %5344 = vmatpush1.msra.mxu0 %v5343
  %5345 = vmatprep.subr.mxu0 0.0
  %v5346 = vand.u32 %v56, 4294901760
  %v5347 = vsub.f32 %v56, %v5346
  %v5348 = vand.u32 %v5347, 4294901760
  %5349 = vmatpush1.msra.mxu0 %v5348
  %5350 = vmatprep.subr.mxu0 0.0
  %v5351 = vand.u32 %v55, 4294901760
  %v5352 = vsub.f32 %v55, %v5351
  %v5353 = vand.u32 %v5352, 4294901760
  %5354 = vmatpush1.msra.mxu0 %v5353
  %5355 = vmatprep.subr.mxu0 0.0
  %v5356 = vand.u32 %v54, 4294901760
  %v5357 = vsub.f32 %v54, %v5356
  %v5358 = vand.u32 %v5357, 4294901760
  %5359 = vmatpush1.msra.mxu0 %v5358
  %5360 = vmatprep.subr.mxu0 0.0
  %v5361 = vand.u32 %v53, 4294901760
  %v5362 = vsub.f32 %v53, %v5361
  %v5363 = vand.u32 %v5362, 4294901760
  %5364 = vmatpush1.msra.mxu0 %v5363
  %5365 = vmatprep.subr.mxu0 0.0
  %v5366 = vand.u32 %v52, 4294901760
  %v5367 = vsub.f32 %v52, %v5366
  %v5368 = vand.u32 %v5367, 4294901760
  %5369 = vmatpush1.msra.mxu0 %v5368
  %5370 = vmatprep.subr.mxu0 0.0
  %v5371 = vand.u32 %v51, 4294901760
  %v5372 = vsub.f32 %v51, %v5371
  %v5373 = vand.u32 %v5372, 4294901760
  %5374 = vmatpush1.msra.mxu0 %v5373
  %5375 = vmatprep.subr.mxu0 0.0
  %v5376 = vand.u32 %v50, 4294901760
  %v5377 = vsub.f32 %v50, %v5376
  %v5378 = vand.u32 %v5377, 4294901760
  %5379 = vmatpush1.msra.mxu0 %v5378
  %5380 = vmatprep.subr.mxu0 0.0
  %v5381 = vand.u32 %v49, 4294901760
  %v5382 = vsub.f32 %v49, %v5381
  %v5383 = vand.u32 %v5382, 4294901760
  %5384 = vmatpush1.msra.mxu0 %v5383
  %5385 = vmatprep.subr.mxu0 0.0
  %v5386 = vand.u32 %v48, 4294901760
  %v5387 = vsub.f32 %v48, %v5386
  %v5388 = vand.u32 %v5387, 4294901760
  %5389 = vmatpush1.msra.mxu0 %v5388
  %5390 = vmatprep.subr.mxu0 0.0
  %v5391 = vand.u32 %v47, 4294901760
  %v5392 = vsub.f32 %v47, %v5391
  %v5393 = vand.u32 %v5392, 4294901760
  %5394 = vmatpush1.msra.mxu0 %v5393
  %5395 = vmatprep.subr.mxu0 0.0
  %5396 = vmatpush2.msra.mxu0 0.0
  %5397 = vmatprep.subr.mxu0 0.0
  %5398 = vmatpush2.msra.mxu0 0.0
  %5399 = vmatprep.subr.mxu0 0.0
  %5400 = vmatpush2.msra.mxu0 0.0
  %5401 = vmatprep.subr.mxu0 0.0
  %5402 = vmatpush2.msra.mxu0 0.0
  %5403 = vmatprep.subr.mxu0 0.0
  %5404 = vmatpush2.msra.mxu0 0.0
  %5405 = vmatprep.subr.mxu0 0.0
  %5406 = vmatpush2.msra.mxu0 0.0
  %5407 = vmatprep.subr.mxu0 0.0
  %5408 = vmatpush2.msra.mxu0 0.0
  %5409 = vmatprep.subr.mxu0 0.0
  %5410 = vmatpush2.msra.mxu0 0.0
  %5411 = vmatprep.subr.mxu0 0.0
  %5412 = vmatpush2.msra.mxu0 0.0
  %5413 = vmatprep.subr.mxu0 0.0
  %5414 = vmatpush2.msra.mxu0 0.0
  %5415 = vmatprep.subr.mxu0 0.0
  %5416 = vmatpush2.msra.mxu0 0.0
  %5417 = vmatprep.subr.mxu0 0.0
  %5418 = vmatpush2.msra.mxu0 0.0
  %5419 = vmatprep.subr.mxu0 0.0
  %5420 = vmatpush2.msra.mxu0 0.0
  %5421 = vmatprep.subr.mxu0 0.0
  %5422 = vmatpush2.msra.mxu0 0.0
  %5423 = vmatprep.subr.mxu0 0.0
  %5424 = vmatpush2.msra.mxu0 0.0
  %5425 = vmatprep.subr.mxu0 0.0
  %5426 = vmatpush2.msra.mxu0 0.0
  %5427 = vmatprep.mubr.f32.mxu0 0.0
  %v5428 = vand.u32 %v4876, 4294901760
  %5429 = vmatmul.mubr.f32.gmra.mxu0 %v5428
  %v5430 = vpop.f32.mrf.mxu0
  %v5431 = vadd.f32 %v5312, %v5430
  %v5432 = vpop.f32.mrf.mxu0
  %5433 = vdwg.mxu0
  %5434 = vmatprep.subr.mxu0 0.0
  %v5435 = vand.u32 %v62, 4294901760
  %5436 = vmatpush1.msra.mxu0 %v5435
  %5437 = vmatprep.subr.mxu0 0.0
  %v5438 = vand.u32 %v61, 4294901760
  %5439 = vmatpush1.msra.mxu0 %v5438
  %5440 = vmatprep.subr.mxu0 0.0
  %v5441 = vand.u32 %v60, 4294901760
  %5442 = vmatpush1.msra.mxu0 %v5441
  %5443 = vmatprep.subr.mxu0 0.0
  %v5444 = vand.u32 %v59, 4294901760
  %5445 = vmatpush1.msra.mxu0 %v5444
  %5446 = vmatprep.subr.mxu0 0.0
  %v5447 = vand.u32 %v58, 4294901760
  %5448 = vmatpush1.msra.mxu0 %v5447
  %5449 = vmatprep.subr.mxu0 0.0
  %v5450 = vand.u32 %v57, 4294901760
  %5451 = vmatpush1.msra.mxu0 %v5450
  %5452 = vmatprep.subr.mxu0 0.0
  %v5453 = vand.u32 %v56, 4294901760
  %5454 = vmatpush1.msra.mxu0 %v5453
  %5455 = vmatprep.subr.mxu0 0.0
  %v5456 = vand.u32 %v55, 4294901760
  %5457 = vmatpush1.msra.mxu0 %v5456
  %5458 = vmatprep.subr.mxu0 0.0
  %v5459 = vand.u32 %v54, 4294901760
  %5460 = vmatpush1.msra.mxu0 %v5459
  %5461 = vmatprep.subr.mxu0 0.0
  %v5462 = vand.u32 %v53, 4294901760
  %5463 = vmatpush1.msra.mxu0 %v5462
  %5464 = vmatprep.subr.mxu0 0.0
  %v5465 = vand.u32 %v52, 4294901760
  %5466 = vmatpush1.msra.mxu0 %v5465
  %5467 = vmatprep.subr.mxu0 0.0
  %v5468 = vand.u32 %v51, 4294901760
  %5469 = vmatpush1.msra.mxu0 %v5468
  %5470 = vmatprep.subr.mxu0 0.0
  %v5471 = vand.u32 %v50, 4294901760
  %5472 = vmatpush1.msra.mxu0 %v5471
  %5473 = vmatprep.subr.mxu0 0.0
  %v5474 = vand.u32 %v49, 4294901760
  %5475 = vmatpush1.msra.mxu0 %v5474
  %5476 = vmatprep.subr.mxu0 0.0
  %v5477 = vand.u32 %v48, 4294901760
  %5478 = vmatpush1.msra.mxu0 %v5477
  %5479 = vmatprep.subr.mxu0 0.0
  %v5480 = vand.u32 %v47, 4294901760
  %5481 = vmatpush1.msra.mxu0 %v5480
  %5482 = vmatprep.subr.mxu0 0.0
  %5483 = vmatpush2.msra.mxu0 0.0
  %5484 = vmatprep.subr.mxu0 0.0
  %5485 = vmatpush2.msra.mxu0 0.0
  %5486 = vmatprep.subr.mxu0 0.0
  %5487 = vmatpush2.msra.mxu0 0.0
  %5488 = vmatprep.subr.mxu0 0.0
  %5489 = vmatpush2.msra.mxu0 0.0
  %5490 = vmatprep.subr.mxu0 0.0
  %5491 = vmatpush2.msra.mxu0 0.0
  %5492 = vmatprep.subr.mxu0 0.0
  %5493 = vmatpush2.msra.mxu0 0.0
  %5494 = vmatprep.subr.mxu0 0.0
  %5495 = vmatpush2.msra.mxu0 0.0
  %5496 = vmatprep.subr.mxu0 0.0
  %5497 = vmatpush2.msra.mxu0 0.0
  %5498 = vmatprep.subr.mxu0 0.0
  %5499 = vmatpush2.msra.mxu0 0.0
  %5500 = vmatprep.subr.mxu0 0.0
  %5501 = vmatpush2.msra.mxu0 0.0
  %5502 = vmatprep.subr.mxu0 0.0
  %5503 = vmatpush2.msra.mxu0 0.0
  %5504 = vmatprep.subr.mxu0 0.0
  %5505 = vmatpush2.msra.mxu0 0.0
  %5506 = vmatprep.subr.mxu0 0.0
  %5507 = vmatpush2.msra.mxu0 0.0
  %5508 = vmatprep.subr.mxu0 0.0
  %5509 = vmatpush2.msra.mxu0 0.0
  %5510 = vmatprep.subr.mxu0 0.0
  %5511 = vmatpush2.msra.mxu0 0.0
  %5512 = vmatprep.subr.mxu0 0.0
  %5513 = vmatpush2.msra.mxu0 0.0
  %5514 = vmatprep.mubr.f32.mxu0 0.0
  %v5515 = vand.u32 %v4876, 4294901760
  %5516 = vmatmul.mubr.f32.gmra.mxu0 %v5515
  %v5517 = vpop.f32.mrf.mxu0
  %v5518 = vadd.f32 %v5431, %v5517
  %v5519 = vpop.f32.mrf.mxu0
  %5520 = vdwg.mxu0
  %v5521 = vadd.f32 %v4879, %v5518
  %v5522 = vtanh.pop %v5521
  %5523 = vst [vmem:[%s4878] sm:$0xff] %v5522
  %5524 = vst [vmem:[%s9] sm:$0xff] %v5522
  %v5525 = vld [vmem:[#allocation2] sm:$0xff]
  %v5526 = vld [vmem:[#allocation2 + $0x8] sm:$0xff]
  %v5527 = vld [vmem:[#allocation2 + $0x10] sm:$0xff]
  %v5528 = vld [vmem:[#allocation2 + $0x18] sm:$0xff]
  %v5529 = vld [vmem:[#allocation2 + $0x20] sm:$0xff]
  %v5530 = vld [vmem:[#allocation2 + $0x28] sm:$0xff]
  %v5531 = vld [vmem:[#allocation2 + $0x30] sm:$0xff]
  %v5533 = vlaneseq
  %v5534 = vshrl.u32 %v5533, 7
  %v5535 = vsub.s32 0, %v5534
  %v5536 = vrot.slane %v80, %v5535
  %5538 = vmatprep.subr.mxu0 0.0
  %v5539 = vand.u32 %v62, 4294901760
  %5540 = vmatpush1.msra.mxu0 %v5539
  %5541 = vmatprep.subr.mxu0 0.0
  %v5542 = vand.u32 %v61, 4294901760
  %5543 = vmatpush1.msra.mxu0 %v5542
  %5544 = vmatprep.subr.mxu0 0.0
  %v5545 = vand.u32 %v60, 4294901760
  %5546 = vmatpush1.msra.mxu0 %v5545
  %5547 = vmatprep.subr.mxu0 0.0
  %v5548 = vand.u32 %v59, 4294901760
  %5549 = vmatpush1.msra.mxu0 %v5548
  %5550 = vmatprep.subr.mxu0 0.0
  %v5551 = vand.u32 %v58, 4294901760
  %5552 = vmatpush1.msra.mxu0 %v5551
  %5553 = vmatprep.subr.mxu0 0.0
  %v5554 = vand.u32 %v57, 4294901760
  %5555 = vmatpush1.msra.mxu0 %v5554
  %5556 = vmatprep.subr.mxu0 0.0
  %v5557 = vand.u32 %v56, 4294901760
  %5558 = vmatpush1.msra.mxu0 %v5557
  %5559 = vmatprep.subr.mxu0 0.0
  %v5560 = vand.u32 %v55, 4294901760
  %5561 = vmatpush1.msra.mxu0 %v5560
  %5562 = vmatprep.subr.mxu0 0.0
  %v5563 = vand.u32 %v54, 4294901760
  %5564 = vmatpush1.msra.mxu0 %v5563
  %5565 = vmatprep.subr.mxu0 0.0
  %v5566 = vand.u32 %v53, 4294901760
  %5567 = vmatpush1.msra.mxu0 %v5566
  %5568 = vmatprep.subr.mxu0 0.0
  %v5569 = vand.u32 %v52, 4294901760
  %5570 = vmatpush1.msra.mxu0 %v5569
  %5571 = vmatprep.subr.mxu0 0.0
  %v5572 = vand.u32 %v51, 4294901760
  %5573 = vmatpush1.msra.mxu0 %v5572
  %5574 = vmatprep.subr.mxu0 0.0
  %v5575 = vand.u32 %v50, 4294901760
  %5576 = vmatpush1.msra.mxu0 %v5575
  %5577 = vmatprep.subr.mxu0 0.0
  %v5578 = vand.u32 %v49, 4294901760
  %5579 = vmatpush1.msra.mxu0 %v5578
  %5580 = vmatprep.subr.mxu0 0.0
  %v5581 = vand.u32 %v48, 4294901760
  %5582 = vmatpush1.msra.mxu0 %v5581
  %5583 = vmatprep.subr.mxu0 0.0
  %v5584 = vand.u32 %v47, 4294901760
  %5585 = vmatpush1.msra.mxu0 %v5584
  %5586 = vmatprep.subr.mxu0 0.0
  %5587 = vmatpush2.msra.mxu0 0.0
  %5588 = vmatprep.subr.mxu0 0.0
  %5589 = vmatpush2.msra.mxu0 0.0
  %5590 = vmatprep.subr.mxu0 0.0
  %5591 = vmatpush2.msra.mxu0 0.0
  %5592 = vmatprep.subr.mxu0 0.0
  %5593 = vmatpush2.msra.mxu0 0.0
  %5594 = vmatprep.subr.mxu0 0.0
  %5595 = vmatpush2.msra.mxu0 0.0
  %5596 = vmatprep.subr.mxu0 0.0
  %5597 = vmatpush2.msra.mxu0 0.0
  %5598 = vmatprep.subr.mxu0 0.0
  %5599 = vmatpush2.msra.mxu0 0.0
  %5600 = vmatprep.subr.mxu0 0.0
  %5601 = vmatpush2.msra.mxu0 0.0
  %5602 = vmatprep.subr.mxu0 0.0
  %5603 = vmatpush2.msra.mxu0 0.0
  %5604 = vmatprep.subr.mxu0 0.0
  %5605 = vmatpush2.msra.mxu0 0.0
  %5606 = vmatprep.subr.mxu0 0.0
  %5607 = vmatpush2.msra.mxu0 0.0
  %5608 = vmatprep.subr.mxu0 0.0
  %5609 = vmatpush2.msra.mxu0 0.0
  %5610 = vmatprep.subr.mxu0 0.0
  %5611 = vmatpush2.msra.mxu0 0.0
  %5612 = vmatprep.subr.mxu0 0.0
  %5613 = vmatpush2.msra.mxu0 0.0
  %5614 = vmatprep.subr.mxu0 0.0
  %5615 = vmatpush2.msra.mxu0 0.0
  %5616 = vmatprep.subr.mxu0 0.0
  %5617 = vmatpush2.msra.mxu0 0.0
  %5618 = vmatprep.mubr.f32.mxu0 0.0
  %v5619 = vand.u32 %v5525, 4294901760
  %v5620 = vsub.f32 %v5525, %v5619
  %v5621 = vand.u32 %v5620, 4294901760
  %v5622 = vsub.f32 %v5620, %v5621
  %v5623 = vand.u32 %v5622, 4294901760
  %5624 = vmatmul.mubr.f32.gmra.mxu0 %v5623
  %v5625 = vpop.f32.mrf.mxu0
  %v5626 = vadd.f32 %v5536, %v5625
  %v5627 = vpop.f32.mrf.mxu0
  %5628 = vmatprep.mubr.f32.mxu0 0.0
  %v5629 = vand.u32 %v5526, 4294901760
  %v5630 = vsub.f32 %v5526, %v5629
  %v5631 = vand.u32 %v5630, 4294901760
  %v5632 = vsub.f32 %v5630, %v5631
  %v5633 = vand.u32 %v5632, 4294901760
  %5634 = vmatmul.mubr.f32.gmra.mxu0 %v5633
  %v5635 = vpop.f32.mrf.mxu0
  %v5636 = vadd.f32 %v5536, %v5635
  %v5637 = vpop.f32.mrf.mxu0
  %5638 = vmatprep.mubr.f32.mxu0 0.0
  %v5639 = vand.u32 %v5527, 4294901760
  %v5640 = vsub.f32 %v5527, %v5639
  %v5641 = vand.u32 %v5640, 4294901760
  %v5642 = vsub.f32 %v5640, %v5641
  %v5643 = vand.u32 %v5642, 4294901760
  %5644 = vmatmul.mubr.f32.gmra.mxu0 %v5643
  %v5645 = vpop.f32.mrf.mxu0
  %v5646 = vadd.f32 %v5536, %v5645
  %v5647 = vpop.f32.mrf.mxu0
  %5648 = vmatprep.mubr.f32.mxu0 0.0
  %v5649 = vand.u32 %v5528, 4294901760
  %v5650 = vsub.f32 %v5528, %v5649
  %v5651 = vand.u32 %v5650, 4294901760
  %v5652 = vsub.f32 %v5650, %v5651
  %v5653 = vand.u32 %v5652, 4294901760
  %5654 = vmatmul.mubr.f32.gmra.mxu0 %v5653
  %v5655 = vpop.f32.mrf.mxu0
  %v5656 = vadd.f32 %v5536, %v5655
  %v5657 = vpop.f32.mrf.mxu0
  %5658 = vmatprep.mubr.f32.mxu0 0.0
  %v5659 = vand.u32 %v5529, 4294901760
  %v5660 = vsub.f32 %v5529, %v5659
  %v5661 = vand.u32 %v5660, 4294901760
  %v5662 = vsub.f32 %v5660, %v5661
  %v5663 = vand.u32 %v5662, 4294901760
  %5664 = vmatmul.mubr.f32.gmra.mxu0 %v5663
  %v5665 = vpop.f32.mrf.mxu0
  %v5666 = vadd.f32 %v5536, %v5665
  %v5667 = vpop.f32.mrf.mxu0
  %5668 = vmatprep.mubr.f32.mxu0 0.0
  %v5669 = vand.u32 %v5530, 4294901760
  %v5670 = vsub.f32 %v5530, %v5669
  %v5671 = vand.u32 %v5670, 4294901760
  %v5672 = vsub.f32 %v5670, %v5671
  %v5673 = vand.u32 %v5672, 4294901760
  %5674 = vmatmul.mubr.f32.gmra.mxu0 %v5673
  %v5675 = vpop.f32.mrf.mxu0
  %v5676 = vadd.f32 %v5536, %v5675
  %v5677 = vpop.f32.mrf.mxu0
  %5678 = vmatprep.mubr.f32.mxu0 0.0
  %v5679 = vand.u32 %v5531, 4294901760
  %v5680 = vsub.f32 %v5531, %v5679
  %v5681 = vand.u32 %v5680, 4294901760
  %v5682 = vsub.f32 %v5680, %v5681
  %v5683 = vand.u32 %v5682, 4294901760
  %5684 = vmatmul.mubr.f32.gmra.mxu0 %v5683
  %v5685 = vpop.f32.mrf.mxu0
  %v5686 = vadd.f32 %v5536, %v5685
  %v5687 = vpop.f32.mrf.mxu0
  %5688 = vdwg.mxu0
  %5689 = vmatprep.subr.mxu0 0.0
  %v5690 = vand.u32 %v62, 4294901760
  %v5691 = vsub.f32 %v62, %v5690
  %v5692 = vand.u32 %v5691, 4294901760
  %v5693 = vsub.f32 %v5691, %v5692
  %v5694 = vand.u32 %v5693, 4294901760
  %5695 = vmatpush1.msra.mxu0 %v5694
  %5696 = vmatprep.subr.mxu0 0.0
  %v5697 = vand.u32 %v61, 4294901760
  %v5698 = vsub.f32 %v61, %v5697
  %v5699 = vand.u32 %v5698, 4294901760
  %v5700 = vsub.f32 %v5698, %v5699
  %v5701 = vand.u32 %v5700, 4294901760
  %5702 = vmatpush1.msra.mxu0 %v5701
  %5703 = vmatprep.subr.mxu0 0.0
  %v5704 = vand.u32 %v60, 4294901760
  %v5705 = vsub.f32 %v60, %v5704
  %v5706 = vand.u32 %v5705, 4294901760
  %v5707 = vsub.f32 %v5705, %v5706
  %v5708 = vand.u32 %v5707, 4294901760
  %5709 = vmatpush1.msra.mxu0 %v5708
  %5710 = vmatprep.subr.mxu0 0.0
  %v5711 = vand.u32 %v59, 4294901760
  %v5712 = vsub.f32 %v59, %v5711
  %v5713 = vand.u32 %v5712, 4294901760
  %v5714 = vsub.f32 %v5712, %v5713
  %v5715 = vand.u32 %v5714, 4294901760
  %5716 = vmatpush1.msra.mxu0 %v5715
  %5717 = vmatprep.subr.mxu0 0.0
  %v5718 = vand.u32 %v58, 4294901760
  %v5719 = vsub.f32 %v58, %v5718
  %v5720 = vand.u32 %v5719, 4294901760
  %v5721 = vsub.f32 %v5719, %v5720
  %v5722 = vand.u32 %v5721, 4294901760
  %5723 = vmatpush1.msra.mxu0 %v5722
  %5724 = vmatprep.subr.mxu0 0.0
  %v5725 = vand.u32 %v57, 4294901760
  %v5726 = vsub.f32 %v57, %v5725
  %v5727 = vand.u32 %v5726, 4294901760
  %v5728 = vsub.f32 %v5726, %v5727
  %v5729 = vand.u32 %v5728, 4294901760
  %5730 = vmatpush1.msra.mxu0 %v5729
  %5731 = vmatprep.subr.mxu0 0.0
  %v5732 = vand.u32 %v56, 4294901760
  %v5733 = vsub.f32 %v56, %v5732
  %v5734 = vand.u32 %v5733, 4294901760
  %v5735 = vsub.f32 %v5733, %v5734
  %v5736 = vand.u32 %v5735, 4294901760
  %5737 = vmatpush1.msra.mxu0 %v5736
  %5738 = vmatprep.subr.mxu0 0.0
  %v5739 = vand.u32 %v55, 4294901760
  %v5740 = vsub.f32 %v55, %v5739
  %v5741 = vand.u32 %v5740, 4294901760
  %v5742 = vsub.f32 %v5740, %v5741
  %v5743 = vand.u32 %v5742, 4294901760
  %5744 = vmatpush1.msra.mxu0 %v5743
  %5745 = vmatprep.subr.mxu0 0.0
  %v5746 = vand.u32 %v54, 4294901760
  %v5747 = vsub.f32 %v54, %v5746
  %v5748 = vand.u32 %v5747, 4294901760
  %v5749 = vsub.f32 %v5747, %v5748
  %v5750 = vand.u32 %v5749, 4294901760
  %5751 = vmatpush1.msra.mxu0 %v5750
  %5752 = vmatprep.subr.mxu0 0.0
  %v5753 = vand.u32 %v53, 4294901760
  %v5754 = vsub.f32 %v53, %v5753
  %v5755 = vand.u32 %v5754, 4294901760
  %v5756 = vsub.f32 %v5754, %v5755
  %v5757 = vand.u32 %v5756, 4294901760
  %5758 = vmatpush1.msra.mxu0 %v5757
  %5759 = vmatprep.subr.mxu0 0.0
  %v5760 = vand.u32 %v52, 4294901760
  %v5761 = vsub.f32 %v52, %v5760
  %v5762 = vand.u32 %v5761, 4294901760
  %v5763 = vsub.f32 %v5761, %v5762
  %v5764 = vand.u32 %v5763, 4294901760
  %5765 = vmatpush1.msra.mxu0 %v5764
  %5766 = vmatprep.subr.mxu0 0.0
  %v5767 = vand.u32 %v51, 4294901760
  %v5768 = vsub.f32 %v51, %v5767
  %v5769 = vand.u32 %v5768, 4294901760
  %v5770 = vsub.f32 %v5768, %v5769
  %v5771 = vand.u32 %v5770, 4294901760
  %5772 = vmatpush1.msra.mxu0 %v5771
  %5773 = vmatprep.subr.mxu0 0.0
  %v5774 = vand.u32 %v50, 4294901760
  %v5775 = vsub.f32 %v50, %v5774
  %v5776 = vand.u32 %v5775, 4294901760
  %v5777 = vsub.f32 %v5775, %v5776
  %v5778 = vand.u32 %v5777, 4294901760
  %5779 = vmatpush1.msra.mxu0 %v5778
  %5780 = vmatprep.subr.mxu0 0.0
  %v5781 = vand.u32 %v49, 4294901760
  %v5782 = vsub.f32 %v49, %v5781
  %v5783 = vand.u32 %v5782, 4294901760
  %v5784 = vsub.f32 %v5782, %v5783
  %v5785 = vand.u32 %v5784, 4294901760
  %5786 = vmatpush1.msra.mxu0 %v5785
  %5787 = vmatprep.subr.mxu0 0.0
  %v5788 = vand.u32 %v48, 4294901760
  %v5789 = vsub.f32 %v48, %v5788
  %v5790 = vand.u32 %v5789, 4294901760
  %v5791 = vsub.f32 %v5789, %v5790
  %v5792 = vand.u32 %v5791, 4294901760
  %5793 = vmatpush1.msra.mxu0 %v5792
  %5794 = vmatprep.subr.mxu0 0.0
  %v5795 = vand.u32 %v47, 4294901760
  %v5796 = vsub.f32 %v47, %v5795
  %v5797 = vand.u32 %v5796, 4294901760
  %v5798 = vsub.f32 %v5796, %v5797
  %v5799 = vand.u32 %v5798, 4294901760
  %5800 = vmatpush1.msra.mxu0 %v5799
  %5801 = vmatprep.subr.mxu0 0.0
  %5802 = vmatpush2.msra.mxu0 0.0
  %5803 = vmatprep.subr.mxu0 0.0
  %5804 = vmatpush2.msra.mxu0 0.0
  %5805 = vmatprep.subr.mxu0 0.0
  %5806 = vmatpush2.msra.mxu0 0.0
  %5807 = vmatprep.subr.mxu0 0.0
  %5808 = vmatpush2.msra.mxu0 0.0
  %5809 = vmatprep.subr.mxu0 0.0
  %5810 = vmatpush2.msra.mxu0 0.0
  %5811 = vmatprep.subr.mxu0 0.0
  %5812 = vmatpush2.msra.mxu0 0.0
  %5813 = vmatprep.subr.mxu0 0.0
  %5814 = vmatpush2.msra.mxu0 0.0
  %5815 = vmatprep.subr.mxu0 0.0
  %5816 = vmatpush2.msra.mxu0 0.0
  %5817 = vmatprep.subr.mxu0 0.0
  %5818 = vmatpush2.msra.mxu0 0.0
  %5819 = vmatprep.subr.mxu0 0.0
  %5820 = vmatpush2.msra.mxu0 0.0
  %5821 = vmatprep.subr.mxu0 0.0
  %5822 = vmatpush2.msra.mxu0 0.0
  %5823 = vmatprep.subr.mxu0 0.0
  %5824 = vmatpush2.msra.mxu0 0.0
  %5825 = vmatprep.subr.mxu0 0.0
  %5826 = vmatpush2.msra.mxu0 0.0
  %5827 = vmatprep.subr.mxu0 0.0
  %5828 = vmatpush2.msra.mxu0 0.0
  %5829 = vmatprep.subr.mxu0 0.0
  %5830 = vmatpush2.msra.mxu0 0.0
  %5831 = vmatprep.subr.mxu0 0.0
  %5832 = vmatpush2.msra.mxu0 0.0
  %5833 = vmatprep.mubr.f32.mxu0 0.0
  %v5834 = vand.u32 %v5525, 4294901760
  %5835 = vmatmul.mubr.f32.gmra.mxu0 %v5834
  %v5836 = vpop.f32.mrf.mxu0
  %v5837 = vadd.f32 %v5626, %v5836
  %v5838 = vpop.f32.mrf.mxu0
  %5839 = vmatprep.mubr.f32.mxu0 0.0
  %v5840 = vand.u32 %v5526, 4294901760
  %5841 = vmatmul.mubr.f32.gmra.mxu0 %v5840
  %v5842 = vpop.f32.mrf.mxu0
  %v5843 = vadd.f32 %v5636, %v5842
  %v5844 = vpop.f32.mrf.mxu0
  %5845 = vmatprep.mubr.f32.mxu0 0.0
  %v5846 = vand.u32 %v5527, 4294901760
  %5847 = vmatmul.mubr.f32.gmra.mxu0 %v5846
  %v5848 = vpop.f32.mrf.mxu0
  %v5849 = vadd.f32 %v5646, %v5848
  %v5850 = vpop.f32.mrf.mxu0
  %5851 = vmatprep.mubr.f32.mxu0 0.0
  %v5852 = vand.u32 %v5528, 4294901760
  %5853 = vmatmul.mubr.f32.gmra.mxu0 %v5852
  %v5854 = vpop.f32.mrf.mxu0
  %v5855 = vadd.f32 %v5656, %v5854
  %v5856 = vpop.f32.mrf.mxu0
  %5857 = vmatprep.mubr.f32.mxu0 0.0
  %v5858 = vand.u32 %v5529, 4294901760
  %5859 = vmatmul.mubr.f32.gmra.mxu0 %v5858
  %v5860 = vpop.f32.mrf.mxu0
  %v5861 = vadd.f32 %v5666, %v5860
  %v5862 = vpop.f32.mrf.mxu0
  %5863 = vmatprep.mubr.f32.mxu0 0.0
  %v5864 = vand.u32 %v5530, 4294901760
  %5865 = vmatmul.mubr.f32.gmra.mxu0 %v5864
  %v5866 = vpop.f32.mrf.mxu0
  %v5867 = vadd.f32 %v5676, %v5866
  %v5868 = vpop.f32.mrf.mxu0
  %5869 = vmatprep.mubr.f32.mxu0 0.0
  %v5870 = vand.u32 %v5531, 4294901760
  %5871 = vmatmul.mubr.f32.gmra.mxu0 %v5870
  %v5872 = vpop.f32.mrf.mxu0
  %v5873 = vadd.f32 %v5686, %v5872
  %v5874 = vpop.f32.mrf.mxu0
  %5875 = vdwg.mxu0
  %5876 = vmatprep.subr.mxu0 0.0
  %v5877 = vand.u32 %v62, 4294901760
  %v5878 = vsub.f32 %v62, %v5877
  %5879 = vmatpush1.msra.mxu0 %v5878
  %5880 = vmatprep.subr.mxu0 0.0
  %v5881 = vand.u32 %v61, 4294901760
  %v5882 = vsub.f32 %v61, %v5881
  %5883 = vmatpush1.msra.mxu0 %v5882
  %5884 = vmatprep.subr.mxu0 0.0
  %v5885 = vand.u32 %v60, 4294901760
  %v5886 = vsub.f32 %v60, %v5885
  %5887 = vmatpush1.msra.mxu0 %v5886
  %5888 = vmatprep.subr.mxu0 0.0
  %v5889 = vand.u32 %v59, 4294901760
  %v5890 = vsub.f32 %v59, %v5889
  %5891 = vmatpush1.msra.mxu0 %v5890
  %5892 = vmatprep.subr.mxu0 0.0
  %v5893 = vand.u32 %v58, 4294901760
  %v5894 = vsub.f32 %v58, %v5893
  %5895 = vmatpush1.msra.mxu0 %v5894
  %5896 = vmatprep.subr.mxu0 0.0
  %v5897 = vand.u32 %v57, 4294901760
  %v5898 = vsub.f32 %v57, %v5897
  %5899 = vmatpush1.msra.mxu0 %v5898
  %5900 = vmatprep.subr.mxu0 0.0
  %v5901 = vand.u32 %v56, 4294901760
  %v5902 = vsub.f32 %v56, %v5901
  %5903 = vmatpush1.msra.mxu0 %v5902
  %5904 = vmatprep.subr.mxu0 0.0
  %v5905 = vand.u32 %v55, 4294901760
  %v5906 = vsub.f32 %v55, %v5905
  %5907 = vmatpush1.msra.mxu0 %v5906
  %5908 = vmatprep.subr.mxu0 0.0
  %v5909 = vand.u32 %v54, 4294901760
  %v5910 = vsub.f32 %v54, %v5909
  %5911 = vmatpush1.msra.mxu0 %v5910
  %5912 = vmatprep.subr.mxu0 0.0
  %v5913 = vand.u32 %v53, 4294901760
  %v5914 = vsub.f32 %v53, %v5913
  %5915 = vmatpush1.msra.mxu0 %v5914
  %5916 = vmatprep.subr.mxu0 0.0
  %v5917 = vand.u32 %v52, 4294901760
  %v5918 = vsub.f32 %v52, %v5917
  %5919 = vmatpush1.msra.mxu0 %v5918
  %5920 = vmatprep.subr.mxu0 0.0
  %v5921 = vand.u32 %v51, 4294901760
  %v5922 = vsub.f32 %v51, %v5921
  %5923 = vmatpush1.msra.mxu0 %v5922
  %5924 = vmatprep.subr.mxu0 0.0
  %v5925 = vand.u32 %v50, 4294901760
  %v5926 = vsub.f32 %v50, %v5925
  %5927 = vmatpush1.msra.mxu0 %v5926
  %5928 = vmatprep.subr.mxu0 0.0
  %v5929 = vand.u32 %v49, 4294901760
  %v5930 = vsub.f32 %v49, %v5929
  %5931 = vmatpush1.msra.mxu0 %v5930
  %5932 = vmatprep.subr.mxu0 0.0
  %v5933 = vand.u32 %v48, 4294901760
  %v5934 = vsub.f32 %v48, %v5933
  %5935 = vmatpush1.msra.mxu0 %v5934
  %5936 = vmatprep.subr.mxu0 0.0
  %v5937 = vand.u32 %v47, 4294901760
  %v5938 = vsub.f32 %v47, %v5937
  %5939 = vmatpush1.msra.mxu0 %v5938
  %5940 = vmatprep.subr.mxu0 0.0
  %5941 = vmatpush2.msra.mxu0 0.0
  %5942 = vmatprep.subr.mxu0 0.0
  %5943 = vmatpush2.msra.mxu0 0.0
  %5944 = vmatprep.subr.mxu0 0.0
  %5945 = vmatpush2.msra.mxu0 0.0
  %5946 = vmatprep.subr.mxu0 0.0
  %5947 = vmatpush2.msra.mxu0 0.0
  %5948 = vmatprep.subr.mxu0 0.0
  %5949 = vmatpush2.msra.mxu0 0.0
  %5950 = vmatprep.subr.mxu0 0.0
  %5951 = vmatpush2.msra.mxu0 0.0
  %5952 = vmatprep.subr.mxu0 0.0
  %5953 = vmatpush2.msra.mxu0 0.0
  %5954 = vmatprep.subr.mxu0 0.0
  %5955 = vmatpush2.msra.mxu0 0.0
  %5956 = vmatprep.subr.mxu0 0.0
  %5957 = vmatpush2.msra.mxu0 0.0
  %5958 = vmatprep.subr.mxu0 0.0
  %5959 = vmatpush2.msra.mxu0 0.0
  %5960 = vmatprep.subr.mxu0 0.0
  %5961 = vmatpush2.msra.mxu0 0.0
  %5962 = vmatprep.subr.mxu0 0.0
  %5963 = vmatpush2.msra.mxu0 0.0
  %5964 = vmatprep.subr.mxu0 0.0
  %5965 = vmatpush2.msra.mxu0 0.0
  %5966 = vmatprep.subr.mxu0 0.0
  %5967 = vmatpush2.msra.mxu0 0.0
  %5968 = vmatprep.subr.mxu0 0.0
  %5969 = vmatpush2.msra.mxu0 0.0
  %5970 = vmatprep.subr.mxu0 0.0
  %5971 = vmatpush2.msra.mxu0 0.0
  %5972 = vmatprep.mubr.f32.mxu0 0.0
  %v5973 = vand.u32 %v5525, 4294901760
  %v5974 = vsub.f32 %v5525, %v5973
  %5975 = vmatmul.mubr.f32.gmra.mxu0 %v5974
  %v5976 = vpop.f32.mrf.mxu0
  %v5977 = vadd.f32 %v5837, %v5976
  %v5978 = vpop.f32.mrf.mxu0
  %5979 = vmatprep.mubr.f32.mxu0 0.0
  %v5980 = vand.u32 %v5526, 4294901760
  %v5981 = vsub.f32 %v5526, %v5980
  %5982 = vmatmul.mubr.f32.gmra.mxu0 %v5981
  %v5983 = vpop.f32.mrf.mxu0
  %v5984 = vadd.f32 %v5843, %v5983
  %v5985 = vpop.f32.mrf.mxu0
  %5986 = vmatprep.mubr.f32.mxu0 0.0
  %v5987 = vand.u32 %v5527, 4294901760
  %v5988 = vsub.f32 %v5527, %v5987
  %5989 = vmatmul.mubr.f32.gmra.mxu0 %v5988
  %v5990 = vpop.f32.mrf.mxu0
  %v5991 = vadd.f32 %v5849, %v5990
  %v5992 = vpop.f32.mrf.mxu0
  %5993 = vmatprep.mubr.f32.mxu0 0.0
  %v5994 = vand.u32 %v5528, 4294901760
  %v5995 = vsub.f32 %v5528, %v5994
  %5996 = vmatmul.mubr.f32.gmra.mxu0 %v5995
  %v5997 = vpop.f32.mrf.mxu0
  %v5998 = vadd.f32 %v5855, %v5997
  %v5999 = vpop.f32.mrf.mxu0
  %6000 = vmatprep.mubr.f32.mxu0 0.0
  %v6001 = vand.u32 %v5529, 4294901760
  %v6002 = vsub.f32 %v5529, %v6001
  %6003 = vmatmul.mubr.f32.gmra.mxu0 %v6002
  %v6004 = vpop.f32.mrf.mxu0
  %v6005 = vadd.f32 %v5861, %v6004
  %v6006 = vpop.f32.mrf.mxu0
  %6007 = vmatprep.mubr.f32.mxu0 0.0
  %v6008 = vand.u32 %v5530, 4294901760
  %v6009 = vsub.f32 %v5530, %v6008
  %6010 = vmatmul.mubr.f32.gmra.mxu0 %v6009
  %v6011 = vpop.f32.mrf.mxu0
  %v6012 = vadd.f32 %v5867, %v6011
  %v6013 = vpop.f32.mrf.mxu0
  %6014 = vmatprep.mubr.f32.mxu0 0.0
  %v6015 = vand.u32 %v5531, 4294901760
  %v6016 = vsub.f32 %v5531, %v6015
  %6017 = vmatmul.mubr.f32.gmra.mxu0 %v6016
  %v6018 = vpop.f32.mrf.mxu0
  %v6019 = vadd.f32 %v5873, %v6018
  %v6020 = vpop.f32.mrf.mxu0
  %6021 = vdwg.mxu0
  %6022 = vmatprep.subr.mxu0 0.0
  %v6023 = vand.u32 %v62, 4294901760
  %6024 = vmatpush1.msra.mxu0 %v6023
  %6025 = vmatprep.subr.mxu0 0.0
  %v6026 = vand.u32 %v61, 4294901760
  %6027 = vmatpush1.msra.mxu0 %v6026
  %6028 = vmatprep.subr.mxu0 0.0
  %v6029 = vand.u32 %v60, 4294901760
  %6030 = vmatpush1.msra.mxu0 %v6029
  %6031 = vmatprep.subr.mxu0 0.0
  %v6032 = vand.u32 %v59, 4294901760
  %6033 = vmatpush1.msra.mxu0 %v6032
  %6034 = vmatprep.subr.mxu0 0.0
  %v6035 = vand.u32 %v58, 4294901760
  %6036 = vmatpush1.msra.mxu0 %v6035
  %6037 = vmatprep.subr.mxu0 0.0
  %v6038 = vand.u32 %v57, 4294901760
  %6039 = vmatpush1.msra.mxu0 %v6038
  %6040 = vmatprep.subr.mxu0 0.0
  %v6041 = vand.u32 %v56, 4294901760
  %6042 = vmatpush1.msra.mxu0 %v6041
  %6043 = vmatprep.subr.mxu0 0.0
  %v6044 = vand.u32 %v55, 4294901760
  %6045 = vmatpush1.msra.mxu0 %v6044
  %6046 = vmatprep.subr.mxu0 0.0
  %v6047 = vand.u32 %v54, 4294901760
  %6048 = vmatpush1.msra.mxu0 %v6047
  %6049 = vmatprep.subr.mxu0 0.0
  %v6050 = vand.u32 %v53, 4294901760
  %6051 = vmatpush1.msra.mxu0 %v6050
  %6052 = vmatprep.subr.mxu0 0.0
  %v6053 = vand.u32 %v52, 4294901760
  %6054 = vmatpush1.msra.mxu0 %v6053
  %6055 = vmatprep.subr.mxu0 0.0
  %v6056 = vand.u32 %v51, 4294901760
  %6057 = vmatpush1.msra.mxu0 %v6056
  %6058 = vmatprep.subr.mxu0 0.0
  %v6059 = vand.u32 %v50, 4294901760
  %6060 = vmatpush1.msra.mxu0 %v6059
  %6061 = vmatprep.subr.mxu0 0.0
  %v6062 = vand.u32 %v49, 4294901760
  %6063 = vmatpush1.msra.mxu0 %v6062
  %6064 = vmatprep.subr.mxu0 0.0
  %v6065 = vand.u32 %v48, 4294901760
  %6066 = vmatpush1.msra.mxu0 %v6065
  %6067 = vmatprep.subr.mxu0 0.0
  %v6068 = vand.u32 %v47, 4294901760
  %6069 = vmatpush1.msra.mxu0 %v6068
  %6070 = vmatprep.subr.mxu0 0.0
  %6071 = vmatpush2.msra.mxu0 0.0
  %6072 = vmatprep.subr.mxu0 0.0
  %6073 = vmatpush2.msra.mxu0 0.0
  %6074 = vmatprep.subr.mxu0 0.0
  %6075 = vmatpush2.msra.mxu0 0.0
  %6076 = vmatprep.subr.mxu0 0.0
  %6077 = vmatpush2.msra.mxu0 0.0
  %6078 = vmatprep.subr.mxu0 0.0
  %6079 = vmatpush2.msra.mxu0 0.0
  %6080 = vmatprep.subr.mxu0 0.0
  %6081 = vmatpush2.msra.mxu0 0.0
  %6082 = vmatprep.subr.mxu0 0.0
  %6083 = vmatpush2.msra.mxu0 0.0
  %6084 = vmatprep.subr.mxu0 0.0
  %6085 = vmatpush2.msra.mxu0 0.0
  %6086 = vmatprep.subr.mxu0 0.0
  %6087 = vmatpush2.msra.mxu0 0.0
  %6088 = vmatprep.subr.mxu0 0.0
  %6089 = vmatpush2.msra.mxu0 0.0
  %6090 = vmatprep.subr.mxu0 0.0
  %6091 = vmatpush2.msra.mxu0 0.0
  %6092 = vmatprep.subr.mxu0 0.0
  %6093 = vmatpush2.msra.mxu0 0.0
  %6094 = vmatprep.subr.mxu0 0.0
  %6095 = vmatpush2.msra.mxu0 0.0
  %6096 = vmatprep.subr.mxu0 0.0
  %6097 = vmatpush2.msra.mxu0 0.0
  %6098 = vmatprep.subr.mxu0 0.0
  %6099 = vmatpush2.msra.mxu0 0.0
  %6100 = vmatprep.subr.mxu0 0.0
  %6101 = vmatpush2.msra.mxu0 0.0
  %6102 = vmatprep.mubr.f32.mxu0 0.0
  %v6103 = vand.u32 %v5525, 4294901760
  %v6104 = vsub.f32 %v5525, %v6103
  %v6105 = vand.u32 %v6104, 4294901760
  %6106 = vmatmul.mubr.f32.gmra.mxu0 %v6105
  %v6107 = vpop.f32.mrf.mxu0
  %v6108 = vadd.f32 %v5977, %v6107
  %v6109 = vpop.f32.mrf.mxu0
  %6110 = vmatprep.mubr.f32.mxu0 0.0
  %v6111 = vand.u32 %v5526, 4294901760
  %v6112 = vsub.f32 %v5526, %v6111
  %v6113 = vand.u32 %v6112, 4294901760
  %6114 = vmatmul.mubr.f32.gmra.mxu0 %v6113
  %v6115 = vpop.f32.mrf.mxu0
  %v6116 = vadd.f32 %v5984, %v6115
  %v6117 = vpop.f32.mrf.mxu0
  %6118 = vmatprep.mubr.f32.mxu0 0.0
  %v6119 = vand.u32 %v5527, 4294901760
  %v6120 = vsub.f32 %v5527, %v6119
  %v6121 = vand.u32 %v6120, 4294901760
  %6122 = vmatmul.mubr.f32.gmra.mxu0 %v6121
  %v6123 = vpop.f32.mrf.mxu0
  %v6124 = vadd.f32 %v5991, %v6123
  %v6125 = vpop.f32.mrf.mxu0
  %6126 = vmatprep.mubr.f32.mxu0 0.0
  %v6127 = vand.u32 %v5528, 4294901760
  %v6128 = vsub.f32 %v5528, %v6127
  %v6129 = vand.u32 %v6128, 4294901760
  %6130 = vmatmul.mubr.f32.gmra.mxu0 %v6129
  %v6131 = vpop.f32.mrf.mxu0
  %v6132 = vadd.f32 %v5998, %v6131
  %v6133 = vpop.f32.mrf.mxu0
  %6134 = vmatprep.mubr.f32.mxu0 0.0
  %v6135 = vand.u32 %v5529, 4294901760
  %v6136 = vsub.f32 %v5529, %v6135
  %v6137 = vand.u32 %v6136, 4294901760
  %6138 = vmatmul.mubr.f32.gmra.mxu0 %v6137
  %v6139 = vpop.f32.mrf.mxu0
  %v6140 = vadd.f32 %v6005, %v6139
  %v6141 = vpop.f32.mrf.mxu0
  %6142 = vmatprep.mubr.f32.mxu0 0.0
  %v6143 = vand.u32 %v5530, 4294901760
  %v6144 = vsub.f32 %v5530, %v6143
  %v6145 = vand.u32 %v6144, 4294901760
  %6146 = vmatmul.mubr.f32.gmra.mxu0 %v6145
  %v6147 = vpop.f32.mrf.mxu0
  %v6148 = vadd.f32 %v6012, %v6147
  %v6149 = vpop.f32.mrf.mxu0
  %6150 = vmatprep.mubr.f32.mxu0 0.0
  %v6151 = vand.u32 %v5531, 4294901760
  %v6152 = vsub.f32 %v5531, %v6151
  %v6153 = vand.u32 %v6152, 4294901760
  %6154 = vmatmul.mubr.f32.gmra.mxu0 %v6153
  %v6155 = vpop.f32.mrf.mxu0
  %v6156 = vadd.f32 %v6019, %v6155
  %v6157 = vpop.f32.mrf.mxu0
  %6158 = vdwg.mxu0
  %6159 = vmatprep.subr.mxu0 0.0
  %v6160 = vand.u32 %v62, 4294901760
  %v6161 = vsub.f32 %v62, %v6160
  %v6162 = vand.u32 %v6161, 4294901760
  %6163 = vmatpush1.msra.mxu0 %v6162
  %6164 = vmatprep.subr.mxu0 0.0
  %v6165 = vand.u32 %v61, 4294901760
  %v6166 = vsub.f32 %v61, %v6165
  %v6167 = vand.u32 %v6166, 4294901760
  %6168 = vmatpush1.msra.mxu0 %v6167
  %6169 = vmatprep.subr.mxu0 0.0
  %v6170 = vand.u32 %v60, 4294901760
  %v6171 = vsub.f32 %v60, %v6170
  %v6172 = vand.u32 %v6171, 4294901760
  %6173 = vmatpush1.msra.mxu0 %v6172
  %6174 = vmatprep.subr.mxu0 0.0
  %v6175 = vand.u32 %v59, 4294901760
  %v6176 = vsub.f32 %v59, %v6175
  %v6177 = vand.u32 %v6176, 4294901760
  %6178 = vmatpush1.msra.mxu0 %v6177
  %6179 = vmatprep.subr.mxu0 0.0
  %v6180 = vand.u32 %v58, 4294901760
  %v6181 = vsub.f32 %v58, %v6180
  %v6182 = vand.u32 %v6181, 4294901760
  %6183 = vmatpush1.msra.mxu0 %v6182
  %6184 = vmatprep.subr.mxu0 0.0
  %v6185 = vand.u32 %v57, 4294901760
  %v6186 = vsub.f32 %v57, %v6185
  %v6187 = vand.u32 %v6186, 4294901760
  %6188 = vmatpush1.msra.mxu0 %v6187
  %6189 = vmatprep.subr.mxu0 0.0
  %v6190 = vand.u32 %v56, 4294901760
  %v6191 = vsub.f32 %v56, %v6190
  %v6192 = vand.u32 %v6191, 4294901760
  %6193 = vmatpush1.msra.mxu0 %v6192
  %6194 = vmatprep.subr.mxu0 0.0
  %v6195 = vand.u32 %v55, 4294901760
  %v6196 = vsub.f32 %v55, %v6195
  %v6197 = vand.u32 %v6196, 4294901760
  %6198 = vmatpush1.msra.mxu0 %v6197
  %6199 = vmatprep.subr.mxu0 0.0
  %v6200 = vand.u32 %v54, 4294901760
  %v6201 = vsub.f32 %v54, %v6200
  %v6202 = vand.u32 %v6201, 4294901760
  %6203 = vmatpush1.msra.mxu0 %v6202
  %6204 = vmatprep.subr.mxu0 0.0
  %v6205 = vand.u32 %v53, 4294901760
  %v6206 = vsub.f32 %v53, %v6205
  %v6207 = vand.u32 %v6206, 4294901760
  %6208 = vmatpush1.msra.mxu0 %v6207
  %6209 = vmatprep.subr.mxu0 0.0
  %v6210 = vand.u32 %v52, 4294901760
  %v6211 = vsub.f32 %v52, %v6210
  %v6212 = vand.u32 %v6211, 4294901760
  %6213 = vmatpush1.msra.mxu0 %v6212
  %6214 = vmatprep.subr.mxu0 0.0
  %v6215 = vand.u32 %v51, 4294901760
  %v6216 = vsub.f32 %v51, %v6215
  %v6217 = vand.u32 %v6216, 4294901760
  %6218 = vmatpush1.msra.mxu0 %v6217
  %6219 = vmatprep.subr.mxu0 0.0
  %v6220 = vand.u32 %v50, 4294901760
  %v6221 = vsub.f32 %v50, %v6220
  %v6222 = vand.u32 %v6221, 4294901760
  %6223 = vmatpush1.msra.mxu0 %v6222
  %6224 = vmatprep.subr.mxu0 0.0
  %v6225 = vand.u32 %v49, 4294901760
  %v6226 = vsub.f32 %v49, %v6225
  %v6227 = vand.u32 %v6226, 4294901760
  %6228 = vmatpush1.msra.mxu0 %v6227
  %6229 = vmatprep.subr.mxu0 0.0
  %v6230 = vand.u32 %v48, 4294901760
  %v6231 = vsub.f32 %v48, %v6230
  %v6232 = vand.u32 %v6231, 4294901760
  %6233 = vmatpush1.msra.mxu0 %v6232
  %6234 = vmatprep.subr.mxu0 0.0
  %v6235 = vand.u32 %v47, 4294901760
  %v6236 = vsub.f32 %v47, %v6235
  %v6237 = vand.u32 %v6236, 4294901760
  %6238 = vmatpush1.msra.mxu0 %v6237
  %6239 = vmatprep.subr.mxu0 0.0
  %6240 = vmatpush2.msra.mxu0 0.0
  %6241 = vmatprep.subr.mxu0 0.0
  %6242 = vmatpush2.msra.mxu0 0.0
  %6243 = vmatprep.subr.mxu0 0.0
  %6244 = vmatpush2.msra.mxu0 0.0
  %6245 = vmatprep.subr.mxu0 0.0
  %6246 = vmatpush2.msra.mxu0 0.0
  %6247 = vmatprep.subr.mxu0 0.0
  %6248 = vmatpush2.msra.mxu0 0.0
  %6249 = vmatprep.subr.mxu0 0.0
  %6250 = vmatpush2.msra.mxu0 0.0
  %6251 = vmatprep.subr.mxu0 0.0
  %6252 = vmatpush2.msra.mxu0 0.0
  %6253 = vmatprep.subr.mxu0 0.0
  %6254 = vmatpush2.msra.mxu0 0.0
  %6255 = vmatprep.subr.mxu0 0.0
  %6256 = vmatpush2.msra.mxu0 0.0
  %6257 = vmatprep.subr.mxu0 0.0
  %6258 = vmatpush2.msra.mxu0 0.0
  %6259 = vmatprep.subr.mxu0 0.0
  %6260 = vmatpush2.msra.mxu0 0.0
  %6261 = vmatprep.subr.mxu0 0.0
  %6262 = vmatpush2.msra.mxu0 0.0
  %6263 = vmatprep.subr.mxu0 0.0
  %6264 = vmatpush2.msra.mxu0 0.0
  %6265 = vmatprep.subr.mxu0 0.0
  %6266 = vmatpush2.msra.mxu0 0.0
  %6267 = vmatprep.subr.mxu0 0.0
  %6268 = vmatpush2.msra.mxu0 0.0
  %6269 = vmatprep.subr.mxu0 0.0
  %6270 = vmatpush2.msra.mxu0 0.0
  %6271 = vmatprep.mubr.f32.mxu0 0.0
  %v6272 = vand.u32 %v5525, 4294901760
  %6273 = vmatmul.mubr.f32.gmra.mxu0 %v6272
  %v6274 = vpop.f32.mrf.mxu0
  %v6275 = vadd.f32 %v6108, %v6274
  %v6276 = vpop.f32.mrf.mxu0
  %6277 = vmatprep.mubr.f32.mxu0 0.0
  %v6278 = vand.u32 %v5526, 4294901760
  %6279 = vmatmul.mubr.f32.gmra.mxu0 %v6278
  %v6280 = vpop.f32.mrf.mxu0
  %v6281 = vadd.f32 %v6116, %v6280
  %v6282 = vpop.f32.mrf.mxu0
  %6283 = vmatprep.mubr.f32.mxu0 0.0
  %v6284 = vand.u32 %v5527, 4294901760
  %6285 = vmatmul.mubr.f32.gmra.mxu0 %v6284
  %v6286 = vpop.f32.mrf.mxu0
  %v6287 = vadd.f32 %v6124, %v6286
  %v6288 = vpop.f32.mrf.mxu0
  %6289 = vmatprep.mubr.f32.mxu0 0.0
  %v6290 = vand.u32 %v5528, 4294901760
  %6291 = vmatmul.mubr.f32.gmra.mxu0 %v6290
  %v6292 = vpop.f32.mrf.mxu0
  %v6293 = vadd.f32 %v6132, %v6292
  %v6294 = vpop.f32.mrf.mxu0
  %6295 = vmatprep.mubr.f32.mxu0 0.0
  %v6296 = vand.u32 %v5529, 4294901760
  %6297 = vmatmul.mubr.f32.gmra.mxu0 %v6296
  %v6298 = vpop.f32.mrf.mxu0
  %v6299 = vadd.f32 %v6140, %v6298
  %v6300 = vpop.f32.mrf.mxu0
  %6301 = vmatprep.mubr.f32.mxu0 0.0
  %v6302 = vand.u32 %v5530, 4294901760
  %6303 = vmatmul.mubr.f32.gmra.mxu0 %v6302
  %v6304 = vpop.f32.mrf.mxu0
  %v6305 = vadd.f32 %v6148, %v6304
  %v6306 = vpop.f32.mrf.mxu0
  %6307 = vmatprep.mubr.f32.mxu0 0.0
  %v6308 = vand.u32 %v5531, 4294901760
  %6309 = vmatmul.mubr.f32.gmra.mxu0 %v6308
  %v6310 = vpop.f32.mrf.mxu0
  %v6311 = vadd.f32 %v6156, %v6310
  %v6312 = vpop.f32.mrf.mxu0
  %6313 = vdwg.mxu0
  %6314 = vmatprep.subr.mxu0 0.0
  %v6315 = vand.u32 %v62, 4294901760
  %6316 = vmatpush1.msra.mxu0 %v6315
  %6317 = vmatprep.subr.mxu0 0.0
  %v6318 = vand.u32 %v61, 4294901760
  %6319 = vmatpush1.msra.mxu0 %v6318
  %6320 = vmatprep.subr.mxu0 0.0
  %v6321 = vand.u32 %v60, 4294901760
  %6322 = vmatpush1.msra.mxu0 %v6321
  %6323 = vmatprep.subr.mxu0 0.0
  %v6324 = vand.u32 %v59, 4294901760
  %6325 = vmatpush1.msra.mxu0 %v6324
  %6326 = vmatprep.subr.mxu0 0.0
  %v6327 = vand.u32 %v58, 4294901760
  %6328 = vmatpush1.msra.mxu0 %v6327
  %6329 = vmatprep.subr.mxu0 0.0
  %v6330 = vand.u32 %v57, 4294901760
  %6331 = vmatpush1.msra.mxu0 %v6330
  %6332 = vmatprep.subr.mxu0 0.0
  %v6333 = vand.u32 %v56, 4294901760
  %6334 = vmatpush1.msra.mxu0 %v6333
  %6335 = vmatprep.subr.mxu0 0.0
  %v6336 = vand.u32 %v55, 4294901760
  %6337 = vmatpush1.msra.mxu0 %v6336
  %6338 = vmatprep.subr.mxu0 0.0
  %v6339 = vand.u32 %v54, 4294901760
  %6340 = vmatpush1.msra.mxu0 %v6339
  %6341 = vmatprep.subr.mxu0 0.0
  %v6342 = vand.u32 %v53, 4294901760
  %6343 = vmatpush1.msra.mxu0 %v6342
  %6344 = vmatprep.subr.mxu0 0.0
  %v6345 = vand.u32 %v52, 4294901760
  %6346 = vmatpush1.msra.mxu0 %v6345
  %6347 = vmatprep.subr.mxu0 0.0
  %v6348 = vand.u32 %v51, 4294901760
  %6349 = vmatpush1.msra.mxu0 %v6348
  %6350 = vmatprep.subr.mxu0 0.0
  %v6351 = vand.u32 %v50, 4294901760
  %6352 = vmatpush1.msra.mxu0 %v6351
  %6353 = vmatprep.subr.mxu0 0.0
  %v6354 = vand.u32 %v49, 4294901760
  %6355 = vmatpush1.msra.mxu0 %v6354
  %6356 = vmatprep.subr.mxu0 0.0
  %v6357 = vand.u32 %v48, 4294901760
  %6358 = vmatpush1.msra.mxu0 %v6357
  %6359 = vmatprep.subr.mxu0 0.0
  %v6360 = vand.u32 %v47, 4294901760
  %6361 = vmatpush1.msra.mxu0 %v6360
  %6362 = vmatprep.subr.mxu0 0.0
  %6363 = vmatpush2.msra.mxu0 0.0
  %6364 = vmatprep.subr.mxu0 0.0
  %6365 = vmatpush2.msra.mxu0 0.0
  %6366 = vmatprep.subr.mxu0 0.0
  %6367 = vmatpush2.msra.mxu0 0.0
  %6368 = vmatprep.subr.mxu0 0.0
  %6369 = vmatpush2.msra.mxu0 0.0
  %6370 = vmatprep.subr.mxu0 0.0
  %6371 = vmatpush2.msra.mxu0 0.0
  %6372 = vmatprep.subr.mxu0 0.0
  %6373 = vmatpush2.msra.mxu0 0.0
  %6374 = vmatprep.subr.mxu0 0.0
  %6375 = vmatpush2.msra.mxu0 0.0
  %6376 = vmatprep.subr.mxu0 0.0
  %6377 = vmatpush2.msra.mxu0 0.0
  %6378 = vmatprep.subr.mxu0 0.0
  %6379 = vmatpush2.msra.mxu0 0.0
  %6380 = vmatprep.subr.mxu0 0.0
  %6381 = vmatpush2.msra.mxu0 0.0
  %6382 = vmatprep.subr.mxu0 0.0
  %6383 = vmatpush2.msra.mxu0 0.0
  %6384 = vmatprep.subr.mxu0 0.0
  %6385 = vmatpush2.msra.mxu0 0.0
  %6386 = vmatprep.subr.mxu0 0.0
  %6387 = vmatpush2.msra.mxu0 0.0
  %6388 = vmatprep.subr.mxu0 0.0
  %6389 = vmatpush2.msra.mxu0 0.0
  %6390 = vmatprep.subr.mxu0 0.0
  %6391 = vmatpush2.msra.mxu0 0.0
  %6392 = vmatprep.subr.mxu0 0.0
  %6393 = vmatpush2.msra.mxu0 0.0
  %6394 = vmatprep.mubr.f32.mxu0 0.0
  %v6395 = vand.u32 %v5525, 4294901760
  %6396 = vmatmul.mubr.f32.gmra.mxu0 %v6395
  %v6397 = vpop.f32.mrf.mxu0
  %v6398 = vadd.f32 %v6275, %v6397
  %v6399 = vpop.f32.mrf.mxu0
  %6400 = vmatprep.mubr.f32.mxu0 0.0
  %v6401 = vand.u32 %v5526, 4294901760
  %6402 = vmatmul.mubr.f32.gmra.mxu0 %v6401
  %v6403 = vpop.f32.mrf.mxu0
  %v6404 = vadd.f32 %v6281, %v6403
  %v6405 = vpop.f32.mrf.mxu0
  %6406 = vmatprep.mubr.f32.mxu0 0.0
  %v6407 = vand.u32 %v5527, 4294901760
  %6408 = vmatmul.mubr.f32.gmra.mxu0 %v6407
  %v6409 = vpop.f32.mrf.mxu0
  %v6410 = vadd.f32 %v6287, %v6409
  %v6411 = vpop.f32.mrf.mxu0
  %6412 = vmatprep.mubr.f32.mxu0 0.0
  %v6413 = vand.u32 %v5528, 4294901760
  %6414 = vmatmul.mubr.f32.gmra.mxu0 %v6413
  %v6415 = vpop.f32.mrf.mxu0
  %v6416 = vadd.f32 %v6293, %v6415
  %v6417 = vpop.f32.mrf.mxu0
  %6418 = vmatprep.mubr.f32.mxu0 0.0
  %v6419 = vand.u32 %v5529, 4294901760
  %6420 = vmatmul.mubr.f32.gmra.mxu0 %v6419
  %v6421 = vpop.f32.mrf.mxu0
  %v6422 = vadd.f32 %v6299, %v6421
  %v6423 = vpop.f32.mrf.mxu0
  %6424 = vmatprep.mubr.f32.mxu0 0.0
  %v6425 = vand.u32 %v5530, 4294901760
  %6426 = vmatmul.mubr.f32.gmra.mxu0 %v6425
  %v6427 = vpop.f32.mrf.mxu0
  %v6428 = vadd.f32 %v6305, %v6427
  %v6429 = vpop.f32.mrf.mxu0
  %6430 = vmatprep.mubr.f32.mxu0 0.0
  %v6431 = vand.u32 %v5531, 4294901760
  %6432 = vmatmul.mubr.f32.gmra.mxu0 %v6431
  %v6433 = vpop.f32.mrf.mxu0
  %v6434 = vadd.f32 %v6311, %v6433
  %v6435 = vpop.f32.mrf.mxu0
  %6436 = vdwg.mxu0
  %v6438 = vlaneseq
  %v6439 = vshrl.u32 %v6438, 7
  %v6440 = vsub.s32 0, %v6439
  %v6441 = vrot.slane %v81, %v6440
  %6443 = vmatprep.subr.mxu0 0.0
  %v6444 = vand.u32 %v78, 4294901760
  %6445 = vmatpush1.msra.mxu0 %v6444
  %6446 = vmatprep.subr.mxu0 0.0
  %v6447 = vand.u32 %v77, 4294901760
  %6448 = vmatpush1.msra.mxu0 %v6447
  %6449 = vmatprep.subr.mxu0 0.0
  %v6450 = vand.u32 %v76, 4294901760
  %6451 = vmatpush1.msra.mxu0 %v6450
  %6452 = vmatprep.subr.mxu0 0.0
  %v6453 = vand.u32 %v75, 4294901760
  %6454 = vmatpush1.msra.mxu0 %v6453
  %6455 = vmatprep.subr.mxu0 0.0
  %v6456 = vand.u32 %v74, 4294901760
  %6457 = vmatpush1.msra.mxu0 %v6456
  %6458 = vmatprep.subr.mxu0 0.0
  %v6459 = vand.u32 %v73, 4294901760
  %6460 = vmatpush1.msra.mxu0 %v6459
  %6461 = vmatprep.subr.mxu0 0.0
  %v6462 = vand.u32 %v72, 4294901760
  %6463 = vmatpush1.msra.mxu0 %v6462
  %6464 = vmatprep.subr.mxu0 0.0
  %v6465 = vand.u32 %v71, 4294901760
  %6466 = vmatpush1.msra.mxu0 %v6465
  %6467 = vmatprep.subr.mxu0 0.0
  %v6468 = vand.u32 %v70, 4294901760
  %6469 = vmatpush1.msra.mxu0 %v6468
  %6470 = vmatprep.subr.mxu0 0.0
  %v6471 = vand.u32 %v69, 4294901760
  %6472 = vmatpush1.msra.mxu0 %v6471
  %6473 = vmatprep.subr.mxu0 0.0
  %v6474 = vand.u32 %v68, 4294901760
  %6475 = vmatpush1.msra.mxu0 %v6474
  %6476 = vmatprep.subr.mxu0 0.0
  %v6477 = vand.u32 %v67, 4294901760
  %6478 = vmatpush1.msra.mxu0 %v6477
  %6479 = vmatprep.subr.mxu0 0.0
  %v6480 = vand.u32 %v66, 4294901760
  %6481 = vmatpush1.msra.mxu0 %v6480
  %6482 = vmatprep.subr.mxu0 0.0
  %v6483 = vand.u32 %v65, 4294901760
  %6484 = vmatpush1.msra.mxu0 %v6483
  %6485 = vmatprep.subr.mxu0 0.0
  %v6486 = vand.u32 %v64, 4294901760
  %6487 = vmatpush1.msra.mxu0 %v6486
  %6488 = vmatprep.subr.mxu0 0.0
  %v6489 = vand.u32 %v63, 4294901760
  %6490 = vmatpush1.msra.mxu0 %v6489
  %6491 = vmatprep.subr.mxu0 0.0
  %6492 = vmatpush2.msra.mxu0 0.0
  %6493 = vmatprep.subr.mxu0 0.0
  %6494 = vmatpush2.msra.mxu0 0.0
  %6495 = vmatprep.subr.mxu0 0.0
  %6496 = vmatpush2.msra.mxu0 0.0
  %6497 = vmatprep.subr.mxu0 0.0
  %6498 = vmatpush2.msra.mxu0 0.0
  %6499 = vmatprep.subr.mxu0 0.0
  %6500 = vmatpush2.msra.mxu0 0.0
  %6501 = vmatprep.subr.mxu0 0.0
  %6502 = vmatpush2.msra.mxu0 0.0
  %6503 = vmatprep.subr.mxu0 0.0
  %6504 = vmatpush2.msra.mxu0 0.0
  %6505 = vmatprep.subr.mxu0 0.0
  %6506 = vmatpush2.msra.mxu0 0.0
  %6507 = vmatprep.subr.mxu0 0.0
  %6508 = vmatpush2.msra.mxu0 0.0
  %6509 = vmatprep.subr.mxu0 0.0
  %6510 = vmatpush2.msra.mxu0 0.0
  %6511 = vmatprep.subr.mxu0 0.0
  %6512 = vmatpush2.msra.mxu0 0.0
  %6513 = vmatprep.subr.mxu0 0.0
  %6514 = vmatpush2.msra.mxu0 0.0
  %6515 = vmatprep.subr.mxu0 0.0
  %6516 = vmatpush2.msra.mxu0 0.0
  %6517 = vmatprep.subr.mxu0 0.0
  %6518 = vmatpush2.msra.mxu0 0.0
  %6519 = vmatprep.subr.mxu0 0.0
  %6520 = vmatpush2.msra.mxu0 0.0
  %6521 = vmatprep.subr.mxu0 0.0
  %6522 = vmatpush2.msra.mxu0 0.0
  %6523 = vmatprep.mubr.f32.mxu0 0.0
  %v6524 = vand.u32 %v5525, 4294901760
  %v6525 = vsub.f32 %v5525, %v6524
  %v6526 = vand.u32 %v6525, 4294901760
  %v6527 = vsub.f32 %v6525, %v6526
  %v6528 = vand.u32 %v6527, 4294901760
  %6529 = vmatmul.mubr.f32.gmra.mxu0 %v6528
  %v6530 = vpop.f32.mrf.mxu0
  %v6531 = vadd.f32 %v6441, %v6530
  %v6532 = vpop.f32.mrf.mxu0
  %6533 = vmatprep.mubr.f32.mxu0 0.0
  %v6534 = vand.u32 %v5526, 4294901760
  %v6535 = vsub.f32 %v5526, %v6534
  %v6536 = vand.u32 %v6535, 4294901760
  %v6537 = vsub.f32 %v6535, %v6536
  %v6538 = vand.u32 %v6537, 4294901760
  %6539 = vmatmul.mubr.f32.gmra.mxu0 %v6538
  %v6540 = vpop.f32.mrf.mxu0
  %v6541 = vadd.f32 %v6441, %v6540
  %v6542 = vpop.f32.mrf.mxu0
  %6543 = vmatprep.mubr.f32.mxu0 0.0
  %v6544 = vand.u32 %v5527, 4294901760
  %v6545 = vsub.f32 %v5527, %v6544
  %v6546 = vand.u32 %v6545, 4294901760
  %v6547 = vsub.f32 %v6545, %v6546
  %v6548 = vand.u32 %v6547, 4294901760
  %6549 = vmatmul.mubr.f32.gmra.mxu0 %v6548
  %v6550 = vpop.f32.mrf.mxu0
  %v6551 = vadd.f32 %v6441, %v6550
  %v6552 = vpop.f32.mrf.mxu0
  %6553 = vmatprep.mubr.f32.mxu0 0.0
  %v6554 = vand.u32 %v5528, 4294901760
  %v6555 = vsub.f32 %v5528, %v6554
  %v6556 = vand.u32 %v6555, 4294901760
  %v6557 = vsub.f32 %v6555, %v6556
  %v6558 = vand.u32 %v6557, 4294901760
  %6559 = vmatmul.mubr.f32.gmra.mxu0 %v6558
  %v6560 = vpop.f32.mrf.mxu0
  %v6561 = vadd.f32 %v6441, %v6560
  %v6562 = vpop.f32.mrf.mxu0
  %6563 = vmatprep.mubr.f32.mxu0 0.0
  %v6564 = vand.u32 %v5529, 4294901760
  %v6565 = vsub.f32 %v5529, %v6564
  %v6566 = vand.u32 %v6565, 4294901760
  %v6567 = vsub.f32 %v6565, %v6566
  %v6568 = vand.u32 %v6567, 4294901760
  %6569 = vmatmul.mubr.f32.gmra.mxu0 %v6568
  %v6570 = vpop.f32.mrf.mxu0
  %v6571 = vadd.f32 %v6441, %v6570
  %v6572 = vpop.f32.mrf.mxu0
  %6573 = vmatprep.mubr.f32.mxu0 0.0
  %v6574 = vand.u32 %v5530, 4294901760
  %v6575 = vsub.f32 %v5530, %v6574
  %v6576 = vand.u32 %v6575, 4294901760
  %v6577 = vsub.f32 %v6575, %v6576
  %v6578 = vand.u32 %v6577, 4294901760
  %6579 = vmatmul.mubr.f32.gmra.mxu0 %v6578
  %v6580 = vpop.f32.mrf.mxu0
  %v6581 = vadd.f32 %v6441, %v6580
  %v6582 = vpop.f32.mrf.mxu0
  %6583 = vmatprep.mubr.f32.mxu0 0.0
  %v6584 = vand.u32 %v5531, 4294901760
  %v6585 = vsub.f32 %v5531, %v6584
  %v6586 = vand.u32 %v6585, 4294901760
  %v6587 = vsub.f32 %v6585, %v6586
  %v6588 = vand.u32 %v6587, 4294901760
  %6589 = vmatmul.mubr.f32.gmra.mxu0 %v6588
  %v6590 = vpop.f32.mrf.mxu0
  %v6591 = vadd.f32 %v6441, %v6590
  %v6592 = vpop.f32.mrf.mxu0
  %6593 = vdwg.mxu0
  %6594 = vmatprep.subr.mxu0 0.0
  %v6595 = vand.u32 %v78, 4294901760
  %v6596 = vsub.f32 %v78, %v6595
  %v6597 = vand.u32 %v6596, 4294901760
  %v6598 = vsub.f32 %v6596, %v6597
  %v6599 = vand.u32 %v6598, 4294901760
  %6600 = vmatpush1.msra.mxu0 %v6599
  %6601 = vmatprep.subr.mxu0 0.0
  %v6602 = vand.u32 %v77, 4294901760
  %v6603 = vsub.f32 %v77, %v6602
  %v6604 = vand.u32 %v6603, 4294901760
  %v6605 = vsub.f32 %v6603, %v6604
  %v6606 = vand.u32 %v6605, 4294901760
  %6607 = vmatpush1.msra.mxu0 %v6606
  %6608 = vmatprep.subr.mxu0 0.0
  %v6609 = vand.u32 %v76, 4294901760
  %v6610 = vsub.f32 %v76, %v6609
  %v6611 = vand.u32 %v6610, 4294901760
  %v6612 = vsub.f32 %v6610, %v6611
  %v6613 = vand.u32 %v6612, 4294901760
  %6614 = vmatpush1.msra.mxu0 %v6613
  %6615 = vmatprep.subr.mxu0 0.0
  %v6616 = vand.u32 %v75, 4294901760
  %v6617 = vsub.f32 %v75, %v6616
  %v6618 = vand.u32 %v6617, 4294901760
  %v6619 = vsub.f32 %v6617, %v6618
  %v6620 = vand.u32 %v6619, 4294901760
  %6621 = vmatpush1.msra.mxu0 %v6620
  %6622 = vmatprep.subr.mxu0 0.0
  %v6623 = vand.u32 %v74, 4294901760
  %v6624 = vsub.f32 %v74, %v6623
  %v6625 = vand.u32 %v6624, 4294901760
  %v6626 = vsub.f32 %v6624, %v6625
  %v6627 = vand.u32 %v6626, 4294901760
  %6628 = vmatpush1.msra.mxu0 %v6627
  %6629 = vmatprep.subr.mxu0 0.0
  %v6630 = vand.u32 %v73, 4294901760
  %v6631 = vsub.f32 %v73, %v6630
  %v6632 = vand.u32 %v6631, 4294901760
  %v6633 = vsub.f32 %v6631, %v6632
  %v6634 = vand.u32 %v6633, 4294901760
  %6635 = vmatpush1.msra.mxu0 %v6634
  %6636 = vmatprep.subr.mxu0 0.0
  %v6637 = vand.u32 %v72, 4294901760
  %v6638 = vsub.f32 %v72, %v6637
  %v6639 = vand.u32 %v6638, 4294901760
  %v6640 = vsub.f32 %v6638, %v6639
  %v6641 = vand.u32 %v6640, 4294901760
  %6642 = vmatpush1.msra.mxu0 %v6641
  %6643 = vmatprep.subr.mxu0 0.0
  %v6644 = vand.u32 %v71, 4294901760
  %v6645 = vsub.f32 %v71, %v6644
  %v6646 = vand.u32 %v6645, 4294901760
  %v6647 = vsub.f32 %v6645, %v6646
  %v6648 = vand.u32 %v6647, 4294901760
  %6649 = vmatpush1.msra.mxu0 %v6648
  %6650 = vmatprep.subr.mxu0 0.0
  %v6651 = vand.u32 %v70, 4294901760
  %v6652 = vsub.f32 %v70, %v6651
  %v6653 = vand.u32 %v6652, 4294901760
  %v6654 = vsub.f32 %v6652, %v6653
  %v6655 = vand.u32 %v6654, 4294901760
  %6656 = vmatpush1.msra.mxu0 %v6655
  %6657 = vmatprep.subr.mxu0 0.0
  %v6658 = vand.u32 %v69, 4294901760
  %v6659 = vsub.f32 %v69, %v6658
  %v6660 = vand.u32 %v6659, 4294901760
  %v6661 = vsub.f32 %v6659, %v6660
  %v6662 = vand.u32 %v6661, 4294901760
  %6663 = vmatpush1.msra.mxu0 %v6662
  %6664 = vmatprep.subr.mxu0 0.0
  %v6665 = vand.u32 %v68, 4294901760
  %v6666 = vsub.f32 %v68, %v6665
  %v6667 = vand.u32 %v6666, 4294901760
  %v6668 = vsub.f32 %v6666, %v6667
  %v6669 = vand.u32 %v6668, 4294901760
  %6670 = vmatpush1.msra.mxu0 %v6669
  %6671 = vmatprep.subr.mxu0 0.0
  %v6672 = vand.u32 %v67, 4294901760
  %v6673 = vsub.f32 %v67, %v6672
  %v6674 = vand.u32 %v6673, 4294901760
  %v6675 = vsub.f32 %v6673, %v6674
  %v6676 = vand.u32 %v6675, 4294901760
  %6677 = vmatpush1.msra.mxu0 %v6676
  %6678 = vmatprep.subr.mxu0 0.0
  %v6679 = vand.u32 %v66, 4294901760
  %v6680 = vsub.f32 %v66, %v6679
  %v6681 = vand.u32 %v6680, 4294901760
  %v6682 = vsub.f32 %v6680, %v6681
  %v6683 = vand.u32 %v6682, 4294901760
  %6684 = vmatpush1.msra.mxu0 %v6683
  %6685 = vmatprep.subr.mxu0 0.0
  %v6686 = vand.u32 %v65, 4294901760
  %v6687 = vsub.f32 %v65, %v6686
  %v6688 = vand.u32 %v6687, 4294901760
  %v6689 = vsub.f32 %v6687, %v6688
  %v6690 = vand.u32 %v6689, 4294901760
  %6691 = vmatpush1.msra.mxu0 %v6690
  %6692 = vmatprep.subr.mxu0 0.0
  %v6693 = vand.u32 %v64, 4294901760
  %v6694 = vsub.f32 %v64, %v6693
  %v6695 = vand.u32 %v6694, 4294901760
  %v6696 = vsub.f32 %v6694, %v6695
  %v6697 = vand.u32 %v6696, 4294901760
  %6698 = vmatpush1.msra.mxu0 %v6697
  %6699 = vmatprep.subr.mxu0 0.0
  %v6700 = vand.u32 %v63, 4294901760
  %v6701 = vsub.f32 %v63, %v6700
  %v6702 = vand.u32 %v6701, 4294901760
  %v6703 = vsub.f32 %v6701, %v6702
  %v6704 = vand.u32 %v6703, 4294901760
  %6705 = vmatpush1.msra.mxu0 %v6704
  %6706 = vmatprep.subr.mxu0 0.0
  %6707 = vmatpush2.msra.mxu0 0.0
  %6708 = vmatprep.subr.mxu0 0.0
  %6709 = vmatpush2.msra.mxu0 0.0
  %6710 = vmatprep.subr.mxu0 0.0
  %6711 = vmatpush2.msra.mxu0 0.0
  %6712 = vmatprep.subr.mxu0 0.0
  %6713 = vmatpush2.msra.mxu0 0.0
  %6714 = vmatprep.subr.mxu0 0.0
  %6715 = vmatpush2.msra.mxu0 0.0
  %6716 = vmatprep.subr.mxu0 0.0
  %6717 = vmatpush2.msra.mxu0 0.0
  %6718 = vmatprep.subr.mxu0 0.0
  %6719 = vmatpush2.msra.mxu0 0.0
  %6720 = vmatprep.subr.mxu0 0.0
  %6721 = vmatpush2.msra.mxu0 0.0
  %6722 = vmatprep.subr.mxu0 0.0
  %6723 = vmatpush2.msra.mxu0 0.0
  %6724 = vmatprep.subr.mxu0 0.0
  %6725 = vmatpush2.msra.mxu0 0.0
  %6726 = vmatprep.subr.mxu0 0.0
  %6727 = vmatpush2.msra.mxu0 0.0
  %6728 = vmatprep.subr.mxu0 0.0
  %6729 = vmatpush2.msra.mxu0 0.0
  %6730 = vmatprep.subr.mxu0 0.0
  %6731 = vmatpush2.msra.mxu0 0.0
  %6732 = vmatprep.subr.mxu0 0.0
  %6733 = vmatpush2.msra.mxu0 0.0
  %6734 = vmatprep.subr.mxu0 0.0
  %6735 = vmatpush2.msra.mxu0 0.0
  %6736 = vmatprep.subr.mxu0 0.0
  %6737 = vmatpush2.msra.mxu0 0.0
  %6738 = vmatprep.mubr.f32.mxu0 0.0
  %v6739 = vand.u32 %v5525, 4294901760
  %6740 = vmatmul.mubr.f32.gmra.mxu0 %v6739
  %v6741 = vpop.f32.mrf.mxu0
  %v6742 = vadd.f32 %v6531, %v6741
  %v6743 = vpop.f32.mrf.mxu0
  %6744 = vmatprep.mubr.f32.mxu0 0.0
  %v6745 = vand.u32 %v5526, 4294901760
  %6746 = vmatmul.mubr.f32.gmra.mxu0 %v6745
  %v6747 = vpop.f32.mrf.mxu0
  %v6748 = vadd.f32 %v6541, %v6747
  %v6749 = vpop.f32.mrf.mxu0
  %6750 = vmatprep.mubr.f32.mxu0 0.0
  %v6751 = vand.u32 %v5527, 4294901760
  %6752 = vmatmul.mubr.f32.gmra.mxu0 %v6751
  %v6753 = vpop.f32.mrf.mxu0
  %v6754 = vadd.f32 %v6551, %v6753
  %v6755 = vpop.f32.mrf.mxu0
  %6756 = vmatprep.mubr.f32.mxu0 0.0
  %v6757 = vand.u32 %v5528, 4294901760
  %6758 = vmatmul.mubr.f32.gmra.mxu0 %v6757
  %v6759 = vpop.f32.mrf.mxu0
  %v6760 = vadd.f32 %v6561, %v6759
  %v6761 = vpop.f32.mrf.mxu0
  %6762 = vmatprep.mubr.f32.mxu0 0.0
  %v6763 = vand.u32 %v5529, 4294901760
  %6764 = vmatmul.mubr.f32.gmra.mxu0 %v6763
  %v6765 = vpop.f32.mrf.mxu0
  %v6766 = vadd.f32 %v6571, %v6765
  %v6767 = vpop.f32.mrf.mxu0
  %6768 = vmatprep.mubr.f32.mxu0 0.0
  %v6769 = vand.u32 %v5530, 4294901760
  %6770 = vmatmul.mubr.f32.gmra.mxu0 %v6769
  %v6771 = vpop.f32.mrf.mxu0
  %v6772 = vadd.f32 %v6581, %v6771
  %v6773 = vpop.f32.mrf.mxu0
  %6774 = vmatprep.mubr.f32.mxu0 0.0
  %v6775 = vand.u32 %v5531, 4294901760
  %6776 = vmatmul.mubr.f32.gmra.mxu0 %v6775
  %v6777 = vpop.f32.mrf.mxu0
  %v6778 = vadd.f32 %v6591, %v6777
  %v6779 = vpop.f32.mrf.mxu0
  %6780 = vdwg.mxu0
  %6781 = vmatprep.subr.mxu0 0.0
  %v6782 = vand.u32 %v78, 4294901760
  %v6783 = vsub.f32 %v78, %v6782
  %6784 = vmatpush1.msra.mxu0 %v6783
  %6785 = vmatprep.subr.mxu0 0.0
  %v6786 = vand.u32 %v77, 4294901760
  %v6787 = vsub.f32 %v77, %v6786
  %6788 = vmatpush1.msra.mxu0 %v6787
  %6789 = vmatprep.subr.mxu0 0.0
  %v6790 = vand.u32 %v76, 4294901760
  %v6791 = vsub.f32 %v76, %v6790
  %6792 = vmatpush1.msra.mxu0 %v6791
  %6793 = vmatprep.subr.mxu0 0.0
  %v6794 = vand.u32 %v75, 4294901760
  %v6795 = vsub.f32 %v75, %v6794
  %6796 = vmatpush1.msra.mxu0 %v6795
  %6797 = vmatprep.subr.mxu0 0.0
  %v6798 = vand.u32 %v74, 4294901760
  %v6799 = vsub.f32 %v74, %v6798
  %6800 = vmatpush1.msra.mxu0 %v6799
  %6801 = vmatprep.subr.mxu0 0.0
  %v6802 = vand.u32 %v73, 4294901760
  %v6803 = vsub.f32 %v73, %v6802
  %6804 = vmatpush1.msra.mxu0 %v6803
  %6805 = vmatprep.subr.mxu0 0.0
  %v6806 = vand.u32 %v72, 4294901760
  %v6807 = vsub.f32 %v72, %v6806
  %6808 = vmatpush1.msra.mxu0 %v6807
  %6809 = vmatprep.subr.mxu0 0.0
  %v6810 = vand.u32 %v71, 4294901760
  %v6811 = vsub.f32 %v71, %v6810
  %6812 = vmatpush1.msra.mxu0 %v6811
  %6813 = vmatprep.subr.mxu0 0.0
  %v6814 = vand.u32 %v70, 4294901760
  %v6815 = vsub.f32 %v70, %v6814
  %6816 = vmatpush1.msra.mxu0 %v6815
  %6817 = vmatprep.subr.mxu0 0.0
  %v6818 = vand.u32 %v69, 4294901760
  %v6819 = vsub.f32 %v69, %v6818
  %6820 = vmatpush1.msra.mxu0 %v6819
  %6821 = vmatprep.subr.mxu0 0.0
  %v6822 = vand.u32 %v68, 4294901760
  %v6823 = vsub.f32 %v68, %v6822
  %6824 = vmatpush1.msra.mxu0 %v6823
  %6825 = vmatprep.subr.mxu0 0.0
  %v6826 = vand.u32 %v67, 4294901760
  %v6827 = vsub.f32 %v67, %v6826
  %6828 = vmatpush1.msra.mxu0 %v6827
  %6829 = vmatprep.subr.mxu0 0.0
  %v6830 = vand.u32 %v66, 4294901760
  %v6831 = vsub.f32 %v66, %v6830
  %6832 = vmatpush1.msra.mxu0 %v6831
  %6833 = vmatprep.subr.mxu0 0.0
  %v6834 = vand.u32 %v65, 4294901760
  %v6835 = vsub.f32 %v65, %v6834
  %6836 = vmatpush1.msra.mxu0 %v6835
  %6837 = vmatprep.subr.mxu0 0.0
  %v6838 = vand.u32 %v64, 4294901760
  %v6839 = vsub.f32 %v64, %v6838
  %6840 = vmatpush1.msra.mxu0 %v6839
  %6841 = vmatprep.subr.mxu0 0.0
  %v6842 = vand.u32 %v63, 4294901760
  %v6843 = vsub.f32 %v63, %v6842
  %6844 = vmatpush1.msra.mxu0 %v6843
  %6845 = vmatprep.subr.mxu0 0.0
  %6846 = vmatpush2.msra.mxu0 0.0
  %6847 = vmatprep.subr.mxu0 0.0
  %6848 = vmatpush2.msra.mxu0 0.0
  %6849 = vmatprep.subr.mxu0 0.0
  %6850 = vmatpush2.msra.mxu0 0.0
  %6851 = vmatprep.subr.mxu0 0.0
  %6852 = vmatpush2.msra.mxu0 0.0
  %6853 = vmatprep.subr.mxu0 0.0
  %6854 = vmatpush2.msra.mxu0 0.0
  %6855 = vmatprep.subr.mxu0 0.0
  %6856 = vmatpush2.msra.mxu0 0.0
  %6857 = vmatprep.subr.mxu0 0.0
  %6858 = vmatpush2.msra.mxu0 0.0
  %6859 = vmatprep.subr.mxu0 0.0
  %6860 = vmatpush2.msra.mxu0 0.0
  %6861 = vmatprep.subr.mxu0 0.0
  %6862 = vmatpush2.msra.mxu0 0.0
  %6863 = vmatprep.subr.mxu0 0.0
  %6864 = vmatpush2.msra.mxu0 0.0
  %6865 = vmatprep.subr.mxu0 0.0
  %6866 = vmatpush2.msra.mxu0 0.0
  %6867 = vmatprep.subr.mxu0 0.0
  %6868 = vmatpush2.msra.mxu0 0.0
  %6869 = vmatprep.subr.mxu0 0.0
  %6870 = vmatpush2.msra.mxu0 0.0
  %6871 = vmatprep.subr.mxu0 0.0
  %6872 = vmatpush2.msra.mxu0 0.0
  %6873 = vmatprep.subr.mxu0 0.0
  %6874 = vmatpush2.msra.mxu0 0.0
  %6875 = vmatprep.subr.mxu0 0.0
  %6876 = vmatpush2.msra.mxu0 0.0
  %6877 = vmatprep.mubr.f32.mxu0 0.0
  %v6878 = vand.u32 %v5525, 4294901760
  %v6879 = vsub.f32 %v5525, %v6878
  %6880 = vmatmul.mubr.f32.gmra.mxu0 %v6879
  %v6881 = vpop.f32.mrf.mxu0
  %v6882 = vadd.f32 %v6742, %v6881
  %v6883 = vpop.f32.mrf.mxu0
  %6884 = vmatprep.mubr.f32.mxu0 0.0
  %v6885 = vand.u32 %v5526, 4294901760
  %v6886 = vsub.f32 %v5526, %v6885
  %6887 = vmatmul.mubr.f32.gmra.mxu0 %v6886
  %v6888 = vpop.f32.mrf.mxu0
  %v6889 = vadd.f32 %v6748, %v6888
  %v6890 = vpop.f32.mrf.mxu0
  %6891 = vmatprep.mubr.f32.mxu0 0.0
  %v6892 = vand.u32 %v5527, 4294901760
  %v6893 = vsub.f32 %v5527, %v6892
  %6894 = vmatmul.mubr.f32.gmra.mxu0 %v6893
  %v6895 = vpop.f32.mrf.mxu0
  %v6896 = vadd.f32 %v6754, %v6895
  %v6897 = vpop.f32.mrf.mxu0
  %6898 = vmatprep.mubr.f32.mxu0 0.0
  %v6899 = vand.u32 %v5528, 4294901760
  %v6900 = vsub.f32 %v5528, %v6899
  %6901 = vmatmul.mubr.f32.gmra.mxu0 %v6900
  %v6902 = vpop.f32.mrf.mxu0
  %v6903 = vadd.f32 %v6760, %v6902
  %v6904 = vpop.f32.mrf.mxu0
  %6905 = vmatprep.mubr.f32.mxu0 0.0
  %v6906 = vand.u32 %v5529, 4294901760
  %v6907 = vsub.f32 %v5529, %v6906
  %6908 = vmatmul.mubr.f32.gmra.mxu0 %v6907
  %v6909 = vpop.f32.mrf.mxu0
  %v6910 = vadd.f32 %v6766, %v6909
  %v6911 = vpop.f32.mrf.mxu0
  %6912 = vmatprep.mubr.f32.mxu0 0.0
  %v6913 = vand.u32 %v5530, 4294901760
  %v6914 = vsub.f32 %v5530, %v6913
  %6915 = vmatmul.mubr.f32.gmra.mxu0 %v6914
  %v6916 = vpop.f32.mrf.mxu0
  %v6917 = vadd.f32 %v6772, %v6916
  %v6918 = vpop.f32.mrf.mxu0
  %6919 = vmatprep.mubr.f32.mxu0 0.0
  %v6920 = vand.u32 %v5531, 4294901760
  %v6921 = vsub.f32 %v5531, %v6920
  %6922 = vmatmul.mubr.f32.gmra.mxu0 %v6921
  %v6923 = vpop.f32.mrf.mxu0
  %v6924 = vadd.f32 %v6778, %v6923
  %v6925 = vpop.f32.mrf.mxu0
  %6926 = vdwg.mxu0
  %6927 = vmatprep.subr.mxu0 0.0
  %v6928 = vand.u32 %v78, 4294901760
  %6929 = vmatpush1.msra.mxu0 %v6928
  %6930 = vmatprep.subr.mxu0 0.0
  %v6931 = vand.u32 %v77, 4294901760
  %6932 = vmatpush1.msra.mxu0 %v6931
  %6933 = vmatprep.subr.mxu0 0.0
  %v6934 = vand.u32 %v76, 4294901760
  %6935 = vmatpush1.msra.mxu0 %v6934
  %6936 = vmatprep.subr.mxu0 0.0
  %v6937 = vand.u32 %v75, 4294901760
  %6938 = vmatpush1.msra.mxu0 %v6937
  %6939 = vmatprep.subr.mxu0 0.0
  %v6940 = vand.u32 %v74, 4294901760
  %6941 = vmatpush1.msra.mxu0 %v6940
  %6942 = vmatprep.subr.mxu0 0.0
  %v6943 = vand.u32 %v73, 4294901760
  %6944 = vmatpush1.msra.mxu0 %v6943
  %6945 = vmatprep.subr.mxu0 0.0
  %v6946 = vand.u32 %v72, 4294901760
  %6947 = vmatpush1.msra.mxu0 %v6946
  %6948 = vmatprep.subr.mxu0 0.0
  %v6949 = vand.u32 %v71, 4294901760
  %6950 = vmatpush1.msra.mxu0 %v6949
  %6951 = vmatprep.subr.mxu0 0.0
  %v6952 = vand.u32 %v70, 4294901760
  %6953 = vmatpush1.msra.mxu0 %v6952
  %6954 = vmatprep.subr.mxu0 0.0
  %v6955 = vand.u32 %v69, 4294901760
  %6956 = vmatpush1.msra.mxu0 %v6955
  %6957 = vmatprep.subr.mxu0 0.0
  %v6958 = vand.u32 %v68, 4294901760
  %6959 = vmatpush1.msra.mxu0 %v6958
  %6960 = vmatprep.subr.mxu0 0.0
  %v6961 = vand.u32 %v67, 4294901760
  %6962 = vmatpush1.msra.mxu0 %v6961
  %6963 = vmatprep.subr.mxu0 0.0
  %v6964 = vand.u32 %v66, 4294901760
  %6965 = vmatpush1.msra.mxu0 %v6964
  %6966 = vmatprep.subr.mxu0 0.0
  %v6967 = vand.u32 %v65, 4294901760
  %6968 = vmatpush1.msra.mxu0 %v6967
  %6969 = vmatprep.subr.mxu0 0.0
  %v6970 = vand.u32 %v64, 4294901760
  %6971 = vmatpush1.msra.mxu0 %v6970
  %6972 = vmatprep.subr.mxu0 0.0
  %v6973 = vand.u32 %v63, 4294901760
  %6974 = vmatpush1.msra.mxu0 %v6973
  %6975 = vmatprep.subr.mxu0 0.0
  %6976 = vmatpush2.msra.mxu0 0.0
  %6977 = vmatprep.subr.mxu0 0.0
  %6978 = vmatpush2.msra.mxu0 0.0
  %6979 = vmatprep.subr.mxu0 0.0
  %6980 = vmatpush2.msra.mxu0 0.0
  %6981 = vmatprep.subr.mxu0 0.0
  %6982 = vmatpush2.msra.mxu0 0.0
  %6983 = vmatprep.subr.mxu0 0.0
  %6984 = vmatpush2.msra.mxu0 0.0
  %6985 = vmatprep.subr.mxu0 0.0
  %6986 = vmatpush2.msra.mxu0 0.0
  %6987 = vmatprep.subr.mxu0 0.0
  %6988 = vmatpush2.msra.mxu0 0.0
  %6989 = vmatprep.subr.mxu0 0.0
  %6990 = vmatpush2.msra.mxu0 0.0
  %6991 = vmatprep.subr.mxu0 0.0
  %6992 = vmatpush2.msra.mxu0 0.0
  %6993 = vmatprep.subr.mxu0 0.0
  %6994 = vmatpush2.msra.mxu0 0.0
  %6995 = vmatprep.subr.mxu0 0.0
  %6996 = vmatpush2.msra.mxu0 0.0
  %6997 = vmatprep.subr.mxu0 0.0
  %6998 = vmatpush2.msra.mxu0 0.0
  %6999 = vmatprep.subr.mxu0 0.0
  %7000 = vmatpush2.msra.mxu0 0.0
  %7001 = vmatprep.subr.mxu0 0.0
  %7002 = vmatpush2.msra.mxu0 0.0
  %7003 = vmatprep.subr.mxu0 0.0
  %7004 = vmatpush2.msra.mxu0 0.0
  %7005 = vmatprep.subr.mxu0 0.0
  %7006 = vmatpush2.msra.mxu0 0.0
  %7007 = vmatprep.mubr.f32.mxu0 0.0
  %v7008 = vand.u32 %v5525, 4294901760
  %v7009 = vsub.f32 %v5525, %v7008
  %v7010 = vand.u32 %v7009, 4294901760
  %7011 = vmatmul.mubr.f32.gmra.mxu0 %v7010
  %v7012 = vpop.f32.mrf.mxu0
  %v7013 = vadd.f32 %v6882, %v7012
  %v7014 = vpop.f32.mrf.mxu0
  %7015 = vmatprep.mubr.f32.mxu0 0.0
  %v7016 = vand.u32 %v5526, 4294901760
  %v7017 = vsub.f32 %v5526, %v7016
  %v7018 = vand.u32 %v7017, 4294901760
  %7019 = vmatmul.mubr.f32.gmra.mxu0 %v7018
  %v7020 = vpop.f32.mrf.mxu0
  %v7021 = vadd.f32 %v6889, %v7020
  %v7022 = vpop.f32.mrf.mxu0
  %7023 = vmatprep.mubr.f32.mxu0 0.0
  %v7024 = vand.u32 %v5527, 4294901760
  %v7025 = vsub.f32 %v5527, %v7024
  %v7026 = vand.u32 %v7025, 4294901760
  %7027 = vmatmul.mubr.f32.gmra.mxu0 %v7026
  %v7028 = vpop.f32.mrf.mxu0
  %v7029 = vadd.f32 %v6896, %v7028
  %v7030 = vpop.f32.mrf.mxu0
  %7031 = vmatprep.mubr.f32.mxu0 0.0
  %v7032 = vand.u32 %v5528, 4294901760
  %v7033 = vsub.f32 %v5528, %v7032
  %v7034 = vand.u32 %v7033, 4294901760
  %7035 = vmatmul.mubr.f32.gmra.mxu0 %v7034
  %v7036 = vpop.f32.mrf.mxu0
  %v7037 = vadd.f32 %v6903, %v7036
  %v7038 = vpop.f32.mrf.mxu0
  %7039 = vmatprep.mubr.f32.mxu0 0.0
  %v7040 = vand.u32 %v5529, 4294901760
  %v7041 = vsub.f32 %v5529, %v7040
  %v7042 = vand.u32 %v7041, 4294901760
  %7043 = vmatmul.mubr.f32.gmra.mxu0 %v7042
  %v7044 = vpop.f32.mrf.mxu0
  %v7045 = vadd.f32 %v6910, %v7044
  %v7046 = vpop.f32.mrf.mxu0
  %7047 = vmatprep.mubr.f32.mxu0 0.0
  %v7048 = vand.u32 %v5530, 4294901760
  %v7049 = vsub.f32 %v5530, %v7048
  %v7050 = vand.u32 %v7049, 4294901760
  %7051 = vmatmul.mubr.f32.gmra.mxu0 %v7050
  %v7052 = vpop.f32.mrf.mxu0
  %v7053 = vadd.f32 %v6917, %v7052
  %v7054 = vpop.f32.mrf.mxu0
  %7055 = vmatprep.mubr.f32.mxu0 0.0
  %v7056 = vand.u32 %v5531, 4294901760
  %v7057 = vsub.f32 %v5531, %v7056
  %v7058 = vand.u32 %v7057, 4294901760
  %7059 = vmatmul.mubr.f32.gmra.mxu0 %v7058
  %v7060 = vpop.f32.mrf.mxu0
  %v7061 = vadd.f32 %v6924, %v7060
  %v7062 = vpop.f32.mrf.mxu0
  %7063 = vdwg.mxu0
  %7064 = vmatprep.subr.mxu0 0.0
  %v7065 = vand.u32 %v78, 4294901760
  %v7066 = vsub.f32 %v78, %v7065
  %v7067 = vand.u32 %v7066, 4294901760
  %7068 = vmatpush1.msra.mxu0 %v7067
  %7069 = vmatprep.subr.mxu0 0.0
  %v7070 = vand.u32 %v77, 4294901760
  %v7071 = vsub.f32 %v77, %v7070
  %v7072 = vand.u32 %v7071, 4294901760
  %7073 = vmatpush1.msra.mxu0 %v7072
  %7074 = vmatprep.subr.mxu0 0.0
  %v7075 = vand.u32 %v76, 4294901760
  %v7076 = vsub.f32 %v76, %v7075
  %v7077 = vand.u32 %v7076, 4294901760
  %7078 = vmatpush1.msra.mxu0 %v7077
  %7079 = vmatprep.subr.mxu0 0.0
  %v7080 = vand.u32 %v75, 4294901760
  %v7081 = vsub.f32 %v75, %v7080
  %v7082 = vand.u32 %v7081, 4294901760
  %7083 = vmatpush1.msra.mxu0 %v7082
  %7084 = vmatprep.subr.mxu0 0.0
  %v7085 = vand.u32 %v74, 4294901760
  %v7086 = vsub.f32 %v74, %v7085
  %v7087 = vand.u32 %v7086, 4294901760
  %7088 = vmatpush1.msra.mxu0 %v7087
  %7089 = vmatprep.subr.mxu0 0.0
  %v7090 = vand.u32 %v73, 4294901760
  %v7091 = vsub.f32 %v73, %v7090
  %v7092 = vand.u32 %v7091, 4294901760
  %7093 = vmatpush1.msra.mxu0 %v7092
  %7094 = vmatprep.subr.mxu0 0.0
  %v7095 = vand.u32 %v72, 4294901760
  %v7096 = vsub.f32 %v72, %v7095
  %v7097 = vand.u32 %v7096, 4294901760
  %7098 = vmatpush1.msra.mxu0 %v7097
  %7099 = vmatprep.subr.mxu0 0.0
  %v7100 = vand.u32 %v71, 4294901760
  %v7101 = vsub.f32 %v71, %v7100
  %v7102 = vand.u32 %v7101, 4294901760
  %7103 = vmatpush1.msra.mxu0 %v7102
  %7104 = vmatprep.subr.mxu0 0.0
  %v7105 = vand.u32 %v70, 4294901760
  %v7106 = vsub.f32 %v70, %v7105
  %v7107 = vand.u32 %v7106, 4294901760
  %7108 = vmatpush1.msra.mxu0 %v7107
  %7109 = vmatprep.subr.mxu0 0.0
  %v7110 = vand.u32 %v69, 4294901760
  %v7111 = vsub.f32 %v69, %v7110
  %v7112 = vand.u32 %v7111, 4294901760
  %7113 = vmatpush1.msra.mxu0 %v7112
  %7114 = vmatprep.subr.mxu0 0.0
  %v7115 = vand.u32 %v68, 4294901760
  %v7116 = vsub.f32 %v68, %v7115
  %v7117 = vand.u32 %v7116, 4294901760
  %7118 = vmatpush1.msra.mxu0 %v7117
  %7119 = vmatprep.subr.mxu0 0.0
  %v7120 = vand.u32 %v67, 4294901760
  %v7121 = vsub.f32 %v67, %v7120
  %v7122 = vand.u32 %v7121, 4294901760
  %7123 = vmatpush1.msra.mxu0 %v7122
  %7124 = vmatprep.subr.mxu0 0.0
  %v7125 = vand.u32 %v66, 4294901760
  %v7126 = vsub.f32 %v66, %v7125
  %v7127 = vand.u32 %v7126, 4294901760
  %7128 = vmatpush1.msra.mxu0 %v7127
  %7129 = vmatprep.subr.mxu0 0.0
  %v7130 = vand.u32 %v65, 4294901760
  %v7131 = vsub.f32 %v65, %v7130
  %v7132 = vand.u32 %v7131, 4294901760
  %7133 = vmatpush1.msra.mxu0 %v7132
  %7134 = vmatprep.subr.mxu0 0.0
  %v7135 = vand.u32 %v64, 4294901760
  %v7136 = vsub.f32 %v64, %v7135
  %v7137 = vand.u32 %v7136, 4294901760
  %7138 = vmatpush1.msra.mxu0 %v7137
  %7139 = vmatprep.subr.mxu0 0.0
  %v7140 = vand.u32 %v63, 4294901760
  %v7141 = vsub.f32 %v63, %v7140
  %v7142 = vand.u32 %v7141, 4294901760
  %7143 = vmatpush1.msra.mxu0 %v7142
  %7144 = vmatprep.subr.mxu0 0.0
  %7145 = vmatpush2.msra.mxu0 0.0
  %7146 = vmatprep.subr.mxu0 0.0
  %7147 = vmatpush2.msra.mxu0 0.0
  %7148 = vmatprep.subr.mxu0 0.0
  %7149 = vmatpush2.msra.mxu0 0.0
  %7150 = vmatprep.subr.mxu0 0.0
  %7151 = vmatpush2.msra.mxu0 0.0
  %7152 = vmatprep.subr.mxu0 0.0
  %7153 = vmatpush2.msra.mxu0 0.0
  %7154 = vmatprep.subr.mxu0 0.0
  %7155 = vmatpush2.msra.mxu0 0.0
  %7156 = vmatprep.subr.mxu0 0.0
  %7157 = vmatpush2.msra.mxu0 0.0
  %7158 = vmatprep.subr.mxu0 0.0
  %7159 = vmatpush2.msra.mxu0 0.0
  %7160 = vmatprep.subr.mxu0 0.0
  %7161 = vmatpush2.msra.mxu0 0.0
  %7162 = vmatprep.subr.mxu0 0.0
  %7163 = vmatpush2.msra.mxu0 0.0
  %7164 = vmatprep.subr.mxu0 0.0
  %7165 = vmatpush2.msra.mxu0 0.0
  %7166 = vmatprep.subr.mxu0 0.0
  %7167 = vmatpush2.msra.mxu0 0.0
  %7168 = vmatprep.subr.mxu0 0.0
  %7169 = vmatpush2.msra.mxu0 0.0
  %7170 = vmatprep.subr.mxu0 0.0
  %7171 = vmatpush2.msra.mxu0 0.0
  %7172 = vmatprep.subr.mxu0 0.0
  %7173 = vmatpush2.msra.mxu0 0.0
  %7174 = vmatprep.subr.mxu0 0.0
  %7175 = vmatpush2.msra.mxu0 0.0
  %7176 = vmatprep.mubr.f32.mxu0 0.0
  %v7177 = vand.u32 %v5525, 4294901760
  %7178 = vmatmul.mubr.f32.gmra.mxu0 %v7177
  %v7179 = vpop.f32.mrf.mxu0
  %v7180 = vadd.f32 %v7013, %v7179
  %v7181 = vpop.f32.mrf.mxu0
  %7182 = vmatprep.mubr.f32.mxu0 0.0
  %v7183 = vand.u32 %v5526, 4294901760
  %7184 = vmatmul.mubr.f32.gmra.mxu0 %v7183
  %v7185 = vpop.f32.mrf.mxu0
  %v7186 = vadd.f32 %v7021, %v7185
  %v7187 = vpop.f32.mrf.mxu0
  %7188 = vmatprep.mubr.f32.mxu0 0.0
  %v7189 = vand.u32 %v5527, 4294901760
  %7190 = vmatmul.mubr.f32.gmra.mxu0 %v7189
  %v7191 = vpop.f32.mrf.mxu0
  %v7192 = vadd.f32 %v7029, %v7191
  %v7193 = vpop.f32.mrf.mxu0
  %7194 = vmatprep.mubr.f32.mxu0 0.0
  %v7195 = vand.u32 %v5528, 4294901760
  %7196 = vmatmul.mubr.f32.gmra.mxu0 %v7195
  %v7197 = vpop.f32.mrf.mxu0
  %v7198 = vadd.f32 %v7037, %v7197
  %v7199 = vpop.f32.mrf.mxu0
  %7200 = vmatprep.mubr.f32.mxu0 0.0
  %v7201 = vand.u32 %v5529, 4294901760
  %7202 = vmatmul.mubr.f32.gmra.mxu0 %v7201
  %v7203 = vpop.f32.mrf.mxu0
  %v7204 = vadd.f32 %v7045, %v7203
  %v7205 = vpop.f32.mrf.mxu0
  %7206 = vmatprep.mubr.f32.mxu0 0.0
  %v7207 = vand.u32 %v5530, 4294901760
  %7208 = vmatmul.mubr.f32.gmra.mxu0 %v7207
  %v7209 = vpop.f32.mrf.mxu0
  %v7210 = vadd.f32 %v7053, %v7209
  %v7211 = vpop.f32.mrf.mxu0
  %7212 = vmatprep.mubr.f32.mxu0 0.0
  %v7213 = vand.u32 %v5531, 4294901760
  %7214 = vmatmul.mubr.f32.gmra.mxu0 %v7213
  %v7215 = vpop.f32.mrf.mxu0
  %v7216 = vadd.f32 %v7061, %v7215
  %v7217 = vpop.f32.mrf.mxu0
  %7218 = vdwg.mxu0
  %7219 = vmatprep.subr.mxu0 0.0
  %v7220 = vand.u32 %v78, 4294901760
  %7221 = vmatpush1.msra.mxu0 %v7220
  %7222 = vmatprep.subr.mxu0 0.0
  %v7223 = vand.u32 %v77, 4294901760
  %7224 = vmatpush1.msra.mxu0 %v7223
  %7225 = vmatprep.subr.mxu0 0.0
  %v7226 = vand.u32 %v76, 4294901760
  %7227 = vmatpush1.msra.mxu0 %v7226
  %7228 = vmatprep.subr.mxu0 0.0
  %v7229 = vand.u32 %v75, 4294901760
  %7230 = vmatpush1.msra.mxu0 %v7229
  %7231 = vmatprep.subr.mxu0 0.0
  %v7232 = vand.u32 %v74, 4294901760
  %7233 = vmatpush1.msra.mxu0 %v7232
  %7234 = vmatprep.subr.mxu0 0.0
  %v7235 = vand.u32 %v73, 4294901760
  %7236 = vmatpush1.msra.mxu0 %v7235
  %7237 = vmatprep.subr.mxu0 0.0
  %v7238 = vand.u32 %v72, 4294901760
  %7239 = vmatpush1.msra.mxu0 %v7238
  %7240 = vmatprep.subr.mxu0 0.0
  %v7241 = vand.u32 %v71, 4294901760
  %7242 = vmatpush1.msra.mxu0 %v7241
  %7243 = vmatprep.subr.mxu0 0.0
  %v7244 = vand.u32 %v70, 4294901760
  %7245 = vmatpush1.msra.mxu0 %v7244
  %7246 = vmatprep.subr.mxu0 0.0
  %v7247 = vand.u32 %v69, 4294901760
  %7248 = vmatpush1.msra.mxu0 %v7247
  %7249 = vmatprep.subr.mxu0 0.0
  %v7250 = vand.u32 %v68, 4294901760
  %7251 = vmatpush1.msra.mxu0 %v7250
  %7252 = vmatprep.subr.mxu0 0.0
  %v7253 = vand.u32 %v67, 4294901760
  %7254 = vmatpush1.msra.mxu0 %v7253
  %7255 = vmatprep.subr.mxu0 0.0
  %v7256 = vand.u32 %v66, 4294901760
  %7257 = vmatpush1.msra.mxu0 %v7256
  %7258 = vmatprep.subr.mxu0 0.0
  %v7259 = vand.u32 %v65, 4294901760
  %7260 = vmatpush1.msra.mxu0 %v7259
  %7261 = vmatprep.subr.mxu0 0.0
  %v7262 = vand.u32 %v64, 4294901760
  %7263 = vmatpush1.msra.mxu0 %v7262
  %7264 = vmatprep.subr.mxu0 0.0
  %v7265 = vand.u32 %v63, 4294901760
  %7266 = vmatpush1.msra.mxu0 %v7265
  %7267 = vmatprep.subr.mxu0 0.0
  %7268 = vmatpush2.msra.mxu0 0.0
  %7269 = vmatprep.subr.mxu0 0.0
  %7270 = vmatpush2.msra.mxu0 0.0
  %7271 = vmatprep.subr.mxu0 0.0
  %7272 = vmatpush2.msra.mxu0 0.0
  %7273 = vmatprep.subr.mxu0 0.0
  %7274 = vmatpush2.msra.mxu0 0.0
  %7275 = vmatprep.subr.mxu0 0.0
  %7276 = vmatpush2.msra.mxu0 0.0
  %7277 = vmatprep.subr.mxu0 0.0
  %7278 = vmatpush2.msra.mxu0 0.0
  %7279 = vmatprep.subr.mxu0 0.0
  %7280 = vmatpush2.msra.mxu0 0.0
  %7281 = vmatprep.subr.mxu0 0.0
  %7282 = vmatpush2.msra.mxu0 0.0
  %7283 = vmatprep.subr.mxu0 0.0
  %7284 = vmatpush2.msra.mxu0 0.0
  %7285 = vmatprep.subr.mxu0 0.0
  %7286 = vmatpush2.msra.mxu0 0.0
  %7287 = vmatprep.subr.mxu0 0.0
  %7288 = vmatpush2.msra.mxu0 0.0
  %7289 = vmatprep.subr.mxu0 0.0
  %7290 = vmatpush2.msra.mxu0 0.0
  %7291 = vmatprep.subr.mxu0 0.0
  %7292 = vmatpush2.msra.mxu0 0.0
  %7293 = vmatprep.subr.mxu0 0.0
  %7294 = vmatpush2.msra.mxu0 0.0
  %7295 = vmatprep.subr.mxu0 0.0
  %7296 = vmatpush2.msra.mxu0 0.0
  %7297 = vmatprep.subr.mxu0 0.0
  %7298 = vmatpush2.msra.mxu0 0.0
  %7299 = vmatprep.mubr.f32.mxu0 0.0
  %v7300 = vand.u32 %v5525, 4294901760
  %7301 = vmatmul.mubr.f32.gmra.mxu0 %v7300
  %v7302 = vpop.f32.mrf.mxu0
  %v7303 = vadd.f32 %v7180, %v7302
  %v7304 = vpop.f32.mrf.mxu0
  %7305 = vmatprep.mubr.f32.mxu0 0.0
  %v7306 = vand.u32 %v5526, 4294901760
  %7307 = vmatmul.mubr.f32.gmra.mxu0 %v7306
  %v7308 = vpop.f32.mrf.mxu0
  %v7309 = vadd.f32 %v7186, %v7308
  %v7310 = vpop.f32.mrf.mxu0
  %7311 = vmatprep.mubr.f32.mxu0 0.0
  %v7312 = vand.u32 %v5527, 4294901760
  %7313 = vmatmul.mubr.f32.gmra.mxu0 %v7312
  %v7314 = vpop.f32.mrf.mxu0
  %v7315 = vadd.f32 %v7192, %v7314
  %v7316 = vpop.f32.mrf.mxu0
  %7317 = vmatprep.mubr.f32.mxu0 0.0
  %v7318 = vand.u32 %v5528, 4294901760
  %7319 = vmatmul.mubr.f32.gmra.mxu0 %v7318
  %v7320 = vpop.f32.mrf.mxu0
  %v7321 = vadd.f32 %v7198, %v7320
  %v7322 = vpop.f32.mrf.mxu0
  %7323 = vmatprep.mubr.f32.mxu0 0.0
  %v7324 = vand.u32 %v5529, 4294901760
  %7325 = vmatmul.mubr.f32.gmra.mxu0 %v7324
  %v7326 = vpop.f32.mrf.mxu0
  %v7327 = vadd.f32 %v7204, %v7326
  %v7328 = vpop.f32.mrf.mxu0
  %7329 = vmatprep.mubr.f32.mxu0 0.0
  %v7330 = vand.u32 %v5530, 4294901760
  %7331 = vmatmul.mubr.f32.gmra.mxu0 %v7330
  %v7332 = vpop.f32.mrf.mxu0
  %v7333 = vadd.f32 %v7210, %v7332
  %v7334 = vpop.f32.mrf.mxu0
  %7335 = vmatprep.mubr.f32.mxu0 0.0
  %v7336 = vand.u32 %v5531, 4294901760
  %7337 = vmatmul.mubr.f32.gmra.mxu0 %v7336
  %v7338 = vpop.f32.mrf.mxu0
  %v7339 = vadd.f32 %v7216, %v7338
  %v7340 = vpop.f32.mrf.mxu0
  %7341 = vdwg.mxu0
  %7342 = vmax.xlane.f32.xlu0 %v7303
  %v7343 = vpop.xlane.xlu0 %7342
  %7344 = vmax.xlane.f32.xlu0 %v7309
  %v7345 = vpop.xlane.xlu0 %7344
  %7346 = vmax.xlane.f32.xlu0 %v7315
  %v7347 = vpop.xlane.xlu0 %7346
  %7348 = vmax.xlane.f32.xlu0 %v7321
  %v7349 = vpop.xlane.xlu0 %7348
  %7350 = vmax.xlane.f32.xlu0 %v7327
  %v7351 = vpop.xlane.xlu0 %7350
  %7352 = vmax.xlane.f32.xlu0 %v7333
  %v7353 = vpop.xlane.xlu0 %7352
  %7354 = vmax.xlane.f32.xlu0 %v7339
  %v7355 = vpop.xlane.xlu0 %7354
  %v7356 = vsub.f32 %v7303, %v7343
  %v7357 = vsub.f32 %v7309, %v7345
  %v7358 = vsub.f32 %v7315, %v7347
  %v7359 = vsub.f32 %v7321, %v7349
  %v7360 = vsub.f32 %v7327, %v7351
  %v7361 = vsub.f32 %v7333, %v7353
  %v7362 = vsub.f32 %v7339, %v7355
  %v7363 = vmul.f32 %v7356, 1.442695
  %v7364 = vpow.pop %v7363
  %v7365 = vmul.f32 %v7357, 1.442695
  %v7366 = vpow.pop %v7365
  %v7367 = vmul.f32 %v7358, 1.442695
  %v7368 = vpow.pop %v7367
  %v7369 = vmul.f32 %v7359, 1.442695
  %v7370 = vpow.pop %v7369
  %v7371 = vmul.f32 %v7360, 1.442695
  %v7372 = vpow.pop %v7371
  %v7373 = vmul.f32 %v7361, 1.442695
  %v7374 = vpow.pop %v7373
  %v7375 = vmul.f32 %v7362, 1.442695
  %v7376 = vpow.pop %v7375
  %7377 = vadd.xlane.f32.xlu0 %v7364
  %v7378 = vpop.xlane.xlu0 %7377
  %7379 = vadd.xlane.f32.xlu0 %v7366
  %v7380 = vpop.xlane.xlu0 %7379
  %7381 = vadd.xlane.f32.xlu0 %v7368
  %v7382 = vpop.xlane.xlu0 %7381
  %7383 = vadd.xlane.f32.xlu0 %v7370
  %v7384 = vpop.xlane.xlu0 %7383
  %7385 = vadd.xlane.f32.xlu0 %v7372
  %v7386 = vpop.xlane.xlu0 %7385
  %7387 = vadd.xlane.f32.xlu0 %v7374
  %v7388 = vpop.xlane.xlu0 %7387
  %7389 = vadd.xlane.f32.xlu0 %v7376
  %v7390 = vpop.xlane.xlu0 %7389
  %v7391 = vrcp.pop %v7378
  %v7392 = vrcp.pop %v7380
  %v7393 = vrcp.pop %v7382
  %v7394 = vrcp.pop %v7384
  %v7395 = vrcp.pop %v7386
  %v7396 = vrcp.pop %v7388
  %v7397 = vrcp.pop %v7390
  %v7398 = vmul.f32 %v7364, %v7391
  %v7399 = vmul.f32 %v7366, %v7392
  %v7400 = vmul.f32 %v7368, %v7393
  %v7401 = vmul.f32 %v7370, %v7394
  %v7402 = vmul.f32 %v7372, %v7395
  %v7403 = vmul.f32 %v7374, %v7396
  %v7404 = vmul.f32 %v7376, %v7397
  %v7406 = vlaneseq
  %v7407 = vshrl.u32 %v7406, 7
  %v7408 = vsub.s32 0, %v7407
  %v7409 = vrot.slane %v79, %v7408
  %7411 = vmatprep.subr.mxu0 0.0
  %v7412 = vand.u32 %v46, 4294901760
  %7413 = vmatpush1.msra.mxu0 %v7412
  %7414 = vmatprep.subr.mxu0 0.0
  %v7415 = vand.u32 %v45, 4294901760
  %7416 = vmatpush1.msra.mxu0 %v7415
  %7417 = vmatprep.subr.mxu0 0.0
  %v7418 = vand.u32 %v44, 4294901760
  %7419 = vmatpush1.msra.mxu0 %v7418
  %7420 = vmatprep.subr.mxu0 0.0
  %v7421 = vand.u32 %v43, 4294901760
  %7422 = vmatpush1.msra.mxu0 %v7421
  %7423 = vmatprep.subr.mxu0 0.0
  %v7424 = vand.u32 %v42, 4294901760
  %7425 = vmatpush1.msra.mxu0 %v7424
  %7426 = vmatprep.subr.mxu0 0.0
  %v7427 = vand.u32 %v41, 4294901760
  %7428 = vmatpush1.msra.mxu0 %v7427
  %7429 = vmatprep.subr.mxu0 0.0
  %v7430 = vand.u32 %v40, 4294901760
  %7431 = vmatpush1.msra.mxu0 %v7430
  %7432 = vmatprep.subr.mxu0 0.0
  %v7433 = vand.u32 %v39, 4294901760
  %7434 = vmatpush1.msra.mxu0 %v7433
  %7435 = vmatprep.subr.mxu0 0.0
  %v7436 = vand.u32 %v38, 4294901760
  %7437 = vmatpush1.msra.mxu0 %v7436
  %7438 = vmatprep.subr.mxu0 0.0
  %v7439 = vand.u32 %v37, 4294901760
  %7440 = vmatpush1.msra.mxu0 %v7439
  %7441 = vmatprep.subr.mxu0 0.0
  %v7442 = vand.u32 %v36, 4294901760
  %7443 = vmatpush1.msra.mxu0 %v7442
  %7444 = vmatprep.subr.mxu0 0.0
  %v7445 = vand.u32 %v35, 4294901760
  %7446 = vmatpush1.msra.mxu0 %v7445
  %7447 = vmatprep.subr.mxu0 0.0
  %v7448 = vand.u32 %v34, 4294901760
  %7449 = vmatpush1.msra.mxu0 %v7448
  %7450 = vmatprep.subr.mxu0 0.0
  %v7451 = vand.u32 %v33, 4294901760
  %7452 = vmatpush1.msra.mxu0 %v7451
  %7453 = vmatprep.subr.mxu0 0.0
  %v7454 = vand.u32 %v32, 4294901760
  %7455 = vmatpush1.msra.mxu0 %v7454
  %7456 = vmatprep.subr.mxu0 0.0
  %v7457 = vand.u32 %v31, 4294901760
  %7458 = vmatpush1.msra.mxu0 %v7457
  %7459 = vmatprep.subr.mxu0 0.0
  %7460 = vmatpush2.msra.mxu0 0.0
  %7461 = vmatprep.subr.mxu0 0.0
  %7462 = vmatpush2.msra.mxu0 0.0
  %7463 = vmatprep.subr.mxu0 0.0
  %7464 = vmatpush2.msra.mxu0 0.0
  %7465 = vmatprep.subr.mxu0 0.0
  %7466 = vmatpush2.msra.mxu0 0.0
  %7467 = vmatprep.subr.mxu0 0.0
  %7468 = vmatpush2.msra.mxu0 0.0
  %7469 = vmatprep.subr.mxu0 0.0
  %7470 = vmatpush2.msra.mxu0 0.0
  %7471 = vmatprep.subr.mxu0 0.0
  %7472 = vmatpush2.msra.mxu0 0.0
  %7473 = vmatprep.subr.mxu0 0.0
  %7474 = vmatpush2.msra.mxu0 0.0
  %7475 = vmatprep.subr.mxu0 0.0
  %7476 = vmatpush2.msra.mxu0 0.0
  %7477 = vmatprep.subr.mxu0 0.0
  %7478 = vmatpush2.msra.mxu0 0.0
  %7479 = vmatprep.subr.mxu0 0.0
  %7480 = vmatpush2.msra.mxu0 0.0
  %7481 = vmatprep.subr.mxu0 0.0
  %7482 = vmatpush2.msra.mxu0 0.0
  %7483 = vmatprep.subr.mxu0 0.0
  %7484 = vmatpush2.msra.mxu0 0.0
  %7485 = vmatprep.subr.mxu0 0.0
  %7486 = vmatpush2.msra.mxu0 0.0
  %7487 = vmatprep.subr.mxu0 0.0
  %7488 = vmatpush2.msra.mxu0 0.0
  %7489 = vmatprep.subr.mxu0 0.0
  %7490 = vmatpush2.msra.mxu0 0.0
  %7491 = vmatprep.mubr.f32.mxu0 0.0
  %v7492 = vand.u32 %v7398, 4294901760
  %v7493 = vsub.f32 %v7398, %v7492
  %v7494 = vand.u32 %v7493, 4294901760
  %v7495 = vsub.f32 %v7493, %v7494
  %v7496 = vand.u32 %v7495, 4294901760
  %7497 = vmatmul.mubr.f32.gmra.mxu0 %v7496
  %v7498 = vpop.f32.mrf.mxu0
  %v7499 = vadd.f32 %v7409, %v7498
  %v7500 = vpop.f32.mrf.mxu0
  %7501 = vmatprep.mubr.f32.mxu0 0.0
  %v7502 = vand.u32 %v7399, 4294901760
  %v7503 = vsub.f32 %v7399, %v7502
  %v7504 = vand.u32 %v7503, 4294901760
  %v7505 = vsub.f32 %v7503, %v7504
  %v7506 = vand.u32 %v7505, 4294901760
  %7507 = vmatmul.mubr.f32.gmra.mxu0 %v7506
  %v7508 = vpop.f32.mrf.mxu0
  %v7509 = vadd.f32 %v7409, %v7508
  %v7510 = vpop.f32.mrf.mxu0
  %7511 = vmatprep.mubr.f32.mxu0 0.0
  %v7512 = vand.u32 %v7400, 4294901760
  %v7513 = vsub.f32 %v7400, %v7512
  %v7514 = vand.u32 %v7513, 4294901760
  %v7515 = vsub.f32 %v7513, %v7514
  %v7516 = vand.u32 %v7515, 4294901760
  %7517 = vmatmul.mubr.f32.gmra.mxu0 %v7516
  %v7518 = vpop.f32.mrf.mxu0
  %v7519 = vadd.f32 %v7409, %v7518
  %v7520 = vpop.f32.mrf.mxu0
  %7521 = vmatprep.mubr.f32.mxu0 0.0
  %v7522 = vand.u32 %v7401, 4294901760
  %v7523 = vsub.f32 %v7401, %v7522
  %v7524 = vand.u32 %v7523, 4294901760
  %v7525 = vsub.f32 %v7523, %v7524
  %v7526 = vand.u32 %v7525, 4294901760
  %7527 = vmatmul.mubr.f32.gmra.mxu0 %v7526
  %v7528 = vpop.f32.mrf.mxu0
  %v7529 = vadd.f32 %v7409, %v7528
  %v7530 = vpop.f32.mrf.mxu0
  %7531 = vmatprep.mubr.f32.mxu0 0.0
  %v7532 = vand.u32 %v7402, 4294901760
  %v7533 = vsub.f32 %v7402, %v7532
  %v7534 = vand.u32 %v7533, 4294901760
  %v7535 = vsub.f32 %v7533, %v7534
  %v7536 = vand.u32 %v7535, 4294901760
  %7537 = vmatmul.mubr.f32.gmra.mxu0 %v7536
  %v7538 = vpop.f32.mrf.mxu0
  %v7539 = vadd.f32 %v7409, %v7538
  %v7540 = vpop.f32.mrf.mxu0
  %7541 = vmatprep.mubr.f32.mxu0 0.0
  %v7542 = vand.u32 %v7403, 4294901760
  %v7543 = vsub.f32 %v7403, %v7542
  %v7544 = vand.u32 %v7543, 4294901760
  %v7545 = vsub.f32 %v7543, %v7544
  %v7546 = vand.u32 %v7545, 4294901760
  %7547 = vmatmul.mubr.f32.gmra.mxu0 %v7546
  %v7548 = vpop.f32.mrf.mxu0
  %v7549 = vadd.f32 %v7409, %v7548
  %v7550 = vpop.f32.mrf.mxu0
  %7551 = vmatprep.mubr.f32.mxu0 0.0
  %v7552 = vand.u32 %v7404, 4294901760
  %v7553 = vsub.f32 %v7404, %v7552
  %v7554 = vand.u32 %v7553, 4294901760
  %v7555 = vsub.f32 %v7553, %v7554
  %v7556 = vand.u32 %v7555, 4294901760
  %7557 = vmatmul.mubr.f32.gmra.mxu0 %v7556
  %v7558 = vpop.f32.mrf.mxu0
  %v7559 = vadd.f32 %v7409, %v7558
  %v7560 = vpop.f32.mrf.mxu0
  %7561 = vdwg.mxu0
  %7562 = vmatprep.subr.mxu0 0.0
  %v7563 = vand.u32 %v46, 4294901760
  %v7564 = vsub.f32 %v46, %v7563
  %v7565 = vand.u32 %v7564, 4294901760
  %v7566 = vsub.f32 %v7564, %v7565
  %v7567 = vand.u32 %v7566, 4294901760
  %7568 = vmatpush1.msra.mxu0 %v7567
  %7569 = vmatprep.subr.mxu0 0.0
  %v7570 = vand.u32 %v45, 4294901760
  %v7571 = vsub.f32 %v45, %v7570
  %v7572 = vand.u32 %v7571, 4294901760
  %v7573 = vsub.f32 %v7571, %v7572
  %v7574 = vand.u32 %v7573, 4294901760
  %7575 = vmatpush1.msra.mxu0 %v7574
  %7576 = vmatprep.subr.mxu0 0.0
  %v7577 = vand.u32 %v44, 4294901760
  %v7578 = vsub.f32 %v44, %v7577
  %v7579 = vand.u32 %v7578, 4294901760
  %v7580 = vsub.f32 %v7578, %v7579
  %v7581 = vand.u32 %v7580, 4294901760
  %7582 = vmatpush1.msra.mxu0 %v7581
  %7583 = vmatprep.subr.mxu0 0.0
  %v7584 = vand.u32 %v43, 4294901760
  %v7585 = vsub.f32 %v43, %v7584
  %v7586 = vand.u32 %v7585, 4294901760
  %v7587 = vsub.f32 %v7585, %v7586
  %v7588 = vand.u32 %v7587, 4294901760
  %7589 = vmatpush1.msra.mxu0 %v7588
  %7590 = vmatprep.subr.mxu0 0.0
  %v7591 = vand.u32 %v42, 4294901760
  %v7592 = vsub.f32 %v42, %v7591
  %v7593 = vand.u32 %v7592, 4294901760
  %v7594 = vsub.f32 %v7592, %v7593
  %v7595 = vand.u32 %v7594, 4294901760
  %7596 = vmatpush1.msra.mxu0 %v7595
  %7597 = vmatprep.subr.mxu0 0.0
  %v7598 = vand.u32 %v41, 4294901760
  %v7599 = vsub.f32 %v41, %v7598
  %v7600 = vand.u32 %v7599, 4294901760
  %v7601 = vsub.f32 %v7599, %v7600
  %v7602 = vand.u32 %v7601, 4294901760
  %7603 = vmatpush1.msra.mxu0 %v7602
  %7604 = vmatprep.subr.mxu0 0.0
  %v7605 = vand.u32 %v40, 4294901760
  %v7606 = vsub.f32 %v40, %v7605
  %v7607 = vand.u32 %v7606, 4294901760
  %v7608 = vsub.f32 %v7606, %v7607
  %v7609 = vand.u32 %v7608, 4294901760
  %7610 = vmatpush1.msra.mxu0 %v7609
  %7611 = vmatprep.subr.mxu0 0.0
  %v7612 = vand.u32 %v39, 4294901760
  %v7613 = vsub.f32 %v39, %v7612
  %v7614 = vand.u32 %v7613, 4294901760
  %v7615 = vsub.f32 %v7613, %v7614
  %v7616 = vand.u32 %v7615, 4294901760
  %7617 = vmatpush1.msra.mxu0 %v7616
  %7618 = vmatprep.subr.mxu0 0.0
  %v7619 = vand.u32 %v38, 4294901760
  %v7620 = vsub.f32 %v38, %v7619
  %v7621 = vand.u32 %v7620, 4294901760
  %v7622 = vsub.f32 %v7620, %v7621
  %v7623 = vand.u32 %v7622, 4294901760
  %7624 = vmatpush1.msra.mxu0 %v7623
  %7625 = vmatprep.subr.mxu0 0.0
  %v7626 = vand.u32 %v37, 4294901760
  %v7627 = vsub.f32 %v37, %v7626
  %v7628 = vand.u32 %v7627, 4294901760
  %v7629 = vsub.f32 %v7627, %v7628
  %v7630 = vand.u32 %v7629, 4294901760
  %7631 = vmatpush1.msra.mxu0 %v7630
  %7632 = vmatprep.subr.mxu0 0.0
  %v7633 = vand.u32 %v36, 4294901760
  %v7634 = vsub.f32 %v36, %v7633
  %v7635 = vand.u32 %v7634, 4294901760
  %v7636 = vsub.f32 %v7634, %v7635
  %v7637 = vand.u32 %v7636, 4294901760
  %7638 = vmatpush1.msra.mxu0 %v7637
  %7639 = vmatprep.subr.mxu0 0.0
  %v7640 = vand.u32 %v35, 4294901760
  %v7641 = vsub.f32 %v35, %v7640
  %v7642 = vand.u32 %v7641, 4294901760
  %v7643 = vsub.f32 %v7641, %v7642
  %v7644 = vand.u32 %v7643, 4294901760
  %7645 = vmatpush1.msra.mxu0 %v7644
  %7646 = vmatprep.subr.mxu0 0.0
  %v7647 = vand.u32 %v34, 4294901760
  %v7648 = vsub.f32 %v34, %v7647
  %v7649 = vand.u32 %v7648, 4294901760
  %v7650 = vsub.f32 %v7648, %v7649
  %v7651 = vand.u32 %v7650, 4294901760
  %7652 = vmatpush1.msra.mxu0 %v7651
  %7653 = vmatprep.subr.mxu0 0.0
  %v7654 = vand.u32 %v33, 4294901760
  %v7655 = vsub.f32 %v33, %v7654
  %v7656 = vand.u32 %v7655, 4294901760
  %v7657 = vsub.f32 %v7655, %v7656
  %v7658 = vand.u32 %v7657, 4294901760
  %7659 = vmatpush1.msra.mxu0 %v7658
  %7660 = vmatprep.subr.mxu0 0.0
  %v7661 = vand.u32 %v32, 4294901760
  %v7662 = vsub.f32 %v32, %v7661
  %v7663 = vand.u32 %v7662, 4294901760
  %v7664 = vsub.f32 %v7662, %v7663
  %v7665 = vand.u32 %v7664, 4294901760
  %7666 = vmatpush1.msra.mxu0 %v7665
  %7667 = vmatprep.subr.mxu0 0.0
  %v7668 = vand.u32 %v31, 4294901760
  %v7669 = vsub.f32 %v31, %v7668
  %v7670 = vand.u32 %v7669, 4294901760
  %v7671 = vsub.f32 %v7669, %v7670
  %v7672 = vand.u32 %v7671, 4294901760
  %7673 = vmatpush1.msra.mxu0 %v7672
  %7674 = vmatprep.subr.mxu0 0.0
  %7675 = vmatpush2.msra.mxu0 0.0
  %7676 = vmatprep.subr.mxu0 0.0
  %7677 = vmatpush2.msra.mxu0 0.0
  %7678 = vmatprep.subr.mxu0 0.0
  %7679 = vmatpush2.msra.mxu0 0.0
  %7680 = vmatprep.subr.mxu0 0.0
  %7681 = vmatpush2.msra.mxu0 0.0
  %7682 = vmatprep.subr.mxu0 0.0
  %7683 = vmatpush2.msra.mxu0 0.0
  %7684 = vmatprep.subr.mxu0 0.0
  %7685 = vmatpush2.msra.mxu0 0.0
  %7686 = vmatprep.subr.mxu0 0.0
  %7687 = vmatpush2.msra.mxu0 0.0
  %7688 = vmatprep.subr.mxu0 0.0
  %7689 = vmatpush2.msra.mxu0 0.0
  %7690 = vmatprep.subr.mxu0 0.0
  %7691 = vmatpush2.msra.mxu0 0.0
  %7692 = vmatprep.subr.mxu0 0.0
  %7693 = vmatpush2.msra.mxu0 0.0
  %7694 = vmatprep.subr.mxu0 0.0
  %7695 = vmatpush2.msra.mxu0 0.0
  %7696 = vmatprep.subr.mxu0 0.0
  %7697 = vmatpush2.msra.mxu0 0.0
  %7698 = vmatprep.subr.mxu0 0.0
  %7699 = vmatpush2.msra.mxu0 0.0
  %7700 = vmatprep.subr.mxu0 0.0
  %7701 = vmatpush2.msra.mxu0 0.0
  %7702 = vmatprep.subr.mxu0 0.0
  %7703 = vmatpush2.msra.mxu0 0.0
  %7704 = vmatprep.subr.mxu0 0.0
  %7705 = vmatpush2.msra.mxu0 0.0
  %7706 = vmatprep.mubr.f32.mxu0 0.0
  %v7707 = vand.u32 %v7398, 4294901760
  %7708 = vmatmul.mubr.f32.gmra.mxu0 %v7707
  %v7709 = vpop.f32.mrf.mxu0
  %v7710 = vadd.f32 %v7499, %v7709
  %v7711 = vpop.f32.mrf.mxu0
  %7712 = vmatprep.mubr.f32.mxu0 0.0
  %v7713 = vand.u32 %v7399, 4294901760
  %7714 = vmatmul.mubr.f32.gmra.mxu0 %v7713
  %v7715 = vpop.f32.mrf.mxu0
  %v7716 = vadd.f32 %v7509, %v7715
  %v7717 = vpop.f32.mrf.mxu0
  %7718 = vmatprep.mubr.f32.mxu0 0.0
  %v7719 = vand.u32 %v7400, 4294901760
  %7720 = vmatmul.mubr.f32.gmra.mxu0 %v7719
  %v7721 = vpop.f32.mrf.mxu0
  %v7722 = vadd.f32 %v7519, %v7721
  %v7723 = vpop.f32.mrf.mxu0
  %7724 = vmatprep.mubr.f32.mxu0 0.0
  %v7725 = vand.u32 %v7401, 4294901760
  %7726 = vmatmul.mubr.f32.gmra.mxu0 %v7725
  %v7727 = vpop.f32.mrf.mxu0
  %v7728 = vadd.f32 %v7529, %v7727
  %v7729 = vpop.f32.mrf.mxu0
  %7730 = vmatprep.mubr.f32.mxu0 0.0
  %v7731 = vand.u32 %v7402, 4294901760
  %7732 = vmatmul.mubr.f32.gmra.mxu0 %v7731
  %v7733 = vpop.f32.mrf.mxu0
  %v7734 = vadd.f32 %v7539, %v7733
  %v7735 = vpop.f32.mrf.mxu0
  %7736 = vmatprep.mubr.f32.mxu0 0.0
  %v7737 = vand.u32 %v7403, 4294901760
  %7738 = vmatmul.mubr.f32.gmra.mxu0 %v7737
  %v7739 = vpop.f32.mrf.mxu0
  %v7740 = vadd.f32 %v7549, %v7739
  %v7741 = vpop.f32.mrf.mxu0
  %7742 = vmatprep.mubr.f32.mxu0 0.0
  %v7743 = vand.u32 %v7404, 4294901760
  %7744 = vmatmul.mubr.f32.gmra.mxu0 %v7743
  %v7745 = vpop.f32.mrf.mxu0
  %v7746 = vadd.f32 %v7559, %v7745
  %v7747 = vpop.f32.mrf.mxu0
  %7748 = vdwg.mxu0
  %7749 = vmatprep.subr.mxu0 0.0
  %v7750 = vand.u32 %v46, 4294901760
  %v7751 = vsub.f32 %v46, %v7750
  %7752 = vmatpush1.msra.mxu0 %v7751
  %7753 = vmatprep.subr.mxu0 0.0
  %v7754 = vand.u32 %v45, 4294901760
  %v7755 = vsub.f32 %v45, %v7754
  %7756 = vmatpush1.msra.mxu0 %v7755
  %7757 = vmatprep.subr.mxu0 0.0
  %v7758 = vand.u32 %v44, 4294901760
  %v7759 = vsub.f32 %v44, %v7758
  %7760 = vmatpush1.msra.mxu0 %v7759
  %7761 = vmatprep.subr.mxu0 0.0
  %v7762 = vand.u32 %v43, 4294901760
  %v7763 = vsub.f32 %v43, %v7762
  %7764 = vmatpush1.msra.mxu0 %v7763
  %7765 = vmatprep.subr.mxu0 0.0
  %v7766 = vand.u32 %v42, 4294901760
  %v7767 = vsub.f32 %v42, %v7766
  %7768 = vmatpush1.msra.mxu0 %v7767
  %7769 = vmatprep.subr.mxu0 0.0
  %v7770 = vand.u32 %v41, 4294901760
  %v7771 = vsub.f32 %v41, %v7770
  %7772 = vmatpush1.msra.mxu0 %v7771
  %7773 = vmatprep.subr.mxu0 0.0
  %v7774 = vand.u32 %v40, 4294901760
  %v7775 = vsub.f32 %v40, %v7774
  %7776 = vmatpush1.msra.mxu0 %v7775
  %7777 = vmatprep.subr.mxu0 0.0
  %v7778 = vand.u32 %v39, 4294901760
  %v7779 = vsub.f32 %v39, %v7778
  %7780 = vmatpush1.msra.mxu0 %v7779
  %7781 = vmatprep.subr.mxu0 0.0
  %v7782 = vand.u32 %v38, 4294901760
  %v7783 = vsub.f32 %v38, %v7782
  %7784 = vmatpush1.msra.mxu0 %v7783
  %7785 = vmatprep.subr.mxu0 0.0
  %v7786 = vand.u32 %v37, 4294901760
  %v7787 = vsub.f32 %v37, %v7786
  %7788 = vmatpush1.msra.mxu0 %v7787
  %7789 = vmatprep.subr.mxu0 0.0
  %v7790 = vand.u32 %v36, 4294901760
  %v7791 = vsub.f32 %v36, %v7790
  %7792 = vmatpush1.msra.mxu0 %v7791
  %7793 = vmatprep.subr.mxu0 0.0
  %v7794 = vand.u32 %v35, 4294901760
  %v7795 = vsub.f32 %v35, %v7794
  %7796 = vmatpush1.msra.mxu0 %v7795
  %7797 = vmatprep.subr.mxu0 0.0
  %v7798 = vand.u32 %v34, 4294901760
  %v7799 = vsub.f32 %v34, %v7798
  %7800 = vmatpush1.msra.mxu0 %v7799
  %7801 = vmatprep.subr.mxu0 0.0
  %v7802 = vand.u32 %v33, 4294901760
  %v7803 = vsub.f32 %v33, %v7802
  %7804 = vmatpush1.msra.mxu0 %v7803
  %7805 = vmatprep.subr.mxu0 0.0
  %v7806 = vand.u32 %v32, 4294901760
  %v7807 = vsub.f32 %v32, %v7806
  %7808 = vmatpush1.msra.mxu0 %v7807
  %7809 = vmatprep.subr.mxu0 0.0
  %v7810 = vand.u32 %v31, 4294901760
  %v7811 = vsub.f32 %v31, %v7810
  %7812 = vmatpush1.msra.mxu0 %v7811
  %7813 = vmatprep.subr.mxu0 0.0
  %7814 = vmatpush2.msra.mxu0 0.0
  %7815 = vmatprep.subr.mxu0 0.0
  %7816 = vmatpush2.msra.mxu0 0.0
  %7817 = vmatprep.subr.mxu0 0.0
  %7818 = vmatpush2.msra.mxu0 0.0
  %7819 = vmatprep.subr.mxu0 0.0
  %7820 = vmatpush2.msra.mxu0 0.0
  %7821 = vmatprep.subr.mxu0 0.0
  %7822 = vmatpush2.msra.mxu0 0.0
  %7823 = vmatprep.subr.mxu0 0.0
  %7824 = vmatpush2.msra.mxu0 0.0
  %7825 = vmatprep.subr.mxu0 0.0
  %7826 = vmatpush2.msra.mxu0 0.0
  %7827 = vmatprep.subr.mxu0 0.0
  %7828 = vmatpush2.msra.mxu0 0.0
  %7829 = vmatprep.subr.mxu0 0.0
  %7830 = vmatpush2.msra.mxu0 0.0
  %7831 = vmatprep.subr.mxu0 0.0
  %7832 = vmatpush2.msra.mxu0 0.0
  %7833 = vmatprep.subr.mxu0 0.0
  %7834 = vmatpush2.msra.mxu0 0.0
  %7835 = vmatprep.subr.mxu0 0.0
  %7836 = vmatpush2.msra.mxu0 0.0
  %7837 = vmatprep.subr.mxu0 0.0
  %7838 = vmatpush2.msra.mxu0 0.0
  %7839 = vmatprep.subr.mxu0 0.0
  %7840 = vmatpush2.msra.mxu0 0.0
  %7841 = vmatprep.subr.mxu0 0.0
  %7842 = vmatpush2.msra.mxu0 0.0
  %7843 = vmatprep.subr.mxu0 0.0
  %7844 = vmatpush2.msra.mxu0 0.0
  %7845 = vmatprep.mubr.f32.mxu0 0.0
  %v7846 = vand.u32 %v7398, 4294901760
  %v7847 = vsub.f32 %v7398, %v7846
  %7848 = vmatmul.mubr.f32.gmra.mxu0 %v7847
  %v7849 = vpop.f32.mrf.mxu0
  %v7850 = vadd.f32 %v7710, %v7849
  %v7851 = vpop.f32.mrf.mxu0
  %7852 = vmatprep.mubr.f32.mxu0 0.0
  %v7853 = vand.u32 %v7399, 4294901760
  %v7854 = vsub.f32 %v7399, %v7853
  %7855 = vmatmul.mubr.f32.gmra.mxu0 %v7854
  %v7856 = vpop.f32.mrf.mxu0
  %v7857 = vadd.f32 %v7716, %v7856
  %v7858 = vpop.f32.mrf.mxu0
  %7859 = vmatprep.mubr.f32.mxu0 0.0
  %v7860 = vand.u32 %v7400, 4294901760
  %v7861 = vsub.f32 %v7400, %v7860
  %7862 = vmatmul.mubr.f32.gmra.mxu0 %v7861
  %v7863 = vpop.f32.mrf.mxu0
  %v7864 = vadd.f32 %v7722, %v7863
  %v7865 = vpop.f32.mrf.mxu0
  %7866 = vmatprep.mubr.f32.mxu0 0.0
  %v7867 = vand.u32 %v7401, 4294901760
  %v7868 = vsub.f32 %v7401, %v7867
  %7869 = vmatmul.mubr.f32.gmra.mxu0 %v7868
  %v7870 = vpop.f32.mrf.mxu0
  %v7871 = vadd.f32 %v7728, %v7870
  %v7872 = vpop.f32.mrf.mxu0
  %7873 = vmatprep.mubr.f32.mxu0 0.0
  %v7874 = vand.u32 %v7402, 4294901760
  %v7875 = vsub.f32 %v7402, %v7874
  %7876 = vmatmul.mubr.f32.gmra.mxu0 %v7875
  %v7877 = vpop.f32.mrf.mxu0
  %v7878 = vadd.f32 %v7734, %v7877
  %v7879 = vpop.f32.mrf.mxu0
  %7880 = vmatprep.mubr.f32.mxu0 0.0
  %v7881 = vand.u32 %v7403, 4294901760
  %v7882 = vsub.f32 %v7403, %v7881
  %7883 = vmatmul.mubr.f32.gmra.mxu0 %v7882
  %v7884 = vpop.f32.mrf.mxu0
  %v7885 = vadd.f32 %v7740, %v7884
  %v7886 = vpop.f32.mrf.mxu0
  %7887 = vmatprep.mubr.f32.mxu0 0.0
  %v7888 = vand.u32 %v7404, 4294901760
  %v7889 = vsub.f32 %v7404, %v7888
  %7890 = vmatmul.mubr.f32.gmra.mxu0 %v7889
  %v7891 = vpop.f32.mrf.mxu0
  %v7892 = vadd.f32 %v7746, %v7891
  %v7893 = vpop.f32.mrf.mxu0
  %7894 = vdwg.mxu0
  %7895 = vmatprep.subr.mxu0 0.0
  %v7896 = vand.u32 %v46, 4294901760
  %7897 = vmatpush1.msra.mxu0 %v7896
  %7898 = vmatprep.subr.mxu0 0.0
  %v7899 = vand.u32 %v45, 4294901760
  %7900 = vmatpush1.msra.mxu0 %v7899
  %7901 = vmatprep.subr.mxu0 0.0
  %v7902 = vand.u32 %v44, 4294901760
  %7903 = vmatpush1.msra.mxu0 %v7902
  %7904 = vmatprep.subr.mxu0 0.0
  %v7905 = vand.u32 %v43, 4294901760
  %7906 = vmatpush1.msra.mxu0 %v7905
  %7907 = vmatprep.subr.mxu0 0.0
  %v7908 = vand.u32 %v42, 4294901760
  %7909 = vmatpush1.msra.mxu0 %v7908
  %7910 = vmatprep.subr.mxu0 0.0
  %v7911 = vand.u32 %v41, 4294901760
  %7912 = vmatpush1.msra.mxu0 %v7911
  %7913 = vmatprep.subr.mxu0 0.0
  %v7914 = vand.u32 %v40, 4294901760
  %7915 = vmatpush1.msra.mxu0 %v7914
  %7916 = vmatprep.subr.mxu0 0.0
  %v7917 = vand.u32 %v39, 4294901760
  %7918 = vmatpush1.msra.mxu0 %v7917
  %7919 = vmatprep.subr.mxu0 0.0
  %v7920 = vand.u32 %v38, 4294901760
  %7921 = vmatpush1.msra.mxu0 %v7920
  %7922 = vmatprep.subr.mxu0 0.0
  %v7923 = vand.u32 %v37, 4294901760
  %7924 = vmatpush1.msra.mxu0 %v7923
  %7925 = vmatprep.subr.mxu0 0.0
  %v7926 = vand.u32 %v36, 4294901760
  %7927 = vmatpush1.msra.mxu0 %v7926
  %7928 = vmatprep.subr.mxu0 0.0
  %v7929 = vand.u32 %v35, 4294901760
  %7930 = vmatpush1.msra.mxu0 %v7929
  %7931 = vmatprep.subr.mxu0 0.0
  %v7932 = vand.u32 %v34, 4294901760
  %7933 = vmatpush1.msra.mxu0 %v7932
  %7934 = vmatprep.subr.mxu0 0.0
  %v7935 = vand.u32 %v33, 4294901760
  %7936 = vmatpush1.msra.mxu0 %v7935
  %7937 = vmatprep.subr.mxu0 0.0
  %v7938 = vand.u32 %v32, 4294901760
  %7939 = vmatpush1.msra.mxu0 %v7938
  %7940 = vmatprep.subr.mxu0 0.0
  %v7941 = vand.u32 %v31, 4294901760
  %7942 = vmatpush1.msra.mxu0 %v7941
  %7943 = vmatprep.subr.mxu0 0.0
  %7944 = vmatpush2.msra.mxu0 0.0
  %7945 = vmatprep.subr.mxu0 0.0
  %7946 = vmatpush2.msra.mxu0 0.0
  %7947 = vmatprep.subr.mxu0 0.0
  %7948 = vmatpush2.msra.mxu0 0.0
  %7949 = vmatprep.subr.mxu0 0.0
  %7950 = vmatpush2.msra.mxu0 0.0
  %7951 = vmatprep.subr.mxu0 0.0
  %7952 = vmatpush2.msra.mxu0 0.0
  %7953 = vmatprep.subr.mxu0 0.0
  %7954 = vmatpush2.msra.mxu0 0.0
  %7955 = vmatprep.subr.mxu0 0.0
  %7956 = vmatpush2.msra.mxu0 0.0
  %7957 = vmatprep.subr.mxu0 0.0
  %7958 = vmatpush2.msra.mxu0 0.0
  %7959 = vmatprep.subr.mxu0 0.0
  %7960 = vmatpush2.msra.mxu0 0.0
  %7961 = vmatprep.subr.mxu0 0.0
  %7962 = vmatpush2.msra.mxu0 0.0
  %7963 = vmatprep.subr.mxu0 0.0
  %7964 = vmatpush2.msra.mxu0 0.0
  %7965 = vmatprep.subr.mxu0 0.0
  %7966 = vmatpush2.msra.mxu0 0.0
  %7967 = vmatprep.subr.mxu0 0.0
  %7968 = vmatpush2.msra.mxu0 0.0
  %7969 = vmatprep.subr.mxu0 0.0
  %7970 = vmatpush2.msra.mxu0 0.0
  %7971 = vmatprep.subr.mxu0 0.0
  %7972 = vmatpush2.msra.mxu0 0.0
  %7973 = vmatprep.subr.mxu0 0.0
  %7974 = vmatpush2.msra.mxu0 0.0
  %7975 = vmatprep.mubr.f32.mxu0 0.0
  %v7976 = vand.u32 %v7398, 4294901760
  %v7977 = vsub.f32 %v7398, %v7976
  %v7978 = vand.u32 %v7977, 4294901760
  %7979 = vmatmul.mubr.f32.gmra.mxu0 %v7978
  %v7980 = vpop.f32.mrf.mxu0
  %v7981 = vadd.f32 %v7850, %v7980
  %v7982 = vpop.f32.mrf.mxu0
  %7983 = vmatprep.mubr.f32.mxu0 0.0
  %v7984 = vand.u32 %v7399, 4294901760
  %v7985 = vsub.f32 %v7399, %v7984
  %v7986 = vand.u32 %v7985, 4294901760
  %7987 = vmatmul.mubr.f32.gmra.mxu0 %v7986
  %v7988 = vpop.f32.mrf.mxu0
  %v7989 = vadd.f32 %v7857, %v7988
  %v7990 = vpop.f32.mrf.mxu0
  %7991 = vmatprep.mubr.f32.mxu0 0.0
  %v7992 = vand.u32 %v7400, 4294901760
  %v7993 = vsub.f32 %v7400, %v7992
  %v7994 = vand.u32 %v7993, 4294901760
  %7995 = vmatmul.mubr.f32.gmra.mxu0 %v7994
  %v7996 = vpop.f32.mrf.mxu0
  %v7997 = vadd.f32 %v7864, %v7996
  %v7998 = vpop.f32.mrf.mxu0
  %7999 = vmatprep.mubr.f32.mxu0 0.0
  %v8000 = vand.u32 %v7401, 4294901760
  %v8001 = vsub.f32 %v7401, %v8000
  %v8002 = vand.u32 %v8001, 4294901760
  %8003 = vmatmul.mubr.f32.gmra.mxu0 %v8002
  %v8004 = vpop.f32.mrf.mxu0
  %v8005 = vadd.f32 %v7871, %v8004
  %v8006 = vpop.f32.mrf.mxu0
  %8007 = vmatprep.mubr.f32.mxu0 0.0
  %v8008 = vand.u32 %v7402, 4294901760
  %v8009 = vsub.f32 %v7402, %v8008
  %v8010 = vand.u32 %v8009, 4294901760
  %8011 = vmatmul.mubr.f32.gmra.mxu0 %v8010
  %v8012 = vpop.f32.mrf.mxu0
  %v8013 = vadd.f32 %v7878, %v8012
  %v8014 = vpop.f32.mrf.mxu0
  %8015 = vmatprep.mubr.f32.mxu0 0.0
  %v8016 = vand.u32 %v7403, 4294901760
  %v8017 = vsub.f32 %v7403, %v8016
  %v8018 = vand.u32 %v8017, 4294901760
  %8019 = vmatmul.mubr.f32.gmra.mxu0 %v8018
  %v8020 = vpop.f32.mrf.mxu0
  %v8021 = vadd.f32 %v7885, %v8020
  %v8022 = vpop.f32.mrf.mxu0
  %8023 = vmatprep.mubr.f32.mxu0 0.0
  %v8024 = vand.u32 %v7404, 4294901760
  %v8025 = vsub.f32 %v7404, %v8024
  %v8026 = vand.u32 %v8025, 4294901760
  %8027 = vmatmul.mubr.f32.gmra.mxu0 %v8026
  %v8028 = vpop.f32.mrf.mxu0
  %v8029 = vadd.f32 %v7892, %v8028
  %v8030 = vpop.f32.mrf.mxu0
  %8031 = vdwg.mxu0
  %8032 = vmatprep.subr.mxu0 0.0
  %v8033 = vand.u32 %v46, 4294901760
  %v8034 = vsub.f32 %v46, %v8033
  %v8035 = vand.u32 %v8034, 4294901760
  %8036 = vmatpush1.msra.mxu0 %v8035
  %8037 = vmatprep.subr.mxu0 0.0
  %v8038 = vand.u32 %v45, 4294901760
  %v8039 = vsub.f32 %v45, %v8038
  %v8040 = vand.u32 %v8039, 4294901760
  %8041 = vmatpush1.msra.mxu0 %v8040
  %8042 = vmatprep.subr.mxu0 0.0
  %v8043 = vand.u32 %v44, 4294901760
  %v8044 = vsub.f32 %v44, %v8043
  %v8045 = vand.u32 %v8044, 4294901760
  %8046 = vmatpush1.msra.mxu0 %v8045
  %8047 = vmatprep.subr.mxu0 0.0
  %v8048 = vand.u32 %v43, 4294901760
  %v8049 = vsub.f32 %v43, %v8048
  %v8050 = vand.u32 %v8049, 4294901760
  %8051 = vmatpush1.msra.mxu0 %v8050
  %8052 = vmatprep.subr.mxu0 0.0
  %v8053 = vand.u32 %v42, 4294901760
  %v8054 = vsub.f32 %v42, %v8053
  %v8055 = vand.u32 %v8054, 4294901760
  %8056 = vmatpush1.msra.mxu0 %v8055
  %8057 = vmatprep.subr.mxu0 0.0
  %v8058 = vand.u32 %v41, 4294901760
  %v8059 = vsub.f32 %v41, %v8058
  %v8060 = vand.u32 %v8059, 4294901760
  %8061 = vmatpush1.msra.mxu0 %v8060
  %8062 = vmatprep.subr.mxu0 0.0
  %v8063 = vand.u32 %v40, 4294901760
  %v8064 = vsub.f32 %v40, %v8063
  %v8065 = vand.u32 %v8064, 4294901760
  %8066 = vmatpush1.msra.mxu0 %v8065
  %8067 = vmatprep.subr.mxu0 0.0
  %v8068 = vand.u32 %v39, 4294901760
  %v8069 = vsub.f32 %v39, %v8068
  %v8070 = vand.u32 %v8069, 4294901760
  %8071 = vmatpush1.msra.mxu0 %v8070
  %8072 = vmatprep.subr.mxu0 0.0
  %v8073 = vand.u32 %v38, 4294901760
  %v8074 = vsub.f32 %v38, %v8073
  %v8075 = vand.u32 %v8074, 4294901760
  %8076 = vmatpush1.msra.mxu0 %v8075
  %8077 = vmatprep.subr.mxu0 0.0
  %v8078 = vand.u32 %v37, 4294901760
  %v8079 = vsub.f32 %v37, %v8078
  %v8080 = vand.u32 %v8079, 4294901760
  %8081 = vmatpush1.msra.mxu0 %v8080
  %8082 = vmatprep.subr.mxu0 0.0
  %v8083 = vand.u32 %v36, 4294901760
  %v8084 = vsub.f32 %v36, %v8083
  %v8085 = vand.u32 %v8084, 4294901760
  %8086 = vmatpush1.msra.mxu0 %v8085
  %8087 = vmatprep.subr.mxu0 0.0
  %v8088 = vand.u32 %v35, 4294901760
  %v8089 = vsub.f32 %v35, %v8088
  %v8090 = vand.u32 %v8089, 4294901760
  %8091 = vmatpush1.msra.mxu0 %v8090
  %8092 = vmatprep.subr.mxu0 0.0
  %v8093 = vand.u32 %v34, 4294901760
  %v8094 = vsub.f32 %v34, %v8093
  %v8095 = vand.u32 %v8094, 4294901760
  %8096 = vmatpush1.msra.mxu0 %v8095
  %8097 = vmatprep.subr.mxu0 0.0
  %v8098 = vand.u32 %v33, 4294901760
  %v8099 = vsub.f32 %v33, %v8098
  %v8100 = vand.u32 %v8099, 4294901760
  %8101 = vmatpush1.msra.mxu0 %v8100
  %8102 = vmatprep.subr.mxu0 0.0
  %v8103 = vand.u32 %v32, 4294901760
  %v8104 = vsub.f32 %v32, %v8103
  %v8105 = vand.u32 %v8104, 4294901760
  %8106 = vmatpush1.msra.mxu0 %v8105
  %8107 = vmatprep.subr.mxu0 0.0
  %v8108 = vand.u32 %v31, 4294901760
  %v8109 = vsub.f32 %v31, %v8108
  %v8110 = vand.u32 %v8109, 4294901760
  %8111 = vmatpush1.msra.mxu0 %v8110
  %8112 = vmatprep.subr.mxu0 0.0
  %8113 = vmatpush2.msra.mxu0 0.0
  %8114 = vmatprep.subr.mxu0 0.0
  %8115 = vmatpush2.msra.mxu0 0.0
  %8116 = vmatprep.subr.mxu0 0.0
  %8117 = vmatpush2.msra.mxu0 0.0
  %8118 = vmatprep.subr.mxu0 0.0
  %8119 = vmatpush2.msra.mxu0 0.0
  %8120 = vmatprep.subr.mxu0 0.0
  %8121 = vmatpush2.msra.mxu0 0.0
  %8122 = vmatprep.subr.mxu0 0.0
  %8123 = vmatpush2.msra.mxu0 0.0
  %8124 = vmatprep.subr.mxu0 0.0
  %8125 = vmatpush2.msra.mxu0 0.0
  %8126 = vmatprep.subr.mxu0 0.0
  %8127 = vmatpush2.msra.mxu0 0.0
  %8128 = vmatprep.subr.mxu0 0.0
  %8129 = vmatpush2.msra.mxu0 0.0
  %8130 = vmatprep.subr.mxu0 0.0
  %8131 = vmatpush2.msra.mxu0 0.0
  %8132 = vmatprep.subr.mxu0 0.0
  %8133 = vmatpush2.msra.mxu0 0.0
  %8134 = vmatprep.subr.mxu0 0.0
  %8135 = vmatpush2.msra.mxu0 0.0
  %8136 = vmatprep.subr.mxu0 0.0
  %8137 = vmatpush2.msra.mxu0 0.0
  %8138 = vmatprep.subr.mxu0 0.0
  %8139 = vmatpush2.msra.mxu0 0.0
  %8140 = vmatprep.subr.mxu0 0.0
  %8141 = vmatpush2.msra.mxu0 0.0
  %8142 = vmatprep.subr.mxu0 0.0
  %8143 = vmatpush2.msra.mxu0 0.0
  %8144 = vmatprep.mubr.f32.mxu0 0.0
  %v8145 = vand.u32 %v7398, 4294901760
  %8146 = vmatmul.mubr.f32.gmra.mxu0 %v8145
  %v8147 = vpop.f32.mrf.mxu0
  %v8148 = vadd.f32 %v7981, %v8147
  %v8149 = vpop.f32.mrf.mxu0
  %8150 = vmatprep.mubr.f32.mxu0 0.0
  %v8151 = vand.u32 %v7399, 4294901760
  %8152 = vmatmul.mubr.f32.gmra.mxu0 %v8151
  %v8153 = vpop.f32.mrf.mxu0
  %v8154 = vadd.f32 %v7989, %v8153
  %v8155 = vpop.f32.mrf.mxu0
  %8156 = vmatprep.mubr.f32.mxu0 0.0
  %v8157 = vand.u32 %v7400, 4294901760
  %8158 = vmatmul.mubr.f32.gmra.mxu0 %v8157
  %v8159 = vpop.f32.mrf.mxu0
  %v8160 = vadd.f32 %v7997, %v8159
  %v8161 = vpop.f32.mrf.mxu0
  %8162 = vmatprep.mubr.f32.mxu0 0.0
  %v8163 = vand.u32 %v7401, 4294901760
  %8164 = vmatmul.mubr.f32.gmra.mxu0 %v8163
  %v8165 = vpop.f32.mrf.mxu0
  %v8166 = vadd.f32 %v8005, %v8165
  %v8167 = vpop.f32.mrf.mxu0
  %8168 = vmatprep.mubr.f32.mxu0 0.0
  %v8169 = vand.u32 %v7402, 4294901760
  %8170 = vmatmul.mubr.f32.gmra.mxu0 %v8169
  %v8171 = vpop.f32.mrf.mxu0
  %v8172 = vadd.f32 %v8013, %v8171
  %v8173 = vpop.f32.mrf.mxu0
  %8174 = vmatprep.mubr.f32.mxu0 0.0
  %v8175 = vand.u32 %v7403, 4294901760
  %8176 = vmatmul.mubr.f32.gmra.mxu0 %v8175
  %v8177 = vpop.f32.mrf.mxu0
  %v8178 = vadd.f32 %v8021, %v8177
  %v8179 = vpop.f32.mrf.mxu0
  %8180 = vmatprep.mubr.f32.mxu0 0.0
  %v8181 = vand.u32 %v7404, 4294901760
  %8182 = vmatmul.mubr.f32.gmra.mxu0 %v8181
  %v8183 = vpop.f32.mrf.mxu0
  %v8184 = vadd.f32 %v8029, %v8183
  %v8185 = vpop.f32.mrf.mxu0
  %8186 = vdwg.mxu0
  %8187 = vmatprep.subr.mxu0 0.0
  %v8188 = vand.u32 %v46, 4294901760
  %8189 = vmatpush1.msra.mxu0 %v8188
  %8190 = vmatprep.subr.mxu0 0.0
  %v8191 = vand.u32 %v45, 4294901760
  %8192 = vmatpush1.msra.mxu0 %v8191
  %8193 = vmatprep.subr.mxu0 0.0
  %v8194 = vand.u32 %v44, 4294901760
  %8195 = vmatpush1.msra.mxu0 %v8194
  %8196 = vmatprep.subr.mxu0 0.0
  %v8197 = vand.u32 %v43, 4294901760
  %8198 = vmatpush1.msra.mxu0 %v8197
  %8199 = vmatprep.subr.mxu0 0.0
  %v8200 = vand.u32 %v42, 4294901760
  %8201 = vmatpush1.msra.mxu0 %v8200
  %8202 = vmatprep.subr.mxu0 0.0
  %v8203 = vand.u32 %v41, 4294901760
  %8204 = vmatpush1.msra.mxu0 %v8203
  %8205 = vmatprep.subr.mxu0 0.0
  %v8206 = vand.u32 %v40, 4294901760
  %8207 = vmatpush1.msra.mxu0 %v8206
  %8208 = vmatprep.subr.mxu0 0.0
  %v8209 = vand.u32 %v39, 4294901760
  %8210 = vmatpush1.msra.mxu0 %v8209
  %8211 = vmatprep.subr.mxu0 0.0
  %v8212 = vand.u32 %v38, 4294901760
  %8213 = vmatpush1.msra.mxu0 %v8212
  %8214 = vmatprep.subr.mxu0 0.0
  %v8215 = vand.u32 %v37, 4294901760
  %8216 = vmatpush1.msra.mxu0 %v8215
  %8217 = vmatprep.subr.mxu0 0.0
  %v8218 = vand.u32 %v36, 4294901760
  %8219 = vmatpush1.msra.mxu0 %v8218
  %8220 = vmatprep.subr.mxu0 0.0
  %v8221 = vand.u32 %v35, 4294901760
  %8222 = vmatpush1.msra.mxu0 %v8221
  %8223 = vmatprep.subr.mxu0 0.0
  %v8224 = vand.u32 %v34, 4294901760
  %8225 = vmatpush1.msra.mxu0 %v8224
  %8226 = vmatprep.subr.mxu0 0.0
  %v8227 = vand.u32 %v33, 4294901760
  %8228 = vmatpush1.msra.mxu0 %v8227
  %8229 = vmatprep.subr.mxu0 0.0
  %v8230 = vand.u32 %v32, 4294901760
  %8231 = vmatpush1.msra.mxu0 %v8230
  %8232 = vmatprep.subr.mxu0 0.0
  %v8233 = vand.u32 %v31, 4294901760
  %8234 = vmatpush1.msra.mxu0 %v8233
  %8235 = vmatprep.subr.mxu0 0.0
  %8236 = vmatpush2.msra.mxu0 0.0
  %8237 = vmatprep.subr.mxu0 0.0
  %8238 = vmatpush2.msra.mxu0 0.0
  %8239 = vmatprep.subr.mxu0 0.0
  %8240 = vmatpush2.msra.mxu0 0.0
  %8241 = vmatprep.subr.mxu0 0.0
  %8242 = vmatpush2.msra.mxu0 0.0
  %8243 = vmatprep.subr.mxu0 0.0
  %8244 = vmatpush2.msra.mxu0 0.0
  %8245 = vmatprep.subr.mxu0 0.0
  %8246 = vmatpush2.msra.mxu0 0.0
  %8247 = vmatprep.subr.mxu0 0.0
  %8248 = vmatpush2.msra.mxu0 0.0
  %8249 = vmatprep.subr.mxu0 0.0
  %8250 = vmatpush2.msra.mxu0 0.0
  %8251 = vmatprep.subr.mxu0 0.0
  %8252 = vmatpush2.msra.mxu0 0.0
  %8253 = vmatprep.subr.mxu0 0.0
  %8254 = vmatpush2.msra.mxu0 0.0
  %8255 = vmatprep.subr.mxu0 0.0
  %8256 = vmatpush2.msra.mxu0 0.0
  %8257 = vmatprep.subr.mxu0 0.0
  %8258 = vmatpush2.msra.mxu0 0.0
  %8259 = vmatprep.subr.mxu0 0.0
  %8260 = vmatpush2.msra.mxu0 0.0
  %8261 = vmatprep.subr.mxu0 0.0
  %8262 = vmatpush2.msra.mxu0 0.0
  %8263 = vmatprep.subr.mxu0 0.0
  %8264 = vmatpush2.msra.mxu0 0.0
  %8265 = vmatprep.subr.mxu0 0.0
  %8266 = vmatpush2.msra.mxu0 0.0
  %8267 = vmatprep.mubr.f32.mxu0 0.0
  %v8268 = vand.u32 %v7398, 4294901760
  %8269 = vmatmul.mubr.f32.gmra.mxu0 %v8268
  %v8270 = vpop.f32.mrf.mxu0
  %v8271 = vadd.f32 %v8148, %v8270
  %v8272 = vpop.f32.mrf.mxu0
  %8273 = vmatprep.mubr.f32.mxu0 0.0
  %v8274 = vand.u32 %v7399, 4294901760
  %8275 = vmatmul.mubr.f32.gmra.mxu0 %v8274
  %v8276 = vpop.f32.mrf.mxu0
  %v8277 = vadd.f32 %v8154, %v8276
  %v8278 = vpop.f32.mrf.mxu0
  %8279 = vmatprep.mubr.f32.mxu0 0.0
  %v8280 = vand.u32 %v7400, 4294901760
  %8281 = vmatmul.mubr.f32.gmra.mxu0 %v8280
  %v8282 = vpop.f32.mrf.mxu0
  %v8283 = vadd.f32 %v8160, %v8282
  %v8284 = vpop.f32.mrf.mxu0
  %8285 = vmatprep.mubr.f32.mxu0 0.0
  %v8286 = vand.u32 %v7401, 4294901760
  %8287 = vmatmul.mubr.f32.gmra.mxu0 %v8286
  %v8288 = vpop.f32.mrf.mxu0
  %v8289 = vadd.f32 %v8166, %v8288
  %v8290 = vpop.f32.mrf.mxu0
  %8291 = vmatprep.mubr.f32.mxu0 0.0
  %v8292 = vand.u32 %v7402, 4294901760
  %8293 = vmatmul.mubr.f32.gmra.mxu0 %v8292
  %v8294 = vpop.f32.mrf.mxu0
  %v8295 = vadd.f32 %v8172, %v8294
  %v8296 = vpop.f32.mrf.mxu0
  %8297 = vmatprep.mubr.f32.mxu0 0.0
  %v8298 = vand.u32 %v7403, 4294901760
  %8299 = vmatmul.mubr.f32.gmra.mxu0 %v8298
  %v8300 = vpop.f32.mrf.mxu0
  %v8301 = vadd.f32 %v8178, %v8300
  %v8302 = vpop.f32.mrf.mxu0
  %8303 = vmatprep.mubr.f32.mxu0 0.0
  %v8304 = vand.u32 %v7404, 4294901760
  %8305 = vmatmul.mubr.f32.gmra.mxu0 %v8304
  %v8306 = vpop.f32.mrf.mxu0
  %v8307 = vadd.f32 %v8184, %v8306
  %v8308 = vpop.f32.mrf.mxu0
  %8309 = vdwg.mxu0
  %v8310 = vadd.f32 %v8271, %v6398
  %v8311 = vadd.f32 %v8277, %v6404
  %v8312 = vadd.f32 %v8283, %v6410
  %v8313 = vadd.f32 %v8289, %v6416
  %v8314 = vadd.f32 %v8295, %v6422
  %v8315 = vadd.f32 %v8301, %v6428
  %v8316 = vadd.f32 %v8307, %v6434
  %v8317 = vtanh.pop %v8310
  %v8318 = vtanh.pop %v8311
  %v8319 = vtanh.pop %v8312
  %v8320 = vtanh.pop %v8313
  %v8321 = vtanh.pop %v8314
  %v8322 = vtanh.pop %v8315
  %v8323 = vtanh.pop %v8316
  %vm8324 = vcmask 1040384
  %v8325 = vsel %vm8324, %v81, -inf
  %8326 = vmax.xlane.f32.xlu0 %v8325
  %v8327 = vpop.xlane.xlu0 %8326
  %v8328 = vsub.f32 %v81, %v8327
  %v8329 = vmul.f32 %v8328, 1.442695
  %v8330 = vpow.pop %v8329
  %v8331 = vsel %vm8324, %v8330, 0.0
  %8332 = vadd.xlane.f32.xlu0 %v8331
  %v8333 = vpop.xlane.xlu0 %8332
  %v8334 = vrcp.pop %v8333
  %v8335 = vmul.f32 %v8330, %v8334
  %v8337 = vlaneseq
  %v8338 = vshrl.u32 %v8337, 7
  %v8339 = vsub.s32 0, %v8338
  %v8340 = vrot.slane %v8335, %v8339
  %8342 = vst [vmem:[%s8] sm:$0xff] %v8340
  %8343 = vmatprep.subr.mxu0 0.0
  %v8344 = vand.u32 %v78, 4294901760
  %8345 = vmatpush1.msra.mxu0 %v8344
  %8346 = vmatprep.subr.mxu0 0.0
  %v8347 = vand.u32 %v77, 4294901760
  %8348 = vmatpush1.msra.mxu0 %v8347
  %8349 = vmatprep.subr.mxu0 0.0
  %v8350 = vand.u32 %v76, 4294901760
  %8351 = vmatpush1.msra.mxu0 %v8350
  %8352 = vmatprep.subr.mxu0 0.0
  %v8353 = vand.u32 %v75, 4294901760
  %8354 = vmatpush1.msra.mxu0 %v8353
  %8355 = vmatprep.subr.mxu0 0.0
  %v8356 = vand.u32 %v74, 4294901760
  %8357 = vmatpush1.msra.mxu0 %v8356
  %8358 = vmatprep.subr.mxu0 0.0
  %v8359 = vand.u32 %v73, 4294901760
  %8360 = vmatpush1.msra.mxu0 %v8359
  %8361 = vmatprep.subr.mxu0 0.0
  %v8362 = vand.u32 %v72, 4294901760
  %8363 = vmatpush1.msra.mxu0 %v8362
  %8364 = vmatprep.subr.mxu0 0.0
  %v8365 = vand.u32 %v71, 4294901760
  %8366 = vmatpush1.msra.mxu0 %v8365
  %8367 = vmatprep.subr.mxu0 0.0
  %v8368 = vand.u32 %v70, 4294901760
  %8369 = vmatpush1.msra.mxu0 %v8368
  %8370 = vmatprep.subr.mxu0 0.0
  %v8371 = vand.u32 %v69, 4294901760
  %8372 = vmatpush1.msra.mxu0 %v8371
  %8373 = vmatprep.subr.mxu0 0.0
  %v8374 = vand.u32 %v68, 4294901760
  %8375 = vmatpush1.msra.mxu0 %v8374
  %8376 = vmatprep.subr.mxu0 0.0
  %v8377 = vand.u32 %v67, 4294901760
  %8378 = vmatpush1.msra.mxu0 %v8377
  %8379 = vmatprep.subr.mxu0 0.0
  %v8380 = vand.u32 %v66, 4294901760
  %8381 = vmatpush1.msra.mxu0 %v8380
  %8382 = vmatprep.subr.mxu0 0.0
  %v8383 = vand.u32 %v65, 4294901760
  %8384 = vmatpush1.msra.mxu0 %v8383
  %8385 = vmatprep.subr.mxu0 0.0
  %v8386 = vand.u32 %v64, 4294901760
  %8387 = vmatpush1.msra.mxu0 %v8386
  %8388 = vmatprep.subr.mxu0 0.0
  %v8389 = vand.u32 %v63, 4294901760
  %8390 = vmatpush1.msra.mxu0 %v8389
  %8391 = vmatprep.subr.mxu0 0.0
  %8392 = vmatpush2.msra.mxu0 0.0
  %8393 = vmatprep.subr.mxu0 0.0
  %8394 = vmatpush2.msra.mxu0 0.0
  %8395 = vmatprep.subr.mxu0 0.0
  %8396 = vmatpush2.msra.mxu0 0.0
  %8397 = vmatprep.subr.mxu0 0.0
  %8398 = vmatpush2.msra.mxu0 0.0
  %8399 = vmatprep.subr.mxu0 0.0
  %8400 = vmatpush2.msra.mxu0 0.0
  %8401 = vmatprep.subr.mxu0 0.0
  %8402 = vmatpush2.msra.mxu0 0.0
  %8403 = vmatprep.subr.mxu0 0.0
  %8404 = vmatpush2.msra.mxu0 0.0
  %8405 = vmatprep.subr.mxu0 0.0
  %8406 = vmatpush2.msra.mxu0 0.0
  %8407 = vmatprep.subr.mxu0 0.0
  %8408 = vmatpush2.msra.mxu0 0.0
  %8409 = vmatprep.subr.mxu0 0.0
  %8410 = vmatpush2.msra.mxu0 0.0
  %8411 = vmatprep.subr.mxu0 0.0
  %8412 = vmatpush2.msra.mxu0 0.0
  %8413 = vmatprep.subr.mxu0 0.0
  %8414 = vmatpush2.msra.mxu0 0.0
  %8415 = vmatprep.subr.mxu0 0.0
  %8416 = vmatpush2.msra.mxu0 0.0
  %8417 = vmatprep.subr.mxu0 0.0
  %8418 = vmatpush2.msra.mxu0 0.0
  %8419 = vmatprep.subr.mxu0 0.0
  %8420 = vmatpush2.msra.mxu0 0.0
  %8421 = vmatprep.subr.mxu0 0.0
  %8422 = vmatpush2.msra.mxu0 0.0
  %8423 = vmatprep.mubr.f32.mxu0 0.0
  %v8424 = vand.u32 %v8317, 4294901760
  %v8425 = vsub.f32 %v8317, %v8424
  %v8426 = vand.u32 %v8425, 4294901760
  %v8427 = vsub.f32 %v8425, %v8426
  %v8428 = vand.u32 %v8427, 4294901760
  %8429 = vmatmul.mubr.f32.gmra.mxu0 %v8428
  %v8430 = vpop.f32.mrf.mxu0
  %v8431 = vadd.f32 %v6441, %v8430
  %v8432 = vpop.f32.mrf.mxu0
  %8433 = vmatprep.mubr.f32.mxu0 0.0
  %v8434 = vand.u32 %v8318, 4294901760
  %v8435 = vsub.f32 %v8318, %v8434
  %v8436 = vand.u32 %v8435, 4294901760
  %v8437 = vsub.f32 %v8435, %v8436
  %v8438 = vand.u32 %v8437, 4294901760
  %8439 = vmatmul.mubr.f32.gmra.mxu0 %v8438
  %v8440 = vpop.f32.mrf.mxu0
  %v8441 = vadd.f32 %v6441, %v8440
  %v8442 = vpop.f32.mrf.mxu0
  %8443 = vmatprep.mubr.f32.mxu0 0.0
  %v8444 = vand.u32 %v8319, 4294901760
  %v8445 = vsub.f32 %v8319, %v8444
  %v8446 = vand.u32 %v8445, 4294901760
  %v8447 = vsub.f32 %v8445, %v8446
  %v8448 = vand.u32 %v8447, 4294901760
  %8449 = vmatmul.mubr.f32.gmra.mxu0 %v8448
  %v8450 = vpop.f32.mrf.mxu0
  %v8451 = vadd.f32 %v6441, %v8450
  %v8452 = vpop.f32.mrf.mxu0
  %8453 = vmatprep.mubr.f32.mxu0 0.0
  %v8454 = vand.u32 %v8320, 4294901760
  %v8455 = vsub.f32 %v8320, %v8454
  %v8456 = vand.u32 %v8455, 4294901760
  %v8457 = vsub.f32 %v8455, %v8456
  %v8458 = vand.u32 %v8457, 4294901760
  %8459 = vmatmul.mubr.f32.gmra.mxu0 %v8458
  %v8460 = vpop.f32.mrf.mxu0
  %v8461 = vadd.f32 %v6441, %v8460
  %v8462 = vpop.f32.mrf.mxu0
  %8463 = vmatprep.mubr.f32.mxu0 0.0
  %v8464 = vand.u32 %v8321, 4294901760
  %v8465 = vsub.f32 %v8321, %v8464
  %v8466 = vand.u32 %v8465, 4294901760
  %v8467 = vsub.f32 %v8465, %v8466
  %v8468 = vand.u32 %v8467, 4294901760
  %8469 = vmatmul.mubr.f32.gmra.mxu0 %v8468
  %v8470 = vpop.f32.mrf.mxu0
  %v8471 = vadd.f32 %v6441, %v8470
  %v8472 = vpop.f32.mrf.mxu0
  %8473 = vmatprep.mubr.f32.mxu0 0.0
  %v8474 = vand.u32 %v8322, 4294901760
  %v8475 = vsub.f32 %v8322, %v8474
  %v8476 = vand.u32 %v8475, 4294901760
  %v8477 = vsub.f32 %v8475, %v8476
  %v8478 = vand.u32 %v8477, 4294901760
  %8479 = vmatmul.mubr.f32.gmra.mxu0 %v8478
  %v8480 = vpop.f32.mrf.mxu0
  %v8481 = vadd.f32 %v6441, %v8480
  %v8482 = vpop.f32.mrf.mxu0
  %8483 = vmatprep.mubr.f32.mxu0 0.0
  %v8484 = vand.u32 %v8323, 4294901760
  %v8485 = vsub.f32 %v8323, %v8484
  %v8486 = vand.u32 %v8485, 4294901760
  %v8487 = vsub.f32 %v8485, %v8486
  %v8488 = vand.u32 %v8487, 4294901760
  %8489 = vmatmul.mubr.f32.gmra.mxu0 %v8488
  %v8490 = vpop.f32.mrf.mxu0
  %v8491 = vadd.f32 %v6441, %v8490
  %v8492 = vpop.f32.mrf.mxu0
  %8493 = vdwg.mxu0
  %8494 = vmatprep.subr.mxu0 0.0
  %v8495 = vand.u32 %v78, 4294901760
  %v8496 = vsub.f32 %v78, %v8495
  %v8497 = vand.u32 %v8496, 4294901760
  %v8498 = vsub.f32 %v8496, %v8497
  %v8499 = vand.u32 %v8498, 4294901760
  %8500 = vmatpush1.msra.mxu0 %v8499
  %8501 = vmatprep.subr.mxu0 0.0
  %v8502 = vand.u32 %v77, 4294901760
  %v8503 = vsub.f32 %v77, %v8502
  %v8504 = vand.u32 %v8503, 4294901760
  %v8505 = vsub.f32 %v8503, %v8504
  %v8506 = vand.u32 %v8505, 4294901760
  %8507 = vmatpush1.msra.mxu0 %v8506
  %8508 = vmatprep.subr.mxu0 0.0
  %v8509 = vand.u32 %v76, 4294901760
  %v8510 = vsub.f32 %v76, %v8509
  %v8511 = vand.u32 %v8510, 4294901760
  %v8512 = vsub.f32 %v8510, %v8511
  %v8513 = vand.u32 %v8512, 4294901760
  %8514 = vmatpush1.msra.mxu0 %v8513
  %8515 = vmatprep.subr.mxu0 0.0
  %v8516 = vand.u32 %v75, 4294901760
  %v8517 = vsub.f32 %v75, %v8516
  %v8518 = vand.u32 %v8517, 4294901760
  %v8519 = vsub.f32 %v8517, %v8518
  %v8520 = vand.u32 %v8519, 4294901760
  %8521 = vmatpush1.msra.mxu0 %v8520
  %8522 = vmatprep.subr.mxu0 0.0
  %v8523 = vand.u32 %v74, 4294901760
  %v8524 = vsub.f32 %v74, %v8523
  %v8525 = vand.u32 %v8524, 4294901760
  %v8526 = vsub.f32 %v8524, %v8525
  %v8527 = vand.u32 %v8526, 4294901760
  %8528 = vmatpush1.msra.mxu0 %v8527
  %8529 = vmatprep.subr.mxu0 0.0
  %v8530 = vand.u32 %v73, 4294901760
  %v8531 = vsub.f32 %v73, %v8530
  %v8532 = vand.u32 %v8531, 4294901760
  %v8533 = vsub.f32 %v8531, %v8532
  %v8534 = vand.u32 %v8533, 4294901760
  %8535 = vmatpush1.msra.mxu0 %v8534
  %8536 = vmatprep.subr.mxu0 0.0
  %v8537 = vand.u32 %v72, 4294901760
  %v8538 = vsub.f32 %v72, %v8537
  %v8539 = vand.u32 %v8538, 4294901760
  %v8540 = vsub.f32 %v8538, %v8539
  %v8541 = vand.u32 %v8540, 4294901760
  %8542 = vmatpush1.msra.mxu0 %v8541
  %8543 = vmatprep.subr.mxu0 0.0
  %v8544 = vand.u32 %v71, 4294901760
  %v8545 = vsub.f32 %v71, %v8544
  %v8546 = vand.u32 %v8545, 4294901760
  %v8547 = vsub.f32 %v8545, %v8546
  %v8548 = vand.u32 %v8547, 4294901760
  %8549 = vmatpush1.msra.mxu0 %v8548
  %8550 = vmatprep.subr.mxu0 0.0
  %v8551 = vand.u32 %v70, 4294901760
  %v8552 = vsub.f32 %v70, %v8551
  %v8553 = vand.u32 %v8552, 4294901760
  %v8554 = vsub.f32 %v8552, %v8553
  %v8555 = vand.u32 %v8554, 4294901760
  %8556 = vmatpush1.msra.mxu0 %v8555
  %8557 = vmatprep.subr.mxu0 0.0
  %v8558 = vand.u32 %v69, 4294901760
  %v8559 = vsub.f32 %v69, %v8558
  %v8560 = vand.u32 %v8559, 4294901760
  %v8561 = vsub.f32 %v8559, %v8560
  %v8562 = vand.u32 %v8561, 4294901760
  %8563 = vmatpush1.msra.mxu0 %v8562
  %8564 = vmatprep.subr.mxu0 0.0
  %v8565 = vand.u32 %v68, 4294901760
  %v8566 = vsub.f32 %v68, %v8565
  %v8567 = vand.u32 %v8566, 4294901760
  %v8568 = vsub.f32 %v8566, %v8567
  %v8569 = vand.u32 %v8568, 4294901760
  %8570 = vmatpush1.msra.mxu0 %v8569
  %8571 = vmatprep.subr.mxu0 0.0
  %v8572 = vand.u32 %v67, 4294901760
  %v8573 = vsub.f32 %v67, %v8572
  %v8574 = vand.u32 %v8573, 4294901760
  %v8575 = vsub.f32 %v8573, %v8574
  %v8576 = vand.u32 %v8575, 4294901760
  %8577 = vmatpush1.msra.mxu0 %v8576
  %8578 = vmatprep.subr.mxu0 0.0
  %v8579 = vand.u32 %v66, 4294901760
  %v8580 = vsub.f32 %v66, %v8579
  %v8581 = vand.u32 %v8580, 4294901760
  %v8582 = vsub.f32 %v8580, %v8581
  %v8583 = vand.u32 %v8582, 4294901760
  %8584 = vmatpush1.msra.mxu0 %v8583
  %8585 = vmatprep.subr.mxu0 0.0
  %v8586 = vand.u32 %v65, 4294901760
  %v8587 = vsub.f32 %v65, %v8586
  %v8588 = vand.u32 %v8587, 4294901760
  %v8589 = vsub.f32 %v8587, %v8588
  %v8590 = vand.u32 %v8589, 4294901760
  %8591 = vmatpush1.msra.mxu0 %v8590
  %8592 = vmatprep.subr.mxu0 0.0
  %v8593 = vand.u32 %v64, 4294901760
  %v8594 = vsub.f32 %v64, %v8593
  %v8595 = vand.u32 %v8594, 4294901760
  %v8596 = vsub.f32 %v8594, %v8595
  %v8597 = vand.u32 %v8596, 4294901760
  %8598 = vmatpush1.msra.mxu0 %v8597
  %8599 = vmatprep.subr.mxu0 0.0
  %v8600 = vand.u32 %v63, 4294901760
  %v8601 = vsub.f32 %v63, %v8600
  %v8602 = vand.u32 %v8601, 4294901760
  %v8603 = vsub.f32 %v8601, %v8602
  %v8604 = vand.u32 %v8603, 4294901760
  %8605 = vmatpush1.msra.mxu0 %v8604
  %8606 = vmatprep.subr.mxu0 0.0
  %8607 = vmatpush2.msra.mxu0 0.0
  %8608 = vmatprep.subr.mxu0 0.0
  %8609 = vmatpush2.msra.mxu0 0.0
  %8610 = vmatprep.subr.mxu0 0.0
  %8611 = vmatpush2.msra.mxu0 0.0
  %8612 = vmatprep.subr.mxu0 0.0
  %8613 = vmatpush2.msra.mxu0 0.0
  %8614 = vmatprep.subr.mxu0 0.0
  %8615 = vmatpush2.msra.mxu0 0.0
  %8616 = vmatprep.subr.mxu0 0.0
  %8617 = vmatpush2.msra.mxu0 0.0
  %8618 = vmatprep.subr.mxu0 0.0
  %8619 = vmatpush2.msra.mxu0 0.0
  %8620 = vmatprep.subr.mxu0 0.0
  %8621 = vmatpush2.msra.mxu0 0.0
  %8622 = vmatprep.subr.mxu0 0.0
  %8623 = vmatpush2.msra.mxu0 0.0
  %8624 = vmatprep.subr.mxu0 0.0
  %8625 = vmatpush2.msra.mxu0 0.0
  %8626 = vmatprep.subr.mxu0 0.0
  %8627 = vmatpush2.msra.mxu0 0.0
  %8628 = vmatprep.subr.mxu0 0.0
  %8629 = vmatpush2.msra.mxu0 0.0
  %8630 = vmatprep.subr.mxu0 0.0
  %8631 = vmatpush2.msra.mxu0 0.0
  %8632 = vmatprep.subr.mxu0 0.0
  %8633 = vmatpush2.msra.mxu0 0.0
  %8634 = vmatprep.subr.mxu0 0.0
  %8635 = vmatpush2.msra.mxu0 0.0
  %8636 = vmatprep.subr.mxu0 0.0
  %8637 = vmatpush2.msra.mxu0 0.0
  %8638 = vmatprep.mubr.f32.mxu0 0.0
  %v8639 = vand.u32 %v8317, 4294901760
  %8640 = vmatmul.mubr.f32.gmra.mxu0 %v8639
  %v8641 = vpop.f32.mrf.mxu0
  %v8642 = vadd.f32 %v8431, %v8641
  %v8643 = vpop.f32.mrf.mxu0
  %8644 = vmatprep.mubr.f32.mxu0 0.0
  %v8645 = vand.u32 %v8318, 4294901760
  %8646 = vmatmul.mubr.f32.gmra.mxu0 %v8645
  %v8647 = vpop.f32.mrf.mxu0
  %v8648 = vadd.f32 %v8441, %v8647
  %v8649 = vpop.f32.mrf.mxu0
  %8650 = vmatprep.mubr.f32.mxu0 0.0
  %v8651 = vand.u32 %v8319, 4294901760
  %8652 = vmatmul.mubr.f32.gmra.mxu0 %v8651
  %v8653 = vpop.f32.mrf.mxu0
  %v8654 = vadd.f32 %v8451, %v8653
  %v8655 = vpop.f32.mrf.mxu0
  %8656 = vmatprep.mubr.f32.mxu0 0.0
  %v8657 = vand.u32 %v8320, 4294901760
  %8658 = vmatmul.mubr.f32.gmra.mxu0 %v8657
  %v8659 = vpop.f32.mrf.mxu0
  %v8660 = vadd.f32 %v8461, %v8659
  %v8661 = vpop.f32.mrf.mxu0
  %8662 = vmatprep.mubr.f32.mxu0 0.0
  %v8663 = vand.u32 %v8321, 4294901760
  %8664 = vmatmul.mubr.f32.gmra.mxu0 %v8663
  %v8665 = vpop.f32.mrf.mxu0
  %v8666 = vadd.f32 %v8471, %v8665
  %v8667 = vpop.f32.mrf.mxu0
  %8668 = vmatprep.mubr.f32.mxu0 0.0
  %v8669 = vand.u32 %v8322, 4294901760
  %8670 = vmatmul.mubr.f32.gmra.mxu0 %v8669
  %v8671 = vpop.f32.mrf.mxu0
  %v8672 = vadd.f32 %v8481, %v8671
  %v8673 = vpop.f32.mrf.mxu0
  %8674 = vmatprep.mubr.f32.mxu0 0.0
  %v8675 = vand.u32 %v8323, 4294901760
  %8676 = vmatmul.mubr.f32.gmra.mxu0 %v8675
  %v8677 = vpop.f32.mrf.mxu0
  %v8678 = vadd.f32 %v8491, %v8677
  %v8679 = vpop.f32.mrf.mxu0
  %8680 = vdwg.mxu0
  %8681 = vmatprep.subr.mxu0 0.0
  %v8682 = vand.u32 %v78, 4294901760
  %v8683 = vsub.f32 %v78, %v8682
  %8684 = vmatpush1.msra.mxu0 %v8683
  %8685 = vmatprep.subr.mxu0 0.0
  %v8686 = vand.u32 %v77, 4294901760
  %v8687 = vsub.f32 %v77, %v8686
  %8688 = vmatpush1.msra.mxu0 %v8687
  %8689 = vmatprep.subr.mxu0 0.0
  %v8690 = vand.u32 %v76, 4294901760
  %v8691 = vsub.f32 %v76, %v8690
  %8692 = vmatpush1.msra.mxu0 %v8691
  %8693 = vmatprep.subr.mxu0 0.0
  %v8694 = vand.u32 %v75, 4294901760
  %v8695 = vsub.f32 %v75, %v8694
  %8696 = vmatpush1.msra.mxu0 %v8695
  %8697 = vmatprep.subr.mxu0 0.0
  %v8698 = vand.u32 %v74, 4294901760
  %v8699 = vsub.f32 %v74, %v8698
  %8700 = vmatpush1.msra.mxu0 %v8699
  %8701 = vmatprep.subr.mxu0 0.0
  %v8702 = vand.u32 %v73, 4294901760
  %v8703 = vsub.f32 %v73, %v8702
  %8704 = vmatpush1.msra.mxu0 %v8703
  %8705 = vmatprep.subr.mxu0 0.0
  %v8706 = vand.u32 %v72, 4294901760
  %v8707 = vsub.f32 %v72, %v8706
  %8708 = vmatpush1.msra.mxu0 %v8707
  %8709 = vmatprep.subr.mxu0 0.0
  %v8710 = vand.u32 %v71, 4294901760
  %v8711 = vsub.f32 %v71, %v8710
  %8712 = vmatpush1.msra.mxu0 %v8711
  %8713 = vmatprep.subr.mxu0 0.0
  %v8714 = vand.u32 %v70, 4294901760
  %v8715 = vsub.f32 %v70, %v8714
  %8716 = vmatpush1.msra.mxu0 %v8715
  %8717 = vmatprep.subr.mxu0 0.0
  %v8718 = vand.u32 %v69, 4294901760
  %v8719 = vsub.f32 %v69, %v8718
  %8720 = vmatpush1.msra.mxu0 %v8719
  %8721 = vmatprep.subr.mxu0 0.0
  %v8722 = vand.u32 %v68, 4294901760
  %v8723 = vsub.f32 %v68, %v8722
  %8724 = vmatpush1.msra.mxu0 %v8723
  %8725 = vmatprep.subr.mxu0 0.0
  %v8726 = vand.u32 %v67, 4294901760
  %v8727 = vsub.f32 %v67, %v8726
  %8728 = vmatpush1.msra.mxu0 %v8727
  %8729 = vmatprep.subr.mxu0 0.0
  %v8730 = vand.u32 %v66, 4294901760
  %v8731 = vsub.f32 %v66, %v8730
  %8732 = vmatpush1.msra.mxu0 %v8731
  %8733 = vmatprep.subr.mxu0 0.0
  %v8734 = vand.u32 %v65, 4294901760
  %v8735 = vsub.f32 %v65, %v8734
  %8736 = vmatpush1.msra.mxu0 %v8735
  %8737 = vmatprep.subr.mxu0 0.0
  %v8738 = vand.u32 %v64, 4294901760
  %v8739 = vsub.f32 %v64, %v8738
  %8740 = vmatpush1.msra.mxu0 %v8739
  %8741 = vmatprep.subr.mxu0 0.0
  %v8742 = vand.u32 %v63, 4294901760
  %v8743 = vsub.f32 %v63, %v8742
  %8744 = vmatpush1.msra.mxu0 %v8743
  %8745 = vmatprep.subr.mxu0 0.0
  %8746 = vmatpush2.msra.mxu0 0.0
  %8747 = vmatprep.subr.mxu0 0.0
  %8748 = vmatpush2.msra.mxu0 0.0
  %8749 = vmatprep.subr.mxu0 0.0
  %8750 = vmatpush2.msra.mxu0 0.0
  %8751 = vmatprep.subr.mxu0 0.0
  %8752 = vmatpush2.msra.mxu0 0.0
  %8753 = vmatprep.subr.mxu0 0.0
  %8754 = vmatpush2.msra.mxu0 0.0
  %8755 = vmatprep.subr.mxu0 0.0
  %8756 = vmatpush2.msra.mxu0 0.0
  %8757 = vmatprep.subr.mxu0 0.0
  %8758 = vmatpush2.msra.mxu0 0.0
  %8759 = vmatprep.subr.mxu0 0.0
  %8760 = vmatpush2.msra.mxu0 0.0
  %8761 = vmatprep.subr.mxu0 0.0
  %8762 = vmatpush2.msra.mxu0 0.0
  %8763 = vmatprep.subr.mxu0 0.0
  %8764 = vmatpush2.msra.mxu0 0.0
  %8765 = vmatprep.subr.mxu0 0.0
  %8766 = vmatpush2.msra.mxu0 0.0
  %8767 = vmatprep.subr.mxu0 0.0
  %8768 = vmatpush2.msra.mxu0 0.0
  %8769 = vmatprep.subr.mxu0 0.0
  %8770 = vmatpush2.msra.mxu0 0.0
  %8771 = vmatprep.subr.mxu0 0.0
  %8772 = vmatpush2.msra.mxu0 0.0
  %8773 = vmatprep.subr.mxu0 0.0
  %8774 = vmatpush2.msra.mxu0 0.0
  %8775 = vmatprep.subr.mxu0 0.0
  %8776 = vmatpush2.msra.mxu0 0.0
  %8777 = vmatprep.mubr.f32.mxu0 0.0
  %v8778 = vand.u32 %v8317, 4294901760
  %v8779 = vsub.f32 %v8317, %v8778
  %8780 = vmatmul.mubr.f32.gmra.mxu0 %v8779
  %v8781 = vpop.f32.mrf.mxu0
  %v8782 = vadd.f32 %v8642, %v8781
  %v8783 = vpop.f32.mrf.mxu0
  %8784 = vmatprep.mubr.f32.mxu0 0.0
  %v8785 = vand.u32 %v8318, 4294901760
  %v8786 = vsub.f32 %v8318, %v8785
  %8787 = vmatmul.mubr.f32.gmra.mxu0 %v8786
  %v8788 = vpop.f32.mrf.mxu0
  %v8789 = vadd.f32 %v8648, %v8788
  %v8790 = vpop.f32.mrf.mxu0
  %8791 = vmatprep.mubr.f32.mxu0 0.0
  %v8792 = vand.u32 %v8319, 4294901760
  %v8793 = vsub.f32 %v8319, %v8792
  %8794 = vmatmul.mubr.f32.gmra.mxu0 %v8793
  %v8795 = vpop.f32.mrf.mxu0
  %v8796 = vadd.f32 %v8654, %v8795
  %v8797 = vpop.f32.mrf.mxu0
  %8798 = vmatprep.mubr.f32.mxu0 0.0
  %v8799 = vand.u32 %v8320, 4294901760
  %v8800 = vsub.f32 %v8320, %v8799
  %8801 = vmatmul.mubr.f32.gmra.mxu0 %v8800
  %v8802 = vpop.f32.mrf.mxu0
  %v8803 = vadd.f32 %v8660, %v8802
  %v8804 = vpop.f32.mrf.mxu0
  %8805 = vmatprep.mubr.f32.mxu0 0.0
  %v8806 = vand.u32 %v8321, 4294901760
  %v8807 = vsub.f32 %v8321, %v8806
  %8808 = vmatmul.mubr.f32.gmra.mxu0 %v8807
  %v8809 = vpop.f32.mrf.mxu0
  %v8810 = vadd.f32 %v8666, %v8809
  %v8811 = vpop.f32.mrf.mxu0
  %8812 = vmatprep.mubr.f32.mxu0 0.0
  %v8813 = vand.u32 %v8322, 4294901760
  %v8814 = vsub.f32 %v8322, %v8813
  %8815 = vmatmul.mubr.f32.gmra.mxu0 %v8814
  %v8816 = vpop.f32.mrf.mxu0
  %v8817 = vadd.f32 %v8672, %v8816
  %v8818 = vpop.f32.mrf.mxu0
  %8819 = vmatprep.mubr.f32.mxu0 0.0
  %v8820 = vand.u32 %v8323, 4294901760
  %v8821 = vsub.f32 %v8323, %v8820
  %8822 = vmatmul.mubr.f32.gmra.mxu0 %v8821
  %v8823 = vpop.f32.mrf.mxu0
  %v8824 = vadd.f32 %v8678, %v8823
  %v8825 = vpop.f32.mrf.mxu0
  %8826 = vdwg.mxu0
  %8827 = vmatprep.subr.mxu0 0.0
  %v8828 = vand.u32 %v78, 4294901760
  %8829 = vmatpush1.msra.mxu0 %v8828
  %8830 = vmatprep.subr.mxu0 0.0
  %v8831 = vand.u32 %v77, 4294901760
  %8832 = vmatpush1.msra.mxu0 %v8831
  %8833 = vmatprep.subr.mxu0 0.0
  %v8834 = vand.u32 %v76, 4294901760
  %8835 = vmatpush1.msra.mxu0 %v8834
  %8836 = vmatprep.subr.mxu0 0.0
  %v8837 = vand.u32 %v75, 4294901760
  %8838 = vmatpush1.msra.mxu0 %v8837
  %8839 = vmatprep.subr.mxu0 0.0
  %v8840 = vand.u32 %v74, 4294901760
  %8841 = vmatpush1.msra.mxu0 %v8840
  %8842 = vmatprep.subr.mxu0 0.0
  %v8843 = vand.u32 %v73, 4294901760
  %8844 = vmatpush1.msra.mxu0 %v8843
  %8845 = vmatprep.subr.mxu0 0.0
  %v8846 = vand.u32 %v72, 4294901760
  %8847 = vmatpush1.msra.mxu0 %v8846
  %8848 = vmatprep.subr.mxu0 0.0
  %v8849 = vand.u32 %v71, 4294901760
  %8850 = vmatpush1.msra.mxu0 %v8849
  %8851 = vmatprep.subr.mxu0 0.0
  %v8852 = vand.u32 %v70, 4294901760
  %8853 = vmatpush1.msra.mxu0 %v8852
  %8854 = vmatprep.subr.mxu0 0.0
  %v8855 = vand.u32 %v69, 4294901760
  %8856 = vmatpush1.msra.mxu0 %v8855
  %8857 = vmatprep.subr.mxu0 0.0
  %v8858 = vand.u32 %v68, 4294901760
  %8859 = vmatpush1.msra.mxu0 %v8858
  %8860 = vmatprep.subr.mxu0 0.0
  %v8861 = vand.u32 %v67, 4294901760
  %8862 = vmatpush1.msra.mxu0 %v8861
  %8863 = vmatprep.subr.mxu0 0.0
  %v8864 = vand.u32 %v66, 4294901760
  %8865 = vmatpush1.msra.mxu0 %v8864
  %8866 = vmatprep.subr.mxu0 0.0
  %v8867 = vand.u32 %v65, 4294901760
  %8868 = vmatpush1.msra.mxu0 %v8867
  %8869 = vmatprep.subr.mxu0 0.0
  %v8870 = vand.u32 %v64, 4294901760
  %8871 = vmatpush1.msra.mxu0 %v8870
  %8872 = vmatprep.subr.mxu0 0.0
  %v8873 = vand.u32 %v63, 4294901760
  %8874 = vmatpush1.msra.mxu0 %v8873
  %8875 = vmatprep.subr.mxu0 0.0
  %8876 = vmatpush2.msra.mxu0 0.0
  %8877 = vmatprep.subr.mxu0 0.0
  %8878 = vmatpush2.msra.mxu0 0.0
  %8879 = vmatprep.subr.mxu0 0.0
  %8880 = vmatpush2.msra.mxu0 0.0
  %8881 = vmatprep.subr.mxu0 0.0
  %8882 = vmatpush2.msra.mxu0 0.0
  %8883 = vmatprep.subr.mxu0 0.0
  %8884 = vmatpush2.msra.mxu0 0.0
  %8885 = vmatprep.subr.mxu0 0.0
  %8886 = vmatpush2.msra.mxu0 0.0
  %8887 = vmatprep.subr.mxu0 0.0
  %8888 = vmatpush2.msra.mxu0 0.0
  %8889 = vmatprep.subr.mxu0 0.0
  %8890 = vmatpush2.msra.mxu0 0.0
  %8891 = vmatprep.subr.mxu0 0.0
  %8892 = vmatpush2.msra.mxu0 0.0
  %8893 = vmatprep.subr.mxu0 0.0
  %8894 = vmatpush2.msra.mxu0 0.0
  %8895 = vmatprep.subr.mxu0 0.0
  %8896 = vmatpush2.msra.mxu0 0.0
  %8897 = vmatprep.subr.mxu0 0.0
  %8898 = vmatpush2.msra.mxu0 0.0
  %8899 = vmatprep.subr.mxu0 0.0
  %8900 = vmatpush2.msra.mxu0 0.0
  %8901 = vmatprep.subr.mxu0 0.0
  %8902 = vmatpush2.msra.mxu0 0.0
  %8903 = vmatprep.subr.mxu0 0.0
  %8904 = vmatpush2.msra.mxu0 0.0
  %8905 = vmatprep.subr.mxu0 0.0
  %8906 = vmatpush2.msra.mxu0 0.0
  %8907 = vmatprep.mubr.f32.mxu0 0.0
  %v8908 = vand.u32 %v8317, 4294901760
  %v8909 = vsub.f32 %v8317, %v8908
  %v8910 = vand.u32 %v8909, 4294901760
  %8911 = vmatmul.mubr.f32.gmra.mxu0 %v8910
  %v8912 = vpop.f32.mrf.mxu0
  %v8913 = vadd.f32 %v8782, %v8912
  %v8914 = vpop.f32.mrf.mxu0
  %8915 = vmatprep.mubr.f32.mxu0 0.0
  %v8916 = vand.u32 %v8318, 4294901760
  %v8917 = vsub.f32 %v8318, %v8916
  %v8918 = vand.u32 %v8917, 4294901760
  %8919 = vmatmul.mubr.f32.gmra.mxu0 %v8918
  %v8920 = vpop.f32.mrf.mxu0
  %v8921 = vadd.f32 %v8789, %v8920
  %v8922 = vpop.f32.mrf.mxu0
  %8923 = vmatprep.mubr.f32.mxu0 0.0
  %v8924 = vand.u32 %v8319, 4294901760
  %v8925 = vsub.f32 %v8319, %v8924
  %v8926 = vand.u32 %v8925, 4294901760
  %8927 = vmatmul.mubr.f32.gmra.mxu0 %v8926
  %v8928 = vpop.f32.mrf.mxu0
  %v8929 = vadd.f32 %v8796, %v8928
  %v8930 = vpop.f32.mrf.mxu0
  %8931 = vmatprep.mubr.f32.mxu0 0.0
  %v8932 = vand.u32 %v8320, 4294901760
  %v8933 = vsub.f32 %v8320, %v8932
  %v8934 = vand.u32 %v8933, 4294901760
  %8935 = vmatmul.mubr.f32.gmra.mxu0 %v8934
  %v8936 = vpop.f32.mrf.mxu0
  %v8937 = vadd.f32 %v8803, %v8936
  %v8938 = vpop.f32.mrf.mxu0
  %8939 = vmatprep.mubr.f32.mxu0 0.0
  %v8940 = vand.u32 %v8321, 4294901760
  %v8941 = vsub.f32 %v8321, %v8940
  %v8942 = vand.u32 %v8941, 4294901760
  %8943 = vmatmul.mubr.f32.gmra.mxu0 %v8942
  %v8944 = vpop.f32.mrf.mxu0
  %v8945 = vadd.f32 %v8810, %v8944
  %v8946 = vpop.f32.mrf.mxu0
  %8947 = vmatprep.mubr.f32.mxu0 0.0
  %v8948 = vand.u32 %v8322, 4294901760
  %v8949 = vsub.f32 %v8322, %v8948
  %v8950 = vand.u32 %v8949, 4294901760
  %8951 = vmatmul.mubr.f32.gmra.mxu0 %v8950
  %v8952 = vpop.f32.mrf.mxu0
  %v8953 = vadd.f32 %v8817, %v8952
  %v8954 = vpop.f32.mrf.mxu0
  %8955 = vmatprep.mubr.f32.mxu0 0.0
  %v8956 = vand.u32 %v8323, 4294901760
  %v8957 = vsub.f32 %v8323, %v8956
  %v8958 = vand.u32 %v8957, 4294901760
  %8959 = vmatmul.mubr.f32.gmra.mxu0 %v8958
  %v8960 = vpop.f32.mrf.mxu0
  %v8961 = vadd.f32 %v8824, %v8960
  %v8962 = vpop.f32.mrf.mxu0
  %8963 = vdwg.mxu0
  %8964 = vmatprep.subr.mxu0 0.0
  %v8965 = vand.u32 %v78, 4294901760
  %v8966 = vsub.f32 %v78, %v8965
  %v8967 = vand.u32 %v8966, 4294901760
  %8968 = vmatpush1.msra.mxu0 %v8967
  %8969 = vmatprep.subr.mxu0 0.0
  %v8970 = vand.u32 %v77, 4294901760
  %v8971 = vsub.f32 %v77, %v8970
  %v8972 = vand.u32 %v8971, 4294901760
  %8973 = vmatpush1.msra.mxu0 %v8972
  %8974 = vmatprep.subr.mxu0 0.0
  %v8975 = vand.u32 %v76, 4294901760
  %v8976 = vsub.f32 %v76, %v8975
  %v8977 = vand.u32 %v8976, 4294901760
  %8978 = vmatpush1.msra.mxu0 %v8977
  %8979 = vmatprep.subr.mxu0 0.0
  %v8980 = vand.u32 %v75, 4294901760
  %v8981 = vsub.f32 %v75, %v8980
  %v8982 = vand.u32 %v8981, 4294901760
  %8983 = vmatpush1.msra.mxu0 %v8982
  %8984 = vmatprep.subr.mxu0 0.0
  %v8985 = vand.u32 %v74, 4294901760
  %v8986 = vsub.f32 %v74, %v8985
  %v8987 = vand.u32 %v8986, 4294901760
  %8988 = vmatpush1.msra.mxu0 %v8987
  %8989 = vmatprep.subr.mxu0 0.0
  %v8990 = vand.u32 %v73, 4294901760
  %v8991 = vsub.f32 %v73, %v8990
  %v8992 = vand.u32 %v8991, 4294901760
  %8993 = vmatpush1.msra.mxu0 %v8992
  %8994 = vmatprep.subr.mxu0 0.0
  %v8995 = vand.u32 %v72, 4294901760
  %v8996 = vsub.f32 %v72, %v8995
  %v8997 = vand.u32 %v8996, 4294901760
  %8998 = vmatpush1.msra.mxu0 %v8997
  %8999 = vmatprep.subr.mxu0 0.0
  %v9000 = vand.u32 %v71, 4294901760
  %v9001 = vsub.f32 %v71, %v9000
  %v9002 = vand.u32 %v9001, 4294901760
  %9003 = vmatpush1.msra.mxu0 %v9002
  %9004 = vmatprep.subr.mxu0 0.0
  %v9005 = vand.u32 %v70, 4294901760
  %v9006 = vsub.f32 %v70, %v9005
  %v9007 = vand.u32 %v9006, 4294901760
  %9008 = vmatpush1.msra.mxu0 %v9007
  %9009 = vmatprep.subr.mxu0 0.0
  %v9010 = vand.u32 %v69, 4294901760
  %v9011 = vsub.f32 %v69, %v9010
  %v9012 = vand.u32 %v9011, 4294901760
  %9013 = vmatpush1.msra.mxu0 %v9012
  %9014 = vmatprep.subr.mxu0 0.0
  %v9015 = vand.u32 %v68, 4294901760
  %v9016 = vsub.f32 %v68, %v9015
  %v9017 = vand.u32 %v9016, 4294901760
  %9018 = vmatpush1.msra.mxu0 %v9017
  %9019 = vmatprep.subr.mxu0 0.0
  %v9020 = vand.u32 %v67, 4294901760
  %v9021 = vsub.f32 %v67, %v9020
  %v9022 = vand.u32 %v9021, 4294901760
  %9023 = vmatpush1.msra.mxu0 %v9022
  %9024 = vmatprep.subr.mxu0 0.0
  %v9025 = vand.u32 %v66, 4294901760
  %v9026 = vsub.f32 %v66, %v9025
  %v9027 = vand.u32 %v9026, 4294901760
  %9028 = vmatpush1.msra.mxu0 %v9027
  %9029 = vmatprep.subr.mxu0 0.0
  %v9030 = vand.u32 %v65, 4294901760
  %v9031 = vsub.f32 %v65, %v9030
  %v9032 = vand.u32 %v9031, 4294901760
  %9033 = vmatpush1.msra.mxu0 %v9032
  %9034 = vmatprep.subr.mxu0 0.0
  %v9035 = vand.u32 %v64, 4294901760
  %v9036 = vsub.f32 %v64, %v9035
  %v9037 = vand.u32 %v9036, 4294901760
  %9038 = vmatpush1.msra.mxu0 %v9037
  %9039 = vmatprep.subr.mxu0 0.0
  %v9040 = vand.u32 %v63, 4294901760
  %v9041 = vsub.f32 %v63, %v9040
  %v9042 = vand.u32 %v9041, 4294901760
  %9043 = vmatpush1.msra.mxu0 %v9042
  %9044 = vmatprep.subr.mxu0 0.0
  %9045 = vmatpush2.msra.mxu0 0.0
  %9046 = vmatprep.subr.mxu0 0.0
  %9047 = vmatpush2.msra.mxu0 0.0
  %9048 = vmatprep.subr.mxu0 0.0
  %9049 = vmatpush2.msra.mxu0 0.0
  %9050 = vmatprep.subr.mxu0 0.0
  %9051 = vmatpush2.msra.mxu0 0.0
  %9052 = vmatprep.subr.mxu0 0.0
  %9053 = vmatpush2.msra.mxu0 0.0
  %9054 = vmatprep.subr.mxu0 0.0
  %9055 = vmatpush2.msra.mxu0 0.0
  %9056 = vmatprep.subr.mxu0 0.0
  %9057 = vmatpush2.msra.mxu0 0.0
  %9058 = vmatprep.subr.mxu0 0.0
  %9059 = vmatpush2.msra.mxu0 0.0
  %9060 = vmatprep.subr.mxu0 0.0
  %9061 = vmatpush2.msra.mxu0 0.0
  %9062 = vmatprep.subr.mxu0 0.0
  %9063 = vmatpush2.msra.mxu0 0.0
  %9064 = vmatprep.subr.mxu0 0.0
  %9065 = vmatpush2.msra.mxu0 0.0
  %9066 = vmatprep.subr.mxu0 0.0
  %9067 = vmatpush2.msra.mxu0 0.0
  %9068 = vmatprep.subr.mxu0 0.0
  %9069 = vmatpush2.msra.mxu0 0.0
  %9070 = vmatprep.subr.mxu0 0.0
  %9071 = vmatpush2.msra.mxu0 0.0
  %9072 = vmatprep.subr.mxu0 0.0
  %9073 = vmatpush2.msra.mxu0 0.0
  %9074 = vmatprep.subr.mxu0 0.0
  %9075 = vmatpush2.msra.mxu0 0.0
  %9076 = vmatprep.mubr.f32.mxu0 0.0
  %v9077 = vand.u32 %v8317, 4294901760
  %9078 = vmatmul.mubr.f32.gmra.mxu0 %v9077
  %v9079 = vpop.f32.mrf.mxu0
  %v9080 = vadd.f32 %v8913, %v9079
  %v9081 = vpop.f32.mrf.mxu0
  %9082 = vmatprep.mubr.f32.mxu0 0.0
  %v9083 = vand.u32 %v8318, 4294901760
  %9084 = vmatmul.mubr.f32.gmra.mxu0 %v9083
  %v9085 = vpop.f32.mrf.mxu0
  %v9086 = vadd.f32 %v8921, %v9085
  %v9087 = vpop.f32.mrf.mxu0
  %9088 = vmatprep.mubr.f32.mxu0 0.0
  %v9089 = vand.u32 %v8319, 4294901760
  %9090 = vmatmul.mubr.f32.gmra.mxu0 %v9089
  %v9091 = vpop.f32.mrf.mxu0
  %v9092 = vadd.f32 %v8929, %v9091
  %v9093 = vpop.f32.mrf.mxu0
  %9094 = vmatprep.mubr.f32.mxu0 0.0
  %v9095 = vand.u32 %v8320, 4294901760
  %9096 = vmatmul.mubr.f32.gmra.mxu0 %v9095
  %v9097 = vpop.f32.mrf.mxu0
  %v9098 = vadd.f32 %v8937, %v9097
  %v9099 = vpop.f32.mrf.mxu0
  %9100 = vmatprep.mubr.f32.mxu0 0.0
  %v9101 = vand.u32 %v8321, 4294901760
  %9102 = vmatmul.mubr.f32.gmra.mxu0 %v9101
  %v9103 = vpop.f32.mrf.mxu0
  %v9104 = vadd.f32 %v8945, %v9103
  %v9105 = vpop.f32.mrf.mxu0
  %9106 = vmatprep.mubr.f32.mxu0 0.0
  %v9107 = vand.u32 %v8322, 4294901760
  %9108 = vmatmul.mubr.f32.gmra.mxu0 %v9107
  %v9109 = vpop.f32.mrf.mxu0
  %v9110 = vadd.f32 %v8953, %v9109
  %v9111 = vpop.f32.mrf.mxu0
  %9112 = vmatprep.mubr.f32.mxu0 0.0
  %v9113 = vand.u32 %v8323, 4294901760
  %9114 = vmatmul.mubr.f32.gmra.mxu0 %v9113
  %v9115 = vpop.f32.mrf.mxu0
  %v9116 = vadd.f32 %v8961, %v9115
  %v9117 = vpop.f32.mrf.mxu0
  %9118 = vdwg.mxu0
  %9119 = vmatprep.subr.mxu0 0.0
  %v9120 = vand.u32 %v78, 4294901760
  %9121 = vmatpush1.msra.mxu0 %v9120
  %9122 = vmatprep.subr.mxu0 0.0
  %v9123 = vand.u32 %v77, 4294901760
  %9124 = vmatpush1.msra.mxu0 %v9123
  %9125 = vmatprep.subr.mxu0 0.0
  %v9126 = vand.u32 %v76, 4294901760
  %9127 = vmatpush1.msra.mxu0 %v9126
  %9128 = vmatprep.subr.mxu0 0.0
  %v9129 = vand.u32 %v75, 4294901760
  %9130 = vmatpush1.msra.mxu0 %v9129
  %9131 = vmatprep.subr.mxu0 0.0
  %v9132 = vand.u32 %v74, 4294901760
  %9133 = vmatpush1.msra.mxu0 %v9132
  %9134 = vmatprep.subr.mxu0 0.0
  %v9135 = vand.u32 %v73, 4294901760
  %9136 = vmatpush1.msra.mxu0 %v9135
  %9137 = vmatprep.subr.mxu0 0.0
  %v9138 = vand.u32 %v72, 4294901760
  %9139 = vmatpush1.msra.mxu0 %v9138
  %9140 = vmatprep.subr.mxu0 0.0
  %v9141 = vand.u32 %v71, 4294901760
  %9142 = vmatpush1.msra.mxu0 %v9141
  %9143 = vmatprep.subr.mxu0 0.0
  %v9144 = vand.u32 %v70, 4294901760
  %9145 = vmatpush1.msra.mxu0 %v9144
  %9146 = vmatprep.subr.mxu0 0.0
  %v9147 = vand.u32 %v69, 4294901760
  %9148 = vmatpush1.msra.mxu0 %v9147
  %9149 = vmatprep.subr.mxu0 0.0
  %v9150 = vand.u32 %v68, 4294901760
  %9151 = vmatpush1.msra.mxu0 %v9150
  %9152 = vmatprep.subr.mxu0 0.0
  %v9153 = vand.u32 %v67, 4294901760
  %9154 = vmatpush1.msra.mxu0 %v9153
  %9155 = vmatprep.subr.mxu0 0.0
  %v9156 = vand.u32 %v66, 4294901760
  %9157 = vmatpush1.msra.mxu0 %v9156
  %9158 = vmatprep.subr.mxu0 0.0
  %v9159 = vand.u32 %v65, 4294901760
  %9160 = vmatpush1.msra.mxu0 %v9159
  %9161 = vmatprep.subr.mxu0 0.0
  %v9162 = vand.u32 %v64, 4294901760
  %9163 = vmatpush1.msra.mxu0 %v9162
  %9164 = vmatprep.subr.mxu0 0.0
  %v9165 = vand.u32 %v63, 4294901760
  %9166 = vmatpush1.msra.mxu0 %v9165
  %9167 = vmatprep.subr.mxu0 0.0
  %9168 = vmatpush2.msra.mxu0 0.0
  %9169 = vmatprep.subr.mxu0 0.0
  %9170 = vmatpush2.msra.mxu0 0.0
  %9171 = vmatprep.subr.mxu0 0.0
  %9172 = vmatpush2.msra.mxu0 0.0
  %9173 = vmatprep.subr.mxu0 0.0
  %9174 = vmatpush2.msra.mxu0 0.0
  %9175 = vmatprep.subr.mxu0 0.0
  %9176 = vmatpush2.msra.mxu0 0.0
  %9177 = vmatprep.subr.mxu0 0.0
  %9178 = vmatpush2.msra.mxu0 0.0
  %9179 = vmatprep.subr.mxu0 0.0
  %9180 = vmatpush2.msra.mxu0 0.0
  %9181 = vmatprep.subr.mxu0 0.0
  %9182 = vmatpush2.msra.mxu0 0.0
  %9183 = vmatprep.subr.mxu0 0.0
  %9184 = vmatpush2.msra.mxu0 0.0
  %9185 = vmatprep.subr.mxu0 0.0
  %9186 = vmatpush2.msra.mxu0 0.0
  %9187 = vmatprep.subr.mxu0 0.0
  %9188 = vmatpush2.msra.mxu0 0.0
  %9189 = vmatprep.subr.mxu0 0.0
  %9190 = vmatpush2.msra.mxu0 0.0
  %9191 = vmatprep.subr.mxu0 0.0
  %9192 = vmatpush2.msra.mxu0 0.0
  %9193 = vmatprep.subr.mxu0 0.0
  %9194 = vmatpush2.msra.mxu0 0.0
  %9195 = vmatprep.subr.mxu0 0.0
  %9196 = vmatpush2.msra.mxu0 0.0
  %9197 = vmatprep.subr.mxu0 0.0
  %9198 = vmatpush2.msra.mxu0 0.0
  %9199 = vmatprep.mubr.f32.mxu0 0.0
  %v9200 = vand.u32 %v8317, 4294901760
  %9201 = vmatmul.mubr.f32.gmra.mxu0 %v9200
  %v9202 = vpop.f32.mrf.mxu0
  %v9203 = vadd.f32 %v9080, %v9202
  %v9204 = vpop.f32.mrf.mxu0
  %9205 = vmatprep.mubr.f32.mxu0 0.0
  %v9206 = vand.u32 %v8318, 4294901760
  %9207 = vmatmul.mubr.f32.gmra.mxu0 %v9206
  %v9208 = vpop.f32.mrf.mxu0
  %v9209 = vadd.f32 %v9086, %v9208
  %v9210 = vpop.f32.mrf.mxu0
  %9211 = vmatprep.mubr.f32.mxu0 0.0
  %v9212 = vand.u32 %v8319, 4294901760
  %9213 = vmatmul.mubr.f32.gmra.mxu0 %v9212
  %v9214 = vpop.f32.mrf.mxu0
  %v9215 = vadd.f32 %v9092, %v9214
  %v9216 = vpop.f32.mrf.mxu0
  %9217 = vmatprep.mubr.f32.mxu0 0.0
  %v9218 = vand.u32 %v8320, 4294901760
  %9219 = vmatmul.mubr.f32.gmra.mxu0 %v9218
  %v9220 = vpop.f32.mrf.mxu0
  %v9221 = vadd.f32 %v9098, %v9220
  %v9222 = vpop.f32.mrf.mxu0
  %9223 = vmatprep.mubr.f32.mxu0 0.0
  %v9224 = vand.u32 %v8321, 4294901760
  %9225 = vmatmul.mubr.f32.gmra.mxu0 %v9224
  %v9226 = vpop.f32.mrf.mxu0
  %v9227 = vadd.f32 %v9104, %v9226
  %v9228 = vpop.f32.mrf.mxu0
  %9229 = vmatprep.mubr.f32.mxu0 0.0
  %v9230 = vand.u32 %v8322, 4294901760
  %9231 = vmatmul.mubr.f32.gmra.mxu0 %v9230
  %v9232 = vpop.f32.mrf.mxu0
  %v9233 = vadd.f32 %v9110, %v9232
  %v9234 = vpop.f32.mrf.mxu0
  %9235 = vmatprep.mubr.f32.mxu0 0.0
  %v9236 = vand.u32 %v8323, 4294901760
  %9237 = vmatmul.mubr.f32.gmra.mxu0 %v9236
  %v9238 = vpop.f32.mrf.mxu0
  %v9239 = vadd.f32 %v9116, %v9238
  %v9240 = vpop.f32.mrf.mxu0
  %9241 = vdwg.mxu0
  %9242 = vmax.xlane.f32.xlu0 %v9203
  %v9243 = vpop.xlane.xlu0 %9242
  %9244 = vmax.xlane.f32.xlu0 %v9209
  %v9245 = vpop.xlane.xlu0 %9244
  %9246 = vmax.xlane.f32.xlu0 %v9215
  %v9247 = vpop.xlane.xlu0 %9246
  %9248 = vmax.xlane.f32.xlu0 %v9221
  %v9249 = vpop.xlane.xlu0 %9248
  %9250 = vmax.xlane.f32.xlu0 %v9227
  %v9251 = vpop.xlane.xlu0 %9250
  %9252 = vmax.xlane.f32.xlu0 %v9233
  %v9253 = vpop.xlane.xlu0 %9252
  %9254 = vmax.xlane.f32.xlu0 %v9239
  %v9255 = vpop.xlane.xlu0 %9254
  %v9256 = vsub.f32 %v9203, %v9243
  %v9257 = vsub.f32 %v9209, %v9245
  %v9258 = vsub.f32 %v9215, %v9247
  %v9259 = vsub.f32 %v9221, %v9249
  %v9260 = vsub.f32 %v9227, %v9251
  %v9261 = vsub.f32 %v9233, %v9253
  %v9262 = vsub.f32 %v9239, %v9255
  %v9263 = vmul.f32 %v9256, 1.442695
  %v9264 = vpow.pop %v9263
  %v9265 = vmul.f32 %v9257, 1.442695
  %v9266 = vpow.pop %v9265
  %v9267 = vmul.f32 %v9258, 1.442695
  %v9268 = vpow.pop %v9267
  %v9269 = vmul.f32 %v9259, 1.442695
  %v9270 = vpow.pop %v9269
  %v9271 = vmul.f32 %v9260, 1.442695
  %v9272 = vpow.pop %v9271
  %v9273 = vmul.f32 %v9261, 1.442695
  %v9274 = vpow.pop %v9273
  %v9275 = vmul.f32 %v9262, 1.442695
  %v9276 = vpow.pop %v9275
  %9277 = vadd.xlane.f32.xlu0 %v9264
  %v9278 = vpop.xlane.xlu0 %9277
  %9279 = vadd.xlane.f32.xlu0 %v9266
  %v9280 = vpop.xlane.xlu0 %9279
  %9281 = vadd.xlane.f32.xlu0 %v9268
  %v9282 = vpop.xlane.xlu0 %9281
  %9283 = vadd.xlane.f32.xlu0 %v9270
  %v9284 = vpop.xlane.xlu0 %9283
  %9285 = vadd.xlane.f32.xlu0 %v9272
  %v9286 = vpop.xlane.xlu0 %9285
  %9287 = vadd.xlane.f32.xlu0 %v9274
  %v9288 = vpop.xlane.xlu0 %9287
  %9289 = vadd.xlane.f32.xlu0 %v9276
  %v9290 = vpop.xlane.xlu0 %9289
  %v9291 = vrcp.pop %v9278
  %v9292 = vrcp.pop %v9280
  %v9293 = vrcp.pop %v9282
  %v9294 = vrcp.pop %v9284
  %v9295 = vrcp.pop %v9286
  %v9296 = vrcp.pop %v9288
  %v9297 = vrcp.pop %v9290
  %v9298 = vmul.f32 %v9264, %v9291
  %v9299 = vmul.f32 %v9266, %v9292
  %v9300 = vmul.f32 %v9268, %v9293
  %v9301 = vmul.f32 %v9270, %v9294
  %v9302 = vmul.f32 %v9272, %v9295
  %v9303 = vmul.f32 %v9274, %v9296
  %v9304 = vmul.f32 %v9276, %v9297
  %s9305 = scalar_lea.vmem %s8, 8
  %9306 = vst [vmem:[%s9305] sm:$0xff] %v9298
  %9307 = vst [vmem:[%s9305 + $0x8] sm:$0xff] %v9299
  %9308 = vst [vmem:[%s9305 + $0x10] sm:$0xff] %v9300
  %9309 = vst [vmem:[%s9305 + $0x18] sm:$0xff] %v9301
  %9310 = vst [vmem:[%s9305 + $0x20] sm:$0xff] %v9302
  %9311 = vst [vmem:[%s9305 + $0x28] sm:$0xff] %v9303
  %9312 = vst [vmem:[%s9305 + $0x30] sm:$0xff] %v9304
  // Predicated region
  $region34: #{elman_rnn_pred_feedback.1} parent=0 // pred_check
    _
  $region35: #{elman_rnn_pred_feedback.1} parent=0 // pred_check_branch
    %9314 = sbr.rel (0) target = $region37
  $region36: #{elman_rnn_pred_feedback.1} parent=0 // pred_region
    _
  $region37: #{elman_rnn_pred_feedback.1} parent=0 // pred_fallthru
    _
  // Predicated region
  $region38: #{elman_rnn_pred_feedback.1} parent=0 // pred_check
    _
  $region39: #{elman_rnn_pred_feedback.1} parent=0 // pred_check_branch
    %9316 = sbr.rel (0) target = $region41
  $region40: #{elman_rnn_pred_feedback.1} parent=0 // pred_region
    _
  $region41: #{elman_rnn_pred_feedback.1} parent=0 // pred_fallthru
    _
  // Predicated region
  $region42: #{elman_rnn_pred_feedback.1} parent=0 // pred_check
    _
  $region43: #{elman_rnn_pred_feedback.1} parent=0 // pred_check_branch
    %9318 = sbr.rel (0) target = $region45
  $region44: #{elman_rnn_pred_feedback.1} parent=0 // pred_region
    _
  $region45: #{elman_rnn_pred_feedback.1} parent=0 // pred_fallthru
    _
  // Predicated region
  $region46: #{elman_rnn_pred_feedback.1} parent=0 // pred_check
    _
  $region47: #{elman_rnn_pred_feedback.1} parent=0 // pred_check_branch
    %9320 = sbr.rel (0) target = $region49
  $region48: #{elman_rnn_pred_feedback.1} parent=0 // pred_region
    _
  $region49: #{elman_rnn_pred_feedback.1} parent=0 // pred_fallthru
    _

</llo_original>
